<compile_context>
chip_gen: v5e
topology: v5e:2x2
jax: 0.10.0
libtpu: 0.0.40
codegen_flags: <defaults>
</compile_context>

<pallas_src>
import math
import jax
import jax.numpy as jnp
from jax import lax
from jax.experimental import pallas as pl
from jax.experimental.pallas import tpu as pltpu

# ---- synthetic "bert-base"-style config (small) ----
B = 8                 # total batch = num_queries * per_sample_tot
PER_SAMPLE_TOT = 4    # args.per_sample_tot
S = 8                 # sequence length
H = 128               # hidden size
NH = 4                # attention heads
DH = H // NH          # head dim
FF = 512              # FFN intermediate
LAYERS = 2
VOCAB = 64
LN_EPS = 1e-12
USE_PARA_SCORE = True # args.use_para_score


def _layer_norm(z, g, b):
    mu = jnp.mean(z, axis=-1, keepdims=True)
    var = jnp.mean(jnp.square(z - mu), axis=-1, keepdims=True)
    return (z - mu) * lax.rsqrt(var + LN_EPS) * g + b


# --------------------------------------------------------------------------
# Fused kernel: embeddings -> LAYERS encoder layers -> pooler -> linear head
# --------------------------------------------------------------------------
def ranker_kernel(ids_ref, mask_ref, para_ref,
                  wemb_ref, pos_ref, embg_ref, embb_ref,
                  wqkv_ref, bqkv_ref, wo_ref, bo_ref, g1_ref, be1_ref,
                  w1_ref, b1_ref, w2_ref, b2_ref, g2_ref, be2_ref,
                  wp_ref, bp_ref, wlh_ref, wlp_ref, bl_ref,
                  out_ref):
    BS = B * S
    scale = 1.0 / math.sqrt(DH)

    # ---- embeddings: token gather as one-hot matmul (MXU) + pos/type add + LayerNorm ----
    ids = ids_ref[...]                                                # (B*S, 1) int32
    vocab_iota = lax.broadcasted_iota(jnp.int32, (BS, VOCAB), 1)
    onehot = (vocab_iota == ids).astype(jnp.bfloat16)                 # (B*S, VOCAB)
    x = jnp.dot(onehot, wemb_ref[...],
                preferred_element_type=jnp.float32) + pos_ref[...]    # (B*S, H) f32
    x = _layer_norm(x, embg_ref[...], embb_ref[...])

    mask = mask_ref[...]                                              # (B, 1, S) additive mask

    # ---- encoder layers (static unroll; all weights VMEM-resident) ----
    for l in range(LAYERS):
        xb = x.astype(jnp.bfloat16)
        qkv = (jnp.dot(xb, wqkv_ref[l], preferred_element_type=jnp.float32)
               + bqkv_ref[l]).reshape(B, S, 3 * H)                    # (B, S, 3H) f32

        ctx_heads = []
        for h in range(NH):                                           # static unroll over heads
            q = qkv[:, :, h * DH:(h + 1) * DH].astype(jnp.bfloat16)            # (B, S, DH)
            k = qkv[:, :, H + h * DH:H + (h + 1) * DH].astype(jnp.bfloat16)
            v = qkv[:, :, 2 * H + h * DH:2 * H + (h + 1) * DH].astype(jnp.bfloat16)
            s = jnp.einsum('bqd,bkd->bqk', q, k,
                           preferred_element_type=jnp.float32) * scale + mask  # (B, S, S) f32
            m = jnp.max(s, axis=-1, keepdims=True)
            e = jnp.exp(s - m)
            p = e * pl.reciprocal(jnp.sum(e, axis=-1, keepdims=True), approx=True)
            ctx = jnp.einsum('bqk,bkd->bqd', p.astype(jnp.bfloat16), v,
                             preferred_element_type=jnp.float32)               # (B, S, DH)
            ctx_heads.append(ctx)

        # concat-of-heads -> single wide (K=128) output projection
        ctx_all = jnp.concatenate(ctx_heads, axis=-1).reshape(BS, H).astype(jnp.bfloat16)
        attn = jnp.dot(ctx_all, wo_ref[l], preferred_element_type=jnp.float32) + bo_ref[l]
        h1 = _layer_norm(x + attn, g1_ref[l], be1_ref[l])                       # (B*S, H) f32

        f = jnp.dot(h1.astype(jnp.bfloat16), w1_ref[l],
                    preferred_element_type=jnp.float32) + b1_ref[l]             # (B*S, FF)
        # TODO(synk): HF BERT uses exact erf GELU; tanh approximation used here (small drift)
        f = jax.nn.gelu(f, approximate=True)
        f = jnp.dot(f.astype(jnp.bfloat16), w2_ref[l],
                    preferred_element_type=jnp.float32) + b2_ref[l]             # (B*S, H)
        x = _layer_norm(h1 + f, g2_ref[l], be2_ref[l])

    # ---- pooler (tanh(CLS @ Wp + bp)), dropout = identity at eval, cat(para) + Linear ----
    cls = x.reshape(B, S, H)[:, 0, :]                                           # (B, H)
    pooled = jnp.tanh(jnp.dot(cls.astype(jnp.bfloat16), wp_ref[...],
                              preferred_element_type=jnp.float32) + bp_ref[...])
    # cat([pooled, para], 1) @ W.T + b  ==  sum(pooled * w_h) + para * w_p + b
    logits = (jnp.sum(pooled * wlh_ref[...], axis=-1, keepdims=True)
              + para_ref[...] * wlp_ref[...] + bl_ref[...])                     # (B, 1)
    out_ref[...] = logits


# --------------------------------------------------------------------------
# Parameter init (deterministic, BERT-style 0.02 std) — synthetic, no checkpoint load
# --------------------------------------------------------------------------
def init_params(key):
    std = 0.02
    keys = iter(jax.random.split(key, 64))
    bf = jnp.bfloat16

    def nrm(shape, dtype=jnp.float32):
        return (std * jax.random.normal(next(keys), shape, jnp.float32)).astype(dtype)

    pos_emb = nrm((S, H))
    type_emb = nrm((2, H))
    L = LAYERS
    return {
        # embeddings (word table bf16 for MXU gather; pos+type pre-tiled to (B*S, H) f32)
        "wemb": nrm((VOCAB, H), bf),
        "pos_plus": jnp.tile(pos_emb, (B, 1)) + type_emb[0][None, :],
        "emb_g": jnp.ones((1, H), jnp.float32),
        "emb_b": jnp.zeros((1, H), jnp.float32),
        # per-layer weights stacked on a leading layer axis, bf16 matmul operands
        "wqkv": nrm((L, H, 3 * H), bf),
        "bqkv": jnp.zeros((L, 1, 3 * H), jnp.float32),
        "wo": nrm((L, H, H), bf),
        "bo": jnp.zeros((L, 1, H), jnp.float32),
        "g1": jnp.ones((L, 1, H), jnp.float32),
        "be1": jnp.zeros((L, 1, H), jnp.float32),
        "w1": nrm((L, H, FF), bf),
        "b1": jnp.zeros((L, 1, FF), jnp.float32),
        "w2": nrm((L, FF, H), bf),
        "b2": jnp.zeros((L, 1, H), jnp.float32),
        "g2": jnp.ones((L, 1, H), jnp.float32),
        "be2": jnp.zeros((L, 1, H), jnp.float32),
        # BERT pooler dense + nn.Linear(H + 1, 1) split into hidden / para-score parts
        "wp": nrm((H, H), bf),
        "bp": jnp.zeros((1, H), jnp.float32),
        "wlh": nrm((1, H)),
        "wlp": nrm((1, 1)),
        "bl": jnp.zeros((1, 1), jnp.float32),
    }


# --------------------------------------------------------------------------
# Ranker.forward
# --------------------------------------------------------------------------
def ranker_forward(params, input_ids, attention_mask, para_score):
    ids = input_ids.reshape(B * S, 1).astype(jnp.int32)
    # additive attention mask, (B, 1, S); BERT convention of -10000.0
    mask_add = (1.0 - attention_mask.astype(jnp.float32))[:, None, :] * -10000.0
    para = para_score.astype(jnp.float32)[:, None]                    # para_score.unsqueeze(1)
    if not USE_PARA_SCORE:
        para = jnp.zeros_like(para)   # TODO(synk): drop the para feature column entirely if unused

    logits = pl.pallas_call(
        ranker_kernel,
        out_shape=jax.ShapeDtypeStruct((B, 1), jnp.float32),
        compiler_params=pltpu.CompilerParams(vmem_limit_bytes=32 * 1024 * 1024),
    )(ids, mask_add, para,
      params["wemb"], params["pos_plus"], params["emb_g"], params["emb_b"],
      params["wqkv"], params["bqkv"], params["wo"], params["bo"],
      params["g1"], params["be1"], params["w1"], params["b1"],
      params["w2"], params["b2"], params["g2"], params["be2"],
      params["wp"], params["bp"], params["wlh"], params["wlp"], params["bl"])

    return logits.reshape(-1, PER_SAMPLE_TOT)        # (B / per_sample_tot, per_sample_tot)


if __name__ == "__main__":
    key = jax.random.PRNGKey(0)
    kp, ki, kpara = jax.random.split(key, 3)
    params = init_params(kp)

    input_ids = jax.random.randint(ki, (B, S), 0, VOCAB, dtype=jnp.int32)
    attention_mask = jnp.ones((B, S), jnp.int32).at[B // 2:, S - 1].set(0)
    para_score = jax.random.normal(kpara, (B,), jnp.float32)

    out = jax.jit(ranker_forward)(params, input_ids, attention_mask, para_score)
    out = jax.block_until_ready(out)
    assert out.shape == (B // PER_SAMPLE_TOT, PER_SAMPLE_TOT)
    assert out.dtype == jnp.float32
    print("KERNEL_OK")
</pallas_src>

<mosaic_0001>
module attributes {stable_mosaic.version = 11 : i64} {
  func.func @ranker_kernel(%arg0: memref<64x1xi32, #tpu.memory_space<vmem>>, %arg1: memref<8x1x8xf32, #tpu.memory_space<vmem>>, %arg2: memref<8x1xf32, #tpu.memory_space<vmem>>, %arg3: memref<64x128xbf16, #tpu.memory_space<vmem>>, %arg4: memref<64x128xf32, #tpu.memory_space<vmem>>, %arg5: memref<1x128xf32, #tpu.memory_space<vmem>>, %arg6: memref<1x128xf32, #tpu.memory_space<vmem>>, %arg7: memref<2x128x384xbf16, #tpu.memory_space<vmem>>, %arg8: memref<2x1x384xf32, #tpu.memory_space<vmem>>, %arg9: memref<2x128x128xbf16, #tpu.memory_space<vmem>>, %arg10: memref<2x1x128xf32, #tpu.memory_space<vmem>>, %arg11: memref<2x1x128xf32, #tpu.memory_space<vmem>>, %arg12: memref<2x1x128xf32, #tpu.memory_space<vmem>>, %arg13: memref<2x128x512xbf16, #tpu.memory_space<vmem>>, %arg14: memref<2x1x512xf32, #tpu.memory_space<vmem>>, %arg15: memref<2x512x128xbf16, #tpu.memory_space<vmem>>, %arg16: memref<2x1x128xf32, #tpu.memory_space<vmem>>, %arg17: memref<2x1x128xf32, #tpu.memory_space<vmem>>, %arg18: memref<2x1x128xf32, #tpu.memory_space<vmem>>, %arg19: memref<128x128xbf16, #tpu.memory_space<vmem>>, %arg20: memref<1x128xf32, #tpu.memory_space<vmem>>, %arg21: memref<1x128xf32, #tpu.memory_space<vmem>>, %arg22: memref<1x1xf32, #tpu.memory_space<vmem>>, %arg23: memref<1x1xf32, #tpu.memory_space<vmem>>, %arg24: memref<8x1xf32, #tpu.memory_space<vmem>>) attributes {dimension_semantics = [], scalar_prefetch = 0 : i64, scratch_operands = 0 : i64, tpu.core_type = #tpu.core_type<tc>} {
    %c0 = arith.constant 0 : index
    %c0_0 = arith.constant 0 : index
    %0 = vector.load %arg0[%c0, %c0_0] : memref<64x1xi32, #tpu.memory_space<vmem>>, vector<64x1xi32>
    %1 = tpu.iota {dimensions = array<i32: 1>} : vector<64x64xi32>
    %2 = vector.broadcast %0 : vector<64x1xi32> to vector<64x64xi32>
    %3 = arith.cmpi eq, %1, %2 : vector<64x64xi32>
    %4 = arith.extui %3 : vector<64x64xi1> to vector<64x64xi32>
    %5 = arith.sitofp %4 : vector<64x64xi32> to vector<64x64xf32>
    %6 = arith.truncf %5 : vector<64x64xf32> to vector<64x64xbf16>
    %c0_1 = arith.constant 0 : index
    %c0_2 = arith.constant 0 : index
    %7 = vector.load %arg3[%c0_1, %c0_2] : memref<64x128xbf16, #tpu.memory_space<vmem>>, vector<64x128xbf16>
    %cst = arith.constant dense<0.000000e+00> : vector<64x128xf32>
    %8 = tpu.matmul %6, %7, %cst {dimension_numbers = #tpu.dot_dimension_numbers<[1], [0], [0], [1], [0, 0, 1, 1], [], []>} : vector<64x64xbf16>, vector<64x128xbf16>, vector<64x128xf32> -> vector<64x128xf32>
    %c0_3 = arith.constant 0 : index
    %c0_4 = arith.constant 0 : index
    %9 = vector.load %arg4[%c0_3, %c0_4] : memref<64x128xf32, #tpu.memory_space<vmem>>, vector<64x128xf32>
    %10 = arith.addf %8, %9 : vector<64x128xf32>
    %c0_5 = arith.constant 0 : index
    %c0_6 = arith.constant 0 : index
    %11 = vector.load %arg5[%c0_5, %c0_6] : memref<1x128xf32, #tpu.memory_space<vmem>>, vector<1x128xf32>
    %c0_7 = arith.constant 0 : index
    %c0_8 = arith.constant 0 : index
    %12 = vector.load %arg6[%c0_7, %c0_8] : memref<1x128xf32, #tpu.memory_space<vmem>>, vector<1x128xf32>
    %cst_9 = arith.constant dense<0.000000e+00> : vector<64xf32>
    %13 = vector.multi_reduction <add>, %10, %cst_9 [1] : vector<64x128xf32> to vector<64xf32>
    %14 = vector.shape_cast %13 : vector<64xf32> to vector<64x1xf32>
    %cst_10 = arith.constant 1.280000e+02 : f32
    %15 = vector.broadcast %cst_10 : f32 to vector<64x1xf32>
    %16 = arith.divf %14, %15 : vector<64x1xf32>
    %17 = vector.broadcast %16 : vector<64x1xf32> to vector<64x128xf32>
    %18 = arith.subf %10, %17 : vector<64x128xf32>
    %19 = arith.mulf %18, %18 : vector<64x128xf32>
    %cst_11 = arith.constant dense<0.000000e+00> : vector<64xf32>
    %20 = vector.multi_reduction <add>, %19, %cst_11 [1] : vector<64x128xf32> to vector<64xf32>
    %21 = vector.shape_cast %20 : vector<64xf32> to vector<64x1xf32>
    %cst_12 = arith.constant 1.280000e+02 : f32
    %22 = vector.broadcast %cst_12 : f32 to vector<64x1xf32>
    %23 = arith.divf %21, %22 : vector<64x1xf32>
    %24 = vector.broadcast %16 : vector<64x1xf32> to vector<64x128xf32>
    %25 = arith.subf %10, %24 : vector<64x128xf32>
    %cst_13 = arith.constant 9.99999996E-13 : f32
    %26 = vector.broadcast %cst_13 : f32 to vector<64x1xf32>
    %27 = arith.addf %23, %26 : vector<64x1xf32>
    %28 = math.rsqrt %27 : vector<64x1xf32>
    %29 = vector.broadcast %28 : vector<64x1xf32> to vector<64x128xf32>
    %30 = arith.mulf %25, %29 : vector<64x128xf32>
    %31 = vector.broadcast %11 : vector<1x128xf32> to vector<64x128xf32>
    %32 = arith.mulf %30, %31 : vector<64x128xf32>
    %33 = vector.broadcast %12 : vector<1x128xf32> to vector<64x128xf32>
    %34 = arith.addf %32, %33 : vector<64x128xf32>
    %c0_14 = arith.constant 0 : index
    %c0_15 = arith.constant 0 : index
    %c0_16 = arith.constant 0 : index
    %35 = vector.load %arg1[%c0_14, %c0_15, %c0_16] : memref<8x1x8xf32, #tpu.memory_space<vmem>>, vector<8x1x8xf32>
    %36 = arith.truncf %34 : vector<64x128xf32> to vector<64x128xbf16>
    %c0_17 = arith.constant 0 : index
    %c0_18 = arith.constant 0 : index
    %c0_19 = arith.constant 0 : index
    %37 = vector.load %arg7[%c0_17, %c0_18, %c0_19] : memref<2x128x384xbf16, #tpu.memory_space<vmem>>, vector<1x128x384xbf16>
    %38 = vector.shape_cast %37 : vector<1x128x384xbf16> to vector<128x384xbf16>
    %cst_20 = arith.constant dense<0.000000e+00> : vector<64x384xf32>
    %39 = tpu.matmul %36, %38, %cst_20 {dimension_numbers = #tpu.dot_dimension_numbers<[1], [0], [0], [1], [0, 0, 1, 1], [], []>} : vector<64x128xbf16>, vector<128x384xbf16>, vector<64x384xf32> -> vector<64x384xf32>
    %c0_21 = arith.constant 0 : index
    %c0_22 = arith.constant 0 : index
    %c0_23 = arith.constant 0 : index
    %40 = vector.load %arg8[%c0_21, %c0_22, %c0_23] : memref<2x1x384xf32, #tpu.memory_space<vmem>>, vector<1x1x384xf32>
    %41 = vector.shape_cast %40 : vector<1x1x384xf32> to vector<1x384xf32>
    %42 = vector.broadcast %41 : vector<1x384xf32> to vector<64x384xf32>
    %43 = arith.addf %39, %42 : vector<64x384xf32>
    %44 = vector.shape_cast %43 : vector<64x384xf32> to vector<8x8x384xf32>
    %45 = vector.extract_strided_slice %44 {offsets = [0, 0, 0], sizes = [8, 8, 32], strides = [1, 1, 1]} : vector<8x8x384xf32> to vector<8x8x32xf32>
    %46 = arith.truncf %45 : vector<8x8x32xf32> to vector<8x8x32xbf16>
    %47 = vector.extract_strided_slice %44 {offsets = [0, 0, 128], sizes = [8, 8, 32], strides = [1, 1, 1]} : vector<8x8x384xf32> to vector<8x8x32xf32>
    %48 = arith.truncf %47 : vector<8x8x32xf32> to vector<8x8x32xbf16>
    %49 = vector.extract_strided_slice %44 {offsets = [0, 0, 256], sizes = [8, 8, 32], strides = [1, 1, 1]} : vector<8x8x384xf32> to vector<8x8x32xf32>
    %50 = arith.truncf %49 : vector<8x8x32xf32> to vector<8x8x32xbf16>
    "tpu.trace_start"() <{level = 10 : i32, message = "bqd,bkd->bqk"}> : () -> ()
    %cst_24 = arith.constant dense<0.000000e+00> : vector<8x8x8xf32>
    %51 = tpu.matmul %46, %48, %cst_24 {dimension_numbers = #tpu.dot_dimension_numbers<[2], [2], [1], [1], [0, 0, 0, 1, 1, 1], [0], [0]>} : vector<8x8x32xbf16>, vector<8x8x32xbf16>, vector<8x8x8xf32> -> vector<8x8x8xf32>
    "tpu.trace_stop"() : () -> ()
    %cst_25 = arith.constant 0.176776692 : f32
    %52 = vector.broadcast %cst_25 : f32 to vector<8x8x8xf32>
    %53 = arith.mulf %51, %52 : vector<8x8x8xf32>
    %54 = vector.broadcast %35 : vector<8x1x8xf32> to vector<8x8x8xf32>
    %55 = arith.addf %53, %54 : vector<8x8x8xf32>
    %cst_26 = arith.constant dense<0xFF800000> : vector<8x8xf32>
    %56 = vector.multi_reduction <maximumf>, %55, %cst_26 [2] : vector<8x8x8xf32> to vector<8x8xf32>
    %57 = vector.shape_cast %56 : vector<8x8xf32> to vector<8x8x1xf32>
    %58 = vector.broadcast %57 : vector<8x8x1xf32> to vector<8x8x8xf32>
    %59 = arith.subf %55, %58 : vector<8x8x8xf32>
    %60 = math.exp %59 : vector<8x8x8xf32>
    %cst_27 = arith.constant dense<0.000000e+00> : vector<8x8xf32>
    %61 = vector.multi_reduction <add>, %60, %cst_27 [2] : vector<8x8x8xf32> to vector<8x8xf32>
    %62 = vector.shape_cast %61 : vector<8x8xf32> to vector<8x8x1xf32>
    %63 = tpu.reciprocal %62 {approx = true} : vector<8x8x1xf32> -> vector<8x8x1xf32>
    %64 = vector.broadcast %63 : vector<8x8x1xf32> to vector<8x8x8xf32>
    %65 = arith.mulf %60, %64 : vector<8x8x8xf32>
    %66 = arith.truncf %65 : vector<8x8x8xf32> to vector<8x8x8xbf16>
    "tpu.trace_start"() <{level = 10 : i32, message = "bqk,bkd->bqd"}> : () -> ()
    %cst_28 = arith.constant dense<0.000000e+00> : vector<8x8x32xf32>
    %67 = tpu.matmul %66, %50, %cst_28 {dimension_numbers = #tpu.dot_dimension_numbers<[2], [1], [1], [2], [0, 0, 0, 1, 1, 2], [0], [0]>} : vector<8x8x8xbf16>, vector<8x8x32xbf16>, vector<8x8x32xf32> -> vector<8x8x32xf32>
    "tpu.trace_stop"() : () -> ()
    %68 = vector.extract_strided_slice %44 {offsets = [0, 0, 32], sizes = [8, 8, 32], strides = [1, 1, 1]} : vector<8x8x384xf32> to vector<8x8x32xf32>
    %69 = arith.truncf %68 : vector<8x8x32xf32> to vector<8x8x32xbf16>
    %70 = vector.extract_strided_slice %44 {offsets = [0, 0, 160], sizes = [8, 8, 32], strides = [1, 1, 1]} : vector<8x8x384xf32> to vector<8x8x32xf32>
    %71 = arith.truncf %70 : vector<8x8x32xf32> to vector<8x8x32xbf16>
    %72 = vector.extract_strided_slice %44 {offsets = [0, 0, 288], sizes = [8, 8, 32], strides = [1, 1, 1]} : vector<8x8x384xf32> to vector<8x8x32xf32>
    %73 = arith.truncf %72 : vector<8x8x32xf32> to vector<8x8x32xbf16>
    "tpu.trace_start"() <{level = 10 : i32, message = "bqd,bkd->bqk"}> : () -> ()
    %cst_29 = arith.constant dense<0.000000e+00> : vector<8x8x8xf32>
    %74 = tpu.matmul %69, %71, %cst_29 {dimension_numbers = #tpu.dot_dimension_numbers<[2], [2], [1], [1], [0, 0, 0, 1, 1, 1], [0], [0]>} : vector<8x8x32xbf16>, vector<8x8x32xbf16>, vector<8x8x8xf32> -> vector<8x8x8xf32>
    "tpu.trace_stop"() : () -> ()
    %cst_30 = arith.constant 0.176776692 : f32
    %75 = vector.broadcast %cst_30 : f32 to vector<8x8x8xf32>
    %76 = arith.mulf %74, %75 : vector<8x8x8xf32>
    %77 = vector.broadcast %35 : vector<8x1x8xf32> to vector<8x8x8xf32>
    %78 = arith.addf %76, %77 : vector<8x8x8xf32>
    %cst_31 = arith.constant dense<0xFF800000> : vector<8x8xf32>
    %79 = vector.multi_reduction <maximumf>, %78, %cst_31 [2] : vector<8x8x8xf32> to vector<8x8xf32>
    %80 = vector.shape_cast %79 : vector<8x8xf32> to vector<8x8x1xf32>
    %81 = vector.broadcast %80 : vector<8x8x1xf32> to vector<8x8x8xf32>
    %82 = arith.subf %78, %81 : vector<8x8x8xf32>
    %83 = math.exp %82 : vector<8x8x8xf32>
    %cst_32 = arith.constant dense<0.000000e+00> : vector<8x8xf32>
    %84 = vector.multi_reduction <add>, %83, %cst_32 [2] : vector<8x8x8xf32> to vector<8x8xf32>
    %85 = vector.shape_cast %84 : vector<8x8xf32> to vector<8x8x1xf32>
    %86 = tpu.reciprocal %85 {approx = true} : vector<8x8x1xf32> -> vector<8x8x1xf32>
    %87 = vector.broadcast %86 : vector<8x8x1xf32> to vector<8x8x8xf32>
    %88 = arith.mulf %83, %87 : vector<8x8x8xf32>
    %89 = arith.truncf %88 : vector<8x8x8xf32> to vector<8x8x8xbf16>
    "tpu.trace_start"() <{level = 10 : i32, message = "bqk,bkd->bqd"}> : () -> ()
    %cst_33 = arith.constant dense<0.000000e+00> : vector<8x8x32xf32>
    %90 = tpu.matmul %89, %73, %cst_33 {dimension_numbers = #tpu.dot_dimension_numbers<[2], [1], [1], [2], [0, 0, 0, 1, 1, 2], [0], [0]>} : vector<8x8x8xbf16>, vector<8x8x32xbf16>, vector<8x8x32xf32> -> vector<8x8x32xf32>
    "tpu.trace_stop"() : () -> ()
    %91 = vector.extract_strided_slice %44 {offsets = [0, 0, 64], sizes = [8, 8, 32], strides = [1, 1, 1]} : vector<8x8x384xf32> to vector<8x8x32xf32>
    %92 = arith.truncf %91 : vector<8x8x32xf32> to vector<8x8x32xbf16>
    %93 = vector.extract_strided_slice %44 {offsets = [0, 0, 192], sizes = [8, 8, 32], strides = [1, 1, 1]} : vector<8x8x384xf32> to vector<8x8x32xf32>
    %94 = arith.truncf %93 : vector<8x8x32xf32> to vector<8x8x32xbf16>
    %95 = vector.extract_strided_slice %44 {offsets = [0, 0, 320], sizes = [8, 8, 32], strides = [1, 1, 1]} : vector<8x8x384xf32> to vector<8x8x32xf32>
    %96 = arith.truncf %95 : vector<8x8x32xf32> to vector<8x8x32xbf16>
    "tpu.trace_start"() <{level = 10 : i32, message = "bqd,bkd->bqk"}> : () -> ()
    %cst_34 = arith.constant dense<0.000000e+00> : vector<8x8x8xf32>
    %97 = tpu.matmul %92, %94, %cst_34 {dimension_numbers = #tpu.dot_dimension_numbers<[2], [2], [1], [1], [0, 0, 0, 1, 1, 1], [0], [0]>} : vector<8x8x32xbf16>, vector<8x8x32xbf16>, vector<8x8x8xf32> -> vector<8x8x8xf32>
    "tpu.trace_stop"() : () -> ()
    %cst_35 = arith.constant 0.176776692 : f32
    %98 = vector.broadcast %cst_35 : f32 to vector<8x8x8xf32>
    %99 = arith.mulf %97, %98 : vector<8x8x8xf32>
    %100 = vector.broadcast %35 : vector<8x1x8xf32> to vector<8x8x8xf32>
    %101 = arith.addf %99, %100 : vector<8x8x8xf32>
    %cst_36 = arith.constant dense<0xFF800000> : vector<8x8xf32>
    %102 = vector.multi_reduction <maximumf>, %101, %cst_36 [2] : vector<8x8x8xf32> to vector<8x8xf32>
    %103 = vector.shape_cast %102 : vector<8x8xf32> to vector<8x8x1xf32>
    %104 = vector.broadcast %103 : vector<8x8x1xf32> to vector<8x8x8xf32>
    %105 = arith.subf %101, %104 : vector<8x8x8xf32>
    %106 = math.exp %105 : vector<8x8x8xf32>
    %cst_37 = arith.constant dense<0.000000e+00> : vector<8x8xf32>
    %107 = vector.multi_reduction <add>, %106, %cst_37 [2] : vector<8x8x8xf32> to vector<8x8xf32>
    %108 = vector.shape_cast %107 : vector<8x8xf32> to vector<8x8x1xf32>
    %109 = tpu.reciprocal %108 {approx = true} : vector<8x8x1xf32> -> vector<8x8x1xf32>
    %110 = vector.broadcast %109 : vector<8x8x1xf32> to vector<8x8x8xf32>
    %111 = arith.mulf %106, %110 : vector<8x8x8xf32>
    %112 = arith.truncf %111 : vector<8x8x8xf32> to vector<8x8x8xbf16>
    "tpu.trace_start"() <{level = 10 : i32, message = "bqk,bkd->bqd"}> : () -> ()
    %cst_38 = arith.constant dense<0.000000e+00> : vector<8x8x32xf32>
    %113 = tpu.matmul %112, %96, %cst_38 {dimension_numbers = #tpu.dot_dimension_numbers<[2], [1], [1], [2], [0, 0, 0, 1, 1, 2], [0], [0]>} : vector<8x8x8xbf16>, vector<8x8x32xbf16>, vector<8x8x32xf32> -> vector<8x8x32xf32>
    "tpu.trace_stop"() : () -> ()
    %114 = vector.extract_strided_slice %44 {offsets = [0, 0, 96], sizes = [8, 8, 32], strides = [1, 1, 1]} : vector<8x8x384xf32> to vector<8x8x32xf32>
    %115 = arith.truncf %114 : vector<8x8x32xf32> to vector<8x8x32xbf16>
    %116 = vector.extract_strided_slice %44 {offsets = [0, 0, 224], sizes = [8, 8, 32], strides = [1, 1, 1]} : vector<8x8x384xf32> to vector<8x8x32xf32>
    %117 = arith.truncf %116 : vector<8x8x32xf32> to vector<8x8x32xbf16>
    %118 = vector.extract_strided_slice %44 {offsets = [0, 0, 352], sizes = [8, 8, 32], strides = [1, 1, 1]} : vector<8x8x384xf32> to vector<8x8x32xf32>
    %119 = arith.truncf %118 : vector<8x8x32xf32> to vector<8x8x32xbf16>
    "tpu.trace_start"() <{level = 10 : i32, message = "bqd,bkd->bqk"}> : () -> ()
    %cst_39 = arith.constant dense<0.000000e+00> : vector<8x8x8xf32>
    %120 = tpu.matmul %115, %117, %cst_39 {dimension_numbers = #tpu.dot_dimension_numbers<[2], [2], [1], [1], [0, 0, 0, 1, 1, 1], [0], [0]>} : vector<8x8x32xbf16>, vector<8x8x32xbf16>, vector<8x8x8xf32> -> vector<8x8x8xf32>
    "tpu.trace_stop"() : () -> ()
    %cst_40 = arith.constant 0.176776692 : f32
    %121 = vector.broadcast %cst_40 : f32 to vector<8x8x8xf32>
    %122 = arith.mulf %120, %121 : vector<8x8x8xf32>
    %123 = vector.broadcast %35 : vector<8x1x8xf32> to vector<8x8x8xf32>
    %124 = arith.addf %122, %123 : vector<8x8x8xf32>
    %cst_41 = arith.constant dense<0xFF800000> : vector<8x8xf32>
    %125 = vector.multi_reduction <maximumf>, %124, %cst_41 [2] : vector<8x8x8xf32> to vector<8x8xf32>
    %126 = vector.shape_cast %125 : vector<8x8xf32> to vector<8x8x1xf32>
    %127 = vector.broadcast %126 : vector<8x8x1xf32> to vector<8x8x8xf32>
    %128 = arith.subf %124, %127 : vector<8x8x8xf32>
    %129 = math.exp %128 : vector<8x8x8xf32>
    %cst_42 = arith.constant dense<0.000000e+00> : vector<8x8xf32>
    %130 = vector.multi_reduction <add>, %129, %cst_42 [2] : vector<8x8x8xf32> to vector<8x8xf32>
    %131 = vector.shape_cast %130 : vector<8x8xf32> to vector<8x8x1xf32>
    %132 = tpu.reciprocal %131 {approx = true} : vector<8x8x1xf32> -> vector<8x8x1xf32>
    %133 = vector.broadcast %132 : vector<8x8x1xf32> to vector<8x8x8xf32>
    %134 = arith.mulf %129, %133 : vector<8x8x8xf32>
    %135 = arith.truncf %134 : vector<8x8x8xf32> to vector<8x8x8xbf16>
    "tpu.trace_start"() <{level = 10 : i32, message = "bqk,bkd->bqd"}> : () -> ()
    %cst_43 = arith.constant dense<0.000000e+00> : vector<8x8x32xf32>
    %136 = tpu.matmul %135, %119, %cst_43 {dimension_numbers = #tpu.dot_dimension_numbers<[2], [1], [1], [2], [0, 0, 0, 1, 1, 2], [0], [0]>} : vector<8x8x8xbf16>, vector<8x8x32xbf16>, vector<8x8x32xf32> -> vector<8x8x32xf32>
    "tpu.trace_stop"() : () -> ()
    %137 = tpu.concatenate %67, %90, %113, %136 in 2 : vector<8x8x32xf32>, vector<8x8x32xf32>, vector<8x8x32xf32>, vector<8x8x32xf32> -> vector<8x8x128xf32>
    %138 = vector.shape_cast %137 : vector<8x8x128xf32> to vector<64x128xf32>
    %139 = arith.truncf %138 : vector<64x128xf32> to vector<64x128xbf16>
    %c0_44 = arith.constant 0 : index
    %c0_45 = arith.constant 0 : index
    %c0_46 = arith.constant 0 : index
    %140 = vector.load %arg9[%c0_44, %c0_45, %c0_46] : memref<2x128x128xbf16, #tpu.memory_space<vmem>>, vector<1x128x128xbf16>
    %141 = vector.shape_cast %140 : vector<1x128x128xbf16> to vector<128x128xbf16>
    %cst_47 = arith.constant dense<0.000000e+00> : vector<64x128xf32>
    %142 = tpu.matmul %139, %141, %cst_47 {dimension_numbers = #tpu.dot_dimension_numbers<[1], [0], [0], [1], [0, 0, 1, 1], [], []>} : vector<64x128xbf16>, vector<128x128xbf16>, vector<64x128xf32> -> vector<64x128xf32>
    %c0_48 = arith.constant 0 : index
    %c0_49 = arith.constant 0 : index
    %c0_50 = arith.constant 0 : index
    %143 = vector.load %arg10[%c0_48, %c0_49, %c0_50] : memref<2x1x128xf32, #tpu.memory_space<vmem>>, vector<1x1x128xf32>
    %144 = vector.shape_cast %143 : vector<1x1x128xf32> to vector<1x128xf32>
    %145 = vector.broadcast %144 : vector<1x128xf32> to vector<64x128xf32>
    %146 = arith.addf %142, %145 : vector<64x128xf32>
    %147 = arith.addf %34, %146 : vector<64x128xf32>
    %c0_51 = arith.constant 0 : index
    %c0_52 = arith.constant 0 : index
    %c0_53 = arith.constant 0 : index
    %148 = vector.load %arg11[%c0_51, %c0_52, %c0_53] : memref<2x1x128xf32, #tpu.memory_space<vmem>>, vector<1x1x128xf32>
    %149 = vector.shape_cast %148 : vector<1x1x128xf32> to vector<1x128xf32>
    %c0_54 = arith.constant 0 : index
    %c0_55 = arith.constant 0 : index
    %c0_56 = arith.constant 0 : index
    %150 = vector.load %arg12[%c0_54, %c0_55, %c0_56] : memref<2x1x128xf32, #tpu.memory_space<vmem>>, vector<1x1x128xf32>
    %151 = vector.shape_cast %150 : vector<1x1x128xf32> to vector<1x128xf32>
    %cst_57 = arith.constant dense<0.000000e+00> : vector<64xf32>
    %152 = vector.multi_reduction <add>, %147, %cst_57 [1] : vector<64x128xf32> to vector<64xf32>
    %153 = vector.shape_cast %152 : vector<64xf32> to vector<64x1xf32>
    %cst_58 = arith.constant 1.280000e+02 : f32
    %154 = vector.broadcast %cst_58 : f32 to vector<64x1xf32>
    %155 = arith.divf %153, %154 : vector<64x1xf32>
    %156 = vector.broadcast %155 : vector<64x1xf32> to vector<64x128xf32>
    %157 = arith.subf %147, %156 : vector<64x128xf32>
    %158 = arith.mulf %157, %157 : vector<64x128xf32>
    %cst_59 = arith.constant dense<0.000000e+00> : vector<64xf32>
    %159 = vector.multi_reduction <add>, %158, %cst_59 [1] : vector<64x128xf32> to vector<64xf32>
    %160 = vector.shape_cast %159 : vector<64xf32> to vector<64x1xf32>
    %cst_60 = arith.constant 1.280000e+02 : f32
    %161 = vector.broadcast %cst_60 : f32 to vector<64x1xf32>
    %162 = arith.divf %160, %161 : vector<64x1xf32>
    %163 = vector.broadcast %155 : vector<64x1xf32> to vector<64x128xf32>
    %164 = arith.subf %147, %163 : vector<64x128xf32>
    %cst_61 = arith.constant 9.99999996E-13 : f32
    %165 = vector.broadcast %cst_61 : f32 to vector<64x1xf32>
    %166 = arith.addf %162, %165 : vector<64x1xf32>
    %167 = math.rsqrt %166 : vector<64x1xf32>
    %168 = vector.broadcast %167 : vector<64x1xf32> to vector<64x128xf32>
    %169 = arith.mulf %164, %168 : vector<64x128xf32>
    %170 = vector.broadcast %149 : vector<1x128xf32> to vector<64x128xf32>
    %171 = arith.mulf %169, %170 : vector<64x128xf32>
    %172 = vector.broadcast %151 : vector<1x128xf32> to vector<64x128xf32>
    %173 = arith.addf %171, %172 : vector<64x128xf32>
    %174 = arith.truncf %173 : vector<64x128xf32> to vector<64x128xbf16>
    %c0_62 = arith.constant 0 : index
    %c0_63 = arith.constant 0 : index
    %c0_64 = arith.constant 0 : index
    %175 = vector.load %arg13[%c0_62, %c0_63, %c0_64] : memref<2x128x512xbf16, #tpu.memory_space<vmem>>, vector<1x128x512xbf16>
    %176 = vector.shape_cast %175 : vector<1x128x512xbf16> to vector<128x512xbf16>
    %cst_65 = arith.constant dense<0.000000e+00> : vector<64x512xf32>
    %177 = tpu.matmul %174, %176, %cst_65 {dimension_numbers = #tpu.dot_dimension_numbers<[1], [0], [0], [1], [0, 0, 1, 1], [], []>} : vector<64x128xbf16>, vector<128x512xbf16>, vector<64x512xf32> -> vector<64x512xf32>
    %c0_66 = arith.constant 0 : index
    %c0_67 = arith.constant 0 : index
    %c0_68 = arith.constant 0 : index
    %178 = vector.load %arg14[%c0_66, %c0_67, %c0_68] : memref<2x1x512xf32, #tpu.memory_space<vmem>>, vector<1x1x512xf32>
    %179 = vector.shape_cast %178 : vector<1x1x512xf32> to vector<1x512xf32>
    %180 = vector.broadcast %179 : vector<1x512xf32> to vector<64x512xf32>
    %181 = arith.addf %177, %180 : vector<64x512xf32>
    %182 = arith.mulf %181, %181 : vector<64x512xf32>
    %183 = arith.mulf %181, %182 : vector<64x512xf32>
    %cst_69 = arith.constant 4.471500e-02 : f32
    %184 = vector.broadcast %cst_69 : f32 to vector<64x512xf32>
    %185 = arith.mulf %184, %183 : vector<64x512xf32>
    %186 = arith.addf %181, %185 : vector<64x512xf32>
    %cst_70 = arith.constant 0.797884583 : f32
    %187 = vector.broadcast %cst_70 : f32 to vector<64x512xf32>
    %188 = arith.mulf %187, %186 : vector<64x512xf32>
    %189 = math.tanh %188 : vector<64x512xf32>
    %cst_71 = arith.constant 1.000000e+00 : f32
    %190 = vector.broadcast %cst_71 : f32 to vector<64x512xf32>
    %191 = arith.addf %190, %189 : vector<64x512xf32>
    %cst_72 = arith.constant 5.000000e-01 : f32
    %192 = vector.broadcast %cst_72 : f32 to vector<64x512xf32>
    %193 = arith.mulf %192, %191 : vector<64x512xf32>
    %194 = arith.mulf %181, %193 : vector<64x512xf32>
    %195 = arith.truncf %194 : vector<64x512xf32> to vector<64x512xbf16>
    %c0_73 = arith.constant 0 : index
    %c0_74 = arith.constant 0 : index
    %c0_75 = arith.constant 0 : index
    %196 = vector.load %arg15[%c0_73, %c0_74, %c0_75] : memref<2x512x128xbf16, #tpu.memory_space<vmem>>, vector<1x512x128xbf16>
    %197 = vector.shape_cast %196 : vector<1x512x128xbf16> to vector<512x128xbf16>
    %cst_76 = arith.constant dense<0.000000e+00> : vector<64x128xf32>
    %198 = tpu.matmul %195, %197, %cst_76 {dimension_numbers = #tpu.dot_dimension_numbers<[1], [0], [0], [1], [0, 0, 1, 1], [], []>} : vector<64x512xbf16>, vector<512x128xbf16>, vector<64x128xf32> -> vector<64x128xf32>
    %c0_77 = arith.constant 0 : index
    %c0_78 = arith.constant 0 : index
    %c0_79 = arith.constant 0 : index
    %199 = vector.load %arg16[%c0_77, %c0_78, %c0_79] : memref<2x1x128xf32, #tpu.memory_space<vmem>>, vector<1x1x128xf32>
    %200 = vector.shape_cast %199 : vector<1x1x128xf32> to vector<1x128xf32>
    %201 = vector.broadcast %200 : vector<1x128xf32> to vector<64x128xf32>
    %202 = arith.addf %198, %201 : vector<64x128xf32>
    %203 = arith.addf %173, %202 : vector<64x128xf32>
    %c0_80 = arith.constant 0 : index
    %c0_81 = arith.constant 0 : index
    %c0_82 = arith.constant 0 : index
    %204 = vector.load %arg17[%c0_80, %c0_81, %c0_82] : memref<2x1x128xf32, #tpu.memory_space<vmem>>, vector<1x1x128xf32>
    %205 = vector.shape_cast %204 : vector<1x1x128xf32> to vector<1x128xf32>
    %c0_83 = arith.constant 0 : index
    %c0_84 = arith.constant 0 : index
    %c0_85 = arith.constant 0 : index
    %206 = vector.load %arg18[%c0_83, %c0_84, %c0_85] : memref<2x1x128xf32, #tpu.memory_space<vmem>>, vector<1x1x128xf32>
    %207 = vector.shape_cast %206 : vector<1x1x128xf32> to vector<1x128xf32>
    %cst_86 = arith.constant dense<0.000000e+00> : vector<64xf32>
    %208 = vector.multi_reduction <add>, %203, %cst_86 [1] : vector<64x128xf32> to vector<64xf32>
    %209 = vector.shape_cast %208 : vector<64xf32> to vector<64x1xf32>
    %cst_87 = arith.constant 1.280000e+02 : f32
    %210 = vector.broadcast %cst_87 : f32 to vector<64x1xf32>
    %211 = arith.divf %209, %210 : vector<64x1xf32>
    %212 = vector.broadcast %211 : vector<64x1xf32> to vector<64x128xf32>
    %213 = arith.subf %203, %212 : vector<64x128xf32>
    %214 = arith.mulf %213, %213 : vector<64x128xf32>
    %cst_88 = arith.constant dense<0.000000e+00> : vector<64xf32>
    %215 = vector.multi_reduction <add>, %214, %cst_88 [1] : vector<64x128xf32> to vector<64xf32>
    %216 = vector.shape_cast %215 : vector<64xf32> to vector<64x1xf32>
    %cst_89 = arith.constant 1.280000e+02 : f32
    %217 = vector.broadcast %cst_89 : f32 to vector<64x1xf32>
    %218 = arith.divf %216, %217 : vector<64x1xf32>
    %219 = vector.broadcast %211 : vector<64x1xf32> to vector<64x128xf32>
    %220 = arith.subf %203, %219 : vector<64x128xf32>
    %cst_90 = arith.constant 9.99999996E-13 : f32
    %221 = vector.broadcast %cst_90 : f32 to vector<64x1xf32>
    %222 = arith.addf %218, %221 : vector<64x1xf32>
    %223 = math.rsqrt %222 : vector<64x1xf32>
    %224 = vector.broadcast %223 : vector<64x1xf32> to vector<64x128xf32>
    %225 = arith.mulf %220, %224 : vector<64x128xf32>
    %226 = vector.broadcast %205 : vector<1x128xf32> to vector<64x128xf32>
    %227 = arith.mulf %225, %226 : vector<64x128xf32>
    %228 = vector.broadcast %207 : vector<1x128xf32> to vector<64x128xf32>
    %229 = arith.addf %227, %228 : vector<64x128xf32>
    %230 = arith.truncf %229 : vector<64x128xf32> to vector<64x128xbf16>
    %c1 = arith.constant 1 : index
    %c0_91 = arith.constant 0 : index
    %c0_92 = arith.constant 0 : index
    %231 = vector.load %arg7[%c1, %c0_91, %c0_92] : memref<2x128x384xbf16, #tpu.memory_space<vmem>>, vector<1x128x384xbf16>
    %232 = vector.shape_cast %231 : vector<1x128x384xbf16> to vector<128x384xbf16>
    %cst_93 = arith.constant dense<0.000000e+00> : vector<64x384xf32>
    %233 = tpu.matmul %230, %232, %cst_93 {dimension_numbers = #tpu.dot_dimension_numbers<[1], [0], [0], [1], [0, 0, 1, 1], [], []>} : vector<64x128xbf16>, vector<128x384xbf16>, vector<64x384xf32> -> vector<64x384xf32>
    %c1_94 = arith.constant 1 : index
    %c0_95 = arith.constant 0 : index
    %c0_96 = arith.constant 0 : index
    %234 = vector.load %arg8[%c1_94, %c0_95, %c0_96] : memref<2x1x384xf32, #tpu.memory_space<vmem>>, vector<1x1x384xf32>
    %235 = vector.shape_cast %234 : vector<1x1x384xf32> to vector<1x384xf32>
    %236 = vector.broadcast %235 : vector<1x384xf32> to vector<64x384xf32>
    %237 = arith.addf %233, %236 : vector<64x384xf32>
    %238 = vector.shape_cast %237 : vector<64x384xf32> to vector<8x8x384xf32>
    %239 = vector.extract_strided_slice %238 {offsets = [0, 0, 0], sizes = [8, 8, 32], strides = [1, 1, 1]} : vector<8x8x384xf32> to vector<8x8x32xf32>
    %240 = arith.truncf %239 : vector<8x8x32xf32> to vector<8x8x32xbf16>
    %241 = vector.extract_strided_slice %238 {offsets = [0, 0, 128], sizes = [8, 8, 32], strides = [1, 1, 1]} : vector<8x8x384xf32> to vector<8x8x32xf32>
    %242 = arith.truncf %241 : vector<8x8x32xf32> to vector<8x8x32xbf16>
    %243 = vector.extract_strided_slice %238 {offsets = [0, 0, 256], sizes = [8, 8, 32], strides = [1, 1, 1]} : vector<8x8x384xf32> to vector<8x8x32xf32>
    %244 = arith.truncf %243 : vector<8x8x32xf32> to vector<8x8x32xbf16>
    "tpu.trace_start"() <{level = 10 : i32, message = "bqd,bkd->bqk"}> : () -> ()
    %cst_97 = arith.constant dense<0.000000e+00> : vector<8x8x8xf32>
    %245 = tpu.matmul %240, %242, %cst_97 {dimension_numbers = #tpu.dot_dimension_numbers<[2], [2], [1], [1], [0, 0, 0, 1, 1, 1], [0], [0]>} : vector<8x8x32xbf16>, vector<8x8x32xbf16>, vector<8x8x8xf32> -> vector<8x8x8xf32>
    "tpu.trace_stop"() : () -> ()
    %cst_98 = arith.constant 0.176776692 : f32
    %246 = vector.broadcast %cst_98 : f32 to vector<8x8x8xf32>
    %247 = arith.mulf %245, %246 : vector<8x8x8xf32>
    %248 = vector.broadcast %35 : vector<8x1x8xf32> to vector<8x8x8xf32>
    %249 = arith.addf %247, %248 : vector<8x8x8xf32>
    %cst_99 = arith.constant dense<0xFF800000> : vector<8x8xf32>
    %250 = vector.multi_reduction <maximumf>, %249, %cst_99 [2] : vector<8x8x8xf32> to vector<8x8xf32>
    %251 = vector.shape_cast %250 : vector<8x8xf32> to vector<8x8x1xf32>
    %252 = vector.broadcast %251 : vector<8x8x1xf32> to vector<8x8x8xf32>
    %253 = arith.subf %249, %252 : vector<8x8x8xf32>
    %254 = math.exp %253 : vector<8x8x8xf32>
    %cst_100 = arith.constant dense<0.000000e+00> : vector<8x8xf32>
    %255 = vector.multi_reduction <add>, %254, %cst_100 [2] : vector<8x8x8xf32> to vector<8x8xf32>
    %256 = vector.shape_cast %255 : vector<8x8xf32> to vector<8x8x1xf32>
    %257 = tpu.reciprocal %256 {approx = true} : vector<8x8x1xf32> -> vector<8x8x1xf32>
    %258 = vector.broadcast %257 : vector<8x8x1xf32> to vector<8x8x8xf32>
    %259 = arith.mulf %254, %258 : vector<8x8x8xf32>
    %260 = arith.truncf %259 : vector<8x8x8xf32> to vector<8x8x8xbf16>
    "tpu.trace_start"() <{level = 10 : i32, message = "bqk,bkd->bqd"}> : () -> ()
    %cst_101 = arith.constant dense<0.000000e+00> : vector<8x8x32xf32>
    %261 = tpu.matmul %260, %244, %cst_101 {dimension_numbers = #tpu.dot_dimension_numbers<[2], [1], [1], [2], [0, 0, 0, 1, 1, 2], [0], [0]>} : vector<8x8x8xbf16>, vector<8x8x32xbf16>, vector<8x8x32xf32> -> vector<8x8x32xf32>
    "tpu.trace_stop"() : () -> ()
    %262 = vector.extract_strided_slice %238 {offsets = [0, 0, 32], sizes = [8, 8, 32], strides = [1, 1, 1]} : vector<8x8x384xf32> to vector<8x8x32xf32>
    %263 = arith.truncf %262 : vector<8x8x32xf32> to vector<8x8x32xbf16>
    %264 = vector.extract_strided_slice %238 {offsets = [0, 0, 160], sizes = [8, 8, 32], strides = [1, 1, 1]} : vector<8x8x384xf32> to vector<8x8x32xf32>
    %265 = arith.truncf %264 : vector<8x8x32xf32> to vector<8x8x32xbf16>
    %266 = vector.extract_strided_slice %238 {offsets = [0, 0, 288], sizes = [8, 8, 32], strides = [1, 1, 1]} : vector<8x8x384xf32> to vector<8x8x32xf32>
    %267 = arith.truncf %266 : vector<8x8x32xf32> to vector<8x8x32xbf16>
    "tpu.trace_start"() <{level = 10 : i32, message = "bqd,bkd->bqk"}> : () -> ()
    %cst_102 = arith.constant dense<0.000000e+00> : vector<8x8x8xf32>
    %268 = tpu.matmul %263, %265, %cst_102 {dimension_numbers = #tpu.dot_dimension_numbers<[2], [2], [1], [1], [0, 0, 0, 1, 1, 1], [0], [0]>} : vector<8x8x32xbf16>, vector<8x8x32xbf16>, vector<8x8x8xf32> -> vector<8x8x8xf32>
    "tpu.trace_stop"() : () -> ()
    %cst_103 = arith.constant 0.176776692 : f32
    %269 = vector.broadcast %cst_103 : f32 to vector<8x8x8xf32>
    %270 = arith.mulf %268, %269 : vector<8x8x8xf32>
    %271 = vector.broadcast %35 : vector<8x1x8xf32> to vector<8x8x8xf32>
    %272 = arith.addf %270, %271 : vector<8x8x8xf32>
    %cst_104 = arith.constant dense<0xFF800000> : vector<8x8xf32>
    %273 = vector.multi_reduction <maximumf>, %272, %cst_104 [2] : vector<8x8x8xf32> to vector<8x8xf32>
    %274 = vector.shape_cast %273 : vector<8x8xf32> to vector<8x8x1xf32>
    %275 = vector.broadcast %274 : vector<8x8x1xf32> to vector<8x8x8xf32>
    %276 = arith.subf %272, %275 : vector<8x8x8xf32>
    %277 = math.exp %276 : vector<8x8x8xf32>
    %cst_105 = arith.constant dense<0.000000e+00> : vector<8x8xf32>
    %278 = vector.multi_reduction <add>, %277, %cst_105 [2] : vector<8x8x8xf32> to vector<8x8xf32>
    %279 = vector.shape_cast %278 : vector<8x8xf32> to vector<8x8x1xf32>
    %280 = tpu.reciprocal %279 {approx = true} : vector<8x8x1xf32> -> vector<8x8x1xf32>
    %281 = vector.broadcast %280 : vector<8x8x1xf32> to vector<8x8x8xf32>
    %282 = arith.mulf %277, %281 : vector<8x8x8xf32>
    %283 = arith.truncf %282 : vector<8x8x8xf32> to vector<8x8x8xbf16>
    "tpu.trace_start"() <{level = 10 : i32, message = "bqk,bkd->bqd"}> : () -> ()
    %cst_106 = arith.constant dense<0.000000e+00> : vector<8x8x32xf32>
    %284 = tpu.matmul %283, %267, %cst_106 {dimension_numbers = #tpu.dot_dimension_numbers<[2], [1], [1], [2], [0, 0, 0, 1, 1, 2], [0], [0]>} : vector<8x8x8xbf16>, vector<8x8x32xbf16>, vector<8x8x32xf32> -> vector<8x8x32xf32>
    "tpu.trace_stop"() : () -> ()
    %285 = vector.extract_strided_slice %238 {offsets = [0, 0, 64], sizes = [8, 8, 32], strides = [1, 1, 1]} : vector<8x8x384xf32> to vector<8x8x32xf32>
    %286 = arith.truncf %285 : vector<8x8x32xf32> to vector<8x8x32xbf16>
    %287 = vector.extract_strided_slice %238 {offsets = [0, 0, 192], sizes = [8, 8, 32], strides = [1, 1, 1]} : vector<8x8x384xf32> to vector<8x8x32xf32>
    %288 = arith.truncf %287 : vector<8x8x32xf32> to vector<8x8x32xbf16>
    %289 = vector.extract_strided_slice %238 {offsets = [0, 0, 320], sizes = [8, 8, 32], strides = [1, 1, 1]} : vector<8x8x384xf32> to vector<8x8x32xf32>
    %290 = arith.truncf %289 : vector<8x8x32xf32> to vector<8x8x32xbf16>
    "tpu.trace_start"() <{level = 10 : i32, message = "bqd,bkd->bqk"}> : () -> ()
    %cst_107 = arith.constant dense<0.000000e+00> : vector<8x8x8xf32>
    %291 = tpu.matmul %286, %288, %cst_107 {dimension_numbers = #tpu.dot_dimension_numbers<[2], [2], [1], [1], [0, 0, 0, 1, 1, 1], [0], [0]>} : vector<8x8x32xbf16>, vector<8x8x32xbf16>, vector<8x8x8xf32> -> vector<8x8x8xf32>
    "tpu.trace_stop"() : () -> ()
    %cst_108 = arith.constant 0.176776692 : f32
    %292 = vector.broadcast %cst_108 : f32 to vector<8x8x8xf32>
    %293 = arith.mulf %291, %292 : vector<8x8x8xf32>
    %294 = vector.broadcast %35 : vector<8x1x8xf32> to vector<8x8x8xf32>
    %295 = arith.addf %293, %294 : vector<8x8x8xf32>
    %cst_109 = arith.constant dense<0xFF800000> : vector<8x8xf32>
    %296 = vector.multi_reduction <maximumf>, %295, %cst_109 [2] : vector<8x8x8xf32> to vector<8x8xf32>
    %297 = vector.shape_cast %296 : vector<8x8xf32> to vector<8x8x1xf32>
    %298 = vector.broadcast %297 : vector<8x8x1xf32> to vector<8x8x8xf32>
    %299 = arith.subf %295, %298 : vector<8x8x8xf32>
    %300 = math.exp %299 : vector<8x8x8xf32>
    %cst_110 = arith.constant dense<0.000000e+00> : vector<8x8xf32>
    %301 = vector.multi_reduction <add>, %300, %cst_110 [2] : vector<8x8x8xf32> to vector<8x8xf32>
    %302 = vector.shape_cast %301 : vector<8x8xf32> to vector<8x8x1xf32>
    %303 = tpu.reciprocal %302 {approx = true} : vector<8x8x1xf32> -> vector<8x8x1xf32>
    %304 = vector.broadcast %303 : vector<8x8x1xf32> to vector<8x8x8xf32>
    %305 = arith.mulf %300, %304 : vector<8x8x8xf32>
    %306 = arith.truncf %305 : vector<8x8x8xf32> to vector<8x8x8xbf16>
    "tpu.trace_start"() <{level = 10 : i32, message = "bqk,bkd->bqd"}> : () -> ()
    %cst_111 = arith.constant dense<0.000000e+00> : vector<8x8x32xf32>
    %307 = tpu.matmul %306, %290, %cst_111 {dimension_numbers = #tpu.dot_dimension_numbers<[2], [1], [1], [2], [0, 0, 0, 1, 1, 2], [0], [0]>} : vector<8x8x8xbf16>, vector<8x8x32xbf16>, vector<8x8x32xf32> -> vector<8x8x32xf32>
    "tpu.trace_stop"() : () -> ()
    %308 = vector.extract_strided_slice %238 {offsets = [0, 0, 96], sizes = [8, 8, 32], strides = [1, 1, 1]} : vector<8x8x384xf32> to vector<8x8x32xf32>
    %309 = arith.truncf %308 : vector<8x8x32xf32> to vector<8x8x32xbf16>
    %310 = vector.extract_strided_slice %238 {offsets = [0, 0, 224], sizes = [8, 8, 32], strides = [1, 1, 1]} : vector<8x8x384xf32> to vector<8x8x32xf32>
    %311 = arith.truncf %310 : vector<8x8x32xf32> to vector<8x8x32xbf16>
    %312 = vector.extract_strided_slice %238 {offsets = [0, 0, 352], sizes = [8, 8, 32], strides = [1, 1, 1]} : vector<8x8x384xf32> to vector<8x8x32xf32>
    %313 = arith.truncf %312 : vector<8x8x32xf32> to vector<8x8x32xbf16>
    "tpu.trace_start"() <{level = 10 : i32, message = "bqd,bkd->bqk"}> : () -> ()
    %cst_112 = arith.constant dense<0.000000e+00> : vector<8x8x8xf32>
    %314 = tpu.matmul %309, %311, %cst_112 {dimension_numbers = #tpu.dot_dimension_numbers<[2], [2], [1], [1], [0, 0, 0, 1, 1, 1], [0], [0]>} : vector<8x8x32xbf16>, vector<8x8x32xbf16>, vector<8x8x8xf32> -> vector<8x8x8xf32>
    "tpu.trace_stop"() : () -> ()
    %cst_113 = arith.constant 0.176776692 : f32
    %315 = vector.broadcast %cst_113 : f32 to vector<8x8x8xf32>
    %316 = arith.mulf %314, %315 : vector<8x8x8xf32>
    %317 = vector.broadcast %35 : vector<8x1x8xf32> to vector<8x8x8xf32>
    %318 = arith.addf %316, %317 : vector<8x8x8xf32>
    %cst_114 = arith.constant dense<0xFF800000> : vector<8x8xf32>
    %319 = vector.multi_reduction <maximumf>, %318, %cst_114 [2] : vector<8x8x8xf32> to vector<8x8xf32>
    %320 = vector.shape_cast %319 : vector<8x8xf32> to vector<8x8x1xf32>
    %321 = vector.broadcast %320 : vector<8x8x1xf32> to vector<8x8x8xf32>
    %322 = arith.subf %318, %321 : vector<8x8x8xf32>
    %323 = math.exp %322 : vector<8x8x8xf32>
    %cst_115 = arith.constant dense<0.000000e+00> : vector<8x8xf32>
    %324 = vector.multi_reduction <add>, %323, %cst_115 [2] : vector<8x8x8xf32> to vector<8x8xf32>
    %325 = vector.shape_cast %324 : vector<8x8xf32> to vector<8x8x1xf32>
    %326 = tpu.reciprocal %325 {approx = true} : vector<8x8x1xf32> -> vector<8x8x1xf32>
    %327 = vector.broadcast %326 : vector<8x8x1xf32> to vector<8x8x8xf32>
    %328 = arith.mulf %323, %327 : vector<8x8x8xf32>
    %329 = arith.truncf %328 : vector<8x8x8xf32> to vector<8x8x8xbf16>
    "tpu.trace_start"() <{level = 10 : i32, message = "bqk,bkd->bqd"}> : () -> ()
    %cst_116 = arith.constant dense<0.000000e+00> : vector<8x8x32xf32>
    %330 = tpu.matmul %329, %313, %cst_116 {dimension_numbers = #tpu.dot_dimension_numbers<[2], [1], [1], [2], [0, 0, 0, 1, 1, 2], [0], [0]>} : vector<8x8x8xbf16>, vector<8x8x32xbf16>, vector<8x8x32xf32> -> vector<8x8x32xf32>
    "tpu.trace_stop"() : () -> ()
    %331 = tpu.concatenate %261, %284, %307, %330 in 2 : vector<8x8x32xf32>, vector<8x8x32xf32>, vector<8x8x32xf32>, vector<8x8x32xf32> -> vector<8x8x128xf32>
    %332 = vector.shape_cast %331 : vector<8x8x128xf32> to vector<64x128xf32>
    %333 = arith.truncf %332 : vector<64x128xf32> to vector<64x128xbf16>
    %c1_117 = arith.constant 1 : index
    %c0_118 = arith.constant 0 : index
    %c0_119 = arith.constant 0 : index
    %334 = vector.load %arg9[%c1_117, %c0_118, %c0_119] : memref<2x128x128xbf16, #tpu.memory_space<vmem>>, vector<1x128x128xbf16>
    %335 = vector.shape_cast %334 : vector<1x128x128xbf16> to vector<128x128xbf16>
    %cst_120 = arith.constant dense<0.000000e+00> : vector<64x128xf32>
    %336 = tpu.matmul %333, %335, %cst_120 {dimension_numbers = #tpu.dot_dimension_numbers<[1], [0], [0], [1], [0, 0, 1, 1], [], []>} : vector<64x128xbf16>, vector<128x128xbf16>, vector<64x128xf32> -> vector<64x128xf32>
    %c1_121 = arith.constant 1 : index
    %c0_122 = arith.constant 0 : index
    %c0_123 = arith.constant 0 : index
    %337 = vector.load %arg10[%c1_121, %c0_122, %c0_123] : memref<2x1x128xf32, #tpu.memory_space<vmem>>, vector<1x1x128xf32>
    %338 = vector.shape_cast %337 : vector<1x1x128xf32> to vector<1x128xf32>
    %339 = vector.broadcast %338 : vector<1x128xf32> to vector<64x128xf32>
    %340 = arith.addf %336, %339 : vector<64x128xf32>
    %341 = arith.addf %229, %340 : vector<64x128xf32>
    %c1_124 = arith.constant 1 : index
    %c0_125 = arith.constant 0 : index
    %c0_126 = arith.constant 0 : index
    %342 = vector.load %arg11[%c1_124, %c0_125, %c0_126] : memref<2x1x128xf32, #tpu.memory_space<vmem>>, vector<1x1x128xf32>
    %343 = vector.shape_cast %342 : vector<1x1x128xf32> to vector<1x128xf32>
    %c1_127 = arith.constant 1 : index
    %c0_128 = arith.constant 0 : index
    %c0_129 = arith.constant 0 : index
    %344 = vector.load %arg12[%c1_127, %c0_128, %c0_129] : memref<2x1x128xf32, #tpu.memory_space<vmem>>, vector<1x1x128xf32>
    %345 = vector.shape_cast %344 : vector<1x1x128xf32> to vector<1x128xf32>
    %cst_130 = arith.constant dense<0.000000e+00> : vector<64xf32>
    %346 = vector.multi_reduction <add>, %341, %cst_130 [1] : vector<64x128xf32> to vector<64xf32>
    %347 = vector.shape_cast %346 : vector<64xf32> to vector<64x1xf32>
    %cst_131 = arith.constant 1.280000e+02 : f32
    %348 = vector.broadcast %cst_131 : f32 to vector<64x1xf32>
    %349 = arith.divf %347, %348 : vector<64x1xf32>
    %350 = vector.broadcast %349 : vector<64x1xf32> to vector<64x128xf32>
    %351 = arith.subf %341, %350 : vector<64x128xf32>
    %352 = arith.mulf %351, %351 : vector<64x128xf32>
    %cst_132 = arith.constant dense<0.000000e+00> : vector<64xf32>
    %353 = vector.multi_reduction <add>, %352, %cst_132 [1] : vector<64x128xf32> to vector<64xf32>
    %354 = vector.shape_cast %353 : vector<64xf32> to vector<64x1xf32>
    %cst_133 = arith.constant 1.280000e+02 : f32
    %355 = vector.broadcast %cst_133 : f32 to vector<64x1xf32>
    %356 = arith.divf %354, %355 : vector<64x1xf32>
    %357 = vector.broadcast %349 : vector<64x1xf32> to vector<64x128xf32>
    %358 = arith.subf %341, %357 : vector<64x128xf32>
    %cst_134 = arith.constant 9.99999996E-13 : f32
    %359 = vector.broadcast %cst_134 : f32 to vector<64x1xf32>
    %360 = arith.addf %356, %359 : vector<64x1xf32>
    %361 = math.rsqrt %360 : vector<64x1xf32>
    %362 = vector.broadcast %361 : vector<64x1xf32> to vector<64x128xf32>
    %363 = arith.mulf %358, %362 : vector<64x128xf32>
    %364 = vector.broadcast %343 : vector<1x128xf32> to vector<64x128xf32>
    %365 = arith.mulf %363, %364 : vector<64x128xf32>
    %366 = vector.broadcast %345 : vector<1x128xf32> to vector<64x128xf32>
    %367 = arith.addf %365, %366 : vector<64x128xf32>
    %368 = arith.truncf %367 : vector<64x128xf32> to vector<64x128xbf16>
    %c1_135 = arith.constant 1 : index
    %c0_136 = arith.constant 0 : index
    %c0_137 = arith.constant 0 : index
    %369 = vector.load %arg13[%c1_135, %c0_136, %c0_137] : memref<2x128x512xbf16, #tpu.memory_space<vmem>>, vector<1x128x512xbf16>
    %370 = vector.shape_cast %369 : vector<1x128x512xbf16> to vector<128x512xbf16>
    %cst_138 = arith.constant dense<0.000000e+00> : vector<64x512xf32>
    %371 = tpu.matmul %368, %370, %cst_138 {dimension_numbers = #tpu.dot_dimension_numbers<[1], [0], [0], [1], [0, 0, 1, 1], [], []>} : vector<64x128xbf16>, vector<128x512xbf16>, vector<64x512xf32> -> vector<64x512xf32>
    %c1_139 = arith.constant 1 : index
    %c0_140 = arith.constant 0 : index
    %c0_141 = arith.constant 0 : index
    %372 = vector.load %arg14[%c1_139, %c0_140, %c0_141] : memref<2x1x512xf32, #tpu.memory_space<vmem>>, vector<1x1x512xf32>
    %373 = vector.shape_cast %372 : vector<1x1x512xf32> to vector<1x512xf32>
    %374 = vector.broadcast %373 : vector<1x512xf32> to vector<64x512xf32>
    %375 = arith.addf %371, %374 : vector<64x512xf32>
    %376 = arith.mulf %375, %375 : vector<64x512xf32>
    %377 = arith.mulf %375, %376 : vector<64x512xf32>
    %cst_142 = arith.constant 4.471500e-02 : f32
    %378 = vector.broadcast %cst_142 : f32 to vector<64x512xf32>
    %379 = arith.mulf %378, %377 : vector<64x512xf32>
    %380 = arith.addf %375, %379 : vector<64x512xf32>
    %cst_143 = arith.constant 0.797884583 : f32
    %381 = vector.broadcast %cst_143 : f32 to vector<64x512xf32>
    %382 = arith.mulf %381, %380 : vector<64x512xf32>
    %383 = math.tanh %382 : vector<64x512xf32>
    %cst_144 = arith.constant 1.000000e+00 : f32
    %384 = vector.broadcast %cst_144 : f32 to vector<64x512xf32>
    %385 = arith.addf %384, %383 : vector<64x512xf32>
    %cst_145 = arith.constant 5.000000e-01 : f32
    %386 = vector.broadcast %cst_145 : f32 to vector<64x512xf32>
    %387 = arith.mulf %386, %385 : vector<64x512xf32>
    %388 = arith.mulf %375, %387 : vector<64x512xf32>
    %389 = arith.truncf %388 : vector<64x512xf32> to vector<64x512xbf16>
    %c1_146 = arith.constant 1 : index
    %c0_147 = arith.constant 0 : index
    %c0_148 = arith.constant 0 : index
    %390 = vector.load %arg15[%c1_146, %c0_147, %c0_148] : memref<2x512x128xbf16, #tpu.memory_space<vmem>>, vector<1x512x128xbf16>
    %391 = vector.shape_cast %390 : vector<1x512x128xbf16> to vector<512x128xbf16>
    %cst_149 = arith.constant dense<0.000000e+00> : vector<64x128xf32>
    %392 = tpu.matmul %389, %391, %cst_149 {dimension_numbers = #tpu.dot_dimension_numbers<[1], [0], [0], [1], [0, 0, 1, 1], [], []>} : vector<64x512xbf16>, vector<512x128xbf16>, vector<64x128xf32> -> vector<64x128xf32>
    %c1_150 = arith.constant 1 : index
    %c0_151 = arith.constant 0 : index
    %c0_152 = arith.constant 0 : index
    %393 = vector.load %arg16[%c1_150, %c0_151, %c0_152] : memref<2x1x128xf32, #tpu.memory_space<vmem>>, vector<1x1x128xf32>
    %394 = vector.shape_cast %393 : vector<1x1x128xf32> to vector<1x128xf32>
    %395 = vector.broadcast %394 : vector<1x128xf32> to vector<64x128xf32>
    %396 = arith.addf %392, %395 : vector<64x128xf32>
    %397 = arith.addf %367, %396 : vector<64x128xf32>
    %c1_153 = arith.constant 1 : index
    %c0_154 = arith.constant 0 : index
    %c0_155 = arith.constant 0 : index
    %398 = vector.load %arg17[%c1_153, %c0_154, %c0_155] : memref<2x1x128xf32, #tpu.memory_space<vmem>>, vector<1x1x128xf32>
    %399 = vector.shape_cast %398 : vector<1x1x128xf32> to vector<1x128xf32>
    %c1_156 = arith.constant 1 : index
    %c0_157 = arith.constant 0 : index
    %c0_158 = arith.constant 0 : index
    %400 = vector.load %arg18[%c1_156, %c0_157, %c0_158] : memref<2x1x128xf32, #tpu.memory_space<vmem>>, vector<1x1x128xf32>
    %401 = vector.shape_cast %400 : vector<1x1x128xf32> to vector<1x128xf32>
    %cst_159 = arith.constant dense<0.000000e+00> : vector<64xf32>
    %402 = vector.multi_reduction <add>, %397, %cst_159 [1] : vector<64x128xf32> to vector<64xf32>
    %403 = vector.shape_cast %402 : vector<64xf32> to vector<64x1xf32>
    %cst_160 = arith.constant 1.280000e+02 : f32
    %404 = vector.broadcast %cst_160 : f32 to vector<64x1xf32>
    %405 = arith.divf %403, %404 : vector<64x1xf32>
    %406 = vector.broadcast %405 : vector<64x1xf32> to vector<64x128xf32>
    %407 = arith.subf %397, %406 : vector<64x128xf32>
    %408 = arith.mulf %407, %407 : vector<64x128xf32>
    %cst_161 = arith.constant dense<0.000000e+00> : vector<64xf32>
    %409 = vector.multi_reduction <add>, %408, %cst_161 [1] : vector<64x128xf32> to vector<64xf32>
    %410 = vector.shape_cast %409 : vector<64xf32> to vector<64x1xf32>
    %cst_162 = arith.constant 1.280000e+02 : f32
    %411 = vector.broadcast %cst_162 : f32 to vector<64x1xf32>
    %412 = arith.divf %410, %411 : vector<64x1xf32>
    %413 = vector.broadcast %405 : vector<64x1xf32> to vector<64x128xf32>
    %414 = arith.subf %397, %413 : vector<64x128xf32>
    %cst_163 = arith.constant 9.99999996E-13 : f32
    %415 = vector.broadcast %cst_163 : f32 to vector<64x1xf32>
    %416 = arith.addf %412, %415 : vector<64x1xf32>
    %417 = math.rsqrt %416 : vector<64x1xf32>
    %418 = vector.broadcast %417 : vector<64x1xf32> to vector<64x128xf32>
    %419 = arith.mulf %414, %418 : vector<64x128xf32>
    %420 = vector.broadcast %399 : vector<1x128xf32> to vector<64x128xf32>
    %421 = arith.mulf %419, %420 : vector<64x128xf32>
    %422 = vector.broadcast %401 : vector<1x128xf32> to vector<64x128xf32>
    %423 = arith.addf %421, %422 : vector<64x128xf32>
    %424 = vector.shape_cast %423 : vector<64x128xf32> to vector<8x8x128xf32>
    %425 = vector.extract_strided_slice %424 {offsets = [0, 0, 0], sizes = [8, 1, 128], strides = [1, 1, 1]} : vector<8x8x128xf32> to vector<8x1x128xf32>
    %426 = vector.shape_cast %425 : vector<8x1x128xf32> to vector<8x128xf32>
    %427 = arith.truncf %426 : vector<8x128xf32> to vector<8x128xbf16>
    %c0_164 = arith.constant 0 : index
    %c0_165 = arith.constant 0 : index
    %428 = vector.load %arg19[%c0_164, %c0_165] : memref<128x128xbf16, #tpu.memory_space<vmem>>, vector<128x128xbf16>
    %cst_166 = arith.constant dense<0.000000e+00> : vector<8x128xf32>
    %429 = tpu.matmul %427, %428, %cst_166 {dimension_numbers = #tpu.dot_dimension_numbers<[1], [0], [0], [1], [0, 0, 1, 1], [], []>} : vector<8x128xbf16>, vector<128x128xbf16>, vector<8x128xf32> -> vector<8x128xf32>
    %c0_167 = arith.constant 0 : index
    %c0_168 = arith.constant 0 : index
    %430 = vector.load %arg20[%c0_167, %c0_168] : memref<1x128xf32, #tpu.memory_space<vmem>>, vector<1x128xf32>
    %431 = vector.broadcast %430 : vector<1x128xf32> to vector<8x128xf32>
    %432 = arith.addf %429, %431 : vector<8x128xf32>
    %433 = math.tanh %432 : vector<8x128xf32>
    %c0_169 = arith.constant 0 : index
    %c0_170 = arith.constant 0 : index
    %434 = vector.load %arg21[%c0_169, %c0_170] : memref<1x128xf32, #tpu.memory_space<vmem>>, vector<1x128xf32>
    %435 = vector.broadcast %434 : vector<1x128xf32> to vector<8x128xf32>
    %436 = arith.mulf %433, %435 : vector<8x128xf32>
    %cst_171 = arith.constant dense<0.000000e+00> : vector<8xf32>
    %437 = vector.multi_reduction <add>, %436, %cst_171 [1] : vector<8x128xf32> to vector<8xf32>
    %438 = vector.shape_cast %437 : vector<8xf32> to vector<8x1xf32>
    %c0_172 = arith.constant 0 : index
    %c0_173 = arith.constant 0 : index
    %439 = vector.load %arg2[%c0_172, %c0_173] : memref<8x1xf32, #tpu.memory_space<vmem>>, vector<8x1xf32>
    %c0_174 = arith.constant 0 : index
    %c0_175 = arith.constant 0 : index
    %440 = vector.load %arg22[%c0_174, %c0_175] : memref<1x1xf32, #tpu.memory_space<vmem>>, vector<1x1xf32>
    %441 = vector.broadcast %440 : vector<1x1xf32> to vector<8x1xf32>
    %442 = arith.mulf %439, %441 : vector<8x1xf32>
    %443 = arith.addf %438, %442 : vector<8x1xf32>
    %c0_176 = arith.constant 0 : index
    %c0_177 = arith.constant 0 : index
    %444 = vector.load %arg23[%c0_176, %c0_177] : memref<1x1xf32, #tpu.memory_space<vmem>>, vector<1x1xf32>
    %445 = vector.broadcast %444 : vector<1x1xf32> to vector<8x1xf32>
    %446 = arith.addf %443, %445 : vector<8x1xf32>
    %c0_178 = arith.constant 0 : index
    %c0_179 = arith.constant 0 : index
    %447 = vector.load %arg24[%c0_178, %c0_179] : memref<8x1xf32, #tpu.memory_space<vmem>>, vector<8x1xf32>
    tpu.vector_store %arg24[%c0_178, %c0_179], %446 {strides = array<i32>} : memref<8x1xf32, #tpu.memory_space<vmem>>, vector<8x1xf32>,
    return
  }
}

</mosaic_0001>

<llo_original>
// kernel: ranker_forward.1
$region0: #{ranker_forward.1}
  #allocation0 [shape = 'u32[]', space=smem, size = 0x4, offset = 0x4, fixed_abs, tag = 'smem constant byte address 0x4 - core index']
  #allocation1 [shape = 'u32[72,128]{1,0:T(1,128)}', space=vmem, size = 0x9000, scoped, tag = 'internal scratch']
  #allocation2 [shape = 'f32[1,1]{1,0:T(1,128)S(1)}', space=vmem, size = 0x200, scoped, tag = 'scoped memory for ranker_forward.1']
  #allocation3 [shape = 'f32[1,1]{1,0:T(1,128)S(1)}', space=vmem, size = 0x200, scoped, tag = 'scoped memory for ranker_forward.1']
  %s0 = inlined_call_operand.vmem [shape: s32[64,1], index: 0, kind: input, shape index: {}]
  %s1 = inlined_call_operand.vmem [shape: f32[8,1,8], index: 1, kind: input, shape index: {}]
  %s2 = inlined_call_operand.vmem [shape: f32[8,1], index: 2, kind: input, shape index: {}]
  %s3 = inlined_call_operand.hbm [shape: bf16[64,128], index: 3, kind: input, shape index: {}]
  %s4 = inlined_call_operand.vmem [shape: f32[64,128], index: 4, kind: input, shape index: {}]
  %s5 = inlined_call_operand.vmem [shape: f32[1,128], index: 5, kind: input, shape index: {}]
  %s6 = inlined_call_operand.vmem [shape: f32[1,128], index: 6, kind: input, shape index: {}]
  %s7 = inlined_call_operand.hbm [shape: bf16[2,128,384], index: 7, kind: input, shape index: {}]
  %s8 = inlined_call_operand.vmem [shape: f32[2,1,384], index: 8, kind: input, shape index: {}]
  %s9 = inlined_call_operand.hbm [shape: bf16[2,128,128], index: 9, kind: input, shape index: {}]
  %s10 = inlined_call_operand.vmem [shape: f32[2,1,128], index: 10, kind: input, shape index: {}]
  %s11 = inlined_call_operand.vmem [shape: f32[2,1,128], index: 11, kind: input, shape index: {}]
  %s12 = inlined_call_operand.vmem [shape: f32[2,1,128], index: 12, kind: input, shape index: {}]
  %s13 = inlined_call_operand.hbm [shape: bf16[2,128,512], index: 13, kind: input, shape index: {}]
  %s14 = inlined_call_operand.vmem [shape: f32[2,1,512], index: 14, kind: input, shape index: {}]
  %s15 = inlined_call_operand.hbm [shape: bf16[2,512,128], index: 15, kind: input, shape index: {}]
  %s16 = inlined_call_operand.vmem [shape: f32[2,1,128], index: 16, kind: input, shape index: {}]
  %s17 = inlined_call_operand.vmem [shape: f32[2,1,128], index: 17, kind: input, shape index: {}]
  %s18 = inlined_call_operand.vmem [shape: f32[2,1,128], index: 18, kind: input, shape index: {}]
  %s19 = inlined_call_operand.hbm [shape: bf16[128,128], index: 19, kind: input, shape index: {}]
  %s20 = inlined_call_operand.vmem [shape: f32[1,128], index: 20, kind: input, shape index: {}]
  %s21 = inlined_call_operand.vmem [shape: f32[1,128], index: 21, kind: input, shape index: {}]
  %s22 = inlined_call_operand.<no memory space> [shape: f32[1,1], index: 22, kind: input, shape index: {}]
  %s23 = inlined_call_operand.<no memory space> [shape: f32[1,1], index: 23, kind: input, shape index: {}]
  %s24 = inlined_call_operand.vmem [shape: f32[8,1], index: 24, kind: output, shape index: {}]
  %s25 = sld [smem:[#allocation0]]
  $region130: #{ranker_forward.1} parent=0
    _
  %s27 = ssub.s32 1, %s25
  %s28 = scalar_select 0, %s27, %s25
  %v29 = vstv %s22
  %30 = vst [vmem:[#allocation2] sm:$0x1] %v29
  %v31 = vstv %s23
  %32 = vst [vmem:[#allocation3] sm:$0x1] %v31
  $region1: #{ranker_forward.1} parent=0
    #allocation4 [shape = 'u8[16384]{0}', space=vmem, size = 0x4000, scoped, tag = 'input window, operand 3, single buffered']
    #allocation5 [shape = 's32[1]{0}', space=sflag, size = 0x4, scoped, tag = 'scoped memory for ranker_forward.1']
    #allocation6 [shape = 'u8[196608]{0}', space=vmem, size = 0x30000, scoped, tag = 'input window, operand 7, single buffered']
    #allocation7 [shape = 's32[1]{0}', space=sflag, size = 0x4, scoped, tag = 'scoped memory for ranker_forward.1']
    #allocation8 [shape = 'u8[65536]{0}', space=vmem, size = 0x10000, scoped, tag = 'input window, operand 9, single buffered']
    #allocation9 [shape = 'u8[262144]{0}', space=vmem, size = 0x40000, scoped, tag = 'input window, operand 13, single buffered']
    #allocation10 [shape = 's32[1]{0}', space=sflag, size = 0x4, scoped, tag = 'scoped memory for ranker_forward.1']
    #allocation11 [shape = 'u8[262144]{0}', space=vmem, size = 0x40000, scoped, tag = 'input window, operand 15, single buffered']
    #allocation12 [shape = 'u8[32768]{0}', space=vmem, size = 0x8000, scoped, tag = 'input window, operand 19, single buffered']
    #allocation13 [shape = 's32[1]{0}', space=sflag, size = 0x4, scoped, tag = 'scoped memory for ranker_forward.1']
    %33 = vsyncpa [#allocation5], 0
    %34 = vsyncpa [#allocation7], 0
    %35 = vsyncpa [#allocation10], 0
    %36 = vsyncpa [#allocation13], 0
    // Predicated region
    $region2: #{ranker_forward.1} parent=1 // pred_check
      _
    $region3: #{ranker_forward.1} parent=1 // pred_check_branch
      %38 = sbr.rel (0) target = $region5
    $region4: #{ranker_forward.1} parent=1 // pred_region
      _
    $region5: #{ranker_forward.1} parent=1 // pred_fallthru
      _
    // Predicated region
    $region6: #{ranker_forward.1} parent=1 // pred_check
      _
    $region7: #{ranker_forward.1} parent=1 // pred_check_branch
      %40 = sbr.rel (0) target = $region9
    $region8: #{ranker_forward.1} parent=1 // pred_region
      _
    $region9: #{ranker_forward.1} parent=1 // pred_fallthru
      _
    // Predicated region
    $region10: #{ranker_forward.1} parent=1 // pred_check
      _
    $region11: #{ranker_forward.1} parent=1 // pred_check_branch
      %42 = sbr.rel (0) target = $region13
    $region12: #{ranker_forward.1} parent=1 // pred_region
      _
    $region13: #{ranker_forward.1} parent=1 // pred_fallthru
      _
    // Predicated region
    $region14: #{ranker_forward.1} parent=1 // pred_check
      _
    $region15: #{ranker_forward.1} parent=1 // pred_check_branch
      %44 = sbr.rel (0) target = $region17
    $region16: #{ranker_forward.1} parent=1 // pred_region
      %46 = vsyncadd [#allocation5], 0
      %s47 = sshll.u32 %s3, 4
      %s48 = int_to_ptr.hbm [resolvable:$true] %s47
      %s49 = sshll.u32 [#allocation4], 4
      %s50 = int_to_ptr.vmem [resolvable:$true] %s49
      %55 = dma.hbm_to_vmem [thread:$0]  %s48, 512, %s50, [#allocation5], 64, 64, 4
    $region17: #{ranker_forward.1} parent=1 // pred_fallthru
      _
    // Predicated region
    $region18: #{ranker_forward.1} parent=1 // pred_check
      _
    $region19: #{ranker_forward.1} parent=1 // pred_check_branch
      %57 = sbr.rel (0) target = $region21
    $region20: #{ranker_forward.1} parent=1 // pred_region
      _
    $region21: #{ranker_forward.1} parent=1 // pred_fallthru
      _
    // Predicated region
    $region22: #{ranker_forward.1} parent=1 // pred_check
      _
    $region23: #{ranker_forward.1} parent=1 // pred_check_branch
      %59 = sbr.rel (0) target = $region25
    $region24: #{ranker_forward.1} parent=1 // pred_region
      _
    $region25: #{ranker_forward.1} parent=1 // pred_fallthru
      _
    // Predicated region
    $region26: #{ranker_forward.1} parent=1 // pred_check
      _
    $region27: #{ranker_forward.1} parent=1 // pred_check_branch
      %61 = sbr.rel (0) target = $region29
    $region28: #{ranker_forward.1} parent=1 // pred_region
      _
    $region29: #{ranker_forward.1} parent=1 // pred_fallthru
      _
    // Predicated region
    $region30: #{ranker_forward.1} parent=1 // pred_check
      _
    $region31: #{ranker_forward.1} parent=1 // pred_check_branch
      %63 = sbr.rel (0) target = $region33
    $region32: #{ranker_forward.1} parent=1 // pred_region
      %65 = vsyncadd [#allocation7], 0
      %s66 = sshll.u32 %s7, 4
      %s67 = int_to_ptr.hbm [resolvable:$true] %s66
      %s68 = sshll.u32 [#allocation6], 4
      %s69 = int_to_ptr.vmem [resolvable:$true] %s68
      %74 = dma.hbm_to_vmem [thread:$0]  %s67, 6144, %s69, [#allocation7], 192, 192, 12
    $region33: #{ranker_forward.1} parent=1 // pred_fallthru
      _
    // Predicated region
    $region34: #{ranker_forward.1} parent=1 // pred_check
      _
    $region35: #{ranker_forward.1} parent=1 // pred_check_branch
      %76 = sbr.rel (0) target = $region37
    $region36: #{ranker_forward.1} parent=1 // pred_region
      _
    $region37: #{ranker_forward.1} parent=1 // pred_fallthru
      _
    // Predicated region
    $region38: #{ranker_forward.1} parent=1 // pred_check
      _
    $region39: #{ranker_forward.1} parent=1 // pred_check_branch
      %78 = sbr.rel (0) target = $region41
    $region40: #{ranker_forward.1} parent=1 // pred_region
      %80 = vsyncadd [#allocation7], 0
      %s81 = sshll.u32 %s9, 4
      %s82 = int_to_ptr.hbm [resolvable:$true] %s81
      %s83 = sshll.u32 [#allocation8], 4
      %s84 = int_to_ptr.vmem [resolvable:$true] %s83
      %89 = dma.hbm_to_vmem [thread:$0]  %s82, 2048, %s84, [#allocation7], 64, 64, 4
    $region41: #{ranker_forward.1} parent=1 // pred_fallthru
      _
    // Predicated region
    $region42: #{ranker_forward.1} parent=1 // pred_check
      _
    $region43: #{ranker_forward.1} parent=1 // pred_check_branch
      %91 = sbr.rel (0) target = $region45
    $region44: #{ranker_forward.1} parent=1 // pred_region
      _
    $region45: #{ranker_forward.1} parent=1 // pred_fallthru
      _
    // Predicated region
    $region46: #{ranker_forward.1} parent=1 // pred_check
      _
    $region47: #{ranker_forward.1} parent=1 // pred_check_branch
      %93 = sbr.rel (0) target = $region49
    $region48: #{ranker_forward.1} parent=1 // pred_region
      _
    $region49: #{ranker_forward.1} parent=1 // pred_fallthru
      _
    // Predicated region
    $region50: #{ranker_forward.1} parent=1 // pred_check
      _
    $region51: #{ranker_forward.1} parent=1 // pred_check_branch
      %95 = sbr.rel (0) target = $region53
    $region52: #{ranker_forward.1} parent=1 // pred_region
      _
    $region53: #{ranker_forward.1} parent=1 // pred_fallthru
      _
    // Predicated region
    $region54: #{ranker_forward.1} parent=1 // pred_check
      _
    $region55: #{ranker_forward.1} parent=1 // pred_check_branch
      %97 = sbr.rel (0) target = $region57
    $region56: #{ranker_forward.1} parent=1 // pred_region
      %99 = vsyncadd [#allocation10], 0
      %s100 = sshll.u32 %s13, 4
      %s101 = int_to_ptr.hbm [resolvable:$true] %s100
      %s102 = sshll.u32 [#allocation9], 4
      %s103 = int_to_ptr.vmem [resolvable:$true] %s102
      %108 = dma.hbm_to_vmem [thread:$0]  %s101, 8192, %s103, [#allocation10], 256, 256, 16
    $region57: #{ranker_forward.1} parent=1 // pred_fallthru
      _
    // Predicated region
    $region58: #{ranker_forward.1} parent=1 // pred_check
      _
    $region59: #{ranker_forward.1} parent=1 // pred_check_branch
      %110 = sbr.rel (0) target = $region61
    $region60: #{ranker_forward.1} parent=1 // pred_region
      _
    $region61: #{ranker_forward.1} parent=1 // pred_fallthru
      _
    // Predicated region
    $region62: #{ranker_forward.1} parent=1 // pred_check
      _
    $region63: #{ranker_forward.1} parent=1 // pred_check_branch
      %112 = sbr.rel (0) target = $region65
    $region64: #{ranker_forward.1} parent=1 // pred_region
      %114 = vsyncadd [#allocation10], 0
      %s115 = sshll.u32 %s15, 4
      %s116 = int_to_ptr.hbm [resolvable:$true] %s115
      %s117 = sshll.u32 [#allocation11], 4
      %s118 = int_to_ptr.vmem [resolvable:$true] %s117
      %123 = dma.hbm_to_vmem [thread:$0]  %s116, 8192, %s118, [#allocation10], 64, 64, 4
    $region65: #{ranker_forward.1} parent=1 // pred_fallthru
      _
    // Predicated region
    $region66: #{ranker_forward.1} parent=1 // pred_check
      _
    $region67: #{ranker_forward.1} parent=1 // pred_check_branch
      %125 = sbr.rel (0) target = $region69
    $region68: #{ranker_forward.1} parent=1 // pred_region
      _
    $region69: #{ranker_forward.1} parent=1 // pred_fallthru
      _
    // Predicated region
    $region70: #{ranker_forward.1} parent=1 // pred_check
      _
    $region71: #{ranker_forward.1} parent=1 // pred_check_branch
      %127 = sbr.rel (0) target = $region73
    $region72: #{ranker_forward.1} parent=1 // pred_region
      _
    $region73: #{ranker_forward.1} parent=1 // pred_fallthru
      _
    // Predicated region
    $region74: #{ranker_forward.1} parent=1 // pred_check
      _
    $region75: #{ranker_forward.1} parent=1 // pred_check_branch
      %129 = sbr.rel (0) target = $region77
    $region76: #{ranker_forward.1} parent=1 // pred_region
      _
    $region77: #{ranker_forward.1} parent=1 // pred_fallthru
      _
    // Predicated region
    $region78: #{ranker_forward.1} parent=1 // pred_check
      _
    $region79: #{ranker_forward.1} parent=1 // pred_check_branch
      %131 = sbr.rel (0) target = $region81
    $region80: #{ranker_forward.1} parent=1 // pred_region
      %133 = vsyncadd [#allocation13], 0
      %s134 = sshll.u32 %s19, 4
      %s135 = int_to_ptr.hbm [resolvable:$true] %s134
      %s136 = sshll.u32 [#allocation12], 4
      %s137 = int_to_ptr.vmem [resolvable:$true] %s136
      %142 = dma.hbm_to_vmem [thread:$0]  %s135, 1024, %s137, [#allocation13], 64, 64, 4
    $region81: #{ranker_forward.1} parent=1 // pred_fallthru
      _
    // Predicated region
    $region82: #{ranker_forward.1} parent=1 // pred_check
      _
    $region83: #{ranker_forward.1} parent=1 // pred_check_branch
      %144 = sbr.rel (0) target = $region85
    $region84: #{ranker_forward.1} parent=1 // pred_region
      _
    $region85: #{ranker_forward.1} parent=1 // pred_fallthru
      _
    // Predicated region
    $region86: #{ranker_forward.1} parent=1 // pred_check
      _
    $region87: #{ranker_forward.1} parent=1 // pred_check_branch
      %146 = sbr.rel (0) target = $region89
    $region88: #{ranker_forward.1} parent=1 // pred_region
      _
    $region89: #{ranker_forward.1} parent=1 // pred_fallthru
      _
    // Predicated region
    $region90: #{ranker_forward.1} parent=1 // pred_check
      _
    $region91: #{ranker_forward.1} parent=1 // pred_check_branch
      %148 = sbr.rel (0) target = $region93
    $region92: #{ranker_forward.1} parent=1 // pred_region
      _
    $region93: #{ranker_forward.1} parent=1 // pred_fallthru
      _
    // Predicated region
    $region94: #{ranker_forward.1} parent=1 // pred_check
      _
    $region95: #{ranker_forward.1} parent=1 // pred_check_branch
      %150 = sbr.rel (0) target = $region97
    $region96: #{ranker_forward.1} parent=1 // pred_region
      _
    $region97: #{ranker_forward.1} parent=1 // pred_fallthru
      _
    // Predicated region
    $region98: #{ranker_forward.1} parent=1 // pred_check
      _
    $region99: #{ranker_forward.1} parent=1 // pred_check_branch
      %152 = sbr.rel (0) target = $region101
    $region100: #{ranker_forward.1} parent=1 // pred_region
      %154 = dma.done [#allocation5], 512
    $region101: #{ranker_forward.1} parent=1 // pred_fallthru
      _
    // Predicated region
    $region102: #{ranker_forward.1} parent=1 // pred_check
      _
    $region103: #{ranker_forward.1} parent=1 // pred_check_branch
      %156 = sbr.rel (0) target = $region105
    $region104: #{ranker_forward.1} parent=1 // pred_region
      %158 = dma.done [#allocation7], 6144
    $region105: #{ranker_forward.1} parent=1 // pred_fallthru
      _
    // Predicated region
    $region106: #{ranker_forward.1} parent=1 // pred_check
      _
    $region107: #{ranker_forward.1} parent=1 // pred_check_branch
      %160 = sbr.rel (0) target = $region109
    $region108: #{ranker_forward.1} parent=1 // pred_region
      %162 = dma.done [#allocation7], 2048
    $region109: #{ranker_forward.1} parent=1 // pred_fallthru
      _
    // Predicated region
    $region110: #{ranker_forward.1} parent=1 // pred_check
      _
    $region111: #{ranker_forward.1} parent=1 // pred_check_branch
      %164 = sbr.rel (0) target = $region113
    $region112: #{ranker_forward.1} parent=1 // pred_region
      %166 = dma.done [#allocation10], 8192
    $region113: #{ranker_forward.1} parent=1 // pred_fallthru
      _
    // Predicated region
    $region114: #{ranker_forward.1} parent=1 // pred_check
      _
    $region115: #{ranker_forward.1} parent=1 // pred_check_branch
      %168 = sbr.rel (0) target = $region117
    $region116: #{ranker_forward.1} parent=1 // pred_region
      %170 = dma.done [#allocation10], 8192
    $region117: #{ranker_forward.1} parent=1 // pred_fallthru
      _
    // Predicated region
    $region118: #{ranker_forward.1} parent=1 // pred_check
      _
    $region119: #{ranker_forward.1} parent=1 // pred_check_branch
      %172 = sbr.rel (0) target = $region121
    $region120: #{ranker_forward.1} parent=1 // pred_region
      %174 = dma.done [#allocation13], 1024
    $region121: #{ranker_forward.1} parent=1 // pred_fallthru
      _
    %v176 = vld [vmem:[%s0] sm:$0xff]
    %v177 = vld [vmem:[%s0 + $0x8] sm:$0xff]
    %v178 = vld [vmem:[%s0 + $0x10] sm:$0xff]
    %v179 = vld [vmem:[%s0 + $0x18] sm:$0xff]
    %v180 = vld [vmem:[%s0 + $0x20] sm:$0xff]
    %v181 = vld [vmem:[%s0 + $0x28] sm:$0xff]
    %v182 = vld [vmem:[%s0 + $0x30] sm:$0xff]
    %v183 = vld [vmem:[%s0 + $0x38] sm:$0xff]
    %v184 = vlaneseq
    %v185 = vand.u32 %v184, 127
    %186 = vset.pattern.permute.xlu0 0
    %187 = vperm.xlu0 %186, %v176
    %v188 = vpop.permute.xlu0 %187
    %189 = vset.pattern.permute.xlu0 0
    %190 = vperm.xlu0 %189, %v177
    %v191 = vpop.permute.xlu0 %190
    %192 = vset.pattern.permute.xlu0 0
    %193 = vperm.xlu0 %192, %v178
    %v194 = vpop.permute.xlu0 %193
    %195 = vset.pattern.permute.xlu0 0
    %196 = vperm.xlu0 %195, %v179
    %v197 = vpop.permute.xlu0 %196
    %198 = vset.pattern.permute.xlu0 0
    %199 = vperm.xlu0 %198, %v180
    %v200 = vpop.permute.xlu0 %199
    %201 = vset.pattern.permute.xlu0 0
    %202 = vperm.xlu0 %201, %v181
    %v203 = vpop.permute.xlu0 %202
    %204 = vset.pattern.permute.xlu0 0
    %205 = vperm.xlu0 %204, %v182
    %v206 = vpop.permute.xlu0 %205
    %207 = vset.pattern.permute.xlu0 0
    %208 = vperm.xlu0 %207, %v183
    %v209 = vpop.permute.xlu0 %208
    %vm210 = vcmp.eq.s32.totalorder %v185, %v188
    %vm211 = vcmp.eq.s32.totalorder %v185, %v191
    %vm212 = vcmp.eq.s32.totalorder %v185, %v194
    %vm213 = vcmp.eq.s32.totalorder %v185, %v197
    %vm214 = vcmp.eq.s32.totalorder %v185, %v200
    %vm215 = vcmp.eq.s32.totalorder %v185, %v203
    %vm216 = vcmp.eq.s32.totalorder %v185, %v206
    %vm217 = vcmp.eq.s32.totalorder %v185, %v209
    %v218 = vsel %vm210, 1, 0
    %v219 = vsel %vm211, 1, 0
    %v220 = vsel %vm212, 1, 0
    %v221 = vsel %vm213, 1, 0
    %v222 = vsel %vm214, 1, 0
    %v223 = vsel %vm215, 1, 0
    %v224 = vsel %vm216, 1, 0
    %v225 = vsel %vm217, 1, 0
    %v226 = vcvt.s32.f32 %v218
    %v227 = vcvt.s32.f32 %v219
    %v228 = vcvt.s32.f32 %v220
    %v229 = vcvt.s32.f32 %v221
    %v230 = vcvt.s32.f32 %v222
    %v231 = vcvt.s32.f32 %v223
    %v232 = vcvt.s32.f32 %v224
    %v233 = vcvt.s32.f32 %v225
    %v234 = vpack.c.bf16 %v227, %v226
    %v235 = vpack.c.bf16 %v229, %v228
    %v236 = vpack.c.bf16 %v231, %v230
    %v237 = vpack.c.bf16 %v233, %v232
    %v238 = vld [vmem:[#allocation4] sm:$0xf]
    %v239 = vld [vmem:[#allocation4 + $0x4] sm:$0xf]
    %v240 = vld [vmem:[#allocation4 + $0x8] sm:$0xf]
    %v241 = vld [vmem:[#allocation4 + $0xc] sm:$0xf]
    %v242 = vld [vmem:[#allocation4 + $0x10] sm:$0xf]
    %v243 = vld [vmem:[#allocation4 + $0x14] sm:$0xf]
    %v244 = vld [vmem:[#allocation4 + $0x18] sm:$0xf]
    %v245 = vld [vmem:[#allocation4 + $0x1c] sm:$0xf]
    %v246 = vld [vmem:[%s4] sm:$0xff]
    %v247 = vld [vmem:[%s4 + $0x8] sm:$0xff]
    %v248 = vld [vmem:[%s4 + $0x10] sm:$0xff]
    %v249 = vld [vmem:[%s4 + $0x18] sm:$0xff]
    %v250 = vld [vmem:[%s4 + $0x20] sm:$0xff]
    %v251 = vld [vmem:[%s4 + $0x28] sm:$0xff]
    %v252 = vld [vmem:[%s4 + $0x30] sm:$0xff]
    %v253 = vld [vmem:[%s4 + $0x38] sm:$0xff]
    %v262 = vunpack.c.l.b16 %v238
    %v263 = vunpack.c.l.b16 %v239
    %v264 = vunpack.c.l.b16 %v240
    %v265 = vunpack.c.l.b16 %v241
    %v266 = vunpack.c.l.b16 %v242
    %v267 = vunpack.c.l.b16 %v243
    %v268 = vunpack.c.l.b16 %v244
    %v269 = vunpack.c.l.b16 %v245
    %v270 = vpack.c.b16 %v263, %v262
    %v271 = vpack.c.b16 %v265, %v264
    %v272 = vpack.c.b16 %v267, %v266
    %v273 = vpack.c.b16 %v269, %v268
    %vm278 = vcmask 523264
    %v280 = vsel %vm278, %v234, 0
    %v283 = vsel %vm278, %v235, 0
    %v286 = vsel %vm278, %v236, 0
    %v289 = vsel %vm278, %v237, 0
    %291 = vmatpush.bf16.msra.mxu0 0
    %292 = vmatpush.bf16.msra.mxu0 0
    %293 = vmatpush.bf16.msra.mxu0 0
    %294 = vmatpush.bf16.msra.mxu0 0
    %295 = vmatpush.bf16.msra.mxu0 %v273
    %296 = vmatpush.bf16.msra.mxu0 %v272
    %297 = vmatpush.bf16.msra.mxu0 %v271
    %298 = vmatpush.bf16.msra.mxu0 %v270
    %299 = vmatmul.bf16.gmra.mxu0 %v280
    %v300 = vpop.f32.mrf.mxu0
    %v301 = vadd.f32 %v246, %v300
    %v302 = vpop.f32.mrf.mxu0
    %v303 = vadd.f32 %v247, %v302
    %304 = vmatmul.bf16.gmra.mxu0 %v283
    %v305 = vpop.f32.mrf.mxu0
    %v306 = vadd.f32 %v248, %v305
    %v307 = vpop.f32.mrf.mxu0
    %v308 = vadd.f32 %v249, %v307
    %309 = vmatmul.bf16.gmra.mxu0 %v286
    %v310 = vpop.f32.mrf.mxu0
    %v311 = vadd.f32 %v250, %v310
    %v312 = vpop.f32.mrf.mxu0
    %v313 = vadd.f32 %v251, %v312
    %314 = vmatmul.bf16.gmra.mxu0 %v289
    %v315 = vpop.f32.mrf.mxu0
    %v316 = vadd.f32 %v252, %v315
    %v317 = vpop.f32.mrf.mxu0
    %v318 = vadd.f32 %v253, %v317
    %319 = vdwg.mxu0
    %v320 = vld [vmem:[%s5] sm:$0x1]
    %v321 = vld [vmem:[%s6] sm:$0x1]
    %322 = vadd.xlane.f32.xlu0 %v301
    %v323 = vpop.xlane.xlu0 %322
    %324 = vadd.xlane.f32.xlu0 %v303
    %v325 = vpop.xlane.xlu0 %324
    %326 = vadd.xlane.f32.xlu0 %v306
    %v327 = vpop.xlane.xlu0 %326
    %328 = vadd.xlane.f32.xlu0 %v308
    %v329 = vpop.xlane.xlu0 %328
    %330 = vadd.xlane.f32.xlu0 %v311
    %v331 = vpop.xlane.xlu0 %330
    %332 = vadd.xlane.f32.xlu0 %v313
    %v333 = vpop.xlane.xlu0 %332
    %334 = vadd.xlane.f32.xlu0 %v316
    %v335 = vpop.xlane.xlu0 %334
    %336 = vadd.xlane.f32.xlu0 %v318
    %v337 = vpop.xlane.xlu0 %336
    %v338 = vrcp.pop 128.0
    %v339 = vmul.f32 128.0, %v338
    %v340 = vsub.f32 1.0, %v339
    %v341 = vmul.f32 %v338, %v340
    %v342 = vadd.f32 %v338, %v341
    %vm343 = vweird.f32 %v338
    %v344 = vsel %vm343, %v338, %v342
    %v345 = vmul.f32 %v323, %v344
    %v346 = vmul.f32 %v325, %v344
    %v347 = vmul.f32 %v327, %v344
    %v348 = vmul.f32 %v329, %v344
    %v349 = vmul.f32 %v331, %v344
    %v350 = vmul.f32 %v333, %v344
    %v351 = vmul.f32 %v335, %v344
    %v352 = vmul.f32 %v337, %v344
    %v353 = vsub.f32 %v301, %v345
    %v354 = vsub.f32 %v303, %v346
    %v355 = vsub.f32 %v306, %v347
    %v356 = vsub.f32 %v308, %v348
    %v357 = vsub.f32 %v311, %v349
    %v358 = vsub.f32 %v313, %v350
    %v359 = vsub.f32 %v316, %v351
    %v360 = vsub.f32 %v318, %v352
    %v361 = vmul.f32 %v353, %v353
    %v362 = vmul.f32 %v354, %v354
    %v363 = vmul.f32 %v355, %v355
    %v364 = vmul.f32 %v356, %v356
    %v365 = vmul.f32 %v357, %v357
    %v366 = vmul.f32 %v358, %v358
    %v367 = vmul.f32 %v359, %v359
    %v368 = vmul.f32 %v360, %v360
    %369 = vadd.xlane.f32.xlu0 %v361
    %v370 = vpop.xlane.xlu0 %369
    %371 = vadd.xlane.f32.xlu0 %v362
    %v372 = vpop.xlane.xlu0 %371
    %373 = vadd.xlane.f32.xlu0 %v363
    %v374 = vpop.xlane.xlu0 %373
    %375 = vadd.xlane.f32.xlu0 %v364
    %v376 = vpop.xlane.xlu0 %375
    %377 = vadd.xlane.f32.xlu0 %v365
    %v378 = vpop.xlane.xlu0 %377
    %379 = vadd.xlane.f32.xlu0 %v366
    %v380 = vpop.xlane.xlu0 %379
    %381 = vadd.xlane.f32.xlu0 %v367
    %v382 = vpop.xlane.xlu0 %381
    %383 = vadd.xlane.f32.xlu0 %v368
    %v384 = vpop.xlane.xlu0 %383
    %v385 = vmul.f32 %v370, %v344
    %v386 = vmul.f32 %v372, %v344
    %v387 = vmul.f32 %v374, %v344
    %v388 = vmul.f32 %v376, %v344
    %v389 = vmul.f32 %v378, %v344
    %v390 = vmul.f32 %v380, %v344
    %v391 = vmul.f32 %v382, %v344
    %v392 = vmul.f32 %v384, %v344
    %v393 = vadd.f32 %v385, 1e-12
    %v394 = vadd.f32 %v386, 1e-12
    %v395 = vadd.f32 %v387, 1e-12
    %v396 = vadd.f32 %v388, 1e-12
    %v397 = vadd.f32 %v389, 1e-12
    %v398 = vadd.f32 %v390, 1e-12
    %v399 = vadd.f32 %v391, 1e-12
    %v400 = vadd.f32 %v392, 1e-12
    %v401 = vrsqrt.pop %v393
    %v402 = vmul.f32 %v401, %v393
    %v403 = vmul.f32 %v402, %v401
    %v404 = vmul.f32 0.5, %v403
    %v405 = vsub.f32 1.5, %v404
    %v406 = vmul.f32 %v401, %v405
    %vm407 = vweird.f32 %v393
    %vm408 = vweird.f32 %v401
    %vm409 = vmor %vm407, %vm408
    %v410 = vsel %vm409, %v401, %v406
    %v411 = vrsqrt.pop %v394
    %v412 = vmul.f32 %v411, %v394
    %v413 = vmul.f32 %v412, %v411
    %v414 = vmul.f32 0.5, %v413
    %v415 = vsub.f32 1.5, %v414
    %v416 = vmul.f32 %v411, %v415
    %vm417 = vweird.f32 %v394
    %vm418 = vweird.f32 %v411
    %vm419 = vmor %vm417, %vm418
    %v420 = vsel %vm419, %v411, %v416
    %v421 = vrsqrt.pop %v395
    %v422 = vmul.f32 %v421, %v395
    %v423 = vmul.f32 %v422, %v421
    %v424 = vmul.f32 0.5, %v423
    %v425 = vsub.f32 1.5, %v424
    %v426 = vmul.f32 %v421, %v425
    %vm427 = vweird.f32 %v395
    %vm428 = vweird.f32 %v421
    %vm429 = vmor %vm427, %vm428
    %v430 = vsel %vm429, %v421, %v426
    %v431 = vrsqrt.pop %v396
    %v432 = vmul.f32 %v431, %v396
    %v433 = vmul.f32 %v432, %v431
    %v434 = vmul.f32 0.5, %v433
    %v435 = vsub.f32 1.5, %v434
    %v436 = vmul.f32 %v431, %v435
    %vm437 = vweird.f32 %v396
    %vm438 = vweird.f32 %v431
    %vm439 = vmor %vm437, %vm438
    %v440 = vsel %vm439, %v431, %v436
    %v441 = vrsqrt.pop %v397
    %v442 = vmul.f32 %v441, %v397
    %v443 = vmul.f32 %v442, %v441
    %v444 = vmul.f32 0.5, %v443
    %v445 = vsub.f32 1.5, %v444
    %v446 = vmul.f32 %v441, %v445
    %vm447 = vweird.f32 %v397
    %vm448 = vweird.f32 %v441
    %vm449 = vmor %vm447, %vm448
    %v450 = vsel %vm449, %v441, %v446
    %v451 = vrsqrt.pop %v398
    %v452 = vmul.f32 %v451, %v398
    %v453 = vmul.f32 %v452, %v451
    %v454 = vmul.f32 0.5, %v453
    %v455 = vsub.f32 1.5, %v454
    %v456 = vmul.f32 %v451, %v455
    %vm457 = vweird.f32 %v398
    %vm458 = vweird.f32 %v451
    %vm459 = vmor %vm457, %vm458
    %v460 = vsel %vm459, %v451, %v456
    %v461 = vrsqrt.pop %v399
    %v462 = vmul.f32 %v461, %v399
    %v463 = vmul.f32 %v462, %v461
    %v464 = vmul.f32 0.5, %v463
    %v465 = vsub.f32 1.5, %v464
    %v466 = vmul.f32 %v461, %v465
    %vm467 = vweird.f32 %v399
    %vm468 = vweird.f32 %v461
    %vm469 = vmor %vm467, %vm468
    %v470 = vsel %vm469, %v461, %v466
    %v471 = vrsqrt.pop %v400
    %v472 = vmul.f32 %v471, %v400
    %v473 = vmul.f32 %v472, %v471
    %v474 = vmul.f32 0.5, %v473
    %v475 = vsub.f32 1.5, %v474
    %v476 = vmul.f32 %v471, %v475
    %vm477 = vweird.f32 %v400
    %vm478 = vweird.f32 %v471
    %vm479 = vmor %vm477, %vm478
    %v480 = vsel %vm479, %v471, %v476
    %v481 = vmul.f32 %v353, %v410
    %v482 = vmul.f32 %v354, %v420
    %v483 = vmul.f32 %v355, %v430
    %v484 = vmul.f32 %v356, %v440
    %v485 = vmul.f32 %v357, %v450
    %v486 = vmul.f32 %v358, %v460
    %v487 = vmul.f32 %v359, %v470
    %v488 = vmul.f32 %v360, %v480
    %v490 = vperm.slane %v320, 0
    %v492 = vmul.f32 %v481, %v490
    %v493 = vmul.f32 %v482, %v490
    %v494 = vmul.f32 %v483, %v490
    %v495 = vmul.f32 %v484, %v490
    %v496 = vmul.f32 %v485, %v490
    %v497 = vmul.f32 %v486, %v490
    %v498 = vmul.f32 %v487, %v490
    %v499 = vmul.f32 %v488, %v490
    %v501 = vperm.slane %v321, 0
    %v503 = vadd.f32 %v492, %v501
    %v504 = vadd.f32 %v493, %v501
    %v505 = vadd.f32 %v494, %v501
    %v506 = vadd.f32 %v495, %v501
    %v507 = vadd.f32 %v496, %v501
    %v508 = vadd.f32 %v497, %v501
    %v509 = vadd.f32 %v498, %v501
    %v510 = vadd.f32 %v499, %v501
    %v511 = vld [vmem:[%s1] sm:$0x1]
    %v512 = vld [vmem:[%s1 + $0x1] sm:$0x1]
    %v513 = vld [vmem:[%s1 + $0x2] sm:$0x1]
    %v514 = vld [vmem:[%s1 + $0x3] sm:$0x1]
    %v515 = vld [vmem:[%s1 + $0x4] sm:$0x1]
    %v516 = vld [vmem:[%s1 + $0x5] sm:$0x1]
    %v517 = vld [vmem:[%s1 + $0x6] sm:$0x1]
    %v518 = vld [vmem:[%s1 + $0x7] sm:$0x1]
    %v519 = vpack.c.bf16 %v504, %v503
    %v520 = vpack.c.bf16 %v506, %v505
    %v521 = vpack.c.bf16 %v508, %v507
    %v522 = vpack.c.bf16 %v510, %v509
    %v523 = vld [vmem:[#allocation6] sm:$0xff]
    %v524 = vld [vmem:[#allocation6 + $0x8] sm:$0xf]
    %v525 = vld [vmem:[#allocation6 + $0xc] sm:$0xff]
    %v526 = vld [vmem:[#allocation6 + $0x14] sm:$0xf]
    %v527 = vld [vmem:[#allocation6 + $0x18] sm:$0xff]
    %v528 = vld [vmem:[#allocation6 + $0x20] sm:$0xf]
    %v529 = vld [vmem:[#allocation6 + $0x24] sm:$0xff]
    %v530 = vld [vmem:[#allocation6 + $0x2c] sm:$0xf]
    %v531 = vld [vmem:[#allocation6 + $0x30] sm:$0xff]
    %v532 = vld [vmem:[#allocation6 + $0x38] sm:$0xf]
    %v533 = vld [vmem:[#allocation6 + $0x3c] sm:$0xff]
    %v534 = vld [vmem:[#allocation6 + $0x44] sm:$0xf]
    %v535 = vld [vmem:[#allocation6 + $0x48] sm:$0xff]
    %v536 = vld [vmem:[#allocation6 + $0x50] sm:$0xf]
    %v537 = vld [vmem:[#allocation6 + $0x54] sm:$0xff]
    %v538 = vld [vmem:[#allocation6 + $0x5c] sm:$0xf]
    %v539 = vld [vmem:[#allocation6 + $0x60] sm:$0xff]
    %v540 = vld [vmem:[#allocation6 + $0x68] sm:$0xf]
    %v541 = vld [vmem:[#allocation6 + $0x6c] sm:$0xff]
    %v542 = vld [vmem:[#allocation6 + $0x74] sm:$0xf]
    %v543 = vld [vmem:[#allocation6 + $0x78] sm:$0xff]
    %v544 = vld [vmem:[#allocation6 + $0x80] sm:$0xf]
    %v545 = vld [vmem:[#allocation6 + $0x84] sm:$0xff]
    %v546 = vld [vmem:[#allocation6 + $0x8c] sm:$0xf]
    %v547 = vld [vmem:[#allocation6 + $0x90] sm:$0xff]
    %v548 = vld [vmem:[#allocation6 + $0x98] sm:$0xf]
    %v549 = vld [vmem:[#allocation6 + $0x9c] sm:$0xff]
    %v550 = vld [vmem:[#allocation6 + $0xa4] sm:$0xf]
    %v551 = vld [vmem:[#allocation6 + $0xa8] sm:$0xff]
    %v552 = vld [vmem:[#allocation6 + $0xb0] sm:$0xf]
    %v553 = vld [vmem:[#allocation6 + $0xb4] sm:$0xff]
    %v554 = vld [vmem:[#allocation6 + $0xbc] sm:$0xf]
    %v555 = vld [vmem:[%s8] sm:$0x7]
    %v557 = vperm.slane %v555, 0
    %v558 = vperm.slane %v555, 1
    %v559 = vperm.slane %v555, 2
    %v595 = vunpack.c.l.b16 %v523
    %v596 = vunpack.c.h.b16 %v523
    %v597 = vunpack.c.l.b16 %v524
    %v598 = vunpack.c.l.b16 %v525
    %v599 = vunpack.c.h.b16 %v525
    %v600 = vunpack.c.l.b16 %v526
    %v601 = vunpack.c.l.b16 %v527
    %v602 = vunpack.c.h.b16 %v527
    %v603 = vunpack.c.l.b16 %v528
    %v604 = vunpack.c.l.b16 %v529
    %v605 = vunpack.c.h.b16 %v529
    %v606 = vunpack.c.l.b16 %v530
    %v607 = vunpack.c.l.b16 %v531
    %v608 = vunpack.c.h.b16 %v531
    %v609 = vunpack.c.l.b16 %v532
    %v610 = vunpack.c.l.b16 %v533
    %v611 = vunpack.c.h.b16 %v533
    %v612 = vunpack.c.l.b16 %v534
    %v613 = vunpack.c.l.b16 %v535
    %v614 = vunpack.c.h.b16 %v535
    %v615 = vunpack.c.l.b16 %v536
    %v616 = vunpack.c.l.b16 %v537
    %v617 = vunpack.c.h.b16 %v537
    %v618 = vunpack.c.l.b16 %v538
    %v619 = vunpack.c.l.b16 %v539
    %v620 = vunpack.c.h.b16 %v539
    %v621 = vunpack.c.l.b16 %v540
    %v622 = vunpack.c.l.b16 %v541
    %v623 = vunpack.c.h.b16 %v541
    %v624 = vunpack.c.l.b16 %v542
    %v625 = vunpack.c.l.b16 %v543
    %v626 = vunpack.c.h.b16 %v543
    %v627 = vunpack.c.l.b16 %v544
    %v628 = vunpack.c.l.b16 %v545
    %v629 = vunpack.c.h.b16 %v545
    %v630 = vunpack.c.l.b16 %v546
    %v631 = vunpack.c.l.b16 %v547
    %v632 = vunpack.c.h.b16 %v547
    %v633 = vunpack.c.l.b16 %v548
    %v634 = vunpack.c.l.b16 %v549
    %v635 = vunpack.c.h.b16 %v549
    %v636 = vunpack.c.l.b16 %v550
    %v637 = vunpack.c.l.b16 %v551
    %v638 = vunpack.c.h.b16 %v551
    %v639 = vunpack.c.l.b16 %v552
    %v640 = vunpack.c.l.b16 %v553
    %v641 = vunpack.c.h.b16 %v553
    %v642 = vunpack.c.l.b16 %v554
    %v643 = vpack.c.b16 %v598, %v595
    %v644 = vpack.c.b16 %v599, %v596
    %v645 = vpack.c.b16 %v600, %v597
    %v646 = vpack.c.b16 %v604, %v601
    %v647 = vpack.c.b16 %v605, %v602
    %v648 = vpack.c.b16 %v606, %v603
    %v649 = vpack.c.b16 %v610, %v607
    %v650 = vpack.c.b16 %v611, %v608
    %v651 = vpack.c.b16 %v612, %v609
    %v652 = vpack.c.b16 %v616, %v613
    %v653 = vpack.c.b16 %v617, %v614
    %v654 = vpack.c.b16 %v618, %v615
    %v655 = vpack.c.b16 %v622, %v619
    %v656 = vpack.c.b16 %v623, %v620
    %v657 = vpack.c.b16 %v624, %v621
    %v658 = vpack.c.b16 %v628, %v625
    %v659 = vpack.c.b16 %v629, %v626
    %v660 = vpack.c.b16 %v630, %v627
    %v661 = vpack.c.b16 %v634, %v631
    %v662 = vpack.c.b16 %v635, %v632
    %v663 = vpack.c.b16 %v636, %v633
    %v664 = vpack.c.b16 %v640, %v637
    %v665 = vpack.c.b16 %v641, %v638
    %v666 = vpack.c.b16 %v642, %v639
    %691 = vmatpush.bf16.msra.mxu0 %v664
    %692 = vmatpush.bf16.msra.mxu0 %v661
    %693 = vmatpush.bf16.msra.mxu0 %v658
    %694 = vmatpush.bf16.msra.mxu0 %v655
    %695 = vmatpush.bf16.msra.mxu0 %v652
    %696 = vmatpush.bf16.msra.mxu0 %v649
    %697 = vmatpush.bf16.msra.mxu0 %v646
    %698 = vmatpush.bf16.msra.mxu0 %v643
    %699 = vmatmul.bf16.gmra.mxu0 %v519
    %v700 = vpop.f32.mrf.mxu0
    %v701 = vadd.f32 %v557, %v700
    %v702 = vpop.f32.mrf.mxu0
    %v703 = vadd.f32 %v557, %v702
    %704 = vmatmul.bf16.gmra.mxu0 %v520
    %v705 = vpop.f32.mrf.mxu0
    %v706 = vadd.f32 %v557, %v705
    %v707 = vpop.f32.mrf.mxu0
    %v708 = vadd.f32 %v557, %v707
    %709 = vmatmul.bf16.gmra.mxu0 %v521
    %v710 = vpop.f32.mrf.mxu0
    %v711 = vadd.f32 %v557, %v710
    %v712 = vpop.f32.mrf.mxu0
    %v713 = vadd.f32 %v557, %v712
    %714 = vmatmul.bf16.gmra.mxu0 %v522
    %v715 = vpop.f32.mrf.mxu0
    %v716 = vadd.f32 %v557, %v715
    %v717 = vpop.f32.mrf.mxu0
    %v718 = vadd.f32 %v557, %v717
    %719 = vdwg.mxu0
    %720 = vmatpush.bf16.msra.mxu0 %v665
    %721 = vmatpush.bf16.msra.mxu0 %v662
    %722 = vmatpush.bf16.msra.mxu0 %v659
    %723 = vmatpush.bf16.msra.mxu0 %v656
    %724 = vmatpush.bf16.msra.mxu0 %v653
    %725 = vmatpush.bf16.msra.mxu0 %v650
    %726 = vmatpush.bf16.msra.mxu0 %v647
    %727 = vmatpush.bf16.msra.mxu0 %v644
    %728 = vmatmul.bf16.gmra.mxu0 %v519
    %v729 = vpop.f32.mrf.mxu0
    %v730 = vadd.f32 %v558, %v729
    %v731 = vpop.f32.mrf.mxu0
    %v732 = vadd.f32 %v558, %v731
    %733 = vmatmul.bf16.gmra.mxu0 %v520
    %v734 = vpop.f32.mrf.mxu0
    %v735 = vadd.f32 %v558, %v734
    %v736 = vpop.f32.mrf.mxu0
    %v737 = vadd.f32 %v558, %v736
    %738 = vmatmul.bf16.gmra.mxu0 %v521
    %v739 = vpop.f32.mrf.mxu0
    %v740 = vadd.f32 %v558, %v739
    %v741 = vpop.f32.mrf.mxu0
    %v742 = vadd.f32 %v558, %v741
    %743 = vmatmul.bf16.gmra.mxu0 %v522
    %v744 = vpop.f32.mrf.mxu0
    %v745 = vadd.f32 %v558, %v744
    %v746 = vpop.f32.mrf.mxu0
    %v747 = vadd.f32 %v558, %v746
    %748 = vdwg.mxu0
    %749 = vmatpush.bf16.msra.mxu0 %v666
    %750 = vmatpush.bf16.msra.mxu0 %v663
    %751 = vmatpush.bf16.msra.mxu0 %v660
    %752 = vmatpush.bf16.msra.mxu0 %v657
    %753 = vmatpush.bf16.msra.mxu0 %v654
    %754 = vmatpush.bf16.msra.mxu0 %v651
    %755 = vmatpush.bf16.msra.mxu0 %v648
    %756 = vmatpush.bf16.msra.mxu0 %v645
    %757 = vmatmul.bf16.gmra.mxu0 %v519
    %v758 = vpop.f32.mrf.mxu0
    %v759 = vadd.f32 %v559, %v758
    %v760 = vpop.f32.mrf.mxu0
    %v761 = vadd.f32 %v559, %v760
    %762 = vmatmul.bf16.gmra.mxu0 %v520
    %v763 = vpop.f32.mrf.mxu0
    %v764 = vadd.f32 %v559, %v763
    %v765 = vpop.f32.mrf.mxu0
    %v766 = vadd.f32 %v559, %v765
    %767 = vmatmul.bf16.gmra.mxu0 %v521
    %v768 = vpop.f32.mrf.mxu0
    %v769 = vadd.f32 %v559, %v768
    %v770 = vpop.f32.mrf.mxu0
    %v771 = vadd.f32 %v559, %v770
    %772 = vmatmul.bf16.gmra.mxu0 %v522
    %v773 = vpop.f32.mrf.mxu0
    %v774 = vadd.f32 %v559, %v773
    %v775 = vpop.f32.mrf.mxu0
    %v776 = vadd.f32 %v559, %v775
    %777 = vdwg.mxu0
    %v778 = vpack.c.bf16 %v701, %v701
    %v779 = vpack.c.bf16 %v703, %v703
    %v780 = vpack.c.bf16 %v706, %v706
    %v781 = vpack.c.bf16 %v708, %v708
    %v782 = vpack.c.bf16 %v711, %v711
    %v783 = vpack.c.bf16 %v713, %v713
    %v784 = vpack.c.bf16 %v716, %v716
    %v785 = vpack.c.bf16 %v718, %v718
    %v786 = vpack.c.bf16 %v730, %v730
    %v787 = vpack.c.bf16 %v732, %v732
    %v788 = vpack.c.bf16 %v735, %v735
    %v789 = vpack.c.bf16 %v737, %v737
    %v790 = vpack.c.bf16 %v740, %v740
    %v791 = vpack.c.bf16 %v742, %v742
    %v792 = vpack.c.bf16 %v745, %v745
    %v793 = vpack.c.bf16 %v747, %v747
    %v794 = vpack.c.bf16 %v759, %v759
    %v795 = vpack.c.bf16 %v761, %v761
    %v796 = vpack.c.bf16 %v764, %v764
    %v797 = vpack.c.bf16 %v766, %v766
    %v798 = vpack.c.bf16 %v769, %v769
    %v799 = vpack.c.bf16 %v771, %v771
    %v800 = vpack.c.bf16 %v774, %v774
    %v801 = vpack.c.bf16 %v776, %v776
    %vm802 = vcmask 261120
    %v804 = vsel %vm802, %v778, 0
    %v807 = vsel %vm802, %v786, 0
    %809 = vmatpush.bf16.xpose.msra.mxu0 0
    %810 = vmatpush.bf16.xpose.msra.mxu0 0
    %811 = vmatpush.bf16.xpose.msra.mxu0 0
    %812 = vmatpush.bf16.xpose.msra.mxu0 0
    %813 = vmatpush.bf16.xpose.msra.mxu0 0
    %814 = vmatpush.bf16.xpose.msra.mxu0 0
    %815 = vmatpush.bf16.xpose.msra.mxu0 0
    %816 = vmatpush.bf16.xpose.msra.mxu0 %v807
    %817 = vmatmul.bf16.gmra.mxu0 %v804
    %v818 = vpop.f32.mrf.mxu0
    %v819 = vadd.f32 0.0, %v818
    %v820 = vpop.f32.mrf.mxu0
    %821 = vdwg.mxu0
    %v823 = vsel %vm802, %v779, 0
    %v826 = vsel %vm802, %v787, 0
    %828 = vmatpush.bf16.xpose.msra.mxu0 0
    %829 = vmatpush.bf16.xpose.msra.mxu0 0
    %830 = vmatpush.bf16.xpose.msra.mxu0 0
    %831 = vmatpush.bf16.xpose.msra.mxu0 0
    %832 = vmatpush.bf16.xpose.msra.mxu0 0
    %833 = vmatpush.bf16.xpose.msra.mxu0 0
    %834 = vmatpush.bf16.xpose.msra.mxu0 0
    %835 = vmatpush.bf16.xpose.msra.mxu0 %v826
    %836 = vmatmul.bf16.gmra.mxu0 %v823
    %v837 = vpop.f32.mrf.mxu0
    %v838 = vadd.f32 0.0, %v837
    %v839 = vpop.f32.mrf.mxu0
    %840 = vdwg.mxu0
    %v842 = vsel %vm802, %v780, 0
    %v845 = vsel %vm802, %v788, 0
    %847 = vmatpush.bf16.xpose.msra.mxu0 0
    %848 = vmatpush.bf16.xpose.msra.mxu0 0
    %849 = vmatpush.bf16.xpose.msra.mxu0 0
    %850 = vmatpush.bf16.xpose.msra.mxu0 0
    %851 = vmatpush.bf16.xpose.msra.mxu0 0
    %852 = vmatpush.bf16.xpose.msra.mxu0 0
    %853 = vmatpush.bf16.xpose.msra.mxu0 0
    %854 = vmatpush.bf16.xpose.msra.mxu0 %v845
    %855 = vmatmul.bf16.gmra.mxu0 %v842
    %v856 = vpop.f32.mrf.mxu0
    %v857 = vadd.f32 0.0, %v856
    %v858 = vpop.f32.mrf.mxu0
    %859 = vdwg.mxu0
    %v861 = vsel %vm802, %v781, 0
    %v864 = vsel %vm802, %v789, 0
    %866 = vmatpush.bf16.xpose.msra.mxu0 0
    %867 = vmatpush.bf16.xpose.msra.mxu0 0
    %868 = vmatpush.bf16.xpose.msra.mxu0 0
    %869 = vmatpush.bf16.xpose.msra.mxu0 0
    %870 = vmatpush.bf16.xpose.msra.mxu0 0
    %871 = vmatpush.bf16.xpose.msra.mxu0 0
    %872 = vmatpush.bf16.xpose.msra.mxu0 0
    %873 = vmatpush.bf16.xpose.msra.mxu0 %v864
    %874 = vmatmul.bf16.gmra.mxu0 %v861
    %v875 = vpop.f32.mrf.mxu0
    %v876 = vadd.f32 0.0, %v875
    %v877 = vpop.f32.mrf.mxu0
    %878 = vdwg.mxu0
    %v880 = vsel %vm802, %v782, 0
    %v883 = vsel %vm802, %v790, 0
    %885 = vmatpush.bf16.xpose.msra.mxu0 0
    %886 = vmatpush.bf16.xpose.msra.mxu0 0
    %887 = vmatpush.bf16.xpose.msra.mxu0 0
    %888 = vmatpush.bf16.xpose.msra.mxu0 0
    %889 = vmatpush.bf16.xpose.msra.mxu0 0
    %890 = vmatpush.bf16.xpose.msra.mxu0 0
    %891 = vmatpush.bf16.xpose.msra.mxu0 0
    %892 = vmatpush.bf16.xpose.msra.mxu0 %v883
    %893 = vmatmul.bf16.gmra.mxu0 %v880
    %v894 = vpop.f32.mrf.mxu0
    %v895 = vadd.f32 0.0, %v894
    %v896 = vpop.f32.mrf.mxu0
    %897 = vdwg.mxu0
    %v899 = vsel %vm802, %v783, 0
    %v902 = vsel %vm802, %v791, 0
    %904 = vmatpush.bf16.xpose.msra.mxu0 0
    %905 = vmatpush.bf16.xpose.msra.mxu0 0
    %906 = vmatpush.bf16.xpose.msra.mxu0 0
    %907 = vmatpush.bf16.xpose.msra.mxu0 0
    %908 = vmatpush.bf16.xpose.msra.mxu0 0
    %909 = vmatpush.bf16.xpose.msra.mxu0 0
    %910 = vmatpush.bf16.xpose.msra.mxu0 0
    %911 = vmatpush.bf16.xpose.msra.mxu0 %v902
    %912 = vmatmul.bf16.gmra.mxu0 %v899
    %v913 = vpop.f32.mrf.mxu0
    %v914 = vadd.f32 0.0, %v913
    %v915 = vpop.f32.mrf.mxu0
    %916 = vdwg.mxu0
    %v918 = vsel %vm802, %v784, 0
    %v921 = vsel %vm802, %v792, 0
    %923 = vmatpush.bf16.xpose.msra.mxu0 0
    %924 = vmatpush.bf16.xpose.msra.mxu0 0
    %925 = vmatpush.bf16.xpose.msra.mxu0 0
    %926 = vmatpush.bf16.xpose.msra.mxu0 0
    %927 = vmatpush.bf16.xpose.msra.mxu0 0
    %928 = vmatpush.bf16.xpose.msra.mxu0 0
    %929 = vmatpush.bf16.xpose.msra.mxu0 0
    %930 = vmatpush.bf16.xpose.msra.mxu0 %v921
    %931 = vmatmul.bf16.gmra.mxu0 %v918
    %v932 = vpop.f32.mrf.mxu0
    %v933 = vadd.f32 0.0, %v932
    %v934 = vpop.f32.mrf.mxu0
    %935 = vdwg.mxu0
    %v937 = vsel %vm802, %v785, 0
    %v940 = vsel %vm802, %v793, 0
    %942 = vmatpush.bf16.xpose.msra.mxu0 0
    %943 = vmatpush.bf16.xpose.msra.mxu0 0
    %944 = vmatpush.bf16.xpose.msra.mxu0 0
    %945 = vmatpush.bf16.xpose.msra.mxu0 0
    %946 = vmatpush.bf16.xpose.msra.mxu0 0
    %947 = vmatpush.bf16.xpose.msra.mxu0 0
    %948 = vmatpush.bf16.xpose.msra.mxu0 0
    %949 = vmatpush.bf16.xpose.msra.mxu0 %v940
    %950 = vmatmul.bf16.gmra.mxu0 %v937
    %v951 = vpop.f32.mrf.mxu0
    %v952 = vadd.f32 0.0, %v951
    %v953 = vpop.f32.mrf.mxu0
    %954 = vdwg.mxu0
    %v955 = vmul.f32 %v819, 0.17677669
    %v956 = vmul.f32 %v838, 0.17677669
    %v957 = vmul.f32 %v857, 0.17677669
    %v958 = vmul.f32 %v876, 0.17677669
    %v959 = vmul.f32 %v895, 0.17677669
    %v960 = vmul.f32 %v914, 0.17677669
    %v961 = vmul.f32 %v933, 0.17677669
    %v962 = vmul.f32 %v952, 0.17677669
    %v971 = vperm.slane %v511, 0
    %v972 = vperm.slane %v512, 0
    %v973 = vperm.slane %v513, 0
    %v974 = vperm.slane %v514, 0
    %v975 = vperm.slane %v515, 0
    %v976 = vperm.slane %v516, 0
    %v977 = vperm.slane %v517, 0
    %v978 = vperm.slane %v518, 0
    %v987 = vadd.f32 %v955, %v971
    %v988 = vadd.f32 %v956, %v972
    %v989 = vadd.f32 %v957, %v973
    %v990 = vadd.f32 %v958, %v974
    %v991 = vadd.f32 %v959, %v975
    %v992 = vadd.f32 %v960, %v976
    %v993 = vadd.f32 %v961, %v977
    %v994 = vadd.f32 %v962, %v978
    %vm995 = vcmask 64512
    %v996 = vsel %vm995, %v987, -inf
    %997 = vmax.xlane.f32.xlu0 %v996
    %v998 = vpop.xlane.xlu0 %997
    %v999 = vsel %vm995, %v988, -inf
    %1000 = vmax.xlane.f32.xlu0 %v999
    %v1001 = vpop.xlane.xlu0 %1000
    %v1002 = vsel %vm995, %v989, -inf
    %1003 = vmax.xlane.f32.xlu0 %v1002
    %v1004 = vpop.xlane.xlu0 %1003
    %v1005 = vsel %vm995, %v990, -inf
    %1006 = vmax.xlane.f32.xlu0 %v1005
    %v1007 = vpop.xlane.xlu0 %1006
    %v1008 = vsel %vm995, %v991, -inf
    %1009 = vmax.xlane.f32.xlu0 %v1008
    %v1010 = vpop.xlane.xlu0 %1009
    %v1011 = vsel %vm995, %v992, -inf
    %1012 = vmax.xlane.f32.xlu0 %v1011
    %v1013 = vpop.xlane.xlu0 %1012
    %v1014 = vsel %vm995, %v993, -inf
    %1015 = vmax.xlane.f32.xlu0 %v1014
    %v1016 = vpop.xlane.xlu0 %1015
    %v1017 = vsel %vm995, %v994, -inf
    %1018 = vmax.xlane.f32.xlu0 %v1017
    %v1019 = vpop.xlane.xlu0 %1018
    %v1020 = vsub.f32 %v987, %v998
    %v1021 = vsub.f32 %v988, %v1001
    %v1022 = vsub.f32 %v989, %v1004
    %v1023 = vsub.f32 %v990, %v1007
    %v1024 = vsub.f32 %v991, %v1010
    %v1025 = vsub.f32 %v992, %v1013
    %v1026 = vsub.f32 %v993, %v1016
    %v1027 = vsub.f32 %v994, %v1019
    %v1028 = vmul.f32 %v1020, 1.442695
    %v1029 = vpow.pop %v1028
    %v1030 = vmul.f32 %v1021, 1.442695
    %v1031 = vpow.pop %v1030
    %v1032 = vmul.f32 %v1022, 1.442695
    %v1033 = vpow.pop %v1032
    %v1034 = vmul.f32 %v1023, 1.442695
    %v1035 = vpow.pop %v1034
    %v1036 = vmul.f32 %v1024, 1.442695
    %v1037 = vpow.pop %v1036
    %v1038 = vmul.f32 %v1025, 1.442695
    %v1039 = vpow.pop %v1038
    %v1040 = vmul.f32 %v1026, 1.442695
    %v1041 = vpow.pop %v1040
    %v1042 = vmul.f32 %v1027, 1.442695
    %v1043 = vpow.pop %v1042
    %v1044 = vsel %vm995, %v1029, 0.0
    %1045 = vadd.xlane.f32.xlu0 %v1044
    %v1046 = vpop.xlane.xlu0 %1045
    %v1047 = vsel %vm995, %v1031, 0.0
    %1048 = vadd.xlane.f32.xlu0 %v1047
    %v1049 = vpop.xlane.xlu0 %1048
    %v1050 = vsel %vm995, %v1033, 0.0
    %1051 = vadd.xlane.f32.xlu0 %v1050
    %v1052 = vpop.xlane.xlu0 %1051
    %v1053 = vsel %vm995, %v1035, 0.0
    %1054 = vadd.xlane.f32.xlu0 %v1053
    %v1055 = vpop.xlane.xlu0 %1054
    %v1056 = vsel %vm995, %v1037, 0.0
    %1057 = vadd.xlane.f32.xlu0 %v1056
    %v1058 = vpop.xlane.xlu0 %1057
    %v1059 = vsel %vm995, %v1039, 0.0
    %1060 = vadd.xlane.f32.xlu0 %v1059
    %v1061 = vpop.xlane.xlu0 %1060
    %v1062 = vsel %vm995, %v1041, 0.0
    %1063 = vadd.xlane.f32.xlu0 %v1062
    %v1064 = vpop.xlane.xlu0 %1063
    %v1065 = vsel %vm995, %v1043, 0.0
    %1066 = vadd.xlane.f32.xlu0 %v1065
    %v1067 = vpop.xlane.xlu0 %1066
    %v1068 = vrcp.pop %v1046
    %v1069 = vrcp.pop %v1049
    %v1070 = vrcp.pop %v1052
    %v1071 = vrcp.pop %v1055
    %v1072 = vrcp.pop %v1058
    %v1073 = vrcp.pop %v1061
    %v1074 = vrcp.pop %v1064
    %v1075 = vrcp.pop %v1067
    %v1076 = vmul.f32 %v1029, %v1068
    %v1077 = vmul.f32 %v1031, %v1069
    %v1078 = vmul.f32 %v1033, %v1070
    %v1079 = vmul.f32 %v1035, %v1071
    %v1080 = vmul.f32 %v1037, %v1072
    %v1081 = vmul.f32 %v1039, %v1073
    %v1082 = vmul.f32 %v1041, %v1074
    %v1083 = vmul.f32 %v1043, %v1075
    %v1084 = vpack.c.bf16 %v1076, %v1076
    %v1085 = vpack.c.bf16 %v1077, %v1077
    %v1086 = vpack.c.bf16 %v1078, %v1078
    %v1087 = vpack.c.bf16 %v1079, %v1079
    %v1088 = vpack.c.bf16 %v1080, %v1080
    %v1089 = vpack.c.bf16 %v1081, %v1081
    %v1090 = vpack.c.bf16 %v1082, %v1082
    %v1091 = vpack.c.bf16 %v1083, %v1083
    %v1093 = vsel %vm995, %v1084, 0
    %vm1095 = vcmask 1043456
    %v1097 = vsel %vm1095, %v794, 0
    %1099 = vmatpush.bf16.msra.mxu0 0
    %1100 = vmatpush.bf16.msra.mxu0 0
    %1101 = vmatpush.bf16.msra.mxu0 0
    %1102 = vmatpush.bf16.msra.mxu0 0
    %1103 = vmatpush.bf16.msra.mxu0 0
    %1104 = vmatpush.bf16.msra.mxu0 0
    %1105 = vmatpush.bf16.msra.mxu0 0
    %1106 = vmatpush.bf16.msra.mxu0 %v1097
    %1107 = vmatmul.bf16.gmra.mxu0 %v1093
    %v1108 = vpop.f32.mrf.mxu0
    %v1109 = vadd.f32 0.0, %v1108
    %v1110 = vpop.f32.mrf.mxu0
    %1111 = vdwg.mxu0
    %v1113 = vsel %vm995, %v1085, 0
    %v1116 = vsel %vm1095, %v795, 0
    %1118 = vmatpush.bf16.msra.mxu0 0
    %1119 = vmatpush.bf16.msra.mxu0 0
    %1120 = vmatpush.bf16.msra.mxu0 0
    %1121 = vmatpush.bf16.msra.mxu0 0
    %1122 = vmatpush.bf16.msra.mxu0 0
    %1123 = vmatpush.bf16.msra.mxu0 0
    %1124 = vmatpush.bf16.msra.mxu0 0
    %1125 = vmatpush.bf16.msra.mxu0 %v1116
    %1126 = vmatmul.bf16.gmra.mxu0 %v1113
    %v1127 = vpop.f32.mrf.mxu0
    %v1128 = vadd.f32 0.0, %v1127
    %v1129 = vpop.f32.mrf.mxu0
    %1130 = vdwg.mxu0
    %v1132 = vsel %vm995, %v1086, 0
    %v1135 = vsel %vm1095, %v796, 0
    %1137 = vmatpush.bf16.msra.mxu0 0
    %1138 = vmatpush.bf16.msra.mxu0 0
    %1139 = vmatpush.bf16.msra.mxu0 0
    %1140 = vmatpush.bf16.msra.mxu0 0
    %1141 = vmatpush.bf16.msra.mxu0 0
    %1142 = vmatpush.bf16.msra.mxu0 0
    %1143 = vmatpush.bf16.msra.mxu0 0
    %1144 = vmatpush.bf16.msra.mxu0 %v1135
    %1145 = vmatmul.bf16.gmra.mxu0 %v1132
    %v1146 = vpop.f32.mrf.mxu0
    %v1147 = vadd.f32 0.0, %v1146
    %v1148 = vpop.f32.mrf.mxu0
    %1149 = vdwg.mxu0
    %v1151 = vsel %vm995, %v1087, 0
    %v1154 = vsel %vm1095, %v797, 0
    %1156 = vmatpush.bf16.msra.mxu0 0
    %1157 = vmatpush.bf16.msra.mxu0 0
    %1158 = vmatpush.bf16.msra.mxu0 0
    %1159 = vmatpush.bf16.msra.mxu0 0
    %1160 = vmatpush.bf16.msra.mxu0 0
    %1161 = vmatpush.bf16.msra.mxu0 0
    %1162 = vmatpush.bf16.msra.mxu0 0
    %1163 = vmatpush.bf16.msra.mxu0 %v1154
    %1164 = vmatmul.bf16.gmra.mxu0 %v1151
    %v1165 = vpop.f32.mrf.mxu0
    %v1166 = vadd.f32 0.0, %v1165
    %v1167 = vpop.f32.mrf.mxu0
    %1168 = vdwg.mxu0
    %v1170 = vsel %vm995, %v1088, 0
    %v1173 = vsel %vm1095, %v798, 0
    %1175 = vmatpush.bf16.msra.mxu0 0
    %1176 = vmatpush.bf16.msra.mxu0 0
    %1177 = vmatpush.bf16.msra.mxu0 0
    %1178 = vmatpush.bf16.msra.mxu0 0
    %1179 = vmatpush.bf16.msra.mxu0 0
    %1180 = vmatpush.bf16.msra.mxu0 0
    %1181 = vmatpush.bf16.msra.mxu0 0
    %1182 = vmatpush.bf16.msra.mxu0 %v1173
    %1183 = vmatmul.bf16.gmra.mxu0 %v1170
    %v1184 = vpop.f32.mrf.mxu0
    %v1185 = vadd.f32 0.0, %v1184
    %v1186 = vpop.f32.mrf.mxu0
    %1187 = vdwg.mxu0
    %v1189 = vsel %vm995, %v1089, 0
    %v1192 = vsel %vm1095, %v799, 0
    %1194 = vmatpush.bf16.msra.mxu0 0
    %1195 = vmatpush.bf16.msra.mxu0 0
    %1196 = vmatpush.bf16.msra.mxu0 0
    %1197 = vmatpush.bf16.msra.mxu0 0
    %1198 = vmatpush.bf16.msra.mxu0 0
    %1199 = vmatpush.bf16.msra.mxu0 0
    %1200 = vmatpush.bf16.msra.mxu0 0
    %1201 = vmatpush.bf16.msra.mxu0 %v1192
    %1202 = vmatmul.bf16.gmra.mxu0 %v1189
    %v1203 = vpop.f32.mrf.mxu0
    %v1204 = vadd.f32 0.0, %v1203
    %v1205 = vpop.f32.mrf.mxu0
    %1206 = vdwg.mxu0
    %v1208 = vsel %vm995, %v1090, 0
    %v1211 = vsel %vm1095, %v800, 0
    %1213 = vmatpush.bf16.msra.mxu0 0
    %1214 = vmatpush.bf16.msra.mxu0 0
    %1215 = vmatpush.bf16.msra.mxu0 0
    %1216 = vmatpush.bf16.msra.mxu0 0
    %1217 = vmatpush.bf16.msra.mxu0 0
    %1218 = vmatpush.bf16.msra.mxu0 0
    %1219 = vmatpush.bf16.msra.mxu0 0
    %1220 = vmatpush.bf16.msra.mxu0 %v1211
    %1221 = vmatmul.bf16.gmra.mxu0 %v1208
    %v1222 = vpop.f32.mrf.mxu0
    %v1223 = vadd.f32 0.0, %v1222
    %v1224 = vpop.f32.mrf.mxu0
    %1225 = vdwg.mxu0
    %v1227 = vsel %vm995, %v1091, 0
    %v1230 = vsel %vm1095, %v801, 0
    %1232 = vmatpush.bf16.msra.mxu0 0
    %1233 = vmatpush.bf16.msra.mxu0 0
    %1234 = vmatpush.bf16.msra.mxu0 0
    %1235 = vmatpush.bf16.msra.mxu0 0
    %1236 = vmatpush.bf16.msra.mxu0 0
    %1237 = vmatpush.bf16.msra.mxu0 0
    %1238 = vmatpush.bf16.msra.mxu0 0
    %1239 = vmatpush.bf16.msra.mxu0 %v1230
    %1240 = vmatmul.bf16.gmra.mxu0 %v1227
    %v1241 = vpop.f32.mrf.mxu0
    %v1242 = vadd.f32 0.0, %v1241
    %v1243 = vpop.f32.mrf.mxu0
    %1244 = vdwg.mxu0
    %v1246 = vunpack.c.l.b16 %v778
    %v1247 = vpack.c.b16 %v1246, %v1246
    %1248 = vrot.lane.b32.xlu0 %v1247, 96
    %v1249 = vpop.permute.xlu0 %1248
    %v1251 = vunpack.c.l.b16 %v786
    %v1252 = vpack.c.b16 %v1251, %v1251
    %1253 = vrot.lane.b32.xlu0 %v1252, 96
    %v1254 = vpop.permute.xlu0 %1253
    %v1256 = vsel %vm802, %v1249, 0
    %v1259 = vsel %vm802, %v1254, 0
    %1261 = vmatpush.bf16.xpose.msra.mxu0 0
    %1262 = vmatpush.bf16.xpose.msra.mxu0 0
    %1263 = vmatpush.bf16.xpose.msra.mxu0 0
    %1264 = vmatpush.bf16.xpose.msra.mxu0 0
    %1265 = vmatpush.bf16.xpose.msra.mxu0 0
    %1266 = vmatpush.bf16.xpose.msra.mxu0 0
    %1267 = vmatpush.bf16.xpose.msra.mxu0 0
    %1268 = vmatpush.bf16.xpose.msra.mxu0 %v1259
    %1269 = vmatmul.bf16.gmra.mxu0 %v1256
    %v1270 = vpop.f32.mrf.mxu0
    %v1271 = vadd.f32 0.0, %v1270
    %v1272 = vpop.f32.mrf.mxu0
    %1273 = vdwg.mxu0
    %v1275 = vunpack.c.l.b16 %v779
    %v1276 = vpack.c.b16 %v1275, %v1275
    %1277 = vrot.lane.b32.xlu0 %v1276, 96
    %v1278 = vpop.permute.xlu0 %1277
    %v1280 = vunpack.c.l.b16 %v787
    %v1281 = vpack.c.b16 %v1280, %v1280
    %1282 = vrot.lane.b32.xlu0 %v1281, 96
    %v1283 = vpop.permute.xlu0 %1282
    %v1285 = vsel %vm802, %v1278, 0
    %v1288 = vsel %vm802, %v1283, 0
    %1290 = vmatpush.bf16.xpose.msra.mxu0 0
    %1291 = vmatpush.bf16.xpose.msra.mxu0 0
    %1292 = vmatpush.bf16.xpose.msra.mxu0 0
    %1293 = vmatpush.bf16.xpose.msra.mxu0 0
    %1294 = vmatpush.bf16.xpose.msra.mxu0 0
    %1295 = vmatpush.bf16.xpose.msra.mxu0 0
    %1296 = vmatpush.bf16.xpose.msra.mxu0 0
    %1297 = vmatpush.bf16.xpose.msra.mxu0 %v1288
    %1298 = vmatmul.bf16.gmra.mxu0 %v1285
    %v1299 = vpop.f32.mrf.mxu0
    %v1300 = vadd.f32 0.0, %v1299
    %v1301 = vpop.f32.mrf.mxu0
    %1302 = vdwg.mxu0
    %v1304 = vunpack.c.l.b16 %v780
    %v1305 = vpack.c.b16 %v1304, %v1304
    %1306 = vrot.lane.b32.xlu0 %v1305, 96
    %v1307 = vpop.permute.xlu0 %1306
    %v1309 = vunpack.c.l.b16 %v788
    %v1310 = vpack.c.b16 %v1309, %v1309
    %1311 = vrot.lane.b32.xlu0 %v1310, 96
    %v1312 = vpop.permute.xlu0 %1311
    %v1314 = vsel %vm802, %v1307, 0
    %v1317 = vsel %vm802, %v1312, 0
    %1319 = vmatpush.bf16.xpose.msra.mxu0 0
    %1320 = vmatpush.bf16.xpose.msra.mxu0 0
    %1321 = vmatpush.bf16.xpose.msra.mxu0 0
    %1322 = vmatpush.bf16.xpose.msra.mxu0 0
    %1323 = vmatpush.bf16.xpose.msra.mxu0 0
    %1324 = vmatpush.bf16.xpose.msra.mxu0 0
    %1325 = vmatpush.bf16.xpose.msra.mxu0 0
    %1326 = vmatpush.bf16.xpose.msra.mxu0 %v1317
    %1327 = vmatmul.bf16.gmra.mxu0 %v1314
    %v1328 = vpop.f32.mrf.mxu0
    %v1329 = vadd.f32 0.0, %v1328
    %v1330 = vpop.f32.mrf.mxu0
    %1331 = vdwg.mxu0
    %v1333 = vunpack.c.l.b16 %v781
    %v1334 = vpack.c.b16 %v1333, %v1333
    %1335 = vrot.lane.b32.xlu0 %v1334, 96
    %v1336 = vpop.permute.xlu0 %1335
    %v1338 = vunpack.c.l.b16 %v789
    %v1339 = vpack.c.b16 %v1338, %v1338
    %1340 = vrot.lane.b32.xlu0 %v1339, 96
    %v1341 = vpop.permute.xlu0 %1340
    %v1343 = vsel %vm802, %v1336, 0
    %v1346 = vsel %vm802, %v1341, 0
    %1348 = vmatpush.bf16.xpose.msra.mxu0 0
    %1349 = vmatpush.bf16.xpose.msra.mxu0 0
    %1350 = vmatpush.bf16.xpose.msra.mxu0 0
    %1351 = vmatpush.bf16.xpose.msra.mxu0 0
    %1352 = vmatpush.bf16.xpose.msra.mxu0 0
    %1353 = vmatpush.bf16.xpose.msra.mxu0 0
    %1354 = vmatpush.bf16.xpose.msra.mxu0 0
    %1355 = vmatpush.bf16.xpose.msra.mxu0 %v1346
    %1356 = vmatmul.bf16.gmra.mxu0 %v1343
    %v1357 = vpop.f32.mrf.mxu0
    %v1358 = vadd.f32 0.0, %v1357
    %v1359 = vpop.f32.mrf.mxu0
    %1360 = vdwg.mxu0
    %v1362 = vunpack.c.l.b16 %v782
    %v1363 = vpack.c.b16 %v1362, %v1362
    %1364 = vrot.lane.b32.xlu0 %v1363, 96
    %v1365 = vpop.permute.xlu0 %1364
    %v1367 = vunpack.c.l.b16 %v790
    %v1368 = vpack.c.b16 %v1367, %v1367
    %1369 = vrot.lane.b32.xlu0 %v1368, 96
    %v1370 = vpop.permute.xlu0 %1369
    %v1372 = vsel %vm802, %v1365, 0
    %v1375 = vsel %vm802, %v1370, 0
    %1377 = vmatpush.bf16.xpose.msra.mxu0 0
    %1378 = vmatpush.bf16.xpose.msra.mxu0 0
    %1379 = vmatpush.bf16.xpose.msra.mxu0 0
    %1380 = vmatpush.bf16.xpose.msra.mxu0 0
    %1381 = vmatpush.bf16.xpose.msra.mxu0 0
    %1382 = vmatpush.bf16.xpose.msra.mxu0 0
    %1383 = vmatpush.bf16.xpose.msra.mxu0 0
    %1384 = vmatpush.bf16.xpose.msra.mxu0 %v1375
    %1385 = vmatmul.bf16.gmra.mxu0 %v1372
    %v1386 = vpop.f32.mrf.mxu0
    %v1387 = vadd.f32 0.0, %v1386
    %v1388 = vpop.f32.mrf.mxu0
    %1389 = vdwg.mxu0
    %v1391 = vunpack.c.l.b16 %v783
    %v1392 = vpack.c.b16 %v1391, %v1391
    %1393 = vrot.lane.b32.xlu0 %v1392, 96
    %v1394 = vpop.permute.xlu0 %1393
    %v1396 = vunpack.c.l.b16 %v791
    %v1397 = vpack.c.b16 %v1396, %v1396
    %1398 = vrot.lane.b32.xlu0 %v1397, 96
    %v1399 = vpop.permute.xlu0 %1398
    %v1401 = vsel %vm802, %v1394, 0
    %v1404 = vsel %vm802, %v1399, 0
    %1406 = vmatpush.bf16.xpose.msra.mxu0 0
    %1407 = vmatpush.bf16.xpose.msra.mxu0 0
    %1408 = vmatpush.bf16.xpose.msra.mxu0 0
    %1409 = vmatpush.bf16.xpose.msra.mxu0 0
    %1410 = vmatpush.bf16.xpose.msra.mxu0 0
    %1411 = vmatpush.bf16.xpose.msra.mxu0 0
    %1412 = vmatpush.bf16.xpose.msra.mxu0 0
    %1413 = vmatpush.bf16.xpose.msra.mxu0 %v1404
    %1414 = vmatmul.bf16.gmra.mxu0 %v1401
    %v1415 = vpop.f32.mrf.mxu0
    %v1416 = vadd.f32 0.0, %v1415
    %v1417 = vpop.f32.mrf.mxu0
    %1418 = vdwg.mxu0
    %v1420 = vunpack.c.l.b16 %v784
    %v1421 = vpack.c.b16 %v1420, %v1420
    %1422 = vrot.lane.b32.xlu0 %v1421, 96
    %v1423 = vpop.permute.xlu0 %1422
    %v1425 = vunpack.c.l.b16 %v792
    %v1426 = vpack.c.b16 %v1425, %v1425
    %1427 = vrot.lane.b32.xlu0 %v1426, 96
    %v1428 = vpop.permute.xlu0 %1427
    %v1430 = vsel %vm802, %v1423, 0
    %v1433 = vsel %vm802, %v1428, 0
    %1435 = vmatpush.bf16.xpose.msra.mxu0 0
    %1436 = vmatpush.bf16.xpose.msra.mxu0 0
    %1437 = vmatpush.bf16.xpose.msra.mxu0 0
    %1438 = vmatpush.bf16.xpose.msra.mxu0 0
    %1439 = vmatpush.bf16.xpose.msra.mxu0 0
    %1440 = vmatpush.bf16.xpose.msra.mxu0 0
    %1441 = vmatpush.bf16.xpose.msra.mxu0 0
    %1442 = vmatpush.bf16.xpose.msra.mxu0 %v1433
    %1443 = vmatmul.bf16.gmra.mxu0 %v1430
    %v1444 = vpop.f32.mrf.mxu0
    %v1445 = vadd.f32 0.0, %v1444
    %v1446 = vpop.f32.mrf.mxu0
    %1447 = vdwg.mxu0
    %v1449 = vunpack.c.l.b16 %v785
    %v1450 = vpack.c.b16 %v1449, %v1449
    %1451 = vrot.lane.b32.xlu0 %v1450, 96
    %v1452 = vpop.permute.xlu0 %1451
    %v1454 = vunpack.c.l.b16 %v793
    %v1455 = vpack.c.b16 %v1454, %v1454
    %1456 = vrot.lane.b32.xlu0 %v1455, 96
    %v1457 = vpop.permute.xlu0 %1456
    %v1459 = vsel %vm802, %v1452, 0
    %v1462 = vsel %vm802, %v1457, 0
    %1464 = vmatpush.bf16.xpose.msra.mxu0 0
    %1465 = vmatpush.bf16.xpose.msra.mxu0 0
    %1466 = vmatpush.bf16.xpose.msra.mxu0 0
    %1467 = vmatpush.bf16.xpose.msra.mxu0 0
    %1468 = vmatpush.bf16.xpose.msra.mxu0 0
    %1469 = vmatpush.bf16.xpose.msra.mxu0 0
    %1470 = vmatpush.bf16.xpose.msra.mxu0 0
    %1471 = vmatpush.bf16.xpose.msra.mxu0 %v1462
    %1472 = vmatmul.bf16.gmra.mxu0 %v1459
    %v1473 = vpop.f32.mrf.mxu0
    %v1474 = vadd.f32 0.0, %v1473
    %v1475 = vpop.f32.mrf.mxu0
    %1476 = vdwg.mxu0
    %v1477 = vmul.f32 %v1271, 0.17677669
    %v1478 = vmul.f32 %v1300, 0.17677669
    %v1479 = vmul.f32 %v1329, 0.17677669
    %v1480 = vmul.f32 %v1358, 0.17677669
    %v1481 = vmul.f32 %v1387, 0.17677669
    %v1482 = vmul.f32 %v1416, 0.17677669
    %v1483 = vmul.f32 %v1445, 0.17677669
    %v1484 = vmul.f32 %v1474, 0.17677669
    %v1485 = vadd.f32 %v1477, %v971
    %v1486 = vadd.f32 %v1478, %v972
    %v1487 = vadd.f32 %v1479, %v973
    %v1488 = vadd.f32 %v1480, %v974
    %v1489 = vadd.f32 %v1481, %v975
    %v1490 = vadd.f32 %v1482, %v976
    %v1491 = vadd.f32 %v1483, %v977
    %v1492 = vadd.f32 %v1484, %v978
    %v1493 = vsel %vm995, %v1485, -inf
    %1494 = vmax.xlane.f32.xlu0 %v1493
    %v1495 = vpop.xlane.xlu0 %1494
    %v1496 = vsel %vm995, %v1486, -inf
    %1497 = vmax.xlane.f32.xlu0 %v1496
    %v1498 = vpop.xlane.xlu0 %1497
    %v1499 = vsel %vm995, %v1487, -inf
    %1500 = vmax.xlane.f32.xlu0 %v1499
    %v1501 = vpop.xlane.xlu0 %1500
    %v1502 = vsel %vm995, %v1488, -inf
    %1503 = vmax.xlane.f32.xlu0 %v1502
    %v1504 = vpop.xlane.xlu0 %1503
    %v1505 = vsel %vm995, %v1489, -inf
    %1506 = vmax.xlane.f32.xlu0 %v1505
    %v1507 = vpop.xlane.xlu0 %1506
    %v1508 = vsel %vm995, %v1490, -inf
    %1509 = vmax.xlane.f32.xlu0 %v1508
    %v1510 = vpop.xlane.xlu0 %1509
    %v1511 = vsel %vm995, %v1491, -inf
    %1512 = vmax.xlane.f32.xlu0 %v1511
    %v1513 = vpop.xlane.xlu0 %1512
    %v1514 = vsel %vm995, %v1492, -inf
    %1515 = vmax.xlane.f32.xlu0 %v1514
    %v1516 = vpop.xlane.xlu0 %1515
    %v1517 = vsub.f32 %v1485, %v1495
    %v1518 = vsub.f32 %v1486, %v1498
    %v1519 = vsub.f32 %v1487, %v1501
    %v1520 = vsub.f32 %v1488, %v1504
    %v1521 = vsub.f32 %v1489, %v1507
    %v1522 = vsub.f32 %v1490, %v1510
    %v1523 = vsub.f32 %v1491, %v1513
    %v1524 = vsub.f32 %v1492, %v1516
    %v1525 = vmul.f32 %v1517, 1.442695
    %v1526 = vpow.pop %v1525
    %v1527 = vmul.f32 %v1518, 1.442695
    %v1528 = vpow.pop %v1527
    %v1529 = vmul.f32 %v1519, 1.442695
    %v1530 = vpow.pop %v1529
    %v1531 = vmul.f32 %v1520, 1.442695
    %v1532 = vpow.pop %v1531
    %v1533 = vmul.f32 %v1521, 1.442695
    %v1534 = vpow.pop %v1533
    %v1535 = vmul.f32 %v1522, 1.442695
    %v1536 = vpow.pop %v1535
    %v1537 = vmul.f32 %v1523, 1.442695
    %v1538 = vpow.pop %v1537
    %v1539 = vmul.f32 %v1524, 1.442695
    %v1540 = vpow.pop %v1539
    %v1541 = vsel %vm995, %v1526, 0.0
    %1542 = vadd.xlane.f32.xlu0 %v1541
    %v1543 = vpop.xlane.xlu0 %1542
    %v1544 = vsel %vm995, %v1528, 0.0
    %1545 = vadd.xlane.f32.xlu0 %v1544
    %v1546 = vpop.xlane.xlu0 %1545
    %v1547 = vsel %vm995, %v1530, 0.0
    %1548 = vadd.xlane.f32.xlu0 %v1547
    %v1549 = vpop.xlane.xlu0 %1548
    %v1550 = vsel %vm995, %v1532, 0.0
    %1551 = vadd.xlane.f32.xlu0 %v1550
    %v1552 = vpop.xlane.xlu0 %1551
    %v1553 = vsel %vm995, %v1534, 0.0
    %1554 = vadd.xlane.f32.xlu0 %v1553
    %v1555 = vpop.xlane.xlu0 %1554
    %v1556 = vsel %vm995, %v1536, 0.0
    %1557 = vadd.xlane.f32.xlu0 %v1556
    %v1558 = vpop.xlane.xlu0 %1557
    %v1559 = vsel %vm995, %v1538, 0.0
    %1560 = vadd.xlane.f32.xlu0 %v1559
    %v1561 = vpop.xlane.xlu0 %1560
    %v1562 = vsel %vm995, %v1540, 0.0
    %1563 = vadd.xlane.f32.xlu0 %v1562
    %v1564 = vpop.xlane.xlu0 %1563
    %v1565 = vrcp.pop %v1543
    %v1566 = vrcp.pop %v1546
    %v1567 = vrcp.pop %v1549
    %v1568 = vrcp.pop %v1552
    %v1569 = vrcp.pop %v1555
    %v1570 = vrcp.pop %v1558
    %v1571 = vrcp.pop %v1561
    %v1572 = vrcp.pop %v1564
    %v1573 = vmul.f32 %v1526, %v1565
    %v1574 = vmul.f32 %v1528, %v1566
    %v1575 = vmul.f32 %v1530, %v1567
    %v1576 = vmul.f32 %v1532, %v1568
    %v1577 = vmul.f32 %v1534, %v1569
    %v1578 = vmul.f32 %v1536, %v1570
    %v1579 = vmul.f32 %v1538, %v1571
    %v1580 = vmul.f32 %v1540, %v1572
    %v1581 = vpack.c.bf16 %v1573, %v1573
    %v1582 = vpack.c.bf16 %v1574, %v1574
    %v1583 = vpack.c.bf16 %v1575, %v1575
    %v1584 = vpack.c.bf16 %v1576, %v1576
    %v1585 = vpack.c.bf16 %v1577, %v1577
    %v1586 = vpack.c.bf16 %v1578, %v1578
    %v1587 = vpack.c.bf16 %v1579, %v1579
    %v1588 = vpack.c.bf16 %v1580, %v1580
    %v1590 = vunpack.c.l.b16 %v794
    %v1591 = vpack.c.b16 %v1590, %v1590
    %1592 = vrot.lane.b32.xlu0 %v1591, 96
    %v1593 = vpop.permute.xlu0 %1592
    %v1595 = vsel %vm995, %v1581, 0
    %v1598 = vsel %vm1095, %v1593, 0
    %1600 = vmatpush.bf16.msra.mxu0 0
    %1601 = vmatpush.bf16.msra.mxu0 0
    %1602 = vmatpush.bf16.msra.mxu0 0
    %1603 = vmatpush.bf16.msra.mxu0 0
    %1604 = vmatpush.bf16.msra.mxu0 0
    %1605 = vmatpush.bf16.msra.mxu0 0
    %1606 = vmatpush.bf16.msra.mxu0 0
    %1607 = vmatpush.bf16.msra.mxu0 %v1598
    %1608 = vmatmul.bf16.gmra.mxu0 %v1595
    %v1609 = vpop.f32.mrf.mxu0
    %v1610 = vadd.f32 0.0, %v1609
    %v1611 = vpop.f32.mrf.mxu0
    %1612 = vdwg.mxu0
    %v1614 = vunpack.c.l.b16 %v795
    %v1615 = vpack.c.b16 %v1614, %v1614
    %1616 = vrot.lane.b32.xlu0 %v1615, 96
    %v1617 = vpop.permute.xlu0 %1616
    %v1619 = vsel %vm995, %v1582, 0
    %v1622 = vsel %vm1095, %v1617, 0
    %1624 = vmatpush.bf16.msra.mxu0 0
    %1625 = vmatpush.bf16.msra.mxu0 0
    %1626 = vmatpush.bf16.msra.mxu0 0
    %1627 = vmatpush.bf16.msra.mxu0 0
    %1628 = vmatpush.bf16.msra.mxu0 0
    %1629 = vmatpush.bf16.msra.mxu0 0
    %1630 = vmatpush.bf16.msra.mxu0 0
    %1631 = vmatpush.bf16.msra.mxu0 %v1622
    %1632 = vmatmul.bf16.gmra.mxu0 %v1619
    %v1633 = vpop.f32.mrf.mxu0
    %v1634 = vadd.f32 0.0, %v1633
    %v1635 = vpop.f32.mrf.mxu0
    %1636 = vdwg.mxu0
    %v1638 = vunpack.c.l.b16 %v796
    %v1639 = vpack.c.b16 %v1638, %v1638
    %1640 = vrot.lane.b32.xlu0 %v1639, 96
    %v1641 = vpop.permute.xlu0 %1640
    %v1643 = vsel %vm995, %v1583, 0
    %v1646 = vsel %vm1095, %v1641, 0
    %1648 = vmatpush.bf16.msra.mxu0 0
    %1649 = vmatpush.bf16.msra.mxu0 0
    %1650 = vmatpush.bf16.msra.mxu0 0
    %1651 = vmatpush.bf16.msra.mxu0 0
    %1652 = vmatpush.bf16.msra.mxu0 0
    %1653 = vmatpush.bf16.msra.mxu0 0
    %1654 = vmatpush.bf16.msra.mxu0 0
    %1655 = vmatpush.bf16.msra.mxu0 %v1646
    %1656 = vmatmul.bf16.gmra.mxu0 %v1643
    %v1657 = vpop.f32.mrf.mxu0
    %v1658 = vadd.f32 0.0, %v1657
    %v1659 = vpop.f32.mrf.mxu0
    %1660 = vdwg.mxu0
    %v1662 = vunpack.c.l.b16 %v797
    %v1663 = vpack.c.b16 %v1662, %v1662
    %1664 = vrot.lane.b32.xlu0 %v1663, 96
    %v1665 = vpop.permute.xlu0 %1664
    %v1667 = vsel %vm995, %v1584, 0
    %v1670 = vsel %vm1095, %v1665, 0
    %1672 = vmatpush.bf16.msra.mxu0 0
    %1673 = vmatpush.bf16.msra.mxu0 0
    %1674 = vmatpush.bf16.msra.mxu0 0
    %1675 = vmatpush.bf16.msra.mxu0 0
    %1676 = vmatpush.bf16.msra.mxu0 0
    %1677 = vmatpush.bf16.msra.mxu0 0
    %1678 = vmatpush.bf16.msra.mxu0 0
    %1679 = vmatpush.bf16.msra.mxu0 %v1670
    %1680 = vmatmul.bf16.gmra.mxu0 %v1667
    %v1681 = vpop.f32.mrf.mxu0
    %v1682 = vadd.f32 0.0, %v1681
    %v1683 = vpop.f32.mrf.mxu0
    %1684 = vdwg.mxu0
    %v1686 = vunpack.c.l.b16 %v798
    %v1687 = vpack.c.b16 %v1686, %v1686
    %1688 = vrot.lane.b32.xlu0 %v1687, 96
    %v1689 = vpop.permute.xlu0 %1688
    %v1691 = vsel %vm995, %v1585, 0
    %v1694 = vsel %vm1095, %v1689, 0
    %1696 = vmatpush.bf16.msra.mxu0 0
    %1697 = vmatpush.bf16.msra.mxu0 0
    %1698 = vmatpush.bf16.msra.mxu0 0
    %1699 = vmatpush.bf16.msra.mxu0 0
    %1700 = vmatpush.bf16.msra.mxu0 0
    %1701 = vmatpush.bf16.msra.mxu0 0
    %1702 = vmatpush.bf16.msra.mxu0 0
    %1703 = vmatpush.bf16.msra.mxu0 %v1694
    %1704 = vmatmul.bf16.gmra.mxu0 %v1691
    %v1705 = vpop.f32.mrf.mxu0
    %v1706 = vadd.f32 0.0, %v1705
    %v1707 = vpop.f32.mrf.mxu0
    %1708 = vdwg.mxu0
    %v1710 = vunpack.c.l.b16 %v799
    %v1711 = vpack.c.b16 %v1710, %v1710
    %1712 = vrot.lane.b32.xlu0 %v1711, 96
    %v1713 = vpop.permute.xlu0 %1712
    %v1715 = vsel %vm995, %v1586, 0
    %v1718 = vsel %vm1095, %v1713, 0
    %1720 = vmatpush.bf16.msra.mxu0 0
    %1721 = vmatpush.bf16.msra.mxu0 0
    %1722 = vmatpush.bf16.msra.mxu0 0
    %1723 = vmatpush.bf16.msra.mxu0 0
    %1724 = vmatpush.bf16.msra.mxu0 0
    %1725 = vmatpush.bf16.msra.mxu0 0
    %1726 = vmatpush.bf16.msra.mxu0 0
    %1727 = vmatpush.bf16.msra.mxu0 %v1718
    %1728 = vmatmul.bf16.gmra.mxu0 %v1715
    %v1729 = vpop.f32.mrf.mxu0
    %v1730 = vadd.f32 0.0, %v1729
    %v1731 = vpop.f32.mrf.mxu0
    %1732 = vdwg.mxu0
    %v1734 = vunpack.c.l.b16 %v800
    %v1735 = vpack.c.b16 %v1734, %v1734
    %1736 = vrot.lane.b32.xlu0 %v1735, 96
    %v1737 = vpop.permute.xlu0 %1736
    %v1739 = vsel %vm995, %v1587, 0
    %v1742 = vsel %vm1095, %v1737, 0
    %1744 = vmatpush.bf16.msra.mxu0 0
    %1745 = vmatpush.bf16.msra.mxu0 0
    %1746 = vmatpush.bf16.msra.mxu0 0
    %1747 = vmatpush.bf16.msra.mxu0 0
    %1748 = vmatpush.bf16.msra.mxu0 0
    %1749 = vmatpush.bf16.msra.mxu0 0
    %1750 = vmatpush.bf16.msra.mxu0 0
    %1751 = vmatpush.bf16.msra.mxu0 %v1742
    %1752 = vmatmul.bf16.gmra.mxu0 %v1739
    %v1753 = vpop.f32.mrf.mxu0
    %v1754 = vadd.f32 0.0, %v1753
    %v1755 = vpop.f32.mrf.mxu0
    %1756 = vdwg.mxu0
    %v1758 = vunpack.c.l.b16 %v801
    %v1759 = vpack.c.b16 %v1758, %v1758
    %1760 = vrot.lane.b32.xlu0 %v1759, 96
    %v1761 = vpop.permute.xlu0 %1760
    %v1763 = vsel %vm995, %v1588, 0
    %v1766 = vsel %vm1095, %v1761, 0
    %1768 = vmatpush.bf16.msra.mxu0 0
    %1769 = vmatpush.bf16.msra.mxu0 0
    %1770 = vmatpush.bf16.msra.mxu0 0
    %1771 = vmatpush.bf16.msra.mxu0 0
    %1772 = vmatpush.bf16.msra.mxu0 0
    %1773 = vmatpush.bf16.msra.mxu0 0
    %1774 = vmatpush.bf16.msra.mxu0 0
    %1775 = vmatpush.bf16.msra.mxu0 %v1766
    %1776 = vmatmul.bf16.gmra.mxu0 %v1763
    %v1777 = vpop.f32.mrf.mxu0
    %v1778 = vadd.f32 0.0, %v1777
    %v1779 = vpop.f32.mrf.mxu0
    %1780 = vdwg.mxu0
    %1781 = vrot.lane.b32.xlu0 %v1247, 64
    %v1782 = vpop.permute.xlu0 %1781
    %1783 = vrot.lane.b32.xlu0 %v1252, 64
    %v1784 = vpop.permute.xlu0 %1783
    %v1786 = vsel %vm802, %v1782, 0
    %v1789 = vsel %vm802, %v1784, 0
    %1791 = vmatpush.bf16.xpose.msra.mxu0 0
    %1792 = vmatpush.bf16.xpose.msra.mxu0 0
    %1793 = vmatpush.bf16.xpose.msra.mxu0 0
    %1794 = vmatpush.bf16.xpose.msra.mxu0 0
    %1795 = vmatpush.bf16.xpose.msra.mxu0 0
    %1796 = vmatpush.bf16.xpose.msra.mxu0 0
    %1797 = vmatpush.bf16.xpose.msra.mxu0 0
    %1798 = vmatpush.bf16.xpose.msra.mxu0 %v1789
    %1799 = vmatmul.bf16.gmra.mxu0 %v1786
    %v1800 = vpop.f32.mrf.mxu0
    %v1801 = vadd.f32 0.0, %v1800
    %v1802 = vpop.f32.mrf.mxu0
    %1803 = vdwg.mxu0
    %1804 = vrot.lane.b32.xlu0 %v1276, 64
    %v1805 = vpop.permute.xlu0 %1804
    %1806 = vrot.lane.b32.xlu0 %v1281, 64
    %v1807 = vpop.permute.xlu0 %1806
    %v1809 = vsel %vm802, %v1805, 0
    %v1812 = vsel %vm802, %v1807, 0
    %1814 = vmatpush.bf16.xpose.msra.mxu0 0
    %1815 = vmatpush.bf16.xpose.msra.mxu0 0
    %1816 = vmatpush.bf16.xpose.msra.mxu0 0
    %1817 = vmatpush.bf16.xpose.msra.mxu0 0
    %1818 = vmatpush.bf16.xpose.msra.mxu0 0
    %1819 = vmatpush.bf16.xpose.msra.mxu0 0
    %1820 = vmatpush.bf16.xpose.msra.mxu0 0
    %1821 = vmatpush.bf16.xpose.msra.mxu0 %v1812
    %1822 = vmatmul.bf16.gmra.mxu0 %v1809
    %v1823 = vpop.f32.mrf.mxu0
    %v1824 = vadd.f32 0.0, %v1823
    %v1825 = vpop.f32.mrf.mxu0
    %1826 = vdwg.mxu0
    %1827 = vrot.lane.b32.xlu0 %v1305, 64
    %v1828 = vpop.permute.xlu0 %1827
    %1829 = vrot.lane.b32.xlu0 %v1310, 64
    %v1830 = vpop.permute.xlu0 %1829
    %v1832 = vsel %vm802, %v1828, 0
    %v1835 = vsel %vm802, %v1830, 0
    %1837 = vmatpush.bf16.xpose.msra.mxu0 0
    %1838 = vmatpush.bf16.xpose.msra.mxu0 0
    %1839 = vmatpush.bf16.xpose.msra.mxu0 0
    %1840 = vmatpush.bf16.xpose.msra.mxu0 0
    %1841 = vmatpush.bf16.xpose.msra.mxu0 0
    %1842 = vmatpush.bf16.xpose.msra.mxu0 0
    %1843 = vmatpush.bf16.xpose.msra.mxu0 0
    %1844 = vmatpush.bf16.xpose.msra.mxu0 %v1835
    %1845 = vmatmul.bf16.gmra.mxu0 %v1832
    %v1846 = vpop.f32.mrf.mxu0
    %v1847 = vadd.f32 0.0, %v1846
    %v1848 = vpop.f32.mrf.mxu0
    %1849 = vdwg.mxu0
    %1850 = vrot.lane.b32.xlu0 %v1334, 64
    %v1851 = vpop.permute.xlu0 %1850
    %1852 = vrot.lane.b32.xlu0 %v1339, 64
    %v1853 = vpop.permute.xlu0 %1852
    %v1855 = vsel %vm802, %v1851, 0
    %v1858 = vsel %vm802, %v1853, 0
    %1860 = vmatpush.bf16.xpose.msra.mxu0 0
    %1861 = vmatpush.bf16.xpose.msra.mxu0 0
    %1862 = vmatpush.bf16.xpose.msra.mxu0 0
    %1863 = vmatpush.bf16.xpose.msra.mxu0 0
    %1864 = vmatpush.bf16.xpose.msra.mxu0 0
    %1865 = vmatpush.bf16.xpose.msra.mxu0 0
    %1866 = vmatpush.bf16.xpose.msra.mxu0 0
    %1867 = vmatpush.bf16.xpose.msra.mxu0 %v1858
    %1868 = vmatmul.bf16.gmra.mxu0 %v1855
    %v1869 = vpop.f32.mrf.mxu0
    %v1870 = vadd.f32 0.0, %v1869
    %v1871 = vpop.f32.mrf.mxu0
    %1872 = vdwg.mxu0
    %1873 = vrot.lane.b32.xlu0 %v1363, 64
    %v1874 = vpop.permute.xlu0 %1873
    %1875 = vrot.lane.b32.xlu0 %v1368, 64
    %v1876 = vpop.permute.xlu0 %1875
    %v1878 = vsel %vm802, %v1874, 0
    %v1881 = vsel %vm802, %v1876, 0
    %1883 = vmatpush.bf16.xpose.msra.mxu0 0
    %1884 = vmatpush.bf16.xpose.msra.mxu0 0
    %1885 = vmatpush.bf16.xpose.msra.mxu0 0
    %1886 = vmatpush.bf16.xpose.msra.mxu0 0
    %1887 = vmatpush.bf16.xpose.msra.mxu0 0
    %1888 = vmatpush.bf16.xpose.msra.mxu0 0
    %1889 = vmatpush.bf16.xpose.msra.mxu0 0
    %1890 = vmatpush.bf16.xpose.msra.mxu0 %v1881
    %1891 = vmatmul.bf16.gmra.mxu0 %v1878
    %v1892 = vpop.f32.mrf.mxu0
    %v1893 = vadd.f32 0.0, %v1892
    %v1894 = vpop.f32.mrf.mxu0
    %1895 = vdwg.mxu0
    %1896 = vrot.lane.b32.xlu0 %v1392, 64
    %v1897 = vpop.permute.xlu0 %1896
    %1898 = vrot.lane.b32.xlu0 %v1397, 64
    %v1899 = vpop.permute.xlu0 %1898
    %v1901 = vsel %vm802, %v1897, 0
    %v1904 = vsel %vm802, %v1899, 0
    %1906 = vmatpush.bf16.xpose.msra.mxu0 0
    %1907 = vmatpush.bf16.xpose.msra.mxu0 0
    %1908 = vmatpush.bf16.xpose.msra.mxu0 0
    %1909 = vmatpush.bf16.xpose.msra.mxu0 0
    %1910 = vmatpush.bf16.xpose.msra.mxu0 0
    %1911 = vmatpush.bf16.xpose.msra.mxu0 0
    %1912 = vmatpush.bf16.xpose.msra.mxu0 0
    %1913 = vmatpush.bf16.xpose.msra.mxu0 %v1904
    %1914 = vmatmul.bf16.gmra.mxu0 %v1901
    %v1915 = vpop.f32.mrf.mxu0
    %v1916 = vadd.f32 0.0, %v1915
    %v1917 = vpop.f32.mrf.mxu0
    %1918 = vdwg.mxu0
    %1919 = vrot.lane.b32.xlu0 %v1421, 64
    %v1920 = vpop.permute.xlu0 %1919
    %1921 = vrot.lane.b32.xlu0 %v1426, 64
    %v1922 = vpop.permute.xlu0 %1921
    %v1924 = vsel %vm802, %v1920, 0
    %v1927 = vsel %vm802, %v1922, 0
    %1929 = vmatpush.bf16.xpose.msra.mxu0 0
    %1930 = vmatpush.bf16.xpose.msra.mxu0 0
    %1931 = vmatpush.bf16.xpose.msra.mxu0 0
    %1932 = vmatpush.bf16.xpose.msra.mxu0 0
    %1933 = vmatpush.bf16.xpose.msra.mxu0 0
    %1934 = vmatpush.bf16.xpose.msra.mxu0 0
    %1935 = vmatpush.bf16.xpose.msra.mxu0 0
    %1936 = vmatpush.bf16.xpose.msra.mxu0 %v1927
    %1937 = vmatmul.bf16.gmra.mxu0 %v1924
    %v1938 = vpop.f32.mrf.mxu0
    %v1939 = vadd.f32 0.0, %v1938
    %v1940 = vpop.f32.mrf.mxu0
    %1941 = vdwg.mxu0
    %1942 = vrot.lane.b32.xlu0 %v1450, 64
    %v1943 = vpop.permute.xlu0 %1942
    %1944 = vrot.lane.b32.xlu0 %v1455, 64
    %v1945 = vpop.permute.xlu0 %1944
    %v1947 = vsel %vm802, %v1943, 0
    %v1950 = vsel %vm802, %v1945, 0
    %1952 = vmatpush.bf16.xpose.msra.mxu0 0
    %1953 = vmatpush.bf16.xpose.msra.mxu0 0
    %1954 = vmatpush.bf16.xpose.msra.mxu0 0
    %1955 = vmatpush.bf16.xpose.msra.mxu0 0
    %1956 = vmatpush.bf16.xpose.msra.mxu0 0
    %1957 = vmatpush.bf16.xpose.msra.mxu0 0
    %1958 = vmatpush.bf16.xpose.msra.mxu0 0
    %1959 = vmatpush.bf16.xpose.msra.mxu0 %v1950
    %1960 = vmatmul.bf16.gmra.mxu0 %v1947
    %v1961 = vpop.f32.mrf.mxu0
    %v1962 = vadd.f32 0.0, %v1961
    %v1963 = vpop.f32.mrf.mxu0
    %1964 = vdwg.mxu0
    %v1965 = vmul.f32 %v1801, 0.17677669
    %v1966 = vmul.f32 %v1824, 0.17677669
    %v1967 = vmul.f32 %v1847, 0.17677669
    %v1968 = vmul.f32 %v1870, 0.17677669
    %v1969 = vmul.f32 %v1893, 0.17677669
    %v1970 = vmul.f32 %v1916, 0.17677669
    %v1971 = vmul.f32 %v1939, 0.17677669
    %v1972 = vmul.f32 %v1962, 0.17677669
    %v1973 = vadd.f32 %v1965, %v971
    %v1974 = vadd.f32 %v1966, %v972
    %v1975 = vadd.f32 %v1967, %v973
    %v1976 = vadd.f32 %v1968, %v974
    %v1977 = vadd.f32 %v1969, %v975
    %v1978 = vadd.f32 %v1970, %v976
    %v1979 = vadd.f32 %v1971, %v977
    %v1980 = vadd.f32 %v1972, %v978
    %v1981 = vsel %vm995, %v1973, -inf
    %1982 = vmax.xlane.f32.xlu0 %v1981
    %v1983 = vpop.xlane.xlu0 %1982
    %v1984 = vsel %vm995, %v1974, -inf
    %1985 = vmax.xlane.f32.xlu0 %v1984
    %v1986 = vpop.xlane.xlu0 %1985
    %v1987 = vsel %vm995, %v1975, -inf
    %1988 = vmax.xlane.f32.xlu0 %v1987
    %v1989 = vpop.xlane.xlu0 %1988
    %v1990 = vsel %vm995, %v1976, -inf
    %1991 = vmax.xlane.f32.xlu0 %v1990
    %v1992 = vpop.xlane.xlu0 %1991
    %v1993 = vsel %vm995, %v1977, -inf
    %1994 = vmax.xlane.f32.xlu0 %v1993
    %v1995 = vpop.xlane.xlu0 %1994
    %v1996 = vsel %vm995, %v1978, -inf
    %1997 = vmax.xlane.f32.xlu0 %v1996
    %v1998 = vpop.xlane.xlu0 %1997
    %v1999 = vsel %vm995, %v1979, -inf
    %2000 = vmax.xlane.f32.xlu0 %v1999
    %v2001 = vpop.xlane.xlu0 %2000
    %v2002 = vsel %vm995, %v1980, -inf
    %2003 = vmax.xlane.f32.xlu0 %v2002
    %v2004 = vpop.xlane.xlu0 %2003
    %v2005 = vsub.f32 %v1973, %v1983
    %v2006 = vsub.f32 %v1974, %v1986
    %v2007 = vsub.f32 %v1975, %v1989
    %v2008 = vsub.f32 %v1976, %v1992
    %v2009 = vsub.f32 %v1977, %v1995
    %v2010 = vsub.f32 %v1978, %v1998
    %v2011 = vsub.f32 %v1979, %v2001
    %v2012 = vsub.f32 %v1980, %v2004
    %v2013 = vmul.f32 %v2005, 1.442695
    %v2014 = vpow.pop %v2013
    %v2015 = vmul.f32 %v2006, 1.442695
    %v2016 = vpow.pop %v2015
    %v2017 = vmul.f32 %v2007, 1.442695
    %v2018 = vpow.pop %v2017
    %v2019 = vmul.f32 %v2008, 1.442695
    %v2020 = vpow.pop %v2019
    %v2021 = vmul.f32 %v2009, 1.442695
    %v2022 = vpow.pop %v2021
    %v2023 = vmul.f32 %v2010, 1.442695
    %v2024 = vpow.pop %v2023
    %v2025 = vmul.f32 %v2011, 1.442695
    %v2026 = vpow.pop %v2025
    %v2027 = vmul.f32 %v2012, 1.442695
    %v2028 = vpow.pop %v2027
    %v2029 = vsel %vm995, %v2014, 0.0
    %2030 = vadd.xlane.f32.xlu0 %v2029
    %v2031 = vpop.xlane.xlu0 %2030
    %v2032 = vsel %vm995, %v2016, 0.0
    %2033 = vadd.xlane.f32.xlu0 %v2032
    %v2034 = vpop.xlane.xlu0 %2033
    %v2035 = vsel %vm995, %v2018, 0.0
    %2036 = vadd.xlane.f32.xlu0 %v2035
    %v2037 = vpop.xlane.xlu0 %2036
    %v2038 = vsel %vm995, %v2020, 0.0
    %2039 = vadd.xlane.f32.xlu0 %v2038
    %v2040 = vpop.xlane.xlu0 %2039
    %v2041 = vsel %vm995, %v2022, 0.0
    %2042 = vadd.xlane.f32.xlu0 %v2041
    %v2043 = vpop.xlane.xlu0 %2042
    %v2044 = vsel %vm995, %v2024, 0.0
    %2045 = vadd.xlane.f32.xlu0 %v2044
    %v2046 = vpop.xlane.xlu0 %2045
    %v2047 = vsel %vm995, %v2026, 0.0
    %2048 = vadd.xlane.f32.xlu0 %v2047
    %v2049 = vpop.xlane.xlu0 %2048
    %v2050 = vsel %vm995, %v2028, 0.0
    %2051 = vadd.xlane.f32.xlu0 %v2050
    %v2052 = vpop.xlane.xlu0 %2051
    %v2053 = vrcp.pop %v2031
    %v2054 = vrcp.pop %v2034
    %v2055 = vrcp.pop %v2037
    %v2056 = vrcp.pop %v2040
    %v2057 = vrcp.pop %v2043
    %v2058 = vrcp.pop %v2046
    %v2059 = vrcp.pop %v2049
    %v2060 = vrcp.pop %v2052
    %v2061 = vmul.f32 %v2014, %v2053
    %v2062 = vmul.f32 %v2016, %v2054
    %v2063 = vmul.f32 %v2018, %v2055
    %v2064 = vmul.f32 %v2020, %v2056
    %v2065 = vmul.f32 %v2022, %v2057
    %v2066 = vmul.f32 %v2024, %v2058
    %v2067 = vmul.f32 %v2026, %v2059
    %v2068 = vmul.f32 %v2028, %v2060
    %v2069 = vpack.c.bf16 %v2061, %v2061
    %v2070 = vpack.c.bf16 %v2062, %v2062
    %v2071 = vpack.c.bf16 %v2063, %v2063
    %v2072 = vpack.c.bf16 %v2064, %v2064
    %v2073 = vpack.c.bf16 %v2065, %v2065
    %v2074 = vpack.c.bf16 %v2066, %v2066
    %v2075 = vpack.c.bf16 %v2067, %v2067
    %v2076 = vpack.c.bf16 %v2068, %v2068
    %2077 = vrot.lane.b32.xlu0 %v1591, 64
    %v2078 = vpop.permute.xlu0 %2077
    %v2080 = vsel %vm995, %v2069, 0
    %v2083 = vsel %vm1095, %v2078, 0
    %2085 = vmatpush.bf16.msra.mxu0 0
    %2086 = vmatpush.bf16.msra.mxu0 0
    %2087 = vmatpush.bf16.msra.mxu0 0
    %2088 = vmatpush.bf16.msra.mxu0 0
    %2089 = vmatpush.bf16.msra.mxu0 0
    %2090 = vmatpush.bf16.msra.mxu0 0
    %2091 = vmatpush.bf16.msra.mxu0 0
    %2092 = vmatpush.bf16.msra.mxu0 %v2083
    %2093 = vmatmul.bf16.gmra.mxu0 %v2080
    %v2094 = vpop.f32.mrf.mxu0
    %v2095 = vadd.f32 0.0, %v2094
    %v2096 = vpop.f32.mrf.mxu0
    %2097 = vdwg.mxu0
    %2098 = vrot.lane.b32.xlu0 %v1615, 64
    %v2099 = vpop.permute.xlu0 %2098
    %v2101 = vsel %vm995, %v2070, 0
    %v2104 = vsel %vm1095, %v2099, 0
    %2106 = vmatpush.bf16.msra.mxu0 0
    %2107 = vmatpush.bf16.msra.mxu0 0
    %2108 = vmatpush.bf16.msra.mxu0 0
    %2109 = vmatpush.bf16.msra.mxu0 0
    %2110 = vmatpush.bf16.msra.mxu0 0
    %2111 = vmatpush.bf16.msra.mxu0 0
    %2112 = vmatpush.bf16.msra.mxu0 0
    %2113 = vmatpush.bf16.msra.mxu0 %v2104
    %2114 = vmatmul.bf16.gmra.mxu0 %v2101
    %v2115 = vpop.f32.mrf.mxu0
    %v2116 = vadd.f32 0.0, %v2115
    %v2117 = vpop.f32.mrf.mxu0
    %2118 = vdwg.mxu0
    %2119 = vrot.lane.b32.xlu0 %v1639, 64
    %v2120 = vpop.permute.xlu0 %2119
    %v2122 = vsel %vm995, %v2071, 0
    %v2125 = vsel %vm1095, %v2120, 0
    %2127 = vmatpush.bf16.msra.mxu0 0
    %2128 = vmatpush.bf16.msra.mxu0 0
    %2129 = vmatpush.bf16.msra.mxu0 0
    %2130 = vmatpush.bf16.msra.mxu0 0
    %2131 = vmatpush.bf16.msra.mxu0 0
    %2132 = vmatpush.bf16.msra.mxu0 0
    %2133 = vmatpush.bf16.msra.mxu0 0
    %2134 = vmatpush.bf16.msra.mxu0 %v2125
    %2135 = vmatmul.bf16.gmra.mxu0 %v2122
    %v2136 = vpop.f32.mrf.mxu0
    %v2137 = vadd.f32 0.0, %v2136
    %v2138 = vpop.f32.mrf.mxu0
    %2139 = vdwg.mxu0
    %2140 = vrot.lane.b32.xlu0 %v1663, 64
    %v2141 = vpop.permute.xlu0 %2140
    %v2143 = vsel %vm995, %v2072, 0
    %v2146 = vsel %vm1095, %v2141, 0
    %2148 = vmatpush.bf16.msra.mxu0 0
    %2149 = vmatpush.bf16.msra.mxu0 0
    %2150 = vmatpush.bf16.msra.mxu0 0
    %2151 = vmatpush.bf16.msra.mxu0 0
    %2152 = vmatpush.bf16.msra.mxu0 0
    %2153 = vmatpush.bf16.msra.mxu0 0
    %2154 = vmatpush.bf16.msra.mxu0 0
    %2155 = vmatpush.bf16.msra.mxu0 %v2146
    %2156 = vmatmul.bf16.gmra.mxu0 %v2143
    %v2157 = vpop.f32.mrf.mxu0
    %v2158 = vadd.f32 0.0, %v2157
    %v2159 = vpop.f32.mrf.mxu0
    %2160 = vdwg.mxu0
    %2161 = vrot.lane.b32.xlu0 %v1687, 64
    %v2162 = vpop.permute.xlu0 %2161
    %v2164 = vsel %vm995, %v2073, 0
    %v2167 = vsel %vm1095, %v2162, 0
    %2169 = vmatpush.bf16.msra.mxu0 0
    %2170 = vmatpush.bf16.msra.mxu0 0
    %2171 = vmatpush.bf16.msra.mxu0 0
    %2172 = vmatpush.bf16.msra.mxu0 0
    %2173 = vmatpush.bf16.msra.mxu0 0
    %2174 = vmatpush.bf16.msra.mxu0 0
    %2175 = vmatpush.bf16.msra.mxu0 0
    %2176 = vmatpush.bf16.msra.mxu0 %v2167
    %2177 = vmatmul.bf16.gmra.mxu0 %v2164
    %v2178 = vpop.f32.mrf.mxu0
    %v2179 = vadd.f32 0.0, %v2178
    %v2180 = vpop.f32.mrf.mxu0
    %2181 = vdwg.mxu0
    %2182 = vrot.lane.b32.xlu0 %v1711, 64
    %v2183 = vpop.permute.xlu0 %2182
    %v2185 = vsel %vm995, %v2074, 0
    %v2188 = vsel %vm1095, %v2183, 0
    %2190 = vmatpush.bf16.msra.mxu0 0
    %2191 = vmatpush.bf16.msra.mxu0 0
    %2192 = vmatpush.bf16.msra.mxu0 0
    %2193 = vmatpush.bf16.msra.mxu0 0
    %2194 = vmatpush.bf16.msra.mxu0 0
    %2195 = vmatpush.bf16.msra.mxu0 0
    %2196 = vmatpush.bf16.msra.mxu0 0
    %2197 = vmatpush.bf16.msra.mxu0 %v2188
    %2198 = vmatmul.bf16.gmra.mxu0 %v2185
    %v2199 = vpop.f32.mrf.mxu0
    %v2200 = vadd.f32 0.0, %v2199
    %v2201 = vpop.f32.mrf.mxu0
    %2202 = vdwg.mxu0
    %2203 = vrot.lane.b32.xlu0 %v1735, 64
    %v2204 = vpop.permute.xlu0 %2203
    %v2206 = vsel %vm995, %v2075, 0
    %v2209 = vsel %vm1095, %v2204, 0
    %2211 = vmatpush.bf16.msra.mxu0 0
    %2212 = vmatpush.bf16.msra.mxu0 0
    %2213 = vmatpush.bf16.msra.mxu0 0
    %2214 = vmatpush.bf16.msra.mxu0 0
    %2215 = vmatpush.bf16.msra.mxu0 0
    %2216 = vmatpush.bf16.msra.mxu0 0
    %2217 = vmatpush.bf16.msra.mxu0 0
    %2218 = vmatpush.bf16.msra.mxu0 %v2209
    %2219 = vmatmul.bf16.gmra.mxu0 %v2206
    %v2220 = vpop.f32.mrf.mxu0
    %v2221 = vadd.f32 0.0, %v2220
    %v2222 = vpop.f32.mrf.mxu0
    %2223 = vdwg.mxu0
    %2224 = vrot.lane.b32.xlu0 %v1759, 64
    %v2225 = vpop.permute.xlu0 %2224
    %v2227 = vsel %vm995, %v2076, 0
    %v2230 = vsel %vm1095, %v2225, 0
    %2232 = vmatpush.bf16.msra.mxu0 0
    %2233 = vmatpush.bf16.msra.mxu0 0
    %2234 = vmatpush.bf16.msra.mxu0 0
    %2235 = vmatpush.bf16.msra.mxu0 0
    %2236 = vmatpush.bf16.msra.mxu0 0
    %2237 = vmatpush.bf16.msra.mxu0 0
    %2238 = vmatpush.bf16.msra.mxu0 0
    %2239 = vmatpush.bf16.msra.mxu0 %v2230
    %2240 = vmatmul.bf16.gmra.mxu0 %v2227
    %v2241 = vpop.f32.mrf.mxu0
    %v2242 = vadd.f32 0.0, %v2241
    %v2243 = vpop.f32.mrf.mxu0
    %2244 = vdwg.mxu0
    %2245 = vrot.lane.b32.xlu0 %v1247, 32
    %v2246 = vpop.permute.xlu0 %2245
    %2247 = vrot.lane.b32.xlu0 %v1252, 32
    %v2248 = vpop.permute.xlu0 %2247
    %v2250 = vsel %vm802, %v2246, 0
    %v2253 = vsel %vm802, %v2248, 0
    %2255 = vmatpush.bf16.xpose.msra.mxu0 0
    %2256 = vmatpush.bf16.xpose.msra.mxu0 0
    %2257 = vmatpush.bf16.xpose.msra.mxu0 0
    %2258 = vmatpush.bf16.xpose.msra.mxu0 0
    %2259 = vmatpush.bf16.xpose.msra.mxu0 0
    %2260 = vmatpush.bf16.xpose.msra.mxu0 0
    %2261 = vmatpush.bf16.xpose.msra.mxu0 0
    %2262 = vmatpush.bf16.xpose.msra.mxu0 %v2253
    %2263 = vmatmul.bf16.gmra.mxu0 %v2250
    %v2264 = vpop.f32.mrf.mxu0
    %v2265 = vadd.f32 0.0, %v2264
    %v2266 = vpop.f32.mrf.mxu0
    %2267 = vdwg.mxu0
    %2268 = vrot.lane.b32.xlu0 %v1276, 32
    %v2269 = vpop.permute.xlu0 %2268
    %2270 = vrot.lane.b32.xlu0 %v1281, 32
    %v2271 = vpop.permute.xlu0 %2270
    %v2273 = vsel %vm802, %v2269, 0
    %v2276 = vsel %vm802, %v2271, 0
    %2278 = vmatpush.bf16.xpose.msra.mxu0 0
    %2279 = vmatpush.bf16.xpose.msra.mxu0 0
    %2280 = vmatpush.bf16.xpose.msra.mxu0 0
    %2281 = vmatpush.bf16.xpose.msra.mxu0 0
    %2282 = vmatpush.bf16.xpose.msra.mxu0 0
    %2283 = vmatpush.bf16.xpose.msra.mxu0 0
    %2284 = vmatpush.bf16.xpose.msra.mxu0 0
    %2285 = vmatpush.bf16.xpose.msra.mxu0 %v2276
    %2286 = vmatmul.bf16.gmra.mxu0 %v2273
    %v2287 = vpop.f32.mrf.mxu0
    %v2288 = vadd.f32 0.0, %v2287
    %v2289 = vpop.f32.mrf.mxu0
    %2290 = vdwg.mxu0
    %2291 = vrot.lane.b32.xlu0 %v1305, 32
    %v2292 = vpop.permute.xlu0 %2291
    %2293 = vrot.lane.b32.xlu0 %v1310, 32
    %v2294 = vpop.permute.xlu0 %2293
    %v2296 = vsel %vm802, %v2292, 0
    %v2299 = vsel %vm802, %v2294, 0
    %2301 = vmatpush.bf16.xpose.msra.mxu0 0
    %2302 = vmatpush.bf16.xpose.msra.mxu0 0
    %2303 = vmatpush.bf16.xpose.msra.mxu0 0
    %2304 = vmatpush.bf16.xpose.msra.mxu0 0
    %2305 = vmatpush.bf16.xpose.msra.mxu0 0
    %2306 = vmatpush.bf16.xpose.msra.mxu0 0
    %2307 = vmatpush.bf16.xpose.msra.mxu0 0
    %2308 = vmatpush.bf16.xpose.msra.mxu0 %v2299
    %2309 = vmatmul.bf16.gmra.mxu0 %v2296
    %v2310 = vpop.f32.mrf.mxu0
    %v2311 = vadd.f32 0.0, %v2310
    %v2312 = vpop.f32.mrf.mxu0
    %2313 = vdwg.mxu0
    %2314 = vrot.lane.b32.xlu0 %v1334, 32
    %v2315 = vpop.permute.xlu0 %2314
    %2316 = vrot.lane.b32.xlu0 %v1339, 32
    %v2317 = vpop.permute.xlu0 %2316
    %v2319 = vsel %vm802, %v2315, 0
    %v2322 = vsel %vm802, %v2317, 0
    %2324 = vmatpush.bf16.xpose.msra.mxu0 0
    %2325 = vmatpush.bf16.xpose.msra.mxu0 0
    %2326 = vmatpush.bf16.xpose.msra.mxu0 0
    %2327 = vmatpush.bf16.xpose.msra.mxu0 0
    %2328 = vmatpush.bf16.xpose.msra.mxu0 0
    %2329 = vmatpush.bf16.xpose.msra.mxu0 0
    %2330 = vmatpush.bf16.xpose.msra.mxu0 0
    %2331 = vmatpush.bf16.xpose.msra.mxu0 %v2322
    %2332 = vmatmul.bf16.gmra.mxu0 %v2319
    %v2333 = vpop.f32.mrf.mxu0
    %v2334 = vadd.f32 0.0, %v2333
    %v2335 = vpop.f32.mrf.mxu0
    %2336 = vdwg.mxu0
    %2337 = vrot.lane.b32.xlu0 %v1363, 32
    %v2338 = vpop.permute.xlu0 %2337
    %2339 = vrot.lane.b32.xlu0 %v1368, 32
    %v2340 = vpop.permute.xlu0 %2339
    %v2342 = vsel %vm802, %v2338, 0
    %v2345 = vsel %vm802, %v2340, 0
    %2347 = vmatpush.bf16.xpose.msra.mxu0 0
    %2348 = vmatpush.bf16.xpose.msra.mxu0 0
    %2349 = vmatpush.bf16.xpose.msra.mxu0 0
    %2350 = vmatpush.bf16.xpose.msra.mxu0 0
    %2351 = vmatpush.bf16.xpose.msra.mxu0 0
    %2352 = vmatpush.bf16.xpose.msra.mxu0 0
    %2353 = vmatpush.bf16.xpose.msra.mxu0 0
    %2354 = vmatpush.bf16.xpose.msra.mxu0 %v2345
    %2355 = vmatmul.bf16.gmra.mxu0 %v2342
    %v2356 = vpop.f32.mrf.mxu0
    %v2357 = vadd.f32 0.0, %v2356
    %v2358 = vpop.f32.mrf.mxu0
    %2359 = vdwg.mxu0
    %2360 = vrot.lane.b32.xlu0 %v1392, 32
    %v2361 = vpop.permute.xlu0 %2360
    %2362 = vrot.lane.b32.xlu0 %v1397, 32
    %v2363 = vpop.permute.xlu0 %2362
    %v2365 = vsel %vm802, %v2361, 0
    %v2368 = vsel %vm802, %v2363, 0
    %2370 = vmatpush.bf16.xpose.msra.mxu0 0
    %2371 = vmatpush.bf16.xpose.msra.mxu0 0
    %2372 = vmatpush.bf16.xpose.msra.mxu0 0
    %2373 = vmatpush.bf16.xpose.msra.mxu0 0
    %2374 = vmatpush.bf16.xpose.msra.mxu0 0
    %2375 = vmatpush.bf16.xpose.msra.mxu0 0
    %2376 = vmatpush.bf16.xpose.msra.mxu0 0
    %2377 = vmatpush.bf16.xpose.msra.mxu0 %v2368
    %2378 = vmatmul.bf16.gmra.mxu0 %v2365
    %v2379 = vpop.f32.mrf.mxu0
    %v2380 = vadd.f32 0.0, %v2379
    %v2381 = vpop.f32.mrf.mxu0
    %2382 = vdwg.mxu0
    %2383 = vrot.lane.b32.xlu0 %v1421, 32
    %v2384 = vpop.permute.xlu0 %2383
    %2385 = vrot.lane.b32.xlu0 %v1426, 32
    %v2386 = vpop.permute.xlu0 %2385
    %v2388 = vsel %vm802, %v2384, 0
    %v2391 = vsel %vm802, %v2386, 0
    %2393 = vmatpush.bf16.xpose.msra.mxu0 0
    %2394 = vmatpush.bf16.xpose.msra.mxu0 0
    %2395 = vmatpush.bf16.xpose.msra.mxu0 0
    %2396 = vmatpush.bf16.xpose.msra.mxu0 0
    %2397 = vmatpush.bf16.xpose.msra.mxu0 0
    %2398 = vmatpush.bf16.xpose.msra.mxu0 0
    %2399 = vmatpush.bf16.xpose.msra.mxu0 0
    %2400 = vmatpush.bf16.xpose.msra.mxu0 %v2391
    %2401 = vmatmul.bf16.gmra.mxu0 %v2388
    %v2402 = vpop.f32.mrf.mxu0
    %v2403 = vadd.f32 0.0, %v2402
    %v2404 = vpop.f32.mrf.mxu0
    %2405 = vdwg.mxu0
    %2406 = vrot.lane.b32.xlu0 %v1450, 32
    %v2407 = vpop.permute.xlu0 %2406
    %2408 = vrot.lane.b32.xlu0 %v1455, 32
    %v2409 = vpop.permute.xlu0 %2408
    %v2411 = vsel %vm802, %v2407, 0
    %v2414 = vsel %vm802, %v2409, 0
    %2416 = vmatpush.bf16.xpose.msra.mxu0 0
    %2417 = vmatpush.bf16.xpose.msra.mxu0 0
    %2418 = vmatpush.bf16.xpose.msra.mxu0 0
    %2419 = vmatpush.bf16.xpose.msra.mxu0 0
    %2420 = vmatpush.bf16.xpose.msra.mxu0 0
    %2421 = vmatpush.bf16.xpose.msra.mxu0 0
    %2422 = vmatpush.bf16.xpose.msra.mxu0 0
    %2423 = vmatpush.bf16.xpose.msra.mxu0 %v2414
    %2424 = vmatmul.bf16.gmra.mxu0 %v2411
    %v2425 = vpop.f32.mrf.mxu0
    %v2426 = vadd.f32 0.0, %v2425
    %v2427 = vpop.f32.mrf.mxu0
    %2428 = vdwg.mxu0
    %v2429 = vmul.f32 %v2265, 0.17677669
    %v2430 = vmul.f32 %v2288, 0.17677669
    %v2431 = vmul.f32 %v2311, 0.17677669
    %v2432 = vmul.f32 %v2334, 0.17677669
    %v2433 = vmul.f32 %v2357, 0.17677669
    %v2434 = vmul.f32 %v2380, 0.17677669
    %v2435 = vmul.f32 %v2403, 0.17677669
    %v2436 = vmul.f32 %v2426, 0.17677669
    %v2437 = vadd.f32 %v2429, %v971
    %v2438 = vadd.f32 %v2430, %v972
    %v2439 = vadd.f32 %v2431, %v973
    %v2440 = vadd.f32 %v2432, %v974
    %v2441 = vadd.f32 %v2433, %v975
    %v2442 = vadd.f32 %v2434, %v976
    %v2443 = vadd.f32 %v2435, %v977
    %v2444 = vadd.f32 %v2436, %v978
    %v2445 = vsel %vm995, %v2437, -inf
    %2446 = vmax.xlane.f32.xlu0 %v2445
    %v2447 = vpop.xlane.xlu0 %2446
    %v2448 = vsel %vm995, %v2438, -inf
    %2449 = vmax.xlane.f32.xlu0 %v2448
    %v2450 = vpop.xlane.xlu0 %2449
    %v2451 = vsel %vm995, %v2439, -inf
    %2452 = vmax.xlane.f32.xlu0 %v2451
    %v2453 = vpop.xlane.xlu0 %2452
    %v2454 = vsel %vm995, %v2440, -inf
    %2455 = vmax.xlane.f32.xlu0 %v2454
    %v2456 = vpop.xlane.xlu0 %2455
    %v2457 = vsel %vm995, %v2441, -inf
    %2458 = vmax.xlane.f32.xlu0 %v2457
    %v2459 = vpop.xlane.xlu0 %2458
    %v2460 = vsel %vm995, %v2442, -inf
    %2461 = vmax.xlane.f32.xlu0 %v2460
    %v2462 = vpop.xlane.xlu0 %2461
    %v2463 = vsel %vm995, %v2443, -inf
    %2464 = vmax.xlane.f32.xlu0 %v2463
    %v2465 = vpop.xlane.xlu0 %2464
    %v2466 = vsel %vm995, %v2444, -inf
    %2467 = vmax.xlane.f32.xlu0 %v2466
    %v2468 = vpop.xlane.xlu0 %2467
    %v2469 = vsub.f32 %v2437, %v2447
    %v2470 = vsub.f32 %v2438, %v2450
    %v2471 = vsub.f32 %v2439, %v2453
    %v2472 = vsub.f32 %v2440, %v2456
    %v2473 = vsub.f32 %v2441, %v2459
    %v2474 = vsub.f32 %v2442, %v2462
    %v2475 = vsub.f32 %v2443, %v2465
    %v2476 = vsub.f32 %v2444, %v2468
    %v2477 = vmul.f32 %v2469, 1.442695
    %v2478 = vpow.pop %v2477
    %v2479 = vmul.f32 %v2470, 1.442695
    %v2480 = vpow.pop %v2479
    %v2481 = vmul.f32 %v2471, 1.442695
    %v2482 = vpow.pop %v2481
    %v2483 = vmul.f32 %v2472, 1.442695
    %v2484 = vpow.pop %v2483
    %v2485 = vmul.f32 %v2473, 1.442695
    %v2486 = vpow.pop %v2485
    %v2487 = vmul.f32 %v2474, 1.442695
    %v2488 = vpow.pop %v2487
    %v2489 = vmul.f32 %v2475, 1.442695
    %v2490 = vpow.pop %v2489
    %v2491 = vmul.f32 %v2476, 1.442695
    %v2492 = vpow.pop %v2491
    %v2493 = vsel %vm995, %v2478, 0.0
    %2494 = vadd.xlane.f32.xlu0 %v2493
    %v2495 = vpop.xlane.xlu0 %2494
    %v2496 = vsel %vm995, %v2480, 0.0
    %2497 = vadd.xlane.f32.xlu0 %v2496
    %v2498 = vpop.xlane.xlu0 %2497
    %v2499 = vsel %vm995, %v2482, 0.0
    %2500 = vadd.xlane.f32.xlu0 %v2499
    %v2501 = vpop.xlane.xlu0 %2500
    %v2502 = vsel %vm995, %v2484, 0.0
    %2503 = vadd.xlane.f32.xlu0 %v2502
    %v2504 = vpop.xlane.xlu0 %2503
    %v2505 = vsel %vm995, %v2486, 0.0
    %2506 = vadd.xlane.f32.xlu0 %v2505
    %v2507 = vpop.xlane.xlu0 %2506
    %v2508 = vsel %vm995, %v2488, 0.0
    %2509 = vadd.xlane.f32.xlu0 %v2508
    %v2510 = vpop.xlane.xlu0 %2509
    %v2511 = vsel %vm995, %v2490, 0.0
    %2512 = vadd.xlane.f32.xlu0 %v2511
    %v2513 = vpop.xlane.xlu0 %2512
    %v2514 = vsel %vm995, %v2492, 0.0
    %2515 = vadd.xlane.f32.xlu0 %v2514
    %v2516 = vpop.xlane.xlu0 %2515
    %v2517 = vrcp.pop %v2495
    %v2518 = vrcp.pop %v2498
    %v2519 = vrcp.pop %v2501
    %v2520 = vrcp.pop %v2504
    %v2521 = vrcp.pop %v2507
    %v2522 = vrcp.pop %v2510
    %v2523 = vrcp.pop %v2513
    %v2524 = vrcp.pop %v2516
    %v2525 = vmul.f32 %v2478, %v2517
    %v2526 = vmul.f32 %v2480, %v2518
    %v2527 = vmul.f32 %v2482, %v2519
    %v2528 = vmul.f32 %v2484, %v2520
    %v2529 = vmul.f32 %v2486, %v2521
    %v2530 = vmul.f32 %v2488, %v2522
    %v2531 = vmul.f32 %v2490, %v2523
    %v2532 = vmul.f32 %v2492, %v2524
    %v2533 = vpack.c.bf16 %v2525, %v2525
    %v2534 = vpack.c.bf16 %v2526, %v2526
    %v2535 = vpack.c.bf16 %v2527, %v2527
    %v2536 = vpack.c.bf16 %v2528, %v2528
    %v2537 = vpack.c.bf16 %v2529, %v2529
    %v2538 = vpack.c.bf16 %v2530, %v2530
    %v2539 = vpack.c.bf16 %v2531, %v2531
    %v2540 = vpack.c.bf16 %v2532, %v2532
    %2541 = vrot.lane.b32.xlu0 %v1591, 32
    %v2542 = vpop.permute.xlu0 %2541
    %v2544 = vsel %vm995, %v2533, 0
    %v2547 = vsel %vm1095, %v2542, 0
    %2549 = vmatpush.bf16.msra.mxu0 0
    %2550 = vmatpush.bf16.msra.mxu0 0
    %2551 = vmatpush.bf16.msra.mxu0 0
    %2552 = vmatpush.bf16.msra.mxu0 0
    %2553 = vmatpush.bf16.msra.mxu0 0
    %2554 = vmatpush.bf16.msra.mxu0 0
    %2555 = vmatpush.bf16.msra.mxu0 0
    %2556 = vmatpush.bf16.msra.mxu0 %v2547
    %2557 = vmatmul.bf16.gmra.mxu0 %v2544
    %v2558 = vpop.f32.mrf.mxu0
    %v2559 = vadd.f32 0.0, %v2558
    %v2560 = vpop.f32.mrf.mxu0
    %2561 = vdwg.mxu0
    %2562 = vrot.lane.b32.xlu0 %v1615, 32
    %v2563 = vpop.permute.xlu0 %2562
    %v2565 = vsel %vm995, %v2534, 0
    %v2568 = vsel %vm1095, %v2563, 0
    %2570 = vmatpush.bf16.msra.mxu0 0
    %2571 = vmatpush.bf16.msra.mxu0 0
    %2572 = vmatpush.bf16.msra.mxu0 0
    %2573 = vmatpush.bf16.msra.mxu0 0
    %2574 = vmatpush.bf16.msra.mxu0 0
    %2575 = vmatpush.bf16.msra.mxu0 0
    %2576 = vmatpush.bf16.msra.mxu0 0
    %2577 = vmatpush.bf16.msra.mxu0 %v2568
    %2578 = vmatmul.bf16.gmra.mxu0 %v2565
    %v2579 = vpop.f32.mrf.mxu0
    %v2580 = vadd.f32 0.0, %v2579
    %v2581 = vpop.f32.mrf.mxu0
    %2582 = vdwg.mxu0
    %2583 = vrot.lane.b32.xlu0 %v1639, 32
    %v2584 = vpop.permute.xlu0 %2583
    %v2586 = vsel %vm995, %v2535, 0
    %v2589 = vsel %vm1095, %v2584, 0
    %2591 = vmatpush.bf16.msra.mxu0 0
    %2592 = vmatpush.bf16.msra.mxu0 0
    %2593 = vmatpush.bf16.msra.mxu0 0
    %2594 = vmatpush.bf16.msra.mxu0 0
    %2595 = vmatpush.bf16.msra.mxu0 0
    %2596 = vmatpush.bf16.msra.mxu0 0
    %2597 = vmatpush.bf16.msra.mxu0 0
    %2598 = vmatpush.bf16.msra.mxu0 %v2589
    %2599 = vmatmul.bf16.gmra.mxu0 %v2586
    %v2600 = vpop.f32.mrf.mxu0
    %v2601 = vadd.f32 0.0, %v2600
    %v2602 = vpop.f32.mrf.mxu0
    %2603 = vdwg.mxu0
    %2604 = vrot.lane.b32.xlu0 %v1663, 32
    %v2605 = vpop.permute.xlu0 %2604
    %v2607 = vsel %vm995, %v2536, 0
    %v2610 = vsel %vm1095, %v2605, 0
    %2612 = vmatpush.bf16.msra.mxu0 0
    %2613 = vmatpush.bf16.msra.mxu0 0
    %2614 = vmatpush.bf16.msra.mxu0 0
    %2615 = vmatpush.bf16.msra.mxu0 0
    %2616 = vmatpush.bf16.msra.mxu0 0
    %2617 = vmatpush.bf16.msra.mxu0 0
    %2618 = vmatpush.bf16.msra.mxu0 0
    %2619 = vmatpush.bf16.msra.mxu0 %v2610
    %2620 = vmatmul.bf16.gmra.mxu0 %v2607
    %v2621 = vpop.f32.mrf.mxu0
    %v2622 = vadd.f32 0.0, %v2621
    %v2623 = vpop.f32.mrf.mxu0
    %2624 = vdwg.mxu0
    %2625 = vrot.lane.b32.xlu0 %v1687, 32
    %v2626 = vpop.permute.xlu0 %2625
    %v2628 = vsel %vm995, %v2537, 0
    %v2631 = vsel %vm1095, %v2626, 0
    %2633 = vmatpush.bf16.msra.mxu0 0
    %2634 = vmatpush.bf16.msra.mxu0 0
    %2635 = vmatpush.bf16.msra.mxu0 0
    %2636 = vmatpush.bf16.msra.mxu0 0
    %2637 = vmatpush.bf16.msra.mxu0 0
    %2638 = vmatpush.bf16.msra.mxu0 0
    %2639 = vmatpush.bf16.msra.mxu0 0
    %2640 = vmatpush.bf16.msra.mxu0 %v2631
    %2641 = vmatmul.bf16.gmra.mxu0 %v2628
    %v2642 = vpop.f32.mrf.mxu0
    %v2643 = vadd.f32 0.0, %v2642
    %v2644 = vpop.f32.mrf.mxu0
    %2645 = vdwg.mxu0
    %2646 = vrot.lane.b32.xlu0 %v1711, 32
    %v2647 = vpop.permute.xlu0 %2646
    %v2649 = vsel %vm995, %v2538, 0
    %v2652 = vsel %vm1095, %v2647, 0
    %2654 = vmatpush.bf16.msra.mxu0 0
    %2655 = vmatpush.bf16.msra.mxu0 0
    %2656 = vmatpush.bf16.msra.mxu0 0
    %2657 = vmatpush.bf16.msra.mxu0 0
    %2658 = vmatpush.bf16.msra.mxu0 0
    %2659 = vmatpush.bf16.msra.mxu0 0
    %2660 = vmatpush.bf16.msra.mxu0 0
    %2661 = vmatpush.bf16.msra.mxu0 %v2652
    %2662 = vmatmul.bf16.gmra.mxu0 %v2649
    %v2663 = vpop.f32.mrf.mxu0
    %v2664 = vadd.f32 0.0, %v2663
    %v2665 = vpop.f32.mrf.mxu0
    %2666 = vdwg.mxu0
    %2667 = vrot.lane.b32.xlu0 %v1735, 32
    %v2668 = vpop.permute.xlu0 %2667
    %v2670 = vsel %vm995, %v2539, 0
    %v2673 = vsel %vm1095, %v2668, 0
    %2675 = vmatpush.bf16.msra.mxu0 0
    %2676 = vmatpush.bf16.msra.mxu0 0
    %2677 = vmatpush.bf16.msra.mxu0 0
    %2678 = vmatpush.bf16.msra.mxu0 0
    %2679 = vmatpush.bf16.msra.mxu0 0
    %2680 = vmatpush.bf16.msra.mxu0 0
    %2681 = vmatpush.bf16.msra.mxu0 0
    %2682 = vmatpush.bf16.msra.mxu0 %v2673
    %2683 = vmatmul.bf16.gmra.mxu0 %v2670
    %v2684 = vpop.f32.mrf.mxu0
    %v2685 = vadd.f32 0.0, %v2684
    %v2686 = vpop.f32.mrf.mxu0
    %2687 = vdwg.mxu0
    %2688 = vrot.lane.b32.xlu0 %v1759, 32
    %v2689 = vpop.permute.xlu0 %2688
    %v2691 = vsel %vm995, %v2540, 0
    %v2694 = vsel %vm1095, %v2689, 0
    %2696 = vmatpush.bf16.msra.mxu0 0
    %2697 = vmatpush.bf16.msra.mxu0 0
    %2698 = vmatpush.bf16.msra.mxu0 0
    %2699 = vmatpush.bf16.msra.mxu0 0
    %2700 = vmatpush.bf16.msra.mxu0 0
    %2701 = vmatpush.bf16.msra.mxu0 0
    %2702 = vmatpush.bf16.msra.mxu0 0
    %2703 = vmatpush.bf16.msra.mxu0 %v2694
    %2704 = vmatmul.bf16.gmra.mxu0 %v2691
    %v2705 = vpop.f32.mrf.mxu0
    %v2706 = vadd.f32 0.0, %v2705
    %v2707 = vpop.f32.mrf.mxu0
    %2708 = vdwg.mxu0
    %2717 = vrot.lane.b32.xlu0 %v1610, 32
    %v2718 = vpop.permute.xlu0 %2717
    %2719 = vrot.lane.b32.xlu0 %v1634, 32
    %v2720 = vpop.permute.xlu0 %2719
    %2721 = vrot.lane.b32.xlu0 %v1658, 32
    %v2722 = vpop.permute.xlu0 %2721
    %2723 = vrot.lane.b32.xlu0 %v1682, 32
    %v2724 = vpop.permute.xlu0 %2723
    %2725 = vrot.lane.b32.xlu0 %v1706, 32
    %v2726 = vpop.permute.xlu0 %2725
    %2727 = vrot.lane.b32.xlu0 %v1730, 32
    %v2728 = vpop.permute.xlu0 %2727
    %2729 = vrot.lane.b32.xlu0 %v1754, 32
    %v2730 = vpop.permute.xlu0 %2729
    %2731 = vrot.lane.b32.xlu0 %v1778, 32
    %v2732 = vpop.permute.xlu0 %2731
    %2749 = vrot.lane.b32.xlu0 %v2095, 64
    %v2750 = vpop.permute.xlu0 %2749
    %2751 = vrot.lane.b32.xlu0 %v2116, 64
    %v2752 = vpop.permute.xlu0 %2751
    %2753 = vrot.lane.b32.xlu0 %v2137, 64
    %v2754 = vpop.permute.xlu0 %2753
    %2755 = vrot.lane.b32.xlu0 %v2158, 64
    %v2756 = vpop.permute.xlu0 %2755
    %2757 = vrot.lane.b32.xlu0 %v2179, 64
    %v2758 = vpop.permute.xlu0 %2757
    %2759 = vrot.lane.b32.xlu0 %v2200, 64
    %v2760 = vpop.permute.xlu0 %2759
    %2761 = vrot.lane.b32.xlu0 %v2221, 64
    %v2762 = vpop.permute.xlu0 %2761
    %2763 = vrot.lane.b32.xlu0 %v2242, 64
    %v2764 = vpop.permute.xlu0 %2763
    %2781 = vrot.lane.b32.xlu0 %v2559, 96
    %v2782 = vpop.permute.xlu0 %2781
    %2783 = vrot.lane.b32.xlu0 %v2580, 96
    %v2784 = vpop.permute.xlu0 %2783
    %2785 = vrot.lane.b32.xlu0 %v2601, 96
    %v2786 = vpop.permute.xlu0 %2785
    %2787 = vrot.lane.b32.xlu0 %v2622, 96
    %v2788 = vpop.permute.xlu0 %2787
    %2789 = vrot.lane.b32.xlu0 %v2643, 96
    %v2790 = vpop.permute.xlu0 %2789
    %2791 = vrot.lane.b32.xlu0 %v2664, 96
    %v2792 = vpop.permute.xlu0 %2791
    %2793 = vrot.lane.b32.xlu0 %v2685, 96
    %v2794 = vpop.permute.xlu0 %2793
    %2795 = vrot.lane.b32.xlu0 %v2706, 96
    %v2796 = vpop.permute.xlu0 %2795
    %v2805 = vsel %vm802, %v1109, %v2718
    %v2806 = vsel %vm802, %v1128, %v2720
    %v2807 = vsel %vm802, %v1147, %v2722
    %v2808 = vsel %vm802, %v1166, %v2724
    %v2809 = vsel %vm802, %v1185, %v2726
    %v2810 = vsel %vm802, %v1204, %v2728
    %v2811 = vsel %vm802, %v1223, %v2730
    %v2812 = vsel %vm802, %v1242, %v2732
    %v2813 = vsel %vm278, %v2805, %v2750
    %v2814 = vsel %vm278, %v2806, %v2752
    %v2815 = vsel %vm278, %v2807, %v2754
    %v2816 = vsel %vm278, %v2808, %v2756
    %v2817 = vsel %vm278, %v2809, %v2758
    %v2818 = vsel %vm278, %v2810, %v2760
    %v2819 = vsel %vm278, %v2811, %v2762
    %v2820 = vsel %vm278, %v2812, %v2764
    %vm2821 = vcmask 785408
    %v2822 = vsel %vm2821, %v2813, %v2782
    %v2823 = vsel %vm2821, %v2814, %v2784
    %v2824 = vsel %vm2821, %v2815, %v2786
    %v2825 = vsel %vm2821, %v2816, %v2788
    %v2826 = vsel %vm2821, %v2817, %v2790
    %v2827 = vsel %vm2821, %v2818, %v2792
    %v2828 = vsel %vm2821, %v2819, %v2794
    %v2829 = vsel %vm2821, %v2820, %v2796
    %v2830 = vpack.c.bf16 %v2823, %v2822
    %v2831 = vpack.c.bf16 %v2825, %v2824
    %v2832 = vpack.c.bf16 %v2827, %v2826
    %v2833 = vpack.c.bf16 %v2829, %v2828
    %v2834 = vld [vmem:[#allocation8] sm:$0xf]
    %v2835 = vld [vmem:[#allocation8 + $0x4] sm:$0xf]
    %v2836 = vld [vmem:[#allocation8 + $0x8] sm:$0xf]
    %v2837 = vld [vmem:[#allocation8 + $0xc] sm:$0xf]
    %v2838 = vld [vmem:[#allocation8 + $0x10] sm:$0xf]
    %v2839 = vld [vmem:[#allocation8 + $0x14] sm:$0xf]
    %v2840 = vld [vmem:[#allocation8 + $0x18] sm:$0xf]
    %v2841 = vld [vmem:[#allocation8 + $0x1c] sm:$0xf]
    %v2842 = vld [vmem:[#allocation8 + $0x20] sm:$0xf]
    %v2843 = vld [vmem:[#allocation8 + $0x24] sm:$0xf]
    %v2844 = vld [vmem:[#allocation8 + $0x28] sm:$0xf]
    %v2845 = vld [vmem:[#allocation8 + $0x2c] sm:$0xf]
    %v2846 = vld [vmem:[#allocation8 + $0x30] sm:$0xf]
    %v2847 = vld [vmem:[#allocation8 + $0x34] sm:$0xf]
    %v2848 = vld [vmem:[#allocation8 + $0x38] sm:$0xf]
    %v2849 = vld [vmem:[#allocation8 + $0x3c] sm:$0xf]
    %v2850 = vld [vmem:[%s10] sm:$0x1]
    %v2852 = vperm.slane %v2850, 0
    %v2870 = vunpack.c.l.b16 %v2834
    %v2871 = vunpack.c.l.b16 %v2835
    %v2872 = vunpack.c.l.b16 %v2836
    %v2873 = vunpack.c.l.b16 %v2837
    %v2874 = vunpack.c.l.b16 %v2838
    %v2875 = vunpack.c.l.b16 %v2839
    %v2876 = vunpack.c.l.b16 %v2840
    %v2877 = vunpack.c.l.b16 %v2841
    %v2878 = vunpack.c.l.b16 %v2842
    %v2879 = vunpack.c.l.b16 %v2843
    %v2880 = vunpack.c.l.b16 %v2844
    %v2881 = vunpack.c.l.b16 %v2845
    %v2882 = vunpack.c.l.b16 %v2846
    %v2883 = vunpack.c.l.b16 %v2847
    %v2884 = vunpack.c.l.b16 %v2848
    %v2885 = vunpack.c.l.b16 %v2849
    %v2886 = vpack.c.b16 %v2871, %v2870
    %v2887 = vpack.c.b16 %v2873, %v2872
    %v2888 = vpack.c.b16 %v2875, %v2874
    %v2889 = vpack.c.b16 %v2877, %v2876
    %v2890 = vpack.c.b16 %v2879, %v2878
    %v2891 = vpack.c.b16 %v2881, %v2880
    %v2892 = vpack.c.b16 %v2883, %v2882
    %v2893 = vpack.c.b16 %v2885, %v2884
    %2902 = vmatpush.bf16.msra.mxu0 %v2893
    %2903 = vmatpush.bf16.msra.mxu0 %v2892
    %2904 = vmatpush.bf16.msra.mxu0 %v2891
    %2905 = vmatpush.bf16.msra.mxu0 %v2890
    %2906 = vmatpush.bf16.msra.mxu0 %v2889
    %2907 = vmatpush.bf16.msra.mxu0 %v2888
    %2908 = vmatpush.bf16.msra.mxu0 %v2887
    %2909 = vmatpush.bf16.msra.mxu0 %v2886
    %2910 = vmatmul.bf16.gmra.mxu0 %v2830
    %v2911 = vpop.f32.mrf.mxu0
    %v2912 = vadd.f32 %v2852, %v2911
    %v2913 = vpop.f32.mrf.mxu0
    %v2914 = vadd.f32 %v2852, %v2913
    %2915 = vmatmul.bf16.gmra.mxu0 %v2831
    %v2916 = vpop.f32.mrf.mxu0
    %v2917 = vadd.f32 %v2852, %v2916
    %v2918 = vpop.f32.mrf.mxu0
    %v2919 = vadd.f32 %v2852, %v2918
    %2920 = vmatmul.bf16.gmra.mxu0 %v2832
    %v2921 = vpop.f32.mrf.mxu0
    %v2922 = vadd.f32 %v2852, %v2921
    %v2923 = vpop.f32.mrf.mxu0
    %v2924 = vadd.f32 %v2852, %v2923
    %2925 = vmatmul.bf16.gmra.mxu0 %v2833
    %v2926 = vpop.f32.mrf.mxu0
    %v2927 = vadd.f32 %v2852, %v2926
    %v2928 = vpop.f32.mrf.mxu0
    %v2929 = vadd.f32 %v2852, %v2928
    %2930 = vdwg.mxu0
    %v2931 = vadd.f32 %v503, %v2912
    %v2932 = vadd.f32 %v504, %v2914
    %v2933 = vadd.f32 %v505, %v2917
    %v2934 = vadd.f32 %v506, %v2919
    %v2935 = vadd.f32 %v507, %v2922
    %v2936 = vadd.f32 %v508, %v2924
    %v2937 = vadd.f32 %v509, %v2927
    %v2938 = vadd.f32 %v510, %v2929
    %v2939 = vld [vmem:[%s11] sm:$0x1]
    %v2940 = vld [vmem:[%s12] sm:$0x1]
    %2941 = vadd.xlane.f32.xlu0 %v2931
    %v2942 = vpop.xlane.xlu0 %2941
    %2943 = vadd.xlane.f32.xlu0 %v2932
    %v2944 = vpop.xlane.xlu0 %2943
    %2945 = vadd.xlane.f32.xlu0 %v2933
    %v2946 = vpop.xlane.xlu0 %2945
    %2947 = vadd.xlane.f32.xlu0 %v2934
    %v2948 = vpop.xlane.xlu0 %2947
    %2949 = vadd.xlane.f32.xlu0 %v2935
    %v2950 = vpop.xlane.xlu0 %2949
    %2951 = vadd.xlane.f32.xlu0 %v2936
    %v2952 = vpop.xlane.xlu0 %2951
    %2953 = vadd.xlane.f32.xlu0 %v2937
    %v2954 = vpop.xlane.xlu0 %2953
    %2955 = vadd.xlane.f32.xlu0 %v2938
    %v2956 = vpop.xlane.xlu0 %2955
    %v2957 = vmul.f32 %v2942, %v344
    %v2958 = vmul.f32 %v2944, %v344
    %v2959 = vmul.f32 %v2946, %v344
    %v2960 = vmul.f32 %v2948, %v344
    %v2961 = vmul.f32 %v2950, %v344
    %v2962 = vmul.f32 %v2952, %v344
    %v2963 = vmul.f32 %v2954, %v344
    %v2964 = vmul.f32 %v2956, %v344
    %v2965 = vsub.f32 %v2931, %v2957
    %v2966 = vsub.f32 %v2932, %v2958
    %v2967 = vsub.f32 %v2933, %v2959
    %v2968 = vsub.f32 %v2934, %v2960
    %v2969 = vsub.f32 %v2935, %v2961
    %v2970 = vsub.f32 %v2936, %v2962
    %v2971 = vsub.f32 %v2937, %v2963
    %v2972 = vsub.f32 %v2938, %v2964
    %v2973 = vmul.f32 %v2965, %v2965
    %v2974 = vmul.f32 %v2966, %v2966
    %v2975 = vmul.f32 %v2967, %v2967
    %v2976 = vmul.f32 %v2968, %v2968
    %v2977 = vmul.f32 %v2969, %v2969
    %v2978 = vmul.f32 %v2970, %v2970
    %v2979 = vmul.f32 %v2971, %v2971
    %v2980 = vmul.f32 %v2972, %v2972
    %2981 = vadd.xlane.f32.xlu0 %v2973
    %v2982 = vpop.xlane.xlu0 %2981
    %2983 = vadd.xlane.f32.xlu0 %v2974
    %v2984 = vpop.xlane.xlu0 %2983
    %2985 = vadd.xlane.f32.xlu0 %v2975
    %v2986 = vpop.xlane.xlu0 %2985
    %2987 = vadd.xlane.f32.xlu0 %v2976
    %v2988 = vpop.xlane.xlu0 %2987
    %2989 = vadd.xlane.f32.xlu0 %v2977
    %v2990 = vpop.xlane.xlu0 %2989
    %2991 = vadd.xlane.f32.xlu0 %v2978
    %v2992 = vpop.xlane.xlu0 %2991
    %2993 = vadd.xlane.f32.xlu0 %v2979
    %v2994 = vpop.xlane.xlu0 %2993
    %2995 = vadd.xlane.f32.xlu0 %v2980
    %v2996 = vpop.xlane.xlu0 %2995
    %v2997 = vmul.f32 %v2982, %v344
    %v2998 = vmul.f32 %v2984, %v344
    %v2999 = vmul.f32 %v2986, %v344
    %v3000 = vmul.f32 %v2988, %v344
    %v3001 = vmul.f32 %v2990, %v344
    %v3002 = vmul.f32 %v2992, %v344
    %v3003 = vmul.f32 %v2994, %v344
    %v3004 = vmul.f32 %v2996, %v344
    %v3005 = vadd.f32 %v2997, 1e-12
    %v3006 = vadd.f32 %v2998, 1e-12
    %v3007 = vadd.f32 %v2999, 1e-12
    %v3008 = vadd.f32 %v3000, 1e-12
    %v3009 = vadd.f32 %v3001, 1e-12
    %v3010 = vadd.f32 %v3002, 1e-12
    %v3011 = vadd.f32 %v3003, 1e-12
    %v3012 = vadd.f32 %v3004, 1e-12
    %v3013 = vrsqrt.pop %v3005
    %v3014 = vmul.f32 %v3013, %v3005
    %v3015 = vmul.f32 %v3014, %v3013
    %v3016 = vmul.f32 0.5, %v3015
    %v3017 = vsub.f32 1.5, %v3016
    %v3018 = vmul.f32 %v3013, %v3017
    %vm3019 = vweird.f32 %v3005
    %vm3020 = vweird.f32 %v3013
    %vm3021 = vmor %vm3019, %vm3020
    %v3022 = vsel %vm3021, %v3013, %v3018
    %v3023 = vrsqrt.pop %v3006
    %v3024 = vmul.f32 %v3023, %v3006
    %v3025 = vmul.f32 %v3024, %v3023
    %v3026 = vmul.f32 0.5, %v3025
    %v3027 = vsub.f32 1.5, %v3026
    %v3028 = vmul.f32 %v3023, %v3027
    %vm3029 = vweird.f32 %v3006
    %vm3030 = vweird.f32 %v3023
    %vm3031 = vmor %vm3029, %vm3030
    %v3032 = vsel %vm3031, %v3023, %v3028
    %v3033 = vrsqrt.pop %v3007
    %v3034 = vmul.f32 %v3033, %v3007
    %v3035 = vmul.f32 %v3034, %v3033
    %v3036 = vmul.f32 0.5, %v3035
    %v3037 = vsub.f32 1.5, %v3036
    %v3038 = vmul.f32 %v3033, %v3037
    %vm3039 = vweird.f32 %v3007
    %vm3040 = vweird.f32 %v3033
    %vm3041 = vmor %vm3039, %vm3040
    %v3042 = vsel %vm3041, %v3033, %v3038
    %v3043 = vrsqrt.pop %v3008
    %v3044 = vmul.f32 %v3043, %v3008
    %v3045 = vmul.f32 %v3044, %v3043
    %v3046 = vmul.f32 0.5, %v3045
    %v3047 = vsub.f32 1.5, %v3046
    %v3048 = vmul.f32 %v3043, %v3047
    %vm3049 = vweird.f32 %v3008
    %vm3050 = vweird.f32 %v3043
    %vm3051 = vmor %vm3049, %vm3050
    %v3052 = vsel %vm3051, %v3043, %v3048
    %v3053 = vrsqrt.pop %v3009
    %v3054 = vmul.f32 %v3053, %v3009
    %v3055 = vmul.f32 %v3054, %v3053
    %v3056 = vmul.f32 0.5, %v3055
    %v3057 = vsub.f32 1.5, %v3056
    %v3058 = vmul.f32 %v3053, %v3057
    %vm3059 = vweird.f32 %v3009
    %vm3060 = vweird.f32 %v3053
    %vm3061 = vmor %vm3059, %vm3060
    %v3062 = vsel %vm3061, %v3053, %v3058
    %v3063 = vrsqrt.pop %v3010
    %v3064 = vmul.f32 %v3063, %v3010
    %v3065 = vmul.f32 %v3064, %v3063
    %v3066 = vmul.f32 0.5, %v3065
    %v3067 = vsub.f32 1.5, %v3066
    %v3068 = vmul.f32 %v3063, %v3067
    %vm3069 = vweird.f32 %v3010
    %vm3070 = vweird.f32 %v3063
    %vm3071 = vmor %vm3069, %vm3070
    %v3072 = vsel %vm3071, %v3063, %v3068
    %v3073 = vrsqrt.pop %v3011
    %v3074 = vmul.f32 %v3073, %v3011
    %v3075 = vmul.f32 %v3074, %v3073
    %v3076 = vmul.f32 0.5, %v3075
    %v3077 = vsub.f32 1.5, %v3076
    %v3078 = vmul.f32 %v3073, %v3077
    %vm3079 = vweird.f32 %v3011
    %vm3080 = vweird.f32 %v3073
    %vm3081 = vmor %vm3079, %vm3080
    %v3082 = vsel %vm3081, %v3073, %v3078
    %v3083 = vrsqrt.pop %v3012
    %v3084 = vmul.f32 %v3083, %v3012
    %v3085 = vmul.f32 %v3084, %v3083
    %v3086 = vmul.f32 0.5, %v3085
    %v3087 = vsub.f32 1.5, %v3086
    %v3088 = vmul.f32 %v3083, %v3087
    %vm3089 = vweird.f32 %v3012
    %vm3090 = vweird.f32 %v3083
    %vm3091 = vmor %vm3089, %vm3090
    %v3092 = vsel %vm3091, %v3083, %v3088
    %v3093 = vmul.f32 %v2965, %v3022
    %v3094 = vmul.f32 %v2966, %v3032
    %v3095 = vmul.f32 %v2967, %v3042
    %v3096 = vmul.f32 %v2968, %v3052
    %v3097 = vmul.f32 %v2969, %v3062
    %v3098 = vmul.f32 %v2970, %v3072
    %v3099 = vmul.f32 %v2971, %v3082
    %v3100 = vmul.f32 %v2972, %v3092
    %v3102 = vperm.slane %v2939, 0
    %v3104 = vmul.f32 %v3093, %v3102
    %v3105 = vmul.f32 %v3094, %v3102
    %v3106 = vmul.f32 %v3095, %v3102
    %v3107 = vmul.f32 %v3096, %v3102
    %v3108 = vmul.f32 %v3097, %v3102
    %v3109 = vmul.f32 %v3098, %v3102
    %v3110 = vmul.f32 %v3099, %v3102
    %v3111 = vmul.f32 %v3100, %v3102
    %v3113 = vperm.slane %v2940, 0
    %v3115 = vadd.f32 %v3104, %v3113
    %v3116 = vadd.f32 %v3105, %v3113
    %v3117 = vadd.f32 %v3106, %v3113
    %v3118 = vadd.f32 %v3107, %v3113
    %v3119 = vadd.f32 %v3108, %v3113
    %v3120 = vadd.f32 %v3109, %v3113
    %v3121 = vadd.f32 %v3110, %v3113
    %v3122 = vadd.f32 %v3111, %v3113
    %v3123 = vpack.c.bf16 %v3116, %v3115
    %v3124 = vpack.c.bf16 %v3118, %v3117
    %v3125 = vpack.c.bf16 %v3120, %v3119
    %v3126 = vpack.c.bf16 %v3122, %v3121
    %v3127 = vld [vmem:[#allocation9] sm:$0xff]
    %v3128 = vld [vmem:[#allocation9 + $0x8] sm:$0xff]
    %v3129 = vld [vmem:[#allocation9 + $0x10] sm:$0xff]
    %v3130 = vld [vmem:[#allocation9 + $0x18] sm:$0xff]
    %v3131 = vld [vmem:[#allocation9 + $0x20] sm:$0xff]
    %v3132 = vld [vmem:[#allocation9 + $0x28] sm:$0xff]
    %v3133 = vld [vmem:[#allocation9 + $0x30] sm:$0xff]
    %v3134 = vld [vmem:[#allocation9 + $0x38] sm:$0xff]
    %v3135 = vld [vmem:[#allocation9 + $0x40] sm:$0xff]
    %v3136 = vld [vmem:[#allocation9 + $0x48] sm:$0xff]
    %v3137 = vld [vmem:[#allocation9 + $0x50] sm:$0xff]
    %v3138 = vld [vmem:[#allocation9 + $0x58] sm:$0xff]
    %v3139 = vld [vmem:[#allocation9 + $0x60] sm:$0xff]
    %v3140 = vld [vmem:[#allocation9 + $0x68] sm:$0xff]
    %v3141 = vld [vmem:[#allocation9 + $0x70] sm:$0xff]
    %v3142 = vld [vmem:[#allocation9 + $0x78] sm:$0xff]
    %v3143 = vld [vmem:[#allocation9 + $0x80] sm:$0xff]
    %v3144 = vld [vmem:[#allocation9 + $0x88] sm:$0xff]
    %v3145 = vld [vmem:[#allocation9 + $0x90] sm:$0xff]
    %v3146 = vld [vmem:[#allocation9 + $0x98] sm:$0xff]
    %v3147 = vld [vmem:[#allocation9 + $0xa0] sm:$0xff]
    %v3148 = vld [vmem:[#allocation9 + $0xa8] sm:$0xff]
    %v3149 = vld [vmem:[#allocation9 + $0xb0] sm:$0xff]
    %v3150 = vld [vmem:[#allocation9 + $0xb8] sm:$0xff]
    %v3151 = vld [vmem:[#allocation9 + $0xc0] sm:$0xff]
    %v3152 = vld [vmem:[#allocation9 + $0xc8] sm:$0xff]
    %v3153 = vld [vmem:[#allocation9 + $0xd0] sm:$0xff]
    %v3154 = vld [vmem:[#allocation9 + $0xd8] sm:$0xff]
    %v3155 = vld [vmem:[#allocation9 + $0xe0] sm:$0xff]
    %v3156 = vld [vmem:[#allocation9 + $0xe8] sm:$0xff]
    %v3157 = vld [vmem:[#allocation9 + $0xf0] sm:$0xff]
    %v3158 = vld [vmem:[#allocation9 + $0xf8] sm:$0xff]
    %v3159 = vld [vmem:[%s14] sm:$0xf]
    %v3161 = vperm.slane %v3159, 0
    %v3162 = vperm.slane %v3159, 1
    %v3163 = vperm.slane %v3159, 2
    %v3164 = vperm.slane %v3159, 3
    %v3201 = vunpack.c.l.b16 %v3127
    %v3202 = vunpack.c.h.b16 %v3127
    %v3203 = vunpack.c.l.b16 %v3128
    %v3204 = vunpack.c.h.b16 %v3128
    %v3205 = vunpack.c.l.b16 %v3129
    %v3206 = vunpack.c.h.b16 %v3129
    %v3207 = vunpack.c.l.b16 %v3130
    %v3208 = vunpack.c.h.b16 %v3130
    %v3209 = vunpack.c.l.b16 %v3131
    %v3210 = vunpack.c.h.b16 %v3131
    %v3211 = vunpack.c.l.b16 %v3132
    %v3212 = vunpack.c.h.b16 %v3132
    %v3213 = vunpack.c.l.b16 %v3133
    %v3214 = vunpack.c.h.b16 %v3133
    %v3215 = vunpack.c.l.b16 %v3134
    %v3216 = vunpack.c.h.b16 %v3134
    %v3217 = vunpack.c.l.b16 %v3135
    %v3218 = vunpack.c.h.b16 %v3135
    %v3219 = vunpack.c.l.b16 %v3136
    %v3220 = vunpack.c.h.b16 %v3136
    %v3221 = vunpack.c.l.b16 %v3137
    %v3222 = vunpack.c.h.b16 %v3137
    %v3223 = vunpack.c.l.b16 %v3138
    %v3224 = vunpack.c.h.b16 %v3138
    %v3225 = vunpack.c.l.b16 %v3139
    %v3226 = vunpack.c.h.b16 %v3139
    %v3227 = vunpack.c.l.b16 %v3140
    %v3228 = vunpack.c.h.b16 %v3140
    %v3229 = vunpack.c.l.b16 %v3141
    %v3230 = vunpack.c.h.b16 %v3141
    %v3231 = vunpack.c.l.b16 %v3142
    %v3232 = vunpack.c.h.b16 %v3142
    %v3233 = vunpack.c.l.b16 %v3143
    %v3234 = vunpack.c.h.b16 %v3143
    %v3235 = vunpack.c.l.b16 %v3144
    %v3236 = vunpack.c.h.b16 %v3144
    %v3237 = vunpack.c.l.b16 %v3145
    %v3238 = vunpack.c.h.b16 %v3145
    %v3239 = vunpack.c.l.b16 %v3146
    %v3240 = vunpack.c.h.b16 %v3146
    %v3241 = vunpack.c.l.b16 %v3147
    %v3242 = vunpack.c.h.b16 %v3147
    %v3243 = vunpack.c.l.b16 %v3148
    %v3244 = vunpack.c.h.b16 %v3148
    %v3245 = vunpack.c.l.b16 %v3149
    %v3246 = vunpack.c.h.b16 %v3149
    %v3247 = vunpack.c.l.b16 %v3150
    %v3248 = vunpack.c.h.b16 %v3150
    %v3249 = vunpack.c.l.b16 %v3151
    %v3250 = vunpack.c.h.b16 %v3151
    %v3251 = vunpack.c.l.b16 %v3152
    %v3252 = vunpack.c.h.b16 %v3152
    %v3253 = vunpack.c.l.b16 %v3153
    %v3254 = vunpack.c.h.b16 %v3153
    %v3255 = vunpack.c.l.b16 %v3154
    %v3256 = vunpack.c.h.b16 %v3154
    %v3257 = vunpack.c.l.b16 %v3155
    %v3258 = vunpack.c.h.b16 %v3155
    %v3259 = vunpack.c.l.b16 %v3156
    %v3260 = vunpack.c.h.b16 %v3156
    %v3261 = vunpack.c.l.b16 %v3157
    %v3262 = vunpack.c.h.b16 %v3157
    %v3263 = vunpack.c.l.b16 %v3158
    %v3264 = vunpack.c.h.b16 %v3158
    %v3265 = vpack.c.b16 %v3205, %v3201
    %v3266 = vpack.c.b16 %v3206, %v3202
    %v3267 = vpack.c.b16 %v3207, %v3203
    %v3268 = vpack.c.b16 %v3208, %v3204
    %v3269 = vpack.c.b16 %v3213, %v3209
    %v3270 = vpack.c.b16 %v3214, %v3210
    %v3271 = vpack.c.b16 %v3215, %v3211
    %v3272 = vpack.c.b16 %v3216, %v3212
    %v3273 = vpack.c.b16 %v3221, %v3217
    %v3274 = vpack.c.b16 %v3222, %v3218
    %v3275 = vpack.c.b16 %v3223, %v3219
    %v3276 = vpack.c.b16 %v3224, %v3220
    %v3277 = vpack.c.b16 %v3229, %v3225
    %v3278 = vpack.c.b16 %v3230, %v3226
    %v3279 = vpack.c.b16 %v3231, %v3227
    %v3280 = vpack.c.b16 %v3232, %v3228
    %v3281 = vpack.c.b16 %v3237, %v3233
    %v3282 = vpack.c.b16 %v3238, %v3234
    %v3283 = vpack.c.b16 %v3239, %v3235
    %v3284 = vpack.c.b16 %v3240, %v3236
    %v3285 = vpack.c.b16 %v3245, %v3241
    %v3286 = vpack.c.b16 %v3246, %v3242
    %v3287 = vpack.c.b16 %v3247, %v3243
    %v3288 = vpack.c.b16 %v3248, %v3244
    %v3289 = vpack.c.b16 %v3253, %v3249
    %v3290 = vpack.c.b16 %v3254, %v3250
    %v3291 = vpack.c.b16 %v3255, %v3251
    %v3292 = vpack.c.b16 %v3256, %v3252
    %v3293 = vpack.c.b16 %v3261, %v3257
    %v3294 = vpack.c.b16 %v3262, %v3258
    %v3295 = vpack.c.b16 %v3263, %v3259
    %v3296 = vpack.c.b16 %v3264, %v3260
    %3329 = vmatpush.bf16.msra.mxu0 %v3293
    %3330 = vmatpush.bf16.msra.mxu0 %v3289
    %3331 = vmatpush.bf16.msra.mxu0 %v3285
    %3332 = vmatpush.bf16.msra.mxu0 %v3281
    %3333 = vmatpush.bf16.msra.mxu0 %v3277
    %3334 = vmatpush.bf16.msra.mxu0 %v3273
    %3335 = vmatpush.bf16.msra.mxu0 %v3269
    %3336 = vmatpush.bf16.msra.mxu0 %v3265
    %3337 = vmatmul.bf16.gmra.mxu0 %v3123
    %v3338 = vpop.f32.mrf.mxu0
    %v3339 = vadd.f32 %v3161, %v3338
    %v3340 = vpop.f32.mrf.mxu0
    %v3341 = vadd.f32 %v3161, %v3340
    %3342 = vmatmul.bf16.gmra.mxu0 %v3124
    %v3343 = vpop.f32.mrf.mxu0
    %v3344 = vadd.f32 %v3161, %v3343
    %v3345 = vpop.f32.mrf.mxu0
    %v3346 = vadd.f32 %v3161, %v3345
    %3347 = vmatmul.bf16.gmra.mxu0 %v3125
    %v3348 = vpop.f32.mrf.mxu0
    %v3349 = vadd.f32 %v3161, %v3348
    %v3350 = vpop.f32.mrf.mxu0
    %v3351 = vadd.f32 %v3161, %v3350
    %3352 = vmatmul.bf16.gmra.mxu0 %v3126
    %v3353 = vpop.f32.mrf.mxu0
    %v3354 = vadd.f32 %v3161, %v3353
    %v3355 = vpop.f32.mrf.mxu0
    %v3356 = vadd.f32 %v3161, %v3355
    %3357 = vdwg.mxu0
    %3358 = vmatpush.bf16.msra.mxu0 %v3294
    %3359 = vmatpush.bf16.msra.mxu0 %v3290
    %3360 = vmatpush.bf16.msra.mxu0 %v3286
    %3361 = vmatpush.bf16.msra.mxu0 %v3282
    %3362 = vmatpush.bf16.msra.mxu0 %v3278
    %3363 = vmatpush.bf16.msra.mxu0 %v3274
    %3364 = vmatpush.bf16.msra.mxu0 %v3270
    %3365 = vmatpush.bf16.msra.mxu0 %v3266
    %3366 = vmatmul.bf16.gmra.mxu0 %v3123
    %v3367 = vpop.f32.mrf.mxu0
    %v3368 = vadd.f32 %v3162, %v3367
    %v3369 = vpop.f32.mrf.mxu0
    %v3370 = vadd.f32 %v3162, %v3369
    %3371 = vmatmul.bf16.gmra.mxu0 %v3124
    %v3372 = vpop.f32.mrf.mxu0
    %v3373 = vadd.f32 %v3162, %v3372
    %v3374 = vpop.f32.mrf.mxu0
    %v3375 = vadd.f32 %v3162, %v3374
    %3376 = vmatmul.bf16.gmra.mxu0 %v3125
    %v3377 = vpop.f32.mrf.mxu0
    %v3378 = vadd.f32 %v3162, %v3377
    %v3379 = vpop.f32.mrf.mxu0
    %v3380 = vadd.f32 %v3162, %v3379
    %3381 = vmatmul.bf16.gmra.mxu0 %v3126
    %v3382 = vpop.f32.mrf.mxu0
    %v3383 = vadd.f32 %v3162, %v3382
    %v3384 = vpop.f32.mrf.mxu0
    %v3385 = vadd.f32 %v3162, %v3384
    %3386 = vdwg.mxu0
    %3387 = vmatpush.bf16.msra.mxu0 %v3295
    %3388 = vmatpush.bf16.msra.mxu0 %v3291
    %3389 = vmatpush.bf16.msra.mxu0 %v3287
    %3390 = vmatpush.bf16.msra.mxu0 %v3283
    %3391 = vmatpush.bf16.msra.mxu0 %v3279
    %3392 = vmatpush.bf16.msra.mxu0 %v3275
    %3393 = vmatpush.bf16.msra.mxu0 %v3271
    %3394 = vmatpush.bf16.msra.mxu0 %v3267
    %3395 = vmatmul.bf16.gmra.mxu0 %v3123
    %v3396 = vpop.f32.mrf.mxu0
    %v3397 = vadd.f32 %v3163, %v3396
    %v3398 = vpop.f32.mrf.mxu0
    %v3399 = vadd.f32 %v3163, %v3398
    %3400 = vmatmul.bf16.gmra.mxu0 %v3124
    %v3401 = vpop.f32.mrf.mxu0
    %v3402 = vadd.f32 %v3163, %v3401
    %v3403 = vpop.f32.mrf.mxu0
    %v3404 = vadd.f32 %v3163, %v3403
    %3405 = vmatmul.bf16.gmra.mxu0 %v3125
    %v3406 = vpop.f32.mrf.mxu0
    %v3407 = vadd.f32 %v3163, %v3406
    %v3408 = vpop.f32.mrf.mxu0
    %v3409 = vadd.f32 %v3163, %v3408
    %3410 = vmatmul.bf16.gmra.mxu0 %v3126
    %v3411 = vpop.f32.mrf.mxu0
    %v3412 = vadd.f32 %v3163, %v3411
    %v3413 = vpop.f32.mrf.mxu0
    %v3414 = vadd.f32 %v3163, %v3413
    %3415 = vdwg.mxu0
    %3416 = vmatpush.bf16.msra.mxu0 %v3296
    %3417 = vmatpush.bf16.msra.mxu0 %v3292
    %3418 = vmatpush.bf16.msra.mxu0 %v3288
    %3419 = vmatpush.bf16.msra.mxu0 %v3284
    %3420 = vmatpush.bf16.msra.mxu0 %v3280
    %3421 = vmatpush.bf16.msra.mxu0 %v3276
    %3422 = vmatpush.bf16.msra.mxu0 %v3272
    %3423 = vmatpush.bf16.msra.mxu0 %v3268
    %3424 = vmatmul.bf16.gmra.mxu0 %v3123
    %v3425 = vpop.f32.mrf.mxu0
    %v3426 = vadd.f32 %v3164, %v3425
    %v3427 = vpop.f32.mrf.mxu0
    %v3428 = vadd.f32 %v3164, %v3427
    %3429 = vmatmul.bf16.gmra.mxu0 %v3124
    %v3430 = vpop.f32.mrf.mxu0
    %v3431 = vadd.f32 %v3164, %v3430
    %v3432 = vpop.f32.mrf.mxu0
    %v3433 = vadd.f32 %v3164, %v3432
    %3434 = vmatmul.bf16.gmra.mxu0 %v3125
    %v3435 = vpop.f32.mrf.mxu0
    %v3436 = vadd.f32 %v3164, %v3435
    %v3437 = vpop.f32.mrf.mxu0
    %v3438 = vadd.f32 %v3164, %v3437
    %3439 = vmatmul.bf16.gmra.mxu0 %v3126
    %v3440 = vpop.f32.mrf.mxu0
    %v3441 = vadd.f32 %v3164, %v3440
    %v3442 = vpop.f32.mrf.mxu0
    %v3443 = vadd.f32 %v3164, %v3442
    %3444 = vdwg.mxu0
    %v3445 = vmul.f32 %v3339, %v3339
    %v3446 = vmul.f32 %v3368, %v3368
    %v3447 = vmul.f32 %v3397, %v3397
    %v3448 = vmul.f32 %v3426, %v3426
    %v3449 = vmul.f32 %v3341, %v3341
    %v3450 = vmul.f32 %v3370, %v3370
    %v3451 = vmul.f32 %v3399, %v3399
    %v3452 = vmul.f32 %v3428, %v3428
    %v3453 = vmul.f32 %v3344, %v3344
    %v3454 = vmul.f32 %v3373, %v3373
    %v3455 = vmul.f32 %v3402, %v3402
    %v3456 = vmul.f32 %v3431, %v3431
    %v3457 = vmul.f32 %v3346, %v3346
    %v3458 = vmul.f32 %v3375, %v3375
    %v3459 = vmul.f32 %v3404, %v3404
    %v3460 = vmul.f32 %v3433, %v3433
    %v3461 = vmul.f32 %v3349, %v3349
    %v3462 = vmul.f32 %v3378, %v3378
    %v3463 = vmul.f32 %v3407, %v3407
    %v3464 = vmul.f32 %v3436, %v3436
    %v3465 = vmul.f32 %v3351, %v3351
    %v3466 = vmul.f32 %v3380, %v3380
    %v3467 = vmul.f32 %v3409, %v3409
    %v3468 = vmul.f32 %v3438, %v3438
    %v3469 = vmul.f32 %v3354, %v3354
    %v3470 = vmul.f32 %v3383, %v3383
    %v3471 = vmul.f32 %v3412, %v3412
    %v3472 = vmul.f32 %v3441, %v3441
    %v3473 = vmul.f32 %v3356, %v3356
    %v3474 = vmul.f32 %v3385, %v3385
    %v3475 = vmul.f32 %v3414, %v3414
    %v3476 = vmul.f32 %v3443, %v3443
    %v3477 = vmul.f32 %v3339, %v3445
    %v3478 = vmul.f32 %v3368, %v3446
    %v3479 = vmul.f32 %v3397, %v3447
    %v3480 = vmul.f32 %v3426, %v3448
    %v3481 = vmul.f32 %v3341, %v3449
    %v3482 = vmul.f32 %v3370, %v3450
    %v3483 = vmul.f32 %v3399, %v3451
    %v3484 = vmul.f32 %v3428, %v3452
    %v3485 = vmul.f32 %v3344, %v3453
    %v3486 = vmul.f32 %v3373, %v3454
    %v3487 = vmul.f32 %v3402, %v3455
    %v3488 = vmul.f32 %v3431, %v3456
    %v3489 = vmul.f32 %v3346, %v3457
    %v3490 = vmul.f32 %v3375, %v3458
    %v3491 = vmul.f32 %v3404, %v3459
    %v3492 = vmul.f32 %v3433, %v3460
    %v3493 = vmul.f32 %v3349, %v3461
    %v3494 = vmul.f32 %v3378, %v3462
    %v3495 = vmul.f32 %v3407, %v3463
    %v3496 = vmul.f32 %v3436, %v3464
    %v3497 = vmul.f32 %v3351, %v3465
    %v3498 = vmul.f32 %v3380, %v3466
    %v3499 = vmul.f32 %v3409, %v3467
    %v3500 = vmul.f32 %v3438, %v3468
    %v3501 = vmul.f32 %v3354, %v3469
    %v3502 = vmul.f32 %v3383, %v3470
    %v3503 = vmul.f32 %v3412, %v3471
    %v3504 = vmul.f32 %v3441, %v3472
    %v3505 = vmul.f32 %v3356, %v3473
    %v3506 = vmul.f32 %v3385, %v3474
    %v3507 = vmul.f32 %v3414, %v3475
    %v3508 = vmul.f32 %v3443, %v3476
    %v3509 = vmul.f32 %v3477, 0.044715
    %v3510 = vmul.f32 %v3478, 0.044715
    %v3511 = vmul.f32 %v3479, 0.044715
    %v3512 = vmul.f32 %v3480, 0.044715
    %v3513 = vmul.f32 %v3481, 0.044715
    %v3514 = vmul.f32 %v3482, 0.044715
    %v3515 = vmul.f32 %v3483, 0.044715
    %v3516 = vmul.f32 %v3484, 0.044715
    %v3517 = vmul.f32 %v3485, 0.044715
    %v3518 = vmul.f32 %v3486, 0.044715
    %v3519 = vmul.f32 %v3487, 0.044715
    %v3520 = vmul.f32 %v3488, 0.044715
    %v3521 = vmul.f32 %v3489, 0.044715
    %v3522 = vmul.f32 %v3490, 0.044715
    %v3523 = vmul.f32 %v3491, 0.044715
    %v3524 = vmul.f32 %v3492, 0.044715
    %v3525 = vmul.f32 %v3493, 0.044715
    %v3526 = vmul.f32 %v3494, 0.044715
    %v3527 = vmul.f32 %v3495, 0.044715
    %v3528 = vmul.f32 %v3496, 0.044715
    %v3529 = vmul.f32 %v3497, 0.044715
    %v3530 = vmul.f32 %v3498, 0.044715
    %v3531 = vmul.f32 %v3499, 0.044715
    %v3532 = vmul.f32 %v3500, 0.044715
    %v3533 = vmul.f32 %v3501, 0.044715
    %v3534 = vmul.f32 %v3502, 0.044715
    %v3535 = vmul.f32 %v3503, 0.044715
    %v3536 = vmul.f32 %v3504, 0.044715
    %v3537 = vmul.f32 %v3505, 0.044715
    %v3538 = vmul.f32 %v3506, 0.044715
    %v3539 = vmul.f32 %v3507, 0.044715
    %v3540 = vmul.f32 %v3508, 0.044715
    %v3541 = vadd.f32 %v3339, %v3509
    %v3542 = vadd.f32 %v3368, %v3510
    %v3543 = vadd.f32 %v3397, %v3511
    %v3544 = vadd.f32 %v3426, %v3512
    %v3545 = vadd.f32 %v3341, %v3513
    %v3546 = vadd.f32 %v3370, %v3514
    %v3547 = vadd.f32 %v3399, %v3515
    %v3548 = vadd.f32 %v3428, %v3516
    %v3549 = vadd.f32 %v3344, %v3517
    %v3550 = vadd.f32 %v3373, %v3518
    %v3551 = vadd.f32 %v3402, %v3519
    %v3552 = vadd.f32 %v3431, %v3520
    %v3553 = vadd.f32 %v3346, %v3521
    %v3554 = vadd.f32 %v3375, %v3522
    %v3555 = vadd.f32 %v3404, %v3523
    %v3556 = vadd.f32 %v3433, %v3524
    %v3557 = vadd.f32 %v3349, %v3525
    %v3558 = vadd.f32 %v3378, %v3526
    %v3559 = vadd.f32 %v3407, %v3527
    %v3560 = vadd.f32 %v3436, %v3528
    %v3561 = vadd.f32 %v3351, %v3529
    %v3562 = vadd.f32 %v3380, %v3530
    %v3563 = vadd.f32 %v3409, %v3531
    %v3564 = vadd.f32 %v3438, %v3532
    %v3565 = vadd.f32 %v3354, %v3533
    %v3566 = vadd.f32 %v3383, %v3534
    %v3567 = vadd.f32 %v3412, %v3535
    %v3568 = vadd.f32 %v3441, %v3536
    %v3569 = vadd.f32 %v3356, %v3537
    %v3570 = vadd.f32 %v3385, %v3538
    %v3571 = vadd.f32 %v3414, %v3539
    %v3572 = vadd.f32 %v3443, %v3540
    %v3573 = vmul.f32 %v3541, 0.7978846
    %v3574 = vmul.f32 %v3542, 0.7978846
    %v3575 = vmul.f32 %v3543, 0.7978846
    %v3576 = vmul.f32 %v3544, 0.7978846
    %v3577 = vmul.f32 %v3545, 0.7978846
    %v3578 = vmul.f32 %v3546, 0.7978846
    %v3579 = vmul.f32 %v3547, 0.7978846
    %v3580 = vmul.f32 %v3548, 0.7978846
    %v3581 = vmul.f32 %v3549, 0.7978846
    %v3582 = vmul.f32 %v3550, 0.7978846
    %v3583 = vmul.f32 %v3551, 0.7978846
    %v3584 = vmul.f32 %v3552, 0.7978846
    %v3585 = vmul.f32 %v3553, 0.7978846
    %v3586 = vmul.f32 %v3554, 0.7978846
    %v3587 = vmul.f32 %v3555, 0.7978846
    %v3588 = vmul.f32 %v3556, 0.7978846
    %v3589 = vmul.f32 %v3557, 0.7978846
    %v3590 = vmul.f32 %v3558, 0.7978846
    %v3591 = vmul.f32 %v3559, 0.7978846
    %v3592 = vmul.f32 %v3560, 0.7978846
    %v3593 = vmul.f32 %v3561, 0.7978846
    %v3594 = vmul.f32 %v3562, 0.7978846
    %v3595 = vmul.f32 %v3563, 0.7978846
    %v3596 = vmul.f32 %v3564, 0.7978846
    %v3597 = vmul.f32 %v3565, 0.7978846
    %v3598 = vmul.f32 %v3566, 0.7978846
    %v3599 = vmul.f32 %v3567, 0.7978846
    %v3600 = vmul.f32 %v3568, 0.7978846
    %v3601 = vmul.f32 %v3569, 0.7978846
    %v3602 = vmul.f32 %v3570, 0.7978846
    %v3603 = vmul.f32 %v3571, 0.7978846
    %v3604 = vmul.f32 %v3572, 0.7978846
    %v3605 = vtanh.pop %v3573
    %v3606 = vtanh.pop %v3574
    %v3607 = vtanh.pop %v3575
    %v3608 = vtanh.pop %v3576
    %v3609 = vtanh.pop %v3577
    %v3610 = vtanh.pop %v3578
    %v3611 = vtanh.pop %v3579
    %v3612 = vtanh.pop %v3580
    %v3613 = vtanh.pop %v3581
    %v3614 = vtanh.pop %v3582
    %v3615 = vtanh.pop %v3583
    %v3616 = vtanh.pop %v3584
    %v3617 = vtanh.pop %v3585
    %v3618 = vtanh.pop %v3586
    %v3619 = vtanh.pop %v3587
    %v3620 = vtanh.pop %v3588
    %v3621 = vtanh.pop %v3589
    %v3622 = vtanh.pop %v3590
    %v3623 = vtanh.pop %v3591
    %v3624 = vtanh.pop %v3592
    %v3625 = vtanh.pop %v3593
    %v3626 = vtanh.pop %v3594
    %v3627 = vtanh.pop %v3595
    %v3628 = vtanh.pop %v3596
    %v3629 = vtanh.pop %v3597
    %v3630 = vtanh.pop %v3598
    %v3631 = vtanh.pop %v3599
    %v3632 = vtanh.pop %v3600
    %v3633 = vtanh.pop %v3601
    %v3634 = vtanh.pop %v3602
    %v3635 = vtanh.pop %v3603
    %v3636 = vtanh.pop %v3604
    %v3637 = vadd.f32 %v3605, 1.0
    %v3638 = vadd.f32 %v3606, 1.0
    %v3639 = vadd.f32 %v3607, 1.0
    %v3640 = vadd.f32 %v3608, 1.0
    %v3641 = vadd.f32 %v3609, 1.0
    %v3642 = vadd.f32 %v3610, 1.0
    %v3643 = vadd.f32 %v3611, 1.0
    %v3644 = vadd.f32 %v3612, 1.0
    %v3645 = vadd.f32 %v3613, 1.0
    %v3646 = vadd.f32 %v3614, 1.0
    %v3647 = vadd.f32 %v3615, 1.0
    %v3648 = vadd.f32 %v3616, 1.0
    %v3649 = vadd.f32 %v3617, 1.0
    %v3650 = vadd.f32 %v3618, 1.0
    %v3651 = vadd.f32 %v3619, 1.0
    %v3652 = vadd.f32 %v3620, 1.0
    %v3653 = vadd.f32 %v3621, 1.0
    %v3654 = vadd.f32 %v3622, 1.0
    %v3655 = vadd.f32 %v3623, 1.0
    %v3656 = vadd.f32 %v3624, 1.0
    %v3657 = vadd.f32 %v3625, 1.0
    %v3658 = vadd.f32 %v3626, 1.0
    %v3659 = vadd.f32 %v3627, 1.0
    %v3660 = vadd.f32 %v3628, 1.0
    %v3661 = vadd.f32 %v3629, 1.0
    %v3662 = vadd.f32 %v3630, 1.0
    %v3663 = vadd.f32 %v3631, 1.0
    %v3664 = vadd.f32 %v3632, 1.0
    %v3665 = vadd.f32 %v3633, 1.0
    %v3666 = vadd.f32 %v3634, 1.0
    %v3667 = vadd.f32 %v3635, 1.0
    %v3668 = vadd.f32 %v3636, 1.0
    %v3669 = vmul.f32 %v3637, 0.5
    %v3670 = vmul.f32 %v3638, 0.5
    %v3671 = vmul.f32 %v3639, 0.5
    %v3672 = vmul.f32 %v3640, 0.5
    %v3673 = vmul.f32 %v3641, 0.5
    %v3674 = vmul.f32 %v3642, 0.5
    %v3675 = vmul.f32 %v3643, 0.5
    %v3676 = vmul.f32 %v3644, 0.5
    %v3677 = vmul.f32 %v3645, 0.5
    %v3678 = vmul.f32 %v3646, 0.5
    %v3679 = vmul.f32 %v3647, 0.5
    %v3680 = vmul.f32 %v3648, 0.5
    %v3681 = vmul.f32 %v3649, 0.5
    %v3682 = vmul.f32 %v3650, 0.5
    %v3683 = vmul.f32 %v3651, 0.5
    %v3684 = vmul.f32 %v3652, 0.5
    %v3685 = vmul.f32 %v3653, 0.5
    %v3686 = vmul.f32 %v3654, 0.5
    %v3687 = vmul.f32 %v3655, 0.5
    %v3688 = vmul.f32 %v3656, 0.5
    %v3689 = vmul.f32 %v3657, 0.5
    %v3690 = vmul.f32 %v3658, 0.5
    %v3691 = vmul.f32 %v3659, 0.5
    %v3692 = vmul.f32 %v3660, 0.5
    %v3693 = vmul.f32 %v3661, 0.5
    %v3694 = vmul.f32 %v3662, 0.5
    %v3695 = vmul.f32 %v3663, 0.5
    %v3696 = vmul.f32 %v3664, 0.5
    %v3697 = vmul.f32 %v3665, 0.5
    %v3698 = vmul.f32 %v3666, 0.5
    %v3699 = vmul.f32 %v3667, 0.5
    %v3700 = vmul.f32 %v3668, 0.5
    %v3701 = vmul.f32 %v3339, %v3669
    %v3702 = vmul.f32 %v3368, %v3670
    %v3703 = vmul.f32 %v3397, %v3671
    %v3704 = vmul.f32 %v3426, %v3672
    %v3705 = vmul.f32 %v3341, %v3673
    %v3706 = vmul.f32 %v3370, %v3674
    %v3707 = vmul.f32 %v3399, %v3675
    %v3708 = vmul.f32 %v3428, %v3676
    %v3709 = vmul.f32 %v3344, %v3677
    %v3710 = vmul.f32 %v3373, %v3678
    %v3711 = vmul.f32 %v3402, %v3679
    %v3712 = vmul.f32 %v3431, %v3680
    %v3713 = vmul.f32 %v3346, %v3681
    %v3714 = vmul.f32 %v3375, %v3682
    %v3715 = vmul.f32 %v3404, %v3683
    %v3716 = vmul.f32 %v3433, %v3684
    %v3717 = vmul.f32 %v3349, %v3685
    %v3718 = vmul.f32 %v3378, %v3686
    %v3719 = vmul.f32 %v3407, %v3687
    %v3720 = vmul.f32 %v3436, %v3688
    %v3721 = vmul.f32 %v3351, %v3689
    %v3722 = vmul.f32 %v3380, %v3690
    %v3723 = vmul.f32 %v3409, %v3691
    %v3724 = vmul.f32 %v3438, %v3692
    %v3725 = vmul.f32 %v3354, %v3693
    %v3726 = vmul.f32 %v3383, %v3694
    %v3727 = vmul.f32 %v3412, %v3695
    %v3728 = vmul.f32 %v3441, %v3696
    %v3729 = vmul.f32 %v3356, %v3697
    %v3730 = vmul.f32 %v3385, %v3698
    %v3731 = vmul.f32 %v3414, %v3699
    %v3732 = vmul.f32 %v3443, %v3700
    %v3733 = vpack.c.bf16 %v3705, %v3701
    %v3734 = vpack.c.bf16 %v3706, %v3702
    %v3735 = vpack.c.bf16 %v3707, %v3703
    %v3736 = vpack.c.bf16 %v3708, %v3704
    %v3737 = vpack.c.bf16 %v3713, %v3709
    %v3738 = vpack.c.bf16 %v3714, %v3710
    %v3739 = vpack.c.bf16 %v3715, %v3711
    %v3740 = vpack.c.bf16 %v3716, %v3712
    %v3741 = vpack.c.bf16 %v3721, %v3717
    %v3742 = vpack.c.bf16 %v3722, %v3718
    %v3743 = vpack.c.bf16 %v3723, %v3719
    %v3744 = vpack.c.bf16 %v3724, %v3720
    %v3745 = vpack.c.bf16 %v3729, %v3725
    %v3746 = vpack.c.bf16 %v3730, %v3726
    %v3747 = vpack.c.bf16 %v3731, %v3727
    %v3748 = vpack.c.bf16 %v3732, %v3728
    %v3749 = vld [vmem:[#allocation11] sm:$0xf]
    %v3750 = vld [vmem:[#allocation11 + $0x4] sm:$0xf]
    %v3751 = vld [vmem:[#allocation11 + $0x8] sm:$0xf]
    %v3752 = vld [vmem:[#allocation11 + $0xc] sm:$0xf]
    %v3753 = vld [vmem:[#allocation11 + $0x10] sm:$0xf]
    %v3754 = vld [vmem:[#allocation11 + $0x14] sm:$0xf]
    %v3755 = vld [vmem:[#allocation11 + $0x18] sm:$0xf]
    %v3756 = vld [vmem:[#allocation11 + $0x1c] sm:$0xf]
    %v3757 = vld [vmem:[#allocation11 + $0x20] sm:$0xf]
    %v3758 = vld [vmem:[#allocation11 + $0x24] sm:$0xf]
    %v3759 = vld [vmem:[#allocation11 + $0x28] sm:$0xf]
    %v3760 = vld [vmem:[#allocation11 + $0x2c] sm:$0xf]
    %v3761 = vld [vmem:[#allocation11 + $0x30] sm:$0xf]
    %v3762 = vld [vmem:[#allocation11 + $0x34] sm:$0xf]
    %v3763 = vld [vmem:[#allocation11 + $0x38] sm:$0xf]
    %v3764 = vld [vmem:[#allocation11 + $0x3c] sm:$0xf]
    %v3765 = vld [vmem:[#allocation11 + $0x40] sm:$0xf]
    %v3766 = vld [vmem:[#allocation11 + $0x44] sm:$0xf]
    %v3767 = vld [vmem:[#allocation11 + $0x48] sm:$0xf]
    %v3768 = vld [vmem:[#allocation11 + $0x4c] sm:$0xf]
    %v3769 = vld [vmem:[#allocation11 + $0x50] sm:$0xf]
    %v3770 = vld [vmem:[#allocation11 + $0x54] sm:$0xf]
    %v3771 = vld [vmem:[#allocation11 + $0x58] sm:$0xf]
    %v3772 = vld [vmem:[#allocation11 + $0x5c] sm:$0xf]
    %v3773 = vld [vmem:[#allocation11 + $0x60] sm:$0xf]
    %v3774 = vld [vmem:[#allocation11 + $0x64] sm:$0xf]
    %v3775 = vld [vmem:[#allocation11 + $0x68] sm:$0xf]
    %v3776 = vld [vmem:[#allocation11 + $0x6c] sm:$0xf]
    %v3777 = vld [vmem:[#allocation11 + $0x70] sm:$0xf]
    %v3778 = vld [vmem:[#allocation11 + $0x74] sm:$0xf]
    %v3779 = vld [vmem:[#allocation11 + $0x78] sm:$0xf]
    %v3780 = vld [vmem:[#allocation11 + $0x7c] sm:$0xf]
    %v3781 = vld [vmem:[#allocation11 + $0x80] sm:$0xf]
    %v3782 = vld [vmem:[#allocation11 + $0x84] sm:$0xf]
    %v3783 = vld [vmem:[#allocation11 + $0x88] sm:$0xf]
    %v3784 = vld [vmem:[#allocation11 + $0x8c] sm:$0xf]
    %v3785 = vld [vmem:[#allocation11 + $0x90] sm:$0xf]
    %v3786 = vld [vmem:[#allocation11 + $0x94] sm:$0xf]
    %v3787 = vld [vmem:[#allocation11 + $0x98] sm:$0xf]
    %v3788 = vld [vmem:[#allocation11 + $0x9c] sm:$0xf]
    %v3789 = vld [vmem:[#allocation11 + $0xa0] sm:$0xf]
    %v3790 = vld [vmem:[#allocation11 + $0xa4] sm:$0xf]
    %v3791 = vld [vmem:[#allocation11 + $0xa8] sm:$0xf]
    %v3792 = vld [vmem:[#allocation11 + $0xac] sm:$0xf]
    %v3793 = vld [vmem:[#allocation11 + $0xb0] sm:$0xf]
    %v3794 = vld [vmem:[#allocation11 + $0xb4] sm:$0xf]
    %v3795 = vld [vmem:[#allocation11 + $0xb8] sm:$0xf]
    %v3796 = vld [vmem:[#allocation11 + $0xbc] sm:$0xf]
    %v3797 = vld [vmem:[#allocation11 + $0xc0] sm:$0xf]
    %v3798 = vld [vmem:[#allocation11 + $0xc4] sm:$0xf]
    %v3799 = vld [vmem:[#allocation11 + $0xc8] sm:$0xf]
    %v3800 = vld [vmem:[#allocation11 + $0xcc] sm:$0xf]
    %v3801 = vld [vmem:[#allocation11 + $0xd0] sm:$0xf]
    %v3802 = vld [vmem:[#allocation11 + $0xd4] sm:$0xf]
    %v3803 = vld [vmem:[#allocation11 + $0xd8] sm:$0xf]
    %v3804 = vld [vmem:[#allocation11 + $0xdc] sm:$0xf]
    %v3805 = vld [vmem:[#allocation11 + $0xe0] sm:$0xf]
    %v3806 = vld [vmem:[#allocation11 + $0xe4] sm:$0xf]
    %v3807 = vld [vmem:[#allocation11 + $0xe8] sm:$0xf]
    %v3808 = vld [vmem:[#allocation11 + $0xec] sm:$0xf]
    %v3809 = vld [vmem:[#allocation11 + $0xf0] sm:$0xf]
    %v3810 = vld [vmem:[#allocation11 + $0xf4] sm:$0xf]
    %v3811 = vld [vmem:[#allocation11 + $0xf8] sm:$0xf]
    %v3812 = vld [vmem:[#allocation11 + $0xfc] sm:$0xf]
    %v3813 = vld [vmem:[%s16] sm:$0x1]
    %v3815 = vperm.slane %v3813, 0
    %v3881 = vunpack.c.l.b16 %v3749
    %v3882 = vunpack.c.l.b16 %v3750
    %v3883 = vunpack.c.l.b16 %v3751
    %v3884 = vunpack.c.l.b16 %v3752
    %v3885 = vunpack.c.l.b16 %v3753
    %v3886 = vunpack.c.l.b16 %v3754
    %v3887 = vunpack.c.l.b16 %v3755
    %v3888 = vunpack.c.l.b16 %v3756
    %v3889 = vunpack.c.l.b16 %v3757
    %v3890 = vunpack.c.l.b16 %v3758
    %v3891 = vunpack.c.l.b16 %v3759
    %v3892 = vunpack.c.l.b16 %v3760
    %v3893 = vunpack.c.l.b16 %v3761
    %v3894 = vunpack.c.l.b16 %v3762
    %v3895 = vunpack.c.l.b16 %v3763
    %v3896 = vunpack.c.l.b16 %v3764
    %v3897 = vunpack.c.l.b16 %v3765
    %v3898 = vunpack.c.l.b16 %v3766
    %v3899 = vunpack.c.l.b16 %v3767
    %v3900 = vunpack.c.l.b16 %v3768
    %v3901 = vunpack.c.l.b16 %v3769
    %v3902 = vunpack.c.l.b16 %v3770
    %v3903 = vunpack.c.l.b16 %v3771
    %v3904 = vunpack.c.l.b16 %v3772
    %v3905 = vunpack.c.l.b16 %v3773
    %v3906 = vunpack.c.l.b16 %v3774
    %v3907 = vunpack.c.l.b16 %v3775
    %v3908 = vunpack.c.l.b16 %v3776
    %v3909 = vunpack.c.l.b16 %v3777
    %v3910 = vunpack.c.l.b16 %v3778
    %v3911 = vunpack.c.l.b16 %v3779
    %v3912 = vunpack.c.l.b16 %v3780
    %v3913 = vunpack.c.l.b16 %v3781
    %v3914 = vunpack.c.l.b16 %v3782
    %v3915 = vunpack.c.l.b16 %v3783
    %v3916 = vunpack.c.l.b16 %v3784
    %v3917 = vunpack.c.l.b16 %v3785
    %v3918 = vunpack.c.l.b16 %v3786
    %v3919 = vunpack.c.l.b16 %v3787
    %v3920 = vunpack.c.l.b16 %v3788
    %v3921 = vunpack.c.l.b16 %v3789
    %v3922 = vunpack.c.l.b16 %v3790
    %v3923 = vunpack.c.l.b16 %v3791
    %v3924 = vunpack.c.l.b16 %v3792
    %v3925 = vunpack.c.l.b16 %v3793
    %v3926 = vunpack.c.l.b16 %v3794
    %v3927 = vunpack.c.l.b16 %v3795
    %v3928 = vunpack.c.l.b16 %v3796
    %v3929 = vunpack.c.l.b16 %v3797
    %v3930 = vunpack.c.l.b16 %v3798
    %v3931 = vunpack.c.l.b16 %v3799
    %v3932 = vunpack.c.l.b16 %v3800
    %v3933 = vunpack.c.l.b16 %v3801
    %v3934 = vunpack.c.l.b16 %v3802
    %v3935 = vunpack.c.l.b16 %v3803
    %v3936 = vunpack.c.l.b16 %v3804
    %v3937 = vunpack.c.l.b16 %v3805
    %v3938 = vunpack.c.l.b16 %v3806
    %v3939 = vunpack.c.l.b16 %v3807
    %v3940 = vunpack.c.l.b16 %v3808
    %v3941 = vunpack.c.l.b16 %v3809
    %v3942 = vunpack.c.l.b16 %v3810
    %v3943 = vunpack.c.l.b16 %v3811
    %v3944 = vunpack.c.l.b16 %v3812
    %v3945 = vpack.c.b16 %v3882, %v3881
    %v3946 = vpack.c.b16 %v3884, %v3883
    %v3947 = vpack.c.b16 %v3886, %v3885
    %v3948 = vpack.c.b16 %v3888, %v3887
    %v3949 = vpack.c.b16 %v3890, %v3889
    %v3950 = vpack.c.b16 %v3892, %v3891
    %v3951 = vpack.c.b16 %v3894, %v3893
    %v3952 = vpack.c.b16 %v3896, %v3895
    %v3953 = vpack.c.b16 %v3898, %v3897
    %v3954 = vpack.c.b16 %v3900, %v3899
    %v3955 = vpack.c.b16 %v3902, %v3901
    %v3956 = vpack.c.b16 %v3904, %v3903
    %v3957 = vpack.c.b16 %v3906, %v3905
    %v3958 = vpack.c.b16 %v3908, %v3907
    %v3959 = vpack.c.b16 %v3910, %v3909
    %v3960 = vpack.c.b16 %v3912, %v3911
    %v3961 = vpack.c.b16 %v3914, %v3913
    %v3962 = vpack.c.b16 %v3916, %v3915
    %v3963 = vpack.c.b16 %v3918, %v3917
    %v3964 = vpack.c.b16 %v3920, %v3919
    %v3965 = vpack.c.b16 %v3922, %v3921
    %v3966 = vpack.c.b16 %v3924, %v3923
    %v3967 = vpack.c.b16 %v3926, %v3925
    %v3968 = vpack.c.b16 %v3928, %v3927
    %v3969 = vpack.c.b16 %v3930, %v3929
    %v3970 = vpack.c.b16 %v3932, %v3931
    %v3971 = vpack.c.b16 %v3934, %v3933
    %v3972 = vpack.c.b16 %v3936, %v3935
    %v3973 = vpack.c.b16 %v3938, %v3937
    %v3974 = vpack.c.b16 %v3940, %v3939
    %v3975 = vpack.c.b16 %v3942, %v3941
    %v3976 = vpack.c.b16 %v3944, %v3943
    %4009 = vmatpush.bf16.msra.mxu0 %v3952
    %4010 = vmatpush.bf16.msra.mxu0 %v3951
    %4011 = vmatpush.bf16.msra.mxu0 %v3950
    %4012 = vmatpush.bf16.msra.mxu0 %v3949
    %4013 = vmatpush.bf16.msra.mxu0 %v3948
    %4014 = vmatpush.bf16.msra.mxu0 %v3947
    %4015 = vmatpush.bf16.msra.mxu0 %v3946
    %4016 = vmatpush.bf16.msra.mxu0 %v3945
    %4017 = vmatmul.bf16.gmra.mxu0 %v3733
    %v4018 = vpop.f32.mrf.mxu0
    %v4019 = vadd.f32 %v3815, %v4018
    %v4020 = vpop.f32.mrf.mxu0
    %v4021 = vadd.f32 %v3815, %v4020
    %4022 = vmatmul.bf16.gmra.mxu0 %v3737
    %v4023 = vpop.f32.mrf.mxu0
    %v4024 = vadd.f32 %v3815, %v4023
    %v4025 = vpop.f32.mrf.mxu0
    %v4026 = vadd.f32 %v3815, %v4025
    %4027 = vmatmul.bf16.gmra.mxu0 %v3741
    %v4028 = vpop.f32.mrf.mxu0
    %v4029 = vadd.f32 %v3815, %v4028
    %v4030 = vpop.f32.mrf.mxu0
    %v4031 = vadd.f32 %v3815, %v4030
    %4032 = vmatmul.bf16.gmra.mxu0 %v3745
    %v4033 = vpop.f32.mrf.mxu0
    %v4034 = vadd.f32 %v3815, %v4033
    %v4035 = vpop.f32.mrf.mxu0
    %v4036 = vadd.f32 %v3815, %v4035
    %4037 = vdwg.mxu0
    %4038 = vmatpush.bf16.msra.mxu0 %v3960
    %4039 = vmatpush.bf16.msra.mxu0 %v3959
    %4040 = vmatpush.bf16.msra.mxu0 %v3958
    %4041 = vmatpush.bf16.msra.mxu0 %v3957
    %4042 = vmatpush.bf16.msra.mxu0 %v3956
    %4043 = vmatpush.bf16.msra.mxu0 %v3955
    %4044 = vmatpush.bf16.msra.mxu0 %v3954
    %4045 = vmatpush.bf16.msra.mxu0 %v3953
    %4046 = vmatmul.bf16.gmra.mxu0 %v3734
    %v4047 = vpop.f32.mrf.mxu0
    %v4048 = vadd.f32 %v4019, %v4047
    %v4049 = vpop.f32.mrf.mxu0
    %v4050 = vadd.f32 %v4021, %v4049
    %4051 = vmatmul.bf16.gmra.mxu0 %v3738
    %v4052 = vpop.f32.mrf.mxu0
    %v4053 = vadd.f32 %v4024, %v4052
    %v4054 = vpop.f32.mrf.mxu0
    %v4055 = vadd.f32 %v4026, %v4054
    %4056 = vmatmul.bf16.gmra.mxu0 %v3742
    %v4057 = vpop.f32.mrf.mxu0
    %v4058 = vadd.f32 %v4029, %v4057
    %v4059 = vpop.f32.mrf.mxu0
    %v4060 = vadd.f32 %v4031, %v4059
    %4061 = vmatmul.bf16.gmra.mxu0 %v3746
    %v4062 = vpop.f32.mrf.mxu0
    %v4063 = vadd.f32 %v4034, %v4062
    %v4064 = vpop.f32.mrf.mxu0
    %v4065 = vadd.f32 %v4036, %v4064
    %4066 = vdwg.mxu0
    %4067 = vmatpush.bf16.msra.mxu0 %v3968
    %4068 = vmatpush.bf16.msra.mxu0 %v3967
    %4069 = vmatpush.bf16.msra.mxu0 %v3966
    %4070 = vmatpush.bf16.msra.mxu0 %v3965
    %4071 = vmatpush.bf16.msra.mxu0 %v3964
    %4072 = vmatpush.bf16.msra.mxu0 %v3963
    %4073 = vmatpush.bf16.msra.mxu0 %v3962
    %4074 = vmatpush.bf16.msra.mxu0 %v3961
    %4075 = vmatmul.bf16.gmra.mxu0 %v3735
    %v4076 = vpop.f32.mrf.mxu0
    %v4077 = vadd.f32 %v4048, %v4076
    %v4078 = vpop.f32.mrf.mxu0
    %v4079 = vadd.f32 %v4050, %v4078
    %4080 = vmatmul.bf16.gmra.mxu0 %v3739
    %v4081 = vpop.f32.mrf.mxu0
    %v4082 = vadd.f32 %v4053, %v4081
    %v4083 = vpop.f32.mrf.mxu0
    %v4084 = vadd.f32 %v4055, %v4083
    %4085 = vmatmul.bf16.gmra.mxu0 %v3743
    %v4086 = vpop.f32.mrf.mxu0
    %v4087 = vadd.f32 %v4058, %v4086
    %v4088 = vpop.f32.mrf.mxu0
    %v4089 = vadd.f32 %v4060, %v4088
    %4090 = vmatmul.bf16.gmra.mxu0 %v3747
    %v4091 = vpop.f32.mrf.mxu0
    %v4092 = vadd.f32 %v4063, %v4091
    %v4093 = vpop.f32.mrf.mxu0
    %v4094 = vadd.f32 %v4065, %v4093
    %4095 = vdwg.mxu0
    %4096 = vmatpush.bf16.msra.mxu0 %v3976
    %4097 = vmatpush.bf16.msra.mxu0 %v3975
    %4098 = vmatpush.bf16.msra.mxu0 %v3974
    %4099 = vmatpush.bf16.msra.mxu0 %v3973
    %4100 = vmatpush.bf16.msra.mxu0 %v3972
    %4101 = vmatpush.bf16.msra.mxu0 %v3971
    %4102 = vmatpush.bf16.msra.mxu0 %v3970
    %4103 = vmatpush.bf16.msra.mxu0 %v3969
    %4104 = vmatmul.bf16.gmra.mxu0 %v3736
    %v4105 = vpop.f32.mrf.mxu0
    %v4106 = vadd.f32 %v4077, %v4105
    %v4107 = vpop.f32.mrf.mxu0
    %v4108 = vadd.f32 %v4079, %v4107
    %4109 = vmatmul.bf16.gmra.mxu0 %v3740
    %v4110 = vpop.f32.mrf.mxu0
    %v4111 = vadd.f32 %v4082, %v4110
    %v4112 = vpop.f32.mrf.mxu0
    %v4113 = vadd.f32 %v4084, %v4112
    %4114 = vmatmul.bf16.gmra.mxu0 %v3744
    %v4115 = vpop.f32.mrf.mxu0
    %v4116 = vadd.f32 %v4087, %v4115
    %v4117 = vpop.f32.mrf.mxu0
    %v4118 = vadd.f32 %v4089, %v4117
    %4119 = vmatmul.bf16.gmra.mxu0 %v3748
    %v4120 = vpop.f32.mrf.mxu0
    %v4121 = vadd.f32 %v4092, %v4120
    %v4122 = vpop.f32.mrf.mxu0
    %v4123 = vadd.f32 %v4094, %v4122
    %4124 = vdwg.mxu0
    %v4125 = vadd.f32 %v3115, %v4106
    %v4126 = vadd.f32 %v3116, %v4108
    %v4127 = vadd.f32 %v3117, %v4111
    %v4128 = vadd.f32 %v3118, %v4113
    %v4129 = vadd.f32 %v3119, %v4116
    %v4130 = vadd.f32 %v3120, %v4118
    %v4131 = vadd.f32 %v3121, %v4121
    %v4132 = vadd.f32 %v3122, %v4123
    %v4133 = vld [vmem:[%s17] sm:$0x1]
    %v4134 = vld [vmem:[%s18] sm:$0x1]
    %4135 = vadd.xlane.f32.xlu0 %v4125
    %v4136 = vpop.xlane.xlu0 %4135
    %4137 = vadd.xlane.f32.xlu0 %v4126
    %v4138 = vpop.xlane.xlu0 %4137
    %4139 = vadd.xlane.f32.xlu0 %v4127
    %v4140 = vpop.xlane.xlu0 %4139
    %4141 = vadd.xlane.f32.xlu0 %v4128
    %v4142 = vpop.xlane.xlu0 %4141
    %4143 = vadd.xlane.f32.xlu0 %v4129
    %v4144 = vpop.xlane.xlu0 %4143
    %4145 = vadd.xlane.f32.xlu0 %v4130
    %v4146 = vpop.xlane.xlu0 %4145
    %4147 = vadd.xlane.f32.xlu0 %v4131
    %v4148 = vpop.xlane.xlu0 %4147
    %4149 = vadd.xlane.f32.xlu0 %v4132
    %v4150 = vpop.xlane.xlu0 %4149
    %v4151 = vmul.f32 %v4136, %v344
    %v4152 = vmul.f32 %v4138, %v344
    %v4153 = vmul.f32 %v4140, %v344
    %v4154 = vmul.f32 %v4142, %v344
    %v4155 = vmul.f32 %v4144, %v344
    %v4156 = vmul.f32 %v4146, %v344
    %v4157 = vmul.f32 %v4148, %v344
    %v4158 = vmul.f32 %v4150, %v344
    %v4159 = vsub.f32 %v4125, %v4151
    %v4160 = vsub.f32 %v4126, %v4152
    %v4161 = vsub.f32 %v4127, %v4153
    %v4162 = vsub.f32 %v4128, %v4154
    %v4163 = vsub.f32 %v4129, %v4155
    %v4164 = vsub.f32 %v4130, %v4156
    %v4165 = vsub.f32 %v4131, %v4157
    %v4166 = vsub.f32 %v4132, %v4158
    %v4167 = vmul.f32 %v4159, %v4159
    %v4168 = vmul.f32 %v4160, %v4160
    %v4169 = vmul.f32 %v4161, %v4161
    %v4170 = vmul.f32 %v4162, %v4162
    %v4171 = vmul.f32 %v4163, %v4163
    %v4172 = vmul.f32 %v4164, %v4164
    %v4173 = vmul.f32 %v4165, %v4165
    %v4174 = vmul.f32 %v4166, %v4166
    %4175 = vadd.xlane.f32.xlu0 %v4167
    %v4176 = vpop.xlane.xlu0 %4175
    %4177 = vadd.xlane.f32.xlu0 %v4168
    %v4178 = vpop.xlane.xlu0 %4177
    %4179 = vadd.xlane.f32.xlu0 %v4169
    %v4180 = vpop.xlane.xlu0 %4179
    %4181 = vadd.xlane.f32.xlu0 %v4170
    %v4182 = vpop.xlane.xlu0 %4181
    %4183 = vadd.xlane.f32.xlu0 %v4171
    %v4184 = vpop.xlane.xlu0 %4183
    %4185 = vadd.xlane.f32.xlu0 %v4172
    %v4186 = vpop.xlane.xlu0 %4185
    %4187 = vadd.xlane.f32.xlu0 %v4173
    %v4188 = vpop.xlane.xlu0 %4187
    %4189 = vadd.xlane.f32.xlu0 %v4174
    %v4190 = vpop.xlane.xlu0 %4189
    %v4191 = vmul.f32 %v4176, %v344
    %v4192 = vmul.f32 %v4178, %v344
    %v4193 = vmul.f32 %v4180, %v344
    %v4194 = vmul.f32 %v4182, %v344
    %v4195 = vmul.f32 %v4184, %v344
    %v4196 = vmul.f32 %v4186, %v344
    %v4197 = vmul.f32 %v4188, %v344
    %v4198 = vmul.f32 %v4190, %v344
    %v4199 = vadd.f32 %v4191, 1e-12
    %v4200 = vadd.f32 %v4192, 1e-12
    %v4201 = vadd.f32 %v4193, 1e-12
    %v4202 = vadd.f32 %v4194, 1e-12
    %v4203 = vadd.f32 %v4195, 1e-12
    %v4204 = vadd.f32 %v4196, 1e-12
    %v4205 = vadd.f32 %v4197, 1e-12
    %v4206 = vadd.f32 %v4198, 1e-12
    %v4207 = vrsqrt.pop %v4199
    %v4208 = vmul.f32 %v4207, %v4199
    %v4209 = vmul.f32 %v4208, %v4207
    %v4210 = vmul.f32 0.5, %v4209
    %v4211 = vsub.f32 1.5, %v4210
    %v4212 = vmul.f32 %v4207, %v4211
    %vm4213 = vweird.f32 %v4199
    %vm4214 = vweird.f32 %v4207
    %vm4215 = vmor %vm4213, %vm4214
    %v4216 = vsel %vm4215, %v4207, %v4212
    %v4217 = vrsqrt.pop %v4200
    %v4218 = vmul.f32 %v4217, %v4200
    %v4219 = vmul.f32 %v4218, %v4217
    %v4220 = vmul.f32 0.5, %v4219
    %v4221 = vsub.f32 1.5, %v4220
    %v4222 = vmul.f32 %v4217, %v4221
    %vm4223 = vweird.f32 %v4200
    %vm4224 = vweird.f32 %v4217
    %vm4225 = vmor %vm4223, %vm4224
    %v4226 = vsel %vm4225, %v4217, %v4222
    %v4227 = vrsqrt.pop %v4201
    %v4228 = vmul.f32 %v4227, %v4201
    %v4229 = vmul.f32 %v4228, %v4227
    %v4230 = vmul.f32 0.5, %v4229
    %v4231 = vsub.f32 1.5, %v4230
    %v4232 = vmul.f32 %v4227, %v4231
    %vm4233 = vweird.f32 %v4201
    %vm4234 = vweird.f32 %v4227
    %vm4235 = vmor %vm4233, %vm4234
    %v4236 = vsel %vm4235, %v4227, %v4232
    %v4237 = vrsqrt.pop %v4202
    %v4238 = vmul.f32 %v4237, %v4202
    %v4239 = vmul.f32 %v4238, %v4237
    %v4240 = vmul.f32 0.5, %v4239
    %v4241 = vsub.f32 1.5, %v4240
    %v4242 = vmul.f32 %v4237, %v4241
    %vm4243 = vweird.f32 %v4202
    %vm4244 = vweird.f32 %v4237
    %vm4245 = vmor %vm4243, %vm4244
    %v4246 = vsel %vm4245, %v4237, %v4242
    %v4247 = vrsqrt.pop %v4203
    %v4248 = vmul.f32 %v4247, %v4203
    %v4249 = vmul.f32 %v4248, %v4247
    %v4250 = vmul.f32 0.5, %v4249
    %v4251 = vsub.f32 1.5, %v4250
    %v4252 = vmul.f32 %v4247, %v4251
    %vm4253 = vweird.f32 %v4203
    %vm4254 = vweird.f32 %v4247
    %vm4255 = vmor %vm4253, %vm4254
    %v4256 = vsel %vm4255, %v4247, %v4252
    %v4257 = vrsqrt.pop %v4204
    %v4258 = vmul.f32 %v4257, %v4204
    %v4259 = vmul.f32 %v4258, %v4257
    %v4260 = vmul.f32 0.5, %v4259
    %v4261 = vsub.f32 1.5, %v4260
    %v4262 = vmul.f32 %v4257, %v4261
    %vm4263 = vweird.f32 %v4204
    %vm4264 = vweird.f32 %v4257
    %vm4265 = vmor %vm4263, %vm4264
    %v4266 = vsel %vm4265, %v4257, %v4262
    %v4267 = vrsqrt.pop %v4205
    %v4268 = vmul.f32 %v4267, %v4205
    %v4269 = vmul.f32 %v4268, %v4267
    %v4270 = vmul.f32 0.5, %v4269
    %v4271 = vsub.f32 1.5, %v4270
    %v4272 = vmul.f32 %v4267, %v4271
    %vm4273 = vweird.f32 %v4205
    %vm4274 = vweird.f32 %v4267
    %vm4275 = vmor %vm4273, %vm4274
    %v4276 = vsel %vm4275, %v4267, %v4272
    %v4277 = vrsqrt.pop %v4206
    %v4278 = vmul.f32 %v4277, %v4206
    %v4279 = vmul.f32 %v4278, %v4277
    %v4280 = vmul.f32 0.5, %v4279
    %v4281 = vsub.f32 1.5, %v4280
    %v4282 = vmul.f32 %v4277, %v4281
    %vm4283 = vweird.f32 %v4206
    %vm4284 = vweird.f32 %v4277
    %vm4285 = vmor %vm4283, %vm4284
    %v4286 = vsel %vm4285, %v4277, %v4282
    %v4287 = vmul.f32 %v4159, %v4216
    %v4288 = vmul.f32 %v4160, %v4226
    %v4289 = vmul.f32 %v4161, %v4236
    %v4290 = vmul.f32 %v4162, %v4246
    %v4291 = vmul.f32 %v4163, %v4256
    %v4292 = vmul.f32 %v4164, %v4266
    %v4293 = vmul.f32 %v4165, %v4276
    %v4294 = vmul.f32 %v4166, %v4286
    %v4296 = vperm.slane %v4133, 0
    %v4298 = vmul.f32 %v4287, %v4296
    %v4299 = vmul.f32 %v4288, %v4296
    %v4300 = vmul.f32 %v4289, %v4296
    %v4301 = vmul.f32 %v4290, %v4296
    %v4302 = vmul.f32 %v4291, %v4296
    %v4303 = vmul.f32 %v4292, %v4296
    %v4304 = vmul.f32 %v4293, %v4296
    %v4305 = vmul.f32 %v4294, %v4296
    %v4307 = vperm.slane %v4134, 0
    %v4309 = vadd.f32 %v4298, %v4307
    %v4310 = vadd.f32 %v4299, %v4307
    %v4311 = vadd.f32 %v4300, %v4307
    %v4312 = vadd.f32 %v4301, %v4307
    %v4313 = vadd.f32 %v4302, %v4307
    %v4314 = vadd.f32 %v4303, %v4307
    %v4315 = vadd.f32 %v4304, %v4307
    %v4316 = vadd.f32 %v4305, %v4307
    %v4317 = vpack.c.bf16 %v4310, %v4309
    %v4318 = vpack.c.bf16 %v4312, %v4311
    %v4319 = vpack.c.bf16 %v4314, %v4313
    %v4320 = vpack.c.bf16 %v4316, %v4315
    %s4321 = scalar_lea.vmem [#allocation6], 192
    %v4322 = vld [vmem:[%s4321] sm:$0xff]
    %v4323 = vld [vmem:[%s4321 + $0x8] sm:$0xf]
    %v4324 = vld [vmem:[%s4321 + $0xc] sm:$0xff]
    %v4325 = vld [vmem:[%s4321 + $0x14] sm:$0xf]
    %v4326 = vld [vmem:[%s4321 + $0x18] sm:$0xff]
    %v4327 = vld [vmem:[%s4321 + $0x20] sm:$0xf]
    %v4328 = vld [vmem:[%s4321 + $0x24] sm:$0xff]
    %v4329 = vld [vmem:[%s4321 + $0x2c] sm:$0xf]
    %v4330 = vld [vmem:[%s4321 + $0x30] sm:$0xff]
    %v4331 = vld [vmem:[%s4321 + $0x38] sm:$0xf]
    %v4332 = vld [vmem:[%s4321 + $0x3c] sm:$0xff]
    %v4333 = vld [vmem:[%s4321 + $0x44] sm:$0xf]
    %v4334 = vld [vmem:[%s4321 + $0x48] sm:$0xff]
    %v4335 = vld [vmem:[%s4321 + $0x50] sm:$0xf]
    %v4336 = vld [vmem:[%s4321 + $0x54] sm:$0xff]
    %v4337 = vld [vmem:[%s4321 + $0x5c] sm:$0xf]
    %v4338 = vld [vmem:[%s4321 + $0x60] sm:$0xff]
    %v4339 = vld [vmem:[%s4321 + $0x68] sm:$0xf]
    %v4340 = vld [vmem:[%s4321 + $0x6c] sm:$0xff]
    %v4341 = vld [vmem:[%s4321 + $0x74] sm:$0xf]
    %v4342 = vld [vmem:[%s4321 + $0x78] sm:$0xff]
    %v4343 = vld [vmem:[%s4321 + $0x80] sm:$0xf]
    %v4344 = vld [vmem:[%s4321 + $0x84] sm:$0xff]
    %v4345 = vld [vmem:[%s4321 + $0x8c] sm:$0xf]
    %v4346 = vld [vmem:[%s4321 + $0x90] sm:$0xff]
    %v4347 = vld [vmem:[%s4321 + $0x98] sm:$0xf]
    %v4348 = vld [vmem:[%s4321 + $0x9c] sm:$0xff]
    %v4349 = vld [vmem:[%s4321 + $0xa4] sm:$0xf]
    %v4350 = vld [vmem:[%s4321 + $0xa8] sm:$0xff]
    %v4351 = vld [vmem:[%s4321 + $0xb0] sm:$0xf]
    %v4352 = vld [vmem:[%s4321 + $0xb4] sm:$0xff]
    %v4353 = vld [vmem:[%s4321 + $0xbc] sm:$0xf]
    %s4354 = scalar_lea.vmem %s8, 3
    %v4355 = vld [vmem:[%s4354] sm:$0x7]
    %v4357 = vperm.slane %v4355, 0
    %v4358 = vperm.slane %v4355, 1
    %v4359 = vperm.slane %v4355, 2
    %v4395 = vunpack.c.l.b16 %v4322
    %v4396 = vunpack.c.h.b16 %v4322
    %v4397 = vunpack.c.l.b16 %v4323
    %v4398 = vunpack.c.l.b16 %v4324
    %v4399 = vunpack.c.h.b16 %v4324
    %v4400 = vunpack.c.l.b16 %v4325
    %v4401 = vunpack.c.l.b16 %v4326
    %v4402 = vunpack.c.h.b16 %v4326
    %v4403 = vunpack.c.l.b16 %v4327
    %v4404 = vunpack.c.l.b16 %v4328
    %v4405 = vunpack.c.h.b16 %v4328
    %v4406 = vunpack.c.l.b16 %v4329
    %v4407 = vunpack.c.l.b16 %v4330
    %v4408 = vunpack.c.h.b16 %v4330
    %v4409 = vunpack.c.l.b16 %v4331
    %v4410 = vunpack.c.l.b16 %v4332
    %v4411 = vunpack.c.h.b16 %v4332
    %v4412 = vunpack.c.l.b16 %v4333
    %v4413 = vunpack.c.l.b16 %v4334
    %v4414 = vunpack.c.h.b16 %v4334
    %v4415 = vunpack.c.l.b16 %v4335
    %v4416 = vunpack.c.l.b16 %v4336
    %v4417 = vunpack.c.h.b16 %v4336
    %v4418 = vunpack.c.l.b16 %v4337
    %v4419 = vunpack.c.l.b16 %v4338
    %v4420 = vunpack.c.h.b16 %v4338
    %v4421 = vunpack.c.l.b16 %v4339
    %v4422 = vunpack.c.l.b16 %v4340
    %v4423 = vunpack.c.h.b16 %v4340
    %v4424 = vunpack.c.l.b16 %v4341
    %v4425 = vunpack.c.l.b16 %v4342
    %v4426 = vunpack.c.h.b16 %v4342
    %v4427 = vunpack.c.l.b16 %v4343
    %v4428 = vunpack.c.l.b16 %v4344
    %v4429 = vunpack.c.h.b16 %v4344
    %v4430 = vunpack.c.l.b16 %v4345
    %v4431 = vunpack.c.l.b16 %v4346
    %v4432 = vunpack.c.h.b16 %v4346
    %v4433 = vunpack.c.l.b16 %v4347
    %v4434 = vunpack.c.l.b16 %v4348
    %v4435 = vunpack.c.h.b16 %v4348
    %v4436 = vunpack.c.l.b16 %v4349
    %v4437 = vunpack.c.l.b16 %v4350
    %v4438 = vunpack.c.h.b16 %v4350
    %v4439 = vunpack.c.l.b16 %v4351
    %v4440 = vunpack.c.l.b16 %v4352
    %v4441 = vunpack.c.h.b16 %v4352
    %v4442 = vunpack.c.l.b16 %v4353
    %v4443 = vpack.c.b16 %v4398, %v4395
    %v4444 = vpack.c.b16 %v4399, %v4396
    %v4445 = vpack.c.b16 %v4400, %v4397
    %v4446 = vpack.c.b16 %v4404, %v4401
    %v4447 = vpack.c.b16 %v4405, %v4402
    %v4448 = vpack.c.b16 %v4406, %v4403
    %v4449 = vpack.c.b16 %v4410, %v4407
    %v4450 = vpack.c.b16 %v4411, %v4408
    %v4451 = vpack.c.b16 %v4412, %v4409
    %v4452 = vpack.c.b16 %v4416, %v4413
    %v4453 = vpack.c.b16 %v4417, %v4414
    %v4454 = vpack.c.b16 %v4418, %v4415
    %v4455 = vpack.c.b16 %v4422, %v4419
    %v4456 = vpack.c.b16 %v4423, %v4420
    %v4457 = vpack.c.b16 %v4424, %v4421
    %v4458 = vpack.c.b16 %v4428, %v4425
    %v4459 = vpack.c.b16 %v4429, %v4426
    %v4460 = vpack.c.b16 %v4430, %v4427
    %v4461 = vpack.c.b16 %v4434, %v4431
    %v4462 = vpack.c.b16 %v4435, %v4432
    %v4463 = vpack.c.b16 %v4436, %v4433
    %v4464 = vpack.c.b16 %v4440, %v4437
    %v4465 = vpack.c.b16 %v4441, %v4438
    %v4466 = vpack.c.b16 %v4442, %v4439
    %4491 = vmatpush.bf16.msra.mxu0 %v4464
    %4492 = vmatpush.bf16.msra.mxu0 %v4461
    %4493 = vmatpush.bf16.msra.mxu0 %v4458
    %4494 = vmatpush.bf16.msra.mxu0 %v4455
    %4495 = vmatpush.bf16.msra.mxu0 %v4452
    %4496 = vmatpush.bf16.msra.mxu0 %v4449
    %4497 = vmatpush.bf16.msra.mxu0 %v4446
    %4498 = vmatpush.bf16.msra.mxu0 %v4443
    %4499 = vmatmul.bf16.gmra.mxu0 %v4317
    %v4500 = vpop.f32.mrf.mxu0
    %v4501 = vadd.f32 %v4357, %v4500
    %v4502 = vpop.f32.mrf.mxu0
    %v4503 = vadd.f32 %v4357, %v4502
    %4504 = vmatmul.bf16.gmra.mxu0 %v4318
    %v4505 = vpop.f32.mrf.mxu0
    %v4506 = vadd.f32 %v4357, %v4505
    %v4507 = vpop.f32.mrf.mxu0
    %v4508 = vadd.f32 %v4357, %v4507
    %4509 = vmatmul.bf16.gmra.mxu0 %v4319
    %v4510 = vpop.f32.mrf.mxu0
    %v4511 = vadd.f32 %v4357, %v4510
    %v4512 = vpop.f32.mrf.mxu0
    %v4513 = vadd.f32 %v4357, %v4512
    %4514 = vmatmul.bf16.gmra.mxu0 %v4320
    %v4515 = vpop.f32.mrf.mxu0
    %v4516 = vadd.f32 %v4357, %v4515
    %v4517 = vpop.f32.mrf.mxu0
    %v4518 = vadd.f32 %v4357, %v4517
    %4519 = vdwg.mxu0
    %4520 = vmatpush.bf16.msra.mxu0 %v4465
    %4521 = vmatpush.bf16.msra.mxu0 %v4462
    %4522 = vmatpush.bf16.msra.mxu0 %v4459
    %4523 = vmatpush.bf16.msra.mxu0 %v4456
    %4524 = vmatpush.bf16.msra.mxu0 %v4453
    %4525 = vmatpush.bf16.msra.mxu0 %v4450
    %4526 = vmatpush.bf16.msra.mxu0 %v4447
    %4527 = vmatpush.bf16.msra.mxu0 %v4444
    %4528 = vmatmul.bf16.gmra.mxu0 %v4317
    %v4529 = vpop.f32.mrf.mxu0
    %v4530 = vadd.f32 %v4358, %v4529
    %v4531 = vpop.f32.mrf.mxu0
    %v4532 = vadd.f32 %v4358, %v4531
    %4533 = vmatmul.bf16.gmra.mxu0 %v4318
    %v4534 = vpop.f32.mrf.mxu0
    %v4535 = vadd.f32 %v4358, %v4534
    %v4536 = vpop.f32.mrf.mxu0
    %v4537 = vadd.f32 %v4358, %v4536
    %4538 = vmatmul.bf16.gmra.mxu0 %v4319
    %v4539 = vpop.f32.mrf.mxu0
    %v4540 = vadd.f32 %v4358, %v4539
    %v4541 = vpop.f32.mrf.mxu0
    %v4542 = vadd.f32 %v4358, %v4541
    %4543 = vmatmul.bf16.gmra.mxu0 %v4320
    %v4544 = vpop.f32.mrf.mxu0
    %v4545 = vadd.f32 %v4358, %v4544
    %v4546 = vpop.f32.mrf.mxu0
    %v4547 = vadd.f32 %v4358, %v4546
    %4548 = vdwg.mxu0
    %4549 = vmatpush.bf16.msra.mxu0 %v4466
    %4550 = vmatpush.bf16.msra.mxu0 %v4463
    %4551 = vmatpush.bf16.msra.mxu0 %v4460
    %4552 = vmatpush.bf16.msra.mxu0 %v4457
    %4553 = vmatpush.bf16.msra.mxu0 %v4454
    %4554 = vmatpush.bf16.msra.mxu0 %v4451
    %4555 = vmatpush.bf16.msra.mxu0 %v4448
    %4556 = vmatpush.bf16.msra.mxu0 %v4445
    %4557 = vmatmul.bf16.gmra.mxu0 %v4317
    %v4558 = vpop.f32.mrf.mxu0
    %v4559 = vadd.f32 %v4359, %v4558
    %v4560 = vpop.f32.mrf.mxu0
    %v4561 = vadd.f32 %v4359, %v4560
    %4562 = vmatmul.bf16.gmra.mxu0 %v4318
    %v4563 = vpop.f32.mrf.mxu0
    %v4564 = vadd.f32 %v4359, %v4563
    %v4565 = vpop.f32.mrf.mxu0
    %v4566 = vadd.f32 %v4359, %v4565
    %4567 = vmatmul.bf16.gmra.mxu0 %v4319
    %v4568 = vpop.f32.mrf.mxu0
    %v4569 = vadd.f32 %v4359, %v4568
    %v4570 = vpop.f32.mrf.mxu0
    %v4571 = vadd.f32 %v4359, %v4570
    %4572 = vmatmul.bf16.gmra.mxu0 %v4320
    %v4573 = vpop.f32.mrf.mxu0
    %v4574 = vadd.f32 %v4359, %v4573
    %v4575 = vpop.f32.mrf.mxu0
    %v4576 = vadd.f32 %v4359, %v4575
    %4577 = vdwg.mxu0
    %v4578 = vpack.c.bf16 %v4501, %v4501
    %v4579 = vpack.c.bf16 %v4503, %v4503
    %v4580 = vpack.c.bf16 %v4506, %v4506
    %v4581 = vpack.c.bf16 %v4508, %v4508
    %v4582 = vpack.c.bf16 %v4511, %v4511
    %v4583 = vpack.c.bf16 %v4513, %v4513
    %v4584 = vpack.c.bf16 %v4516, %v4516
    %v4585 = vpack.c.bf16 %v4518, %v4518
    %v4586 = vpack.c.bf16 %v4530, %v4530
    %v4587 = vpack.c.bf16 %v4532, %v4532
    %v4588 = vpack.c.bf16 %v4535, %v4535
    %v4589 = vpack.c.bf16 %v4537, %v4537
    %v4590 = vpack.c.bf16 %v4540, %v4540
    %v4591 = vpack.c.bf16 %v4542, %v4542
    %v4592 = vpack.c.bf16 %v4545, %v4545
    %v4593 = vpack.c.bf16 %v4547, %v4547
    %v4594 = vpack.c.bf16 %v4559, %v4559
    %v4595 = vpack.c.bf16 %v4561, %v4561
    %v4596 = vpack.c.bf16 %v4564, %v4564
    %v4597 = vpack.c.bf16 %v4566, %v4566
    %v4598 = vpack.c.bf16 %v4569, %v4569
    %v4599 = vpack.c.bf16 %v4571, %v4571
    %v4600 = vpack.c.bf16 %v4574, %v4574
    %v4601 = vpack.c.bf16 %v4576, %v4576
    %v4603 = vsel %vm802, %v4578, 0
    %v4606 = vsel %vm802, %v4586, 0
    %4608 = vmatpush.bf16.xpose.msra.mxu0 0
    %4609 = vmatpush.bf16.xpose.msra.mxu0 0
    %4610 = vmatpush.bf16.xpose.msra.mxu0 0
    %4611 = vmatpush.bf16.xpose.msra.mxu0 0
    %4612 = vmatpush.bf16.xpose.msra.mxu0 0
    %4613 = vmatpush.bf16.xpose.msra.mxu0 0
    %4614 = vmatpush.bf16.xpose.msra.mxu0 0
    %4615 = vmatpush.bf16.xpose.msra.mxu0 %v4606
    %4616 = vmatmul.bf16.gmra.mxu0 %v4603
    %v4617 = vpop.f32.mrf.mxu0
    %v4618 = vadd.f32 0.0, %v4617
    %v4619 = vpop.f32.mrf.mxu0
    %4620 = vdwg.mxu0
    %v4622 = vsel %vm802, %v4579, 0
    %v4625 = vsel %vm802, %v4587, 0
    %4627 = vmatpush.bf16.xpose.msra.mxu0 0
    %4628 = vmatpush.bf16.xpose.msra.mxu0 0
    %4629 = vmatpush.bf16.xpose.msra.mxu0 0
    %4630 = vmatpush.bf16.xpose.msra.mxu0 0
    %4631 = vmatpush.bf16.xpose.msra.mxu0 0
    %4632 = vmatpush.bf16.xpose.msra.mxu0 0
    %4633 = vmatpush.bf16.xpose.msra.mxu0 0
    %4634 = vmatpush.bf16.xpose.msra.mxu0 %v4625
    %4635 = vmatmul.bf16.gmra.mxu0 %v4622
    %v4636 = vpop.f32.mrf.mxu0
    %v4637 = vadd.f32 0.0, %v4636
    %v4638 = vpop.f32.mrf.mxu0
    %4639 = vdwg.mxu0
    %v4641 = vsel %vm802, %v4580, 0
    %v4644 = vsel %vm802, %v4588, 0
    %4646 = vmatpush.bf16.xpose.msra.mxu0 0
    %4647 = vmatpush.bf16.xpose.msra.mxu0 0
    %4648 = vmatpush.bf16.xpose.msra.mxu0 0
    %4649 = vmatpush.bf16.xpose.msra.mxu0 0
    %4650 = vmatpush.bf16.xpose.msra.mxu0 0
    %4651 = vmatpush.bf16.xpose.msra.mxu0 0
    %4652 = vmatpush.bf16.xpose.msra.mxu0 0
    %4653 = vmatpush.bf16.xpose.msra.mxu0 %v4644
    %4654 = vmatmul.bf16.gmra.mxu0 %v4641
    %v4655 = vpop.f32.mrf.mxu0
    %v4656 = vadd.f32 0.0, %v4655
    %v4657 = vpop.f32.mrf.mxu0
    %4658 = vdwg.mxu0
    %v4660 = vsel %vm802, %v4581, 0
    %v4663 = vsel %vm802, %v4589, 0
    %4665 = vmatpush.bf16.xpose.msra.mxu0 0
    %4666 = vmatpush.bf16.xpose.msra.mxu0 0
    %4667 = vmatpush.bf16.xpose.msra.mxu0 0
    %4668 = vmatpush.bf16.xpose.msra.mxu0 0
    %4669 = vmatpush.bf16.xpose.msra.mxu0 0
    %4670 = vmatpush.bf16.xpose.msra.mxu0 0
    %4671 = vmatpush.bf16.xpose.msra.mxu0 0
    %4672 = vmatpush.bf16.xpose.msra.mxu0 %v4663
    %4673 = vmatmul.bf16.gmra.mxu0 %v4660
    %v4674 = vpop.f32.mrf.mxu0
    %v4675 = vadd.f32 0.0, %v4674
    %v4676 = vpop.f32.mrf.mxu0
    %4677 = vdwg.mxu0
    %v4679 = vsel %vm802, %v4582, 0
    %v4682 = vsel %vm802, %v4590, 0
    %4684 = vmatpush.bf16.xpose.msra.mxu0 0
    %4685 = vmatpush.bf16.xpose.msra.mxu0 0
    %4686 = vmatpush.bf16.xpose.msra.mxu0 0
    %4687 = vmatpush.bf16.xpose.msra.mxu0 0
    %4688 = vmatpush.bf16.xpose.msra.mxu0 0
    %4689 = vmatpush.bf16.xpose.msra.mxu0 0
    %4690 = vmatpush.bf16.xpose.msra.mxu0 0
    %4691 = vmatpush.bf16.xpose.msra.mxu0 %v4682
    %4692 = vmatmul.bf16.gmra.mxu0 %v4679
    %v4693 = vpop.f32.mrf.mxu0
    %v4694 = vadd.f32 0.0, %v4693
    %v4695 = vpop.f32.mrf.mxu0
    %4696 = vdwg.mxu0
    %v4698 = vsel %vm802, %v4583, 0
    %v4701 = vsel %vm802, %v4591, 0
    %4703 = vmatpush.bf16.xpose.msra.mxu0 0
    %4704 = vmatpush.bf16.xpose.msra.mxu0 0
    %4705 = vmatpush.bf16.xpose.msra.mxu0 0
    %4706 = vmatpush.bf16.xpose.msra.mxu0 0
    %4707 = vmatpush.bf16.xpose.msra.mxu0 0
    %4708 = vmatpush.bf16.xpose.msra.mxu0 0
    %4709 = vmatpush.bf16.xpose.msra.mxu0 0
    %4710 = vmatpush.bf16.xpose.msra.mxu0 %v4701
    %4711 = vmatmul.bf16.gmra.mxu0 %v4698
    %v4712 = vpop.f32.mrf.mxu0
    %v4713 = vadd.f32 0.0, %v4712
    %v4714 = vpop.f32.mrf.mxu0
    %4715 = vdwg.mxu0
    %v4717 = vsel %vm802, %v4584, 0
    %v4720 = vsel %vm802, %v4592, 0
    %4722 = vmatpush.bf16.xpose.msra.mxu0 0
    %4723 = vmatpush.bf16.xpose.msra.mxu0 0
    %4724 = vmatpush.bf16.xpose.msra.mxu0 0
    %4725 = vmatpush.bf16.xpose.msra.mxu0 0
    %4726 = vmatpush.bf16.xpose.msra.mxu0 0
    %4727 = vmatpush.bf16.xpose.msra.mxu0 0
    %4728 = vmatpush.bf16.xpose.msra.mxu0 0
    %4729 = vmatpush.bf16.xpose.msra.mxu0 %v4720
    %4730 = vmatmul.bf16.gmra.mxu0 %v4717
    %v4731 = vpop.f32.mrf.mxu0
    %v4732 = vadd.f32 0.0, %v4731
    %v4733 = vpop.f32.mrf.mxu0
    %4734 = vdwg.mxu0
    %v4736 = vsel %vm802, %v4585, 0
    %v4739 = vsel %vm802, %v4593, 0
    %4741 = vmatpush.bf16.xpose.msra.mxu0 0
    %4742 = vmatpush.bf16.xpose.msra.mxu0 0
    %4743 = vmatpush.bf16.xpose.msra.mxu0 0
    %4744 = vmatpush.bf16.xpose.msra.mxu0 0
    %4745 = vmatpush.bf16.xpose.msra.mxu0 0
    %4746 = vmatpush.bf16.xpose.msra.mxu0 0
    %4747 = vmatpush.bf16.xpose.msra.mxu0 0
    %4748 = vmatpush.bf16.xpose.msra.mxu0 %v4739
    %4749 = vmatmul.bf16.gmra.mxu0 %v4736
    %v4750 = vpop.f32.mrf.mxu0
    %v4751 = vadd.f32 0.0, %v4750
    %v4752 = vpop.f32.mrf.mxu0
    %4753 = vdwg.mxu0
    %v4754 = vmul.f32 %v4618, 0.17677669
    %v4755 = vmul.f32 %v4637, 0.17677669
    %v4756 = vmul.f32 %v4656, 0.17677669
    %v4757 = vmul.f32 %v4675, 0.17677669
    %v4758 = vmul.f32 %v4694, 0.17677669
    %v4759 = vmul.f32 %v4713, 0.17677669
    %v4760 = vmul.f32 %v4732, 0.17677669
    %v4761 = vmul.f32 %v4751, 0.17677669
    %v4762 = vadd.f32 %v4754, %v971
    %v4763 = vadd.f32 %v4755, %v972
    %v4764 = vadd.f32 %v4756, %v973
    %v4765 = vadd.f32 %v4757, %v974
    %v4766 = vadd.f32 %v4758, %v975
    %v4767 = vadd.f32 %v4759, %v976
    %v4768 = vadd.f32 %v4760, %v977
    %v4769 = vadd.f32 %v4761, %v978
    %v4770 = vsel %vm995, %v4762, -inf
    %4771 = vmax.xlane.f32.xlu0 %v4770
    %v4772 = vpop.xlane.xlu0 %4771
    %v4773 = vsel %vm995, %v4763, -inf
    %4774 = vmax.xlane.f32.xlu0 %v4773
    %v4775 = vpop.xlane.xlu0 %4774
    %v4776 = vsel %vm995, %v4764, -inf
    %4777 = vmax.xlane.f32.xlu0 %v4776
    %v4778 = vpop.xlane.xlu0 %4777
    %v4779 = vsel %vm995, %v4765, -inf
    %4780 = vmax.xlane.f32.xlu0 %v4779
    %v4781 = vpop.xlane.xlu0 %4780
    %v4782 = vsel %vm995, %v4766, -inf
    %4783 = vmax.xlane.f32.xlu0 %v4782
    %v4784 = vpop.xlane.xlu0 %4783
    %v4785 = vsel %vm995, %v4767, -inf
    %4786 = vmax.xlane.f32.xlu0 %v4785
    %v4787 = vpop.xlane.xlu0 %4786
    %v4788 = vsel %vm995, %v4768, -inf
    %4789 = vmax.xlane.f32.xlu0 %v4788
    %v4790 = vpop.xlane.xlu0 %4789
    %v4791 = vsel %vm995, %v4769, -inf
    %4792 = vmax.xlane.f32.xlu0 %v4791
    %v4793 = vpop.xlane.xlu0 %4792
    %v4794 = vsub.f32 %v4762, %v4772
    %v4795 = vsub.f32 %v4763, %v4775
    %v4796 = vsub.f32 %v4764, %v4778
    %v4797 = vsub.f32 %v4765, %v4781
    %v4798 = vsub.f32 %v4766, %v4784
    %v4799 = vsub.f32 %v4767, %v4787
    %v4800 = vsub.f32 %v4768, %v4790
    %v4801 = vsub.f32 %v4769, %v4793
    %v4802 = vmul.f32 %v4794, 1.442695
    %v4803 = vpow.pop %v4802
    %v4804 = vmul.f32 %v4795, 1.442695
    %v4805 = vpow.pop %v4804
    %v4806 = vmul.f32 %v4796, 1.442695
    %v4807 = vpow.pop %v4806
    %v4808 = vmul.f32 %v4797, 1.442695
    %v4809 = vpow.pop %v4808
    %v4810 = vmul.f32 %v4798, 1.442695
    %v4811 = vpow.pop %v4810
    %v4812 = vmul.f32 %v4799, 1.442695
    %v4813 = vpow.pop %v4812
    %v4814 = vmul.f32 %v4800, 1.442695
    %v4815 = vpow.pop %v4814
    %v4816 = vmul.f32 %v4801, 1.442695
    %v4817 = vpow.pop %v4816
    %v4818 = vsel %vm995, %v4803, 0.0
    %4819 = vadd.xlane.f32.xlu0 %v4818
    %v4820 = vpop.xlane.xlu0 %4819
    %v4821 = vsel %vm995, %v4805, 0.0
    %4822 = vadd.xlane.f32.xlu0 %v4821
    %v4823 = vpop.xlane.xlu0 %4822
    %v4824 = vsel %vm995, %v4807, 0.0
    %4825 = vadd.xlane.f32.xlu0 %v4824
    %v4826 = vpop.xlane.xlu0 %4825
    %v4827 = vsel %vm995, %v4809, 0.0
    %4828 = vadd.xlane.f32.xlu0 %v4827
    %v4829 = vpop.xlane.xlu0 %4828
    %v4830 = vsel %vm995, %v4811, 0.0
    %4831 = vadd.xlane.f32.xlu0 %v4830
    %v4832 = vpop.xlane.xlu0 %4831
    %v4833 = vsel %vm995, %v4813, 0.0
    %4834 = vadd.xlane.f32.xlu0 %v4833
    %v4835 = vpop.xlane.xlu0 %4834
    %v4836 = vsel %vm995, %v4815, 0.0
    %4837 = vadd.xlane.f32.xlu0 %v4836
    %v4838 = vpop.xlane.xlu0 %4837
    %v4839 = vsel %vm995, %v4817, 0.0
    %4840 = vadd.xlane.f32.xlu0 %v4839
    %v4841 = vpop.xlane.xlu0 %4840
    %v4842 = vrcp.pop %v4820
    %v4843 = vrcp.pop %v4823
    %v4844 = vrcp.pop %v4826
    %v4845 = vrcp.pop %v4829
    %v4846 = vrcp.pop %v4832
    %v4847 = vrcp.pop %v4835
    %v4848 = vrcp.pop %v4838
    %v4849 = vrcp.pop %v4841
    %v4850 = vmul.f32 %v4803, %v4842
    %v4851 = vmul.f32 %v4805, %v4843
    %v4852 = vmul.f32 %v4807, %v4844
    %v4853 = vmul.f32 %v4809, %v4845
    %v4854 = vmul.f32 %v4811, %v4846
    %v4855 = vmul.f32 %v4813, %v4847
    %v4856 = vmul.f32 %v4815, %v4848
    %v4857 = vmul.f32 %v4817, %v4849
    %v4858 = vpack.c.bf16 %v4850, %v4850
    %v4859 = vpack.c.bf16 %v4851, %v4851
    %v4860 = vpack.c.bf16 %v4852, %v4852
    %v4861 = vpack.c.bf16 %v4853, %v4853
    %v4862 = vpack.c.bf16 %v4854, %v4854
    %v4863 = vpack.c.bf16 %v4855, %v4855
    %v4864 = vpack.c.bf16 %v4856, %v4856
    %v4865 = vpack.c.bf16 %v4857, %v4857
    %v4867 = vsel %vm995, %v4858, 0
    %v4870 = vsel %vm1095, %v4594, 0
    %4872 = vmatpush.bf16.msra.mxu0 0
    %4873 = vmatpush.bf16.msra.mxu0 0
    %4874 = vmatpush.bf16.msra.mxu0 0
    %4875 = vmatpush.bf16.msra.mxu0 0
    %4876 = vmatpush.bf16.msra.mxu0 0
    %4877 = vmatpush.bf16.msra.mxu0 0
    %4878 = vmatpush.bf16.msra.mxu0 0
    %4879 = vmatpush.bf16.msra.mxu0 %v4870
    %4880 = vmatmul.bf16.gmra.mxu0 %v4867
    %v4881 = vpop.f32.mrf.mxu0
    %v4882 = vadd.f32 0.0, %v4881
    %v4883 = vpop.f32.mrf.mxu0
    %4884 = vdwg.mxu0
    %v4886 = vsel %vm995, %v4859, 0
    %v4889 = vsel %vm1095, %v4595, 0
    %4891 = vmatpush.bf16.msra.mxu0 0
    %4892 = vmatpush.bf16.msra.mxu0 0
    %4893 = vmatpush.bf16.msra.mxu0 0
    %4894 = vmatpush.bf16.msra.mxu0 0
    %4895 = vmatpush.bf16.msra.mxu0 0
    %4896 = vmatpush.bf16.msra.mxu0 0
    %4897 = vmatpush.bf16.msra.mxu0 0
    %4898 = vmatpush.bf16.msra.mxu0 %v4889
    %4899 = vmatmul.bf16.gmra.mxu0 %v4886
    %v4900 = vpop.f32.mrf.mxu0
    %v4901 = vadd.f32 0.0, %v4900
    %v4902 = vpop.f32.mrf.mxu0
    %4903 = vdwg.mxu0
    %v4905 = vsel %vm995, %v4860, 0
    %v4908 = vsel %vm1095, %v4596, 0
    %4910 = vmatpush.bf16.msra.mxu0 0
    %4911 = vmatpush.bf16.msra.mxu0 0
    %4912 = vmatpush.bf16.msra.mxu0 0
    %4913 = vmatpush.bf16.msra.mxu0 0
    %4914 = vmatpush.bf16.msra.mxu0 0
    %4915 = vmatpush.bf16.msra.mxu0 0
    %4916 = vmatpush.bf16.msra.mxu0 0
    %4917 = vmatpush.bf16.msra.mxu0 %v4908
    %4918 = vmatmul.bf16.gmra.mxu0 %v4905
    %v4919 = vpop.f32.mrf.mxu0
    %v4920 = vadd.f32 0.0, %v4919
    %v4921 = vpop.f32.mrf.mxu0
    %4922 = vdwg.mxu0
    %v4924 = vsel %vm995, %v4861, 0
    %v4927 = vsel %vm1095, %v4597, 0
    %4929 = vmatpush.bf16.msra.mxu0 0
    %4930 = vmatpush.bf16.msra.mxu0 0
    %4931 = vmatpush.bf16.msra.mxu0 0
    %4932 = vmatpush.bf16.msra.mxu0 0
    %4933 = vmatpush.bf16.msra.mxu0 0
    %4934 = vmatpush.bf16.msra.mxu0 0
    %4935 = vmatpush.bf16.msra.mxu0 0
    %4936 = vmatpush.bf16.msra.mxu0 %v4927
    %4937 = vmatmul.bf16.gmra.mxu0 %v4924
    %v4938 = vpop.f32.mrf.mxu0
    %v4939 = vadd.f32 0.0, %v4938
    %v4940 = vpop.f32.mrf.mxu0
    %4941 = vdwg.mxu0
    %v4943 = vsel %vm995, %v4862, 0
    %v4946 = vsel %vm1095, %v4598, 0
    %4948 = vmatpush.bf16.msra.mxu0 0
    %4949 = vmatpush.bf16.msra.mxu0 0
    %4950 = vmatpush.bf16.msra.mxu0 0
    %4951 = vmatpush.bf16.msra.mxu0 0
    %4952 = vmatpush.bf16.msra.mxu0 0
    %4953 = vmatpush.bf16.msra.mxu0 0
    %4954 = vmatpush.bf16.msra.mxu0 0
    %4955 = vmatpush.bf16.msra.mxu0 %v4946
    %4956 = vmatmul.bf16.gmra.mxu0 %v4943
    %v4957 = vpop.f32.mrf.mxu0
    %v4958 = vadd.f32 0.0, %v4957
    %v4959 = vpop.f32.mrf.mxu0
    %4960 = vdwg.mxu0
    %v4962 = vsel %vm995, %v4863, 0
    %v4965 = vsel %vm1095, %v4599, 0
    %4967 = vmatpush.bf16.msra.mxu0 0
    %4968 = vmatpush.bf16.msra.mxu0 0
    %4969 = vmatpush.bf16.msra.mxu0 0
    %4970 = vmatpush.bf16.msra.mxu0 0
    %4971 = vmatpush.bf16.msra.mxu0 0
    %4972 = vmatpush.bf16.msra.mxu0 0
    %4973 = vmatpush.bf16.msra.mxu0 0
    %4974 = vmatpush.bf16.msra.mxu0 %v4965
    %4975 = vmatmul.bf16.gmra.mxu0 %v4962
    %v4976 = vpop.f32.mrf.mxu0
    %v4977 = vadd.f32 0.0, %v4976
    %v4978 = vpop.f32.mrf.mxu0
    %4979 = vdwg.mxu0
    %v4981 = vsel %vm995, %v4864, 0
    %v4984 = vsel %vm1095, %v4600, 0
    %4986 = vmatpush.bf16.msra.mxu0 0
    %4987 = vmatpush.bf16.msra.mxu0 0
    %4988 = vmatpush.bf16.msra.mxu0 0
    %4989 = vmatpush.bf16.msra.mxu0 0
    %4990 = vmatpush.bf16.msra.mxu0 0
    %4991 = vmatpush.bf16.msra.mxu0 0
    %4992 = vmatpush.bf16.msra.mxu0 0
    %4993 = vmatpush.bf16.msra.mxu0 %v4984
    %4994 = vmatmul.bf16.gmra.mxu0 %v4981
    %v4995 = vpop.f32.mrf.mxu0
    %v4996 = vadd.f32 0.0, %v4995
    %v4997 = vpop.f32.mrf.mxu0
    %4998 = vdwg.mxu0
    %v5000 = vsel %vm995, %v4865, 0
    %v5003 = vsel %vm1095, %v4601, 0
    %5005 = vmatpush.bf16.msra.mxu0 0
    %5006 = vmatpush.bf16.msra.mxu0 0
    %5007 = vmatpush.bf16.msra.mxu0 0
    %5008 = vmatpush.bf16.msra.mxu0 0
    %5009 = vmatpush.bf16.msra.mxu0 0
    %5010 = vmatpush.bf16.msra.mxu0 0
    %5011 = vmatpush.bf16.msra.mxu0 0
    %5012 = vmatpush.bf16.msra.mxu0 %v5003
    %5013 = vmatmul.bf16.gmra.mxu0 %v5000
    %v5014 = vpop.f32.mrf.mxu0
    %v5015 = vadd.f32 0.0, %v5014
    %v5016 = vpop.f32.mrf.mxu0
    %5017 = vdwg.mxu0
    %v5019 = vunpack.c.l.b16 %v4578
    %v5020 = vpack.c.b16 %v5019, %v5019
    %5021 = vrot.lane.b32.xlu0 %v5020, 96
    %v5022 = vpop.permute.xlu0 %5021
    %v5024 = vunpack.c.l.b16 %v4586
    %v5025 = vpack.c.b16 %v5024, %v5024
    %5026 = vrot.lane.b32.xlu0 %v5025, 96
    %v5027 = vpop.permute.xlu0 %5026
    %v5029 = vsel %vm802, %v5022, 0
    %v5032 = vsel %vm802, %v5027, 0
    %5034 = vmatpush.bf16.xpose.msra.mxu0 0
    %5035 = vmatpush.bf16.xpose.msra.mxu0 0
    %5036 = vmatpush.bf16.xpose.msra.mxu0 0
    %5037 = vmatpush.bf16.xpose.msra.mxu0 0
    %5038 = vmatpush.bf16.xpose.msra.mxu0 0
    %5039 = vmatpush.bf16.xpose.msra.mxu0 0
    %5040 = vmatpush.bf16.xpose.msra.mxu0 0
    %5041 = vmatpush.bf16.xpose.msra.mxu0 %v5032
    %5042 = vmatmul.bf16.gmra.mxu0 %v5029
    %v5043 = vpop.f32.mrf.mxu0
    %v5044 = vadd.f32 0.0, %v5043
    %v5045 = vpop.f32.mrf.mxu0
    %5046 = vdwg.mxu0
    %v5048 = vunpack.c.l.b16 %v4579
    %v5049 = vpack.c.b16 %v5048, %v5048
    %5050 = vrot.lane.b32.xlu0 %v5049, 96
    %v5051 = vpop.permute.xlu0 %5050
    %v5053 = vunpack.c.l.b16 %v4587
    %v5054 = vpack.c.b16 %v5053, %v5053
    %5055 = vrot.lane.b32.xlu0 %v5054, 96
    %v5056 = vpop.permute.xlu0 %5055
    %v5058 = vsel %vm802, %v5051, 0
    %v5061 = vsel %vm802, %v5056, 0
    %5063 = vmatpush.bf16.xpose.msra.mxu0 0
    %5064 = vmatpush.bf16.xpose.msra.mxu0 0
    %5065 = vmatpush.bf16.xpose.msra.mxu0 0
    %5066 = vmatpush.bf16.xpose.msra.mxu0 0
    %5067 = vmatpush.bf16.xpose.msra.mxu0 0
    %5068 = vmatpush.bf16.xpose.msra.mxu0 0
    %5069 = vmatpush.bf16.xpose.msra.mxu0 0
    %5070 = vmatpush.bf16.xpose.msra.mxu0 %v5061
    %5071 = vmatmul.bf16.gmra.mxu0 %v5058
    %v5072 = vpop.f32.mrf.mxu0
    %v5073 = vadd.f32 0.0, %v5072
    %v5074 = vpop.f32.mrf.mxu0
    %5075 = vdwg.mxu0
    %v5077 = vunpack.c.l.b16 %v4580
    %v5078 = vpack.c.b16 %v5077, %v5077
    %5079 = vrot.lane.b32.xlu0 %v5078, 96
    %v5080 = vpop.permute.xlu0 %5079
    %v5082 = vunpack.c.l.b16 %v4588
    %v5083 = vpack.c.b16 %v5082, %v5082
    %5084 = vrot.lane.b32.xlu0 %v5083, 96
    %v5085 = vpop.permute.xlu0 %5084
    %v5087 = vsel %vm802, %v5080, 0
    %v5090 = vsel %vm802, %v5085, 0
    %5092 = vmatpush.bf16.xpose.msra.mxu0 0
    %5093 = vmatpush.bf16.xpose.msra.mxu0 0
    %5094 = vmatpush.bf16.xpose.msra.mxu0 0
    %5095 = vmatpush.bf16.xpose.msra.mxu0 0
    %5096 = vmatpush.bf16.xpose.msra.mxu0 0
    %5097 = vmatpush.bf16.xpose.msra.mxu0 0
    %5098 = vmatpush.bf16.xpose.msra.mxu0 0
    %5099 = vmatpush.bf16.xpose.msra.mxu0 %v5090
    %5100 = vmatmul.bf16.gmra.mxu0 %v5087
    %v5101 = vpop.f32.mrf.mxu0
    %v5102 = vadd.f32 0.0, %v5101
    %v5103 = vpop.f32.mrf.mxu0
    %5104 = vdwg.mxu0
    %v5106 = vunpack.c.l.b16 %v4581
    %v5107 = vpack.c.b16 %v5106, %v5106
    %5108 = vrot.lane.b32.xlu0 %v5107, 96
    %v5109 = vpop.permute.xlu0 %5108
    %v5111 = vunpack.c.l.b16 %v4589
    %v5112 = vpack.c.b16 %v5111, %v5111
    %5113 = vrot.lane.b32.xlu0 %v5112, 96
    %v5114 = vpop.permute.xlu0 %5113
    %v5116 = vsel %vm802, %v5109, 0
    %v5119 = vsel %vm802, %v5114, 0
    %5121 = vmatpush.bf16.xpose.msra.mxu0 0
    %5122 = vmatpush.bf16.xpose.msra.mxu0 0
    %5123 = vmatpush.bf16.xpose.msra.mxu0 0
    %5124 = vmatpush.bf16.xpose.msra.mxu0 0
    %5125 = vmatpush.bf16.xpose.msra.mxu0 0
    %5126 = vmatpush.bf16.xpose.msra.mxu0 0
    %5127 = vmatpush.bf16.xpose.msra.mxu0 0
    %5128 = vmatpush.bf16.xpose.msra.mxu0 %v5119
    %5129 = vmatmul.bf16.gmra.mxu0 %v5116
    %v5130 = vpop.f32.mrf.mxu0
    %v5131 = vadd.f32 0.0, %v5130
    %v5132 = vpop.f32.mrf.mxu0
    %5133 = vdwg.mxu0
    %v5135 = vunpack.c.l.b16 %v4582
    %v5136 = vpack.c.b16 %v5135, %v5135
    %5137 = vrot.lane.b32.xlu0 %v5136, 96
    %v5138 = vpop.permute.xlu0 %5137
    %v5140 = vunpack.c.l.b16 %v4590
    %v5141 = vpack.c.b16 %v5140, %v5140
    %5142 = vrot.lane.b32.xlu0 %v5141, 96
    %v5143 = vpop.permute.xlu0 %5142
    %v5145 = vsel %vm802, %v5138, 0
    %v5148 = vsel %vm802, %v5143, 0
    %5150 = vmatpush.bf16.xpose.msra.mxu0 0
    %5151 = vmatpush.bf16.xpose.msra.mxu0 0
    %5152 = vmatpush.bf16.xpose.msra.mxu0 0
    %5153 = vmatpush.bf16.xpose.msra.mxu0 0
    %5154 = vmatpush.bf16.xpose.msra.mxu0 0
    %5155 = vmatpush.bf16.xpose.msra.mxu0 0
    %5156 = vmatpush.bf16.xpose.msra.mxu0 0
    %5157 = vmatpush.bf16.xpose.msra.mxu0 %v5148
    %5158 = vmatmul.bf16.gmra.mxu0 %v5145
    %v5159 = vpop.f32.mrf.mxu0
    %v5160 = vadd.f32 0.0, %v5159
    %v5161 = vpop.f32.mrf.mxu0
    %5162 = vdwg.mxu0
    %v5164 = vunpack.c.l.b16 %v4583
    %v5165 = vpack.c.b16 %v5164, %v5164
    %5166 = vrot.lane.b32.xlu0 %v5165, 96
    %v5167 = vpop.permute.xlu0 %5166
    %v5169 = vunpack.c.l.b16 %v4591
    %v5170 = vpack.c.b16 %v5169, %v5169
    %5171 = vrot.lane.b32.xlu0 %v5170, 96
    %v5172 = vpop.permute.xlu0 %5171
    %v5174 = vsel %vm802, %v5167, 0
    %v5177 = vsel %vm802, %v5172, 0
    %5179 = vmatpush.bf16.xpose.msra.mxu0 0
    %5180 = vmatpush.bf16.xpose.msra.mxu0 0
    %5181 = vmatpush.bf16.xpose.msra.mxu0 0
    %5182 = vmatpush.bf16.xpose.msra.mxu0 0
    %5183 = vmatpush.bf16.xpose.msra.mxu0 0
    %5184 = vmatpush.bf16.xpose.msra.mxu0 0
    %5185 = vmatpush.bf16.xpose.msra.mxu0 0
    %5186 = vmatpush.bf16.xpose.msra.mxu0 %v5177
    %5187 = vmatmul.bf16.gmra.mxu0 %v5174
    %v5188 = vpop.f32.mrf.mxu0
    %v5189 = vadd.f32 0.0, %v5188
    %v5190 = vpop.f32.mrf.mxu0
    %5191 = vdwg.mxu0
    %v5193 = vunpack.c.l.b16 %v4584
    %v5194 = vpack.c.b16 %v5193, %v5193
    %5195 = vrot.lane.b32.xlu0 %v5194, 96
    %v5196 = vpop.permute.xlu0 %5195
    %v5198 = vunpack.c.l.b16 %v4592
    %v5199 = vpack.c.b16 %v5198, %v5198
    %5200 = vrot.lane.b32.xlu0 %v5199, 96
    %v5201 = vpop.permute.xlu0 %5200
    %v5203 = vsel %vm802, %v5196, 0
    %v5206 = vsel %vm802, %v5201, 0
    %5208 = vmatpush.bf16.xpose.msra.mxu0 0
    %5209 = vmatpush.bf16.xpose.msra.mxu0 0
    %5210 = vmatpush.bf16.xpose.msra.mxu0 0
    %5211 = vmatpush.bf16.xpose.msra.mxu0 0
    %5212 = vmatpush.bf16.xpose.msra.mxu0 0
    %5213 = vmatpush.bf16.xpose.msra.mxu0 0
    %5214 = vmatpush.bf16.xpose.msra.mxu0 0
    %5215 = vmatpush.bf16.xpose.msra.mxu0 %v5206
    %5216 = vmatmul.bf16.gmra.mxu0 %v5203
    %v5217 = vpop.f32.mrf.mxu0
    %v5218 = vadd.f32 0.0, %v5217
    %v5219 = vpop.f32.mrf.mxu0
    %5220 = vdwg.mxu0
    %v5222 = vunpack.c.l.b16 %v4585
    %v5223 = vpack.c.b16 %v5222, %v5222
    %5224 = vrot.lane.b32.xlu0 %v5223, 96
    %v5225 = vpop.permute.xlu0 %5224
    %v5227 = vunpack.c.l.b16 %v4593
    %v5228 = vpack.c.b16 %v5227, %v5227
    %5229 = vrot.lane.b32.xlu0 %v5228, 96
    %v5230 = vpop.permute.xlu0 %5229
    %v5232 = vsel %vm802, %v5225, 0
    %v5235 = vsel %vm802, %v5230, 0
    %5237 = vmatpush.bf16.xpose.msra.mxu0 0
    %5238 = vmatpush.bf16.xpose.msra.mxu0 0
    %5239 = vmatpush.bf16.xpose.msra.mxu0 0
    %5240 = vmatpush.bf16.xpose.msra.mxu0 0
    %5241 = vmatpush.bf16.xpose.msra.mxu0 0
    %5242 = vmatpush.bf16.xpose.msra.mxu0 0
    %5243 = vmatpush.bf16.xpose.msra.mxu0 0
    %5244 = vmatpush.bf16.xpose.msra.mxu0 %v5235
    %5245 = vmatmul.bf16.gmra.mxu0 %v5232
    %v5246 = vpop.f32.mrf.mxu0
    %v5247 = vadd.f32 0.0, %v5246
    %v5248 = vpop.f32.mrf.mxu0
    %5249 = vdwg.mxu0
    %v5250 = vmul.f32 %v5044, 0.17677669
    %v5251 = vmul.f32 %v5073, 0.17677669
    %v5252 = vmul.f32 %v5102, 0.17677669
    %v5253 = vmul.f32 %v5131, 0.17677669
    %v5254 = vmul.f32 %v5160, 0.17677669
    %v5255 = vmul.f32 %v5189, 0.17677669
    %v5256 = vmul.f32 %v5218, 0.17677669
    %v5257 = vmul.f32 %v5247, 0.17677669
    %v5258 = vadd.f32 %v5250, %v971
    %v5259 = vadd.f32 %v5251, %v972
    %v5260 = vadd.f32 %v5252, %v973
    %v5261 = vadd.f32 %v5253, %v974
    %v5262 = vadd.f32 %v5254, %v975
    %v5263 = vadd.f32 %v5255, %v976
    %v5264 = vadd.f32 %v5256, %v977
    %v5265 = vadd.f32 %v5257, %v978
    %v5266 = vsel %vm995, %v5258, -inf
    %5267 = vmax.xlane.f32.xlu0 %v5266
    %v5268 = vpop.xlane.xlu0 %5267
    %v5269 = vsel %vm995, %v5259, -inf
    %5270 = vmax.xlane.f32.xlu0 %v5269
    %v5271 = vpop.xlane.xlu0 %5270
    %v5272 = vsel %vm995, %v5260, -inf
    %5273 = vmax.xlane.f32.xlu0 %v5272
    %v5274 = vpop.xlane.xlu0 %5273
    %v5275 = vsel %vm995, %v5261, -inf
    %5276 = vmax.xlane.f32.xlu0 %v5275
    %v5277 = vpop.xlane.xlu0 %5276
    %v5278 = vsel %vm995, %v5262, -inf
    %5279 = vmax.xlane.f32.xlu0 %v5278
    %v5280 = vpop.xlane.xlu0 %5279
    %v5281 = vsel %vm995, %v5263, -inf
    %5282 = vmax.xlane.f32.xlu0 %v5281
    %v5283 = vpop.xlane.xlu0 %5282
    %v5284 = vsel %vm995, %v5264, -inf
    %5285 = vmax.xlane.f32.xlu0 %v5284
    %v5286 = vpop.xlane.xlu0 %5285
    %v5287 = vsel %vm995, %v5265, -inf
    %5288 = vmax.xlane.f32.xlu0 %v5287
    %v5289 = vpop.xlane.xlu0 %5288
    %v5290 = vsub.f32 %v5258, %v5268
    %v5291 = vsub.f32 %v5259, %v5271
    %v5292 = vsub.f32 %v5260, %v5274
    %v5293 = vsub.f32 %v5261, %v5277
    %v5294 = vsub.f32 %v5262, %v5280
    %v5295 = vsub.f32 %v5263, %v5283
    %v5296 = vsub.f32 %v5264, %v5286
    %v5297 = vsub.f32 %v5265, %v5289
    %v5298 = vmul.f32 %v5290, 1.442695
    %v5299 = vpow.pop %v5298
    %v5300 = vmul.f32 %v5291, 1.442695
    %v5301 = vpow.pop %v5300
    %v5302 = vmul.f32 %v5292, 1.442695
    %v5303 = vpow.pop %v5302
    %v5304 = vmul.f32 %v5293, 1.442695
    %v5305 = vpow.pop %v5304
    %v5306 = vmul.f32 %v5294, 1.442695
    %v5307 = vpow.pop %v5306
    %v5308 = vmul.f32 %v5295, 1.442695
    %v5309 = vpow.pop %v5308
    %v5310 = vmul.f32 %v5296, 1.442695
    %v5311 = vpow.pop %v5310
    %v5312 = vmul.f32 %v5297, 1.442695
    %v5313 = vpow.pop %v5312
    %v5314 = vsel %vm995, %v5299, 0.0
    %5315 = vadd.xlane.f32.xlu0 %v5314
    %v5316 = vpop.xlane.xlu0 %5315
    %v5317 = vsel %vm995, %v5301, 0.0
    %5318 = vadd.xlane.f32.xlu0 %v5317
    %v5319 = vpop.xlane.xlu0 %5318
    %v5320 = vsel %vm995, %v5303, 0.0
    %5321 = vadd.xlane.f32.xlu0 %v5320
    %v5322 = vpop.xlane.xlu0 %5321
    %v5323 = vsel %vm995, %v5305, 0.0
    %5324 = vadd.xlane.f32.xlu0 %v5323
    %v5325 = vpop.xlane.xlu0 %5324
    %v5326 = vsel %vm995, %v5307, 0.0
    %5327 = vadd.xlane.f32.xlu0 %v5326
    %v5328 = vpop.xlane.xlu0 %5327
    %v5329 = vsel %vm995, %v5309, 0.0
    %5330 = vadd.xlane.f32.xlu0 %v5329
    %v5331 = vpop.xlane.xlu0 %5330
    %v5332 = vsel %vm995, %v5311, 0.0
    %5333 = vadd.xlane.f32.xlu0 %v5332
    %v5334 = vpop.xlane.xlu0 %5333
    %v5335 = vsel %vm995, %v5313, 0.0
    %5336 = vadd.xlane.f32.xlu0 %v5335
    %v5337 = vpop.xlane.xlu0 %5336
    %v5338 = vrcp.pop %v5316
    %v5339 = vrcp.pop %v5319
    %v5340 = vrcp.pop %v5322
    %v5341 = vrcp.pop %v5325
    %v5342 = vrcp.pop %v5328
    %v5343 = vrcp.pop %v5331
    %v5344 = vrcp.pop %v5334
    %v5345 = vrcp.pop %v5337
    %v5346 = vmul.f32 %v5299, %v5338
    %v5347 = vmul.f32 %v5301, %v5339
    %v5348 = vmul.f32 %v5303, %v5340
    %v5349 = vmul.f32 %v5305, %v5341
    %v5350 = vmul.f32 %v5307, %v5342
    %v5351 = vmul.f32 %v5309, %v5343
    %v5352 = vmul.f32 %v5311, %v5344
    %v5353 = vmul.f32 %v5313, %v5345
    %v5354 = vpack.c.bf16 %v5346, %v5346
    %v5355 = vpack.c.bf16 %v5347, %v5347
    %v5356 = vpack.c.bf16 %v5348, %v5348
    %v5357 = vpack.c.bf16 %v5349, %v5349
    %v5358 = vpack.c.bf16 %v5350, %v5350
    %v5359 = vpack.c.bf16 %v5351, %v5351
    %v5360 = vpack.c.bf16 %v5352, %v5352
    %v5361 = vpack.c.bf16 %v5353, %v5353
    %v5363 = vunpack.c.l.b16 %v4594
    %v5364 = vpack.c.b16 %v5363, %v5363
    %5365 = vrot.lane.b32.xlu0 %v5364, 96
    %v5366 = vpop.permute.xlu0 %5365
    %v5368 = vsel %vm995, %v5354, 0
    %v5371 = vsel %vm1095, %v5366, 0
    %5373 = vmatpush.bf16.msra.mxu0 0
    %5374 = vmatpush.bf16.msra.mxu0 0
    %5375 = vmatpush.bf16.msra.mxu0 0
    %5376 = vmatpush.bf16.msra.mxu0 0
    %5377 = vmatpush.bf16.msra.mxu0 0
    %5378 = vmatpush.bf16.msra.mxu0 0
    %5379 = vmatpush.bf16.msra.mxu0 0
    %5380 = vmatpush.bf16.msra.mxu0 %v5371
    %5381 = vmatmul.bf16.gmra.mxu0 %v5368
    %v5382 = vpop.f32.mrf.mxu0
    %v5383 = vadd.f32 0.0, %v5382
    %v5384 = vpop.f32.mrf.mxu0
    %5385 = vdwg.mxu0
    %v5387 = vunpack.c.l.b16 %v4595
    %v5388 = vpack.c.b16 %v5387, %v5387
    %5389 = vrot.lane.b32.xlu0 %v5388, 96
    %v5390 = vpop.permute.xlu0 %5389
    %v5392 = vsel %vm995, %v5355, 0
    %v5395 = vsel %vm1095, %v5390, 0
    %5397 = vmatpush.bf16.msra.mxu0 0
    %5398 = vmatpush.bf16.msra.mxu0 0
    %5399 = vmatpush.bf16.msra.mxu0 0
    %5400 = vmatpush.bf16.msra.mxu0 0
    %5401 = vmatpush.bf16.msra.mxu0 0
    %5402 = vmatpush.bf16.msra.mxu0 0
    %5403 = vmatpush.bf16.msra.mxu0 0
    %5404 = vmatpush.bf16.msra.mxu0 %v5395
    %5405 = vmatmul.bf16.gmra.mxu0 %v5392
    %v5406 = vpop.f32.mrf.mxu0
    %v5407 = vadd.f32 0.0, %v5406
    %v5408 = vpop.f32.mrf.mxu0
    %5409 = vdwg.mxu0
    %v5411 = vunpack.c.l.b16 %v4596
    %v5412 = vpack.c.b16 %v5411, %v5411
    %5413 = vrot.lane.b32.xlu0 %v5412, 96
    %v5414 = vpop.permute.xlu0 %5413
    %v5416 = vsel %vm995, %v5356, 0
    %v5419 = vsel %vm1095, %v5414, 0
    %5421 = vmatpush.bf16.msra.mxu0 0
    %5422 = vmatpush.bf16.msra.mxu0 0
    %5423 = vmatpush.bf16.msra.mxu0 0
    %5424 = vmatpush.bf16.msra.mxu0 0
    %5425 = vmatpush.bf16.msra.mxu0 0
    %5426 = vmatpush.bf16.msra.mxu0 0
    %5427 = vmatpush.bf16.msra.mxu0 0
    %5428 = vmatpush.bf16.msra.mxu0 %v5419
    %5429 = vmatmul.bf16.gmra.mxu0 %v5416
    %v5430 = vpop.f32.mrf.mxu0
    %v5431 = vadd.f32 0.0, %v5430
    %v5432 = vpop.f32.mrf.mxu0
    %5433 = vdwg.mxu0
    %v5435 = vunpack.c.l.b16 %v4597
    %v5436 = vpack.c.b16 %v5435, %v5435
    %5437 = vrot.lane.b32.xlu0 %v5436, 96
    %v5438 = vpop.permute.xlu0 %5437
    %v5440 = vsel %vm995, %v5357, 0
    %v5443 = vsel %vm1095, %v5438, 0
    %5445 = vmatpush.bf16.msra.mxu0 0
    %5446 = vmatpush.bf16.msra.mxu0 0
    %5447 = vmatpush.bf16.msra.mxu0 0
    %5448 = vmatpush.bf16.msra.mxu0 0
    %5449 = vmatpush.bf16.msra.mxu0 0
    %5450 = vmatpush.bf16.msra.mxu0 0
    %5451 = vmatpush.bf16.msra.mxu0 0
    %5452 = vmatpush.bf16.msra.mxu0 %v5443
    %5453 = vmatmul.bf16.gmra.mxu0 %v5440
    %v5454 = vpop.f32.mrf.mxu0
    %v5455 = vadd.f32 0.0, %v5454
    %v5456 = vpop.f32.mrf.mxu0
    %5457 = vdwg.mxu0
    %v5459 = vunpack.c.l.b16 %v4598
    %v5460 = vpack.c.b16 %v5459, %v5459
    %5461 = vrot.lane.b32.xlu0 %v5460, 96
    %v5462 = vpop.permute.xlu0 %5461
    %v5464 = vsel %vm995, %v5358, 0
    %v5467 = vsel %vm1095, %v5462, 0
    %5469 = vmatpush.bf16.msra.mxu0 0
    %5470 = vmatpush.bf16.msra.mxu0 0
    %5471 = vmatpush.bf16.msra.mxu0 0
    %5472 = vmatpush.bf16.msra.mxu0 0
    %5473 = vmatpush.bf16.msra.mxu0 0
    %5474 = vmatpush.bf16.msra.mxu0 0
    %5475 = vmatpush.bf16.msra.mxu0 0
    %5476 = vmatpush.bf16.msra.mxu0 %v5467
    %5477 = vmatmul.bf16.gmra.mxu0 %v5464
    %v5478 = vpop.f32.mrf.mxu0
    %v5479 = vadd.f32 0.0, %v5478
    %v5480 = vpop.f32.mrf.mxu0
    %5481 = vdwg.mxu0
    %v5483 = vunpack.c.l.b16 %v4599
    %v5484 = vpack.c.b16 %v5483, %v5483
    %5485 = vrot.lane.b32.xlu0 %v5484, 96
    %v5486 = vpop.permute.xlu0 %5485
    %v5488 = vsel %vm995, %v5359, 0
    %v5491 = vsel %vm1095, %v5486, 0
    %5493 = vmatpush.bf16.msra.mxu0 0
    %5494 = vmatpush.bf16.msra.mxu0 0
    %5495 = vmatpush.bf16.msra.mxu0 0
    %5496 = vmatpush.bf16.msra.mxu0 0
    %5497 = vmatpush.bf16.msra.mxu0 0
    %5498 = vmatpush.bf16.msra.mxu0 0
    %5499 = vmatpush.bf16.msra.mxu0 0
    %5500 = vmatpush.bf16.msra.mxu0 %v5491
    %5501 = vmatmul.bf16.gmra.mxu0 %v5488
    %v5502 = vpop.f32.mrf.mxu0
    %v5503 = vadd.f32 0.0, %v5502
    %v5504 = vpop.f32.mrf.mxu0
    %5505 = vdwg.mxu0
    %v5507 = vunpack.c.l.b16 %v4600
    %v5508 = vpack.c.b16 %v5507, %v5507
    %5509 = vrot.lane.b32.xlu0 %v5508, 96
    %v5510 = vpop.permute.xlu0 %5509
    %v5512 = vsel %vm995, %v5360, 0
    %v5515 = vsel %vm1095, %v5510, 0
    %5517 = vmatpush.bf16.msra.mxu0 0
    %5518 = vmatpush.bf16.msra.mxu0 0
    %5519 = vmatpush.bf16.msra.mxu0 0
    %5520 = vmatpush.bf16.msra.mxu0 0
    %5521 = vmatpush.bf16.msra.mxu0 0
    %5522 = vmatpush.bf16.msra.mxu0 0
    %5523 = vmatpush.bf16.msra.mxu0 0
    %5524 = vmatpush.bf16.msra.mxu0 %v5515
    %5525 = vmatmul.bf16.gmra.mxu0 %v5512
    %v5526 = vpop.f32.mrf.mxu0
    %v5527 = vadd.f32 0.0, %v5526
    %v5528 = vpop.f32.mrf.mxu0
    %5529 = vdwg.mxu0
    %v5531 = vunpack.c.l.b16 %v4601
    %v5532 = vpack.c.b16 %v5531, %v5531
    %5533 = vrot.lane.b32.xlu0 %v5532, 96
    %v5534 = vpop.permute.xlu0 %5533
    %v5536 = vsel %vm995, %v5361, 0
    %v5539 = vsel %vm1095, %v5534, 0
    %5541 = vmatpush.bf16.msra.mxu0 0
    %5542 = vmatpush.bf16.msra.mxu0 0
    %5543 = vmatpush.bf16.msra.mxu0 0
    %5544 = vmatpush.bf16.msra.mxu0 0
    %5545 = vmatpush.bf16.msra.mxu0 0
    %5546 = vmatpush.bf16.msra.mxu0 0
    %5547 = vmatpush.bf16.msra.mxu0 0
    %5548 = vmatpush.bf16.msra.mxu0 %v5539
    %5549 = vmatmul.bf16.gmra.mxu0 %v5536
    %v5550 = vpop.f32.mrf.mxu0
    %v5551 = vadd.f32 0.0, %v5550
    %v5552 = vpop.f32.mrf.mxu0
    %5553 = vdwg.mxu0
    %5554 = vrot.lane.b32.xlu0 %v5020, 64
    %v5555 = vpop.permute.xlu0 %5554
    %5556 = vrot.lane.b32.xlu0 %v5025, 64
    %v5557 = vpop.permute.xlu0 %5556
    %v5559 = vsel %vm802, %v5555, 0
    %v5562 = vsel %vm802, %v5557, 0
    %5564 = vmatpush.bf16.xpose.msra.mxu0 0
    %5565 = vmatpush.bf16.xpose.msra.mxu0 0
    %5566 = vmatpush.bf16.xpose.msra.mxu0 0
    %5567 = vmatpush.bf16.xpose.msra.mxu0 0
    %5568 = vmatpush.bf16.xpose.msra.mxu0 0
    %5569 = vmatpush.bf16.xpose.msra.mxu0 0
    %5570 = vmatpush.bf16.xpose.msra.mxu0 0
    %5571 = vmatpush.bf16.xpose.msra.mxu0 %v5562
    %5572 = vmatmul.bf16.gmra.mxu0 %v5559
    %v5573 = vpop.f32.mrf.mxu0
    %v5574 = vadd.f32 0.0, %v5573
    %v5575 = vpop.f32.mrf.mxu0
    %5576 = vdwg.mxu0
    %5577 = vrot.lane.b32.xlu0 %v5049, 64
    %v5578 = vpop.permute.xlu0 %5577
    %5579 = vrot.lane.b32.xlu0 %v5054, 64
    %v5580 = vpop.permute.xlu0 %5579
    %v5582 = vsel %vm802, %v5578, 0
    %v5585 = vsel %vm802, %v5580, 0
    %5587 = vmatpush.bf16.xpose.msra.mxu0 0
    %5588 = vmatpush.bf16.xpose.msra.mxu0 0
    %5589 = vmatpush.bf16.xpose.msra.mxu0 0
    %5590 = vmatpush.bf16.xpose.msra.mxu0 0
    %5591 = vmatpush.bf16.xpose.msra.mxu0 0
    %5592 = vmatpush.bf16.xpose.msra.mxu0 0
    %5593 = vmatpush.bf16.xpose.msra.mxu0 0
    %5594 = vmatpush.bf16.xpose.msra.mxu0 %v5585
    %5595 = vmatmul.bf16.gmra.mxu0 %v5582
    %v5596 = vpop.f32.mrf.mxu0
    %v5597 = vadd.f32 0.0, %v5596
    %v5598 = vpop.f32.mrf.mxu0
    %5599 = vdwg.mxu0
    %5600 = vrot.lane.b32.xlu0 %v5078, 64
    %v5601 = vpop.permute.xlu0 %5600
    %5602 = vrot.lane.b32.xlu0 %v5083, 64
    %v5603 = vpop.permute.xlu0 %5602
    %v5605 = vsel %vm802, %v5601, 0
    %v5608 = vsel %vm802, %v5603, 0
    %5610 = vmatpush.bf16.xpose.msra.mxu0 0
    %5611 = vmatpush.bf16.xpose.msra.mxu0 0
    %5612 = vmatpush.bf16.xpose.msra.mxu0 0
    %5613 = vmatpush.bf16.xpose.msra.mxu0 0
    %5614 = vmatpush.bf16.xpose.msra.mxu0 0
    %5615 = vmatpush.bf16.xpose.msra.mxu0 0
    %5616 = vmatpush.bf16.xpose.msra.mxu0 0
    %5617 = vmatpush.bf16.xpose.msra.mxu0 %v5608
    %5618 = vmatmul.bf16.gmra.mxu0 %v5605
    %v5619 = vpop.f32.mrf.mxu0
    %v5620 = vadd.f32 0.0, %v5619
    %v5621 = vpop.f32.mrf.mxu0
    %5622 = vdwg.mxu0
    %5623 = vrot.lane.b32.xlu0 %v5107, 64
    %v5624 = vpop.permute.xlu0 %5623
    %5625 = vrot.lane.b32.xlu0 %v5112, 64
    %v5626 = vpop.permute.xlu0 %5625
    %v5628 = vsel %vm802, %v5624, 0
    %v5631 = vsel %vm802, %v5626, 0
    %5633 = vmatpush.bf16.xpose.msra.mxu0 0
    %5634 = vmatpush.bf16.xpose.msra.mxu0 0
    %5635 = vmatpush.bf16.xpose.msra.mxu0 0
    %5636 = vmatpush.bf16.xpose.msra.mxu0 0
    %5637 = vmatpush.bf16.xpose.msra.mxu0 0
    %5638 = vmatpush.bf16.xpose.msra.mxu0 0
    %5639 = vmatpush.bf16.xpose.msra.mxu0 0
    %5640 = vmatpush.bf16.xpose.msra.mxu0 %v5631
    %5641 = vmatmul.bf16.gmra.mxu0 %v5628
    %v5642 = vpop.f32.mrf.mxu0
    %v5643 = vadd.f32 0.0, %v5642
    %v5644 = vpop.f32.mrf.mxu0
    %5645 = vdwg.mxu0
    %5646 = vrot.lane.b32.xlu0 %v5136, 64
    %v5647 = vpop.permute.xlu0 %5646
    %5648 = vrot.lane.b32.xlu0 %v5141, 64
    %v5649 = vpop.permute.xlu0 %5648
    %v5651 = vsel %vm802, %v5647, 0
    %v5654 = vsel %vm802, %v5649, 0
    %5656 = vmatpush.bf16.xpose.msra.mxu0 0
    %5657 = vmatpush.bf16.xpose.msra.mxu0 0
    %5658 = vmatpush.bf16.xpose.msra.mxu0 0
    %5659 = vmatpush.bf16.xpose.msra.mxu0 0
    %5660 = vmatpush.bf16.xpose.msra.mxu0 0
    %5661 = vmatpush.bf16.xpose.msra.mxu0 0
    %5662 = vmatpush.bf16.xpose.msra.mxu0 0
    %5663 = vmatpush.bf16.xpose.msra.mxu0 %v5654
    %5664 = vmatmul.bf16.gmra.mxu0 %v5651
    %v5665 = vpop.f32.mrf.mxu0
    %v5666 = vadd.f32 0.0, %v5665
    %v5667 = vpop.f32.mrf.mxu0
    %5668 = vdwg.mxu0
    %5669 = vrot.lane.b32.xlu0 %v5165, 64
    %v5670 = vpop.permute.xlu0 %5669
    %5671 = vrot.lane.b32.xlu0 %v5170, 64
    %v5672 = vpop.permute.xlu0 %5671
    %v5674 = vsel %vm802, %v5670, 0
    %v5677 = vsel %vm802, %v5672, 0
    %5679 = vmatpush.bf16.xpose.msra.mxu0 0
    %5680 = vmatpush.bf16.xpose.msra.mxu0 0
    %5681 = vmatpush.bf16.xpose.msra.mxu0 0
    %5682 = vmatpush.bf16.xpose.msra.mxu0 0
    %5683 = vmatpush.bf16.xpose.msra.mxu0 0
    %5684 = vmatpush.bf16.xpose.msra.mxu0 0
    %5685 = vmatpush.bf16.xpose.msra.mxu0 0
    %5686 = vmatpush.bf16.xpose.msra.mxu0 %v5677
    %5687 = vmatmul.bf16.gmra.mxu0 %v5674
    %v5688 = vpop.f32.mrf.mxu0
    %v5689 = vadd.f32 0.0, %v5688
    %v5690 = vpop.f32.mrf.mxu0
    %5691 = vdwg.mxu0
    %5692 = vrot.lane.b32.xlu0 %v5194, 64
    %v5693 = vpop.permute.xlu0 %5692
    %5694 = vrot.lane.b32.xlu0 %v5199, 64
    %v5695 = vpop.permute.xlu0 %5694
    %v5697 = vsel %vm802, %v5693, 0
    %v5700 = vsel %vm802, %v5695, 0
    %5702 = vmatpush.bf16.xpose.msra.mxu0 0
    %5703 = vmatpush.bf16.xpose.msra.mxu0 0
    %5704 = vmatpush.bf16.xpose.msra.mxu0 0
    %5705 = vmatpush.bf16.xpose.msra.mxu0 0
    %5706 = vmatpush.bf16.xpose.msra.mxu0 0
    %5707 = vmatpush.bf16.xpose.msra.mxu0 0
    %5708 = vmatpush.bf16.xpose.msra.mxu0 0
    %5709 = vmatpush.bf16.xpose.msra.mxu0 %v5700
    %5710 = vmatmul.bf16.gmra.mxu0 %v5697
    %v5711 = vpop.f32.mrf.mxu0
    %v5712 = vadd.f32 0.0, %v5711
    %v5713 = vpop.f32.mrf.mxu0
    %5714 = vdwg.mxu0
    %5715 = vrot.lane.b32.xlu0 %v5223, 64
    %v5716 = vpop.permute.xlu0 %5715
    %5717 = vrot.lane.b32.xlu0 %v5228, 64
    %v5718 = vpop.permute.xlu0 %5717
    %v5720 = vsel %vm802, %v5716, 0
    %v5723 = vsel %vm802, %v5718, 0
    %5725 = vmatpush.bf16.xpose.msra.mxu0 0
    %5726 = vmatpush.bf16.xpose.msra.mxu0 0
    %5727 = vmatpush.bf16.xpose.msra.mxu0 0
    %5728 = vmatpush.bf16.xpose.msra.mxu0 0
    %5729 = vmatpush.bf16.xpose.msra.mxu0 0
    %5730 = vmatpush.bf16.xpose.msra.mxu0 0
    %5731 = vmatpush.bf16.xpose.msra.mxu0 0
    %5732 = vmatpush.bf16.xpose.msra.mxu0 %v5723
    %5733 = vmatmul.bf16.gmra.mxu0 %v5720
    %v5734 = vpop.f32.mrf.mxu0
    %v5735 = vadd.f32 0.0, %v5734
    %v5736 = vpop.f32.mrf.mxu0
    %5737 = vdwg.mxu0
    %v5738 = vmul.f32 %v5574, 0.17677669
    %v5739 = vmul.f32 %v5597, 0.17677669
    %v5740 = vmul.f32 %v5620, 0.17677669
    %v5741 = vmul.f32 %v5643, 0.17677669
    %v5742 = vmul.f32 %v5666, 0.17677669
    %v5743 = vmul.f32 %v5689, 0.17677669
    %v5744 = vmul.f32 %v5712, 0.17677669
    %v5745 = vmul.f32 %v5735, 0.17677669
    %v5746 = vadd.f32 %v5738, %v971
    %v5747 = vadd.f32 %v5739, %v972
    %v5748 = vadd.f32 %v5740, %v973
    %v5749 = vadd.f32 %v5741, %v974
    %v5750 = vadd.f32 %v5742, %v975
    %v5751 = vadd.f32 %v5743, %v976
    %v5752 = vadd.f32 %v5744, %v977
    %v5753 = vadd.f32 %v5745, %v978
    %v5754 = vsel %vm995, %v5746, -inf
    %5755 = vmax.xlane.f32.xlu0 %v5754
    %v5756 = vpop.xlane.xlu0 %5755
    %v5757 = vsel %vm995, %v5747, -inf
    %5758 = vmax.xlane.f32.xlu0 %v5757
    %v5759 = vpop.xlane.xlu0 %5758
    %v5760 = vsel %vm995, %v5748, -inf
    %5761 = vmax.xlane.f32.xlu0 %v5760
    %v5762 = vpop.xlane.xlu0 %5761
    %v5763 = vsel %vm995, %v5749, -inf
    %5764 = vmax.xlane.f32.xlu0 %v5763
    %v5765 = vpop.xlane.xlu0 %5764
    %v5766 = vsel %vm995, %v5750, -inf
    %5767 = vmax.xlane.f32.xlu0 %v5766
    %v5768 = vpop.xlane.xlu0 %5767
    %v5769 = vsel %vm995, %v5751, -inf
    %5770 = vmax.xlane.f32.xlu0 %v5769
    %v5771 = vpop.xlane.xlu0 %5770
    %v5772 = vsel %vm995, %v5752, -inf
    %5773 = vmax.xlane.f32.xlu0 %v5772
    %v5774 = vpop.xlane.xlu0 %5773
    %v5775 = vsel %vm995, %v5753, -inf
    %5776 = vmax.xlane.f32.xlu0 %v5775
    %v5777 = vpop.xlane.xlu0 %5776
    %v5778 = vsub.f32 %v5746, %v5756
    %v5779 = vsub.f32 %v5747, %v5759
    %v5780 = vsub.f32 %v5748, %v5762
    %v5781 = vsub.f32 %v5749, %v5765
    %v5782 = vsub.f32 %v5750, %v5768
    %v5783 = vsub.f32 %v5751, %v5771
    %v5784 = vsub.f32 %v5752, %v5774
    %v5785 = vsub.f32 %v5753, %v5777
    %v5786 = vmul.f32 %v5778, 1.442695
    %v5787 = vpow.pop %v5786
    %v5788 = vmul.f32 %v5779, 1.442695
    %v5789 = vpow.pop %v5788
    %v5790 = vmul.f32 %v5780, 1.442695
    %v5791 = vpow.pop %v5790
    %v5792 = vmul.f32 %v5781, 1.442695
    %v5793 = vpow.pop %v5792
    %v5794 = vmul.f32 %v5782, 1.442695
    %v5795 = vpow.pop %v5794
    %v5796 = vmul.f32 %v5783, 1.442695
    %v5797 = vpow.pop %v5796
    %v5798 = vmul.f32 %v5784, 1.442695
    %v5799 = vpow.pop %v5798
    %v5800 = vmul.f32 %v5785, 1.442695
    %v5801 = vpow.pop %v5800
    %v5802 = vsel %vm995, %v5787, 0.0
    %5803 = vadd.xlane.f32.xlu0 %v5802
    %v5804 = vpop.xlane.xlu0 %5803
    %v5805 = vsel %vm995, %v5789, 0.0
    %5806 = vadd.xlane.f32.xlu0 %v5805
    %v5807 = vpop.xlane.xlu0 %5806
    %v5808 = vsel %vm995, %v5791, 0.0
    %5809 = vadd.xlane.f32.xlu0 %v5808
    %v5810 = vpop.xlane.xlu0 %5809
    %v5811 = vsel %vm995, %v5793, 0.0
    %5812 = vadd.xlane.f32.xlu0 %v5811
    %v5813 = vpop.xlane.xlu0 %5812
    %v5814 = vsel %vm995, %v5795, 0.0
    %5815 = vadd.xlane.f32.xlu0 %v5814
    %v5816 = vpop.xlane.xlu0 %5815
    %v5817 = vsel %vm995, %v5797, 0.0
    %5818 = vadd.xlane.f32.xlu0 %v5817
    %v5819 = vpop.xlane.xlu0 %5818
    %v5820 = vsel %vm995, %v5799, 0.0
    %5821 = vadd.xlane.f32.xlu0 %v5820
    %v5822 = vpop.xlane.xlu0 %5821
    %v5823 = vsel %vm995, %v5801, 0.0
    %5824 = vadd.xlane.f32.xlu0 %v5823
    %v5825 = vpop.xlane.xlu0 %5824
    %v5826 = vrcp.pop %v5804
    %v5827 = vrcp.pop %v5807
    %v5828 = vrcp.pop %v5810
    %v5829 = vrcp.pop %v5813
    %v5830 = vrcp.pop %v5816
    %v5831 = vrcp.pop %v5819
    %v5832 = vrcp.pop %v5822
    %v5833 = vrcp.pop %v5825
    %v5834 = vmul.f32 %v5787, %v5826
    %v5835 = vmul.f32 %v5789, %v5827
    %v5836 = vmul.f32 %v5791, %v5828
    %v5837 = vmul.f32 %v5793, %v5829
    %v5838 = vmul.f32 %v5795, %v5830
    %v5839 = vmul.f32 %v5797, %v5831
    %v5840 = vmul.f32 %v5799, %v5832
    %v5841 = vmul.f32 %v5801, %v5833
    %v5842 = vpack.c.bf16 %v5834, %v5834
    %v5843 = vpack.c.bf16 %v5835, %v5835
    %v5844 = vpack.c.bf16 %v5836, %v5836
    %v5845 = vpack.c.bf16 %v5837, %v5837
    %v5846 = vpack.c.bf16 %v5838, %v5838
    %v5847 = vpack.c.bf16 %v5839, %v5839
    %v5848 = vpack.c.bf16 %v5840, %v5840
    %v5849 = vpack.c.bf16 %v5841, %v5841
    %5850 = vrot.lane.b32.xlu0 %v5364, 64
    %v5851 = vpop.permute.xlu0 %5850
    %v5853 = vsel %vm995, %v5842, 0
    %v5856 = vsel %vm1095, %v5851, 0
    %5858 = vmatpush.bf16.msra.mxu0 0
    %5859 = vmatpush.bf16.msra.mxu0 0
    %5860 = vmatpush.bf16.msra.mxu0 0
    %5861 = vmatpush.bf16.msra.mxu0 0
    %5862 = vmatpush.bf16.msra.mxu0 0
    %5863 = vmatpush.bf16.msra.mxu0 0
    %5864 = vmatpush.bf16.msra.mxu0 0
    %5865 = vmatpush.bf16.msra.mxu0 %v5856
    %5866 = vmatmul.bf16.gmra.mxu0 %v5853
    %v5867 = vpop.f32.mrf.mxu0
    %v5868 = vadd.f32 0.0, %v5867
    %v5869 = vpop.f32.mrf.mxu0
    %5870 = vdwg.mxu0
    %5871 = vrot.lane.b32.xlu0 %v5388, 64
    %v5872 = vpop.permute.xlu0 %5871
    %v5874 = vsel %vm995, %v5843, 0
    %v5877 = vsel %vm1095, %v5872, 0
    %5879 = vmatpush.bf16.msra.mxu0 0
    %5880 = vmatpush.bf16.msra.mxu0 0
    %5881 = vmatpush.bf16.msra.mxu0 0
    %5882 = vmatpush.bf16.msra.mxu0 0
    %5883 = vmatpush.bf16.msra.mxu0 0
    %5884 = vmatpush.bf16.msra.mxu0 0
    %5885 = vmatpush.bf16.msra.mxu0 0
    %5886 = vmatpush.bf16.msra.mxu0 %v5877
    %5887 = vmatmul.bf16.gmra.mxu0 %v5874
    %v5888 = vpop.f32.mrf.mxu0
    %v5889 = vadd.f32 0.0, %v5888
    %v5890 = vpop.f32.mrf.mxu0
    %5891 = vdwg.mxu0
    %5892 = vrot.lane.b32.xlu0 %v5412, 64
    %v5893 = vpop.permute.xlu0 %5892
    %v5895 = vsel %vm995, %v5844, 0
    %v5898 = vsel %vm1095, %v5893, 0
    %5900 = vmatpush.bf16.msra.mxu0 0
    %5901 = vmatpush.bf16.msra.mxu0 0
    %5902 = vmatpush.bf16.msra.mxu0 0
    %5903 = vmatpush.bf16.msra.mxu0 0
    %5904 = vmatpush.bf16.msra.mxu0 0
    %5905 = vmatpush.bf16.msra.mxu0 0
    %5906 = vmatpush.bf16.msra.mxu0 0
    %5907 = vmatpush.bf16.msra.mxu0 %v5898
    %5908 = vmatmul.bf16.gmra.mxu0 %v5895
    %v5909 = vpop.f32.mrf.mxu0
    %v5910 = vadd.f32 0.0, %v5909
    %v5911 = vpop.f32.mrf.mxu0
    %5912 = vdwg.mxu0
    %5913 = vrot.lane.b32.xlu0 %v5436, 64
    %v5914 = vpop.permute.xlu0 %5913
    %v5916 = vsel %vm995, %v5845, 0
    %v5919 = vsel %vm1095, %v5914, 0
    %5921 = vmatpush.bf16.msra.mxu0 0
    %5922 = vmatpush.bf16.msra.mxu0 0
    %5923 = vmatpush.bf16.msra.mxu0 0
    %5924 = vmatpush.bf16.msra.mxu0 0
    %5925 = vmatpush.bf16.msra.mxu0 0
    %5926 = vmatpush.bf16.msra.mxu0 0
    %5927 = vmatpush.bf16.msra.mxu0 0
    %5928 = vmatpush.bf16.msra.mxu0 %v5919
    %5929 = vmatmul.bf16.gmra.mxu0 %v5916
    %v5930 = vpop.f32.mrf.mxu0
    %v5931 = vadd.f32 0.0, %v5930
    %v5932 = vpop.f32.mrf.mxu0
    %5933 = vdwg.mxu0
    %5934 = vrot.lane.b32.xlu0 %v5460, 64
    %v5935 = vpop.permute.xlu0 %5934
    %v5937 = vsel %vm995, %v5846, 0
    %v5940 = vsel %vm1095, %v5935, 0
    %5942 = vmatpush.bf16.msra.mxu0 0
    %5943 = vmatpush.bf16.msra.mxu0 0
    %5944 = vmatpush.bf16.msra.mxu0 0
    %5945 = vmatpush.bf16.msra.mxu0 0
    %5946 = vmatpush.bf16.msra.mxu0 0
    %5947 = vmatpush.bf16.msra.mxu0 0
    %5948 = vmatpush.bf16.msra.mxu0 0
    %5949 = vmatpush.bf16.msra.mxu0 %v5940
    %5950 = vmatmul.bf16.gmra.mxu0 %v5937
    %v5951 = vpop.f32.mrf.mxu0
    %v5952 = vadd.f32 0.0, %v5951
    %v5953 = vpop.f32.mrf.mxu0
    %5954 = vdwg.mxu0
    %5955 = vrot.lane.b32.xlu0 %v5484, 64
    %v5956 = vpop.permute.xlu0 %5955
    %v5958 = vsel %vm995, %v5847, 0
    %v5961 = vsel %vm1095, %v5956, 0
    %5963 = vmatpush.bf16.msra.mxu0 0
    %5964 = vmatpush.bf16.msra.mxu0 0
    %5965 = vmatpush.bf16.msra.mxu0 0
    %5966 = vmatpush.bf16.msra.mxu0 0
    %5967 = vmatpush.bf16.msra.mxu0 0
    %5968 = vmatpush.bf16.msra.mxu0 0
    %5969 = vmatpush.bf16.msra.mxu0 0
    %5970 = vmatpush.bf16.msra.mxu0 %v5961
    %5971 = vmatmul.bf16.gmra.mxu0 %v5958
    %v5972 = vpop.f32.mrf.mxu0
    %v5973 = vadd.f32 0.0, %v5972
    %v5974 = vpop.f32.mrf.mxu0
    %5975 = vdwg.mxu0
    %5976 = vrot.lane.b32.xlu0 %v5508, 64
    %v5977 = vpop.permute.xlu0 %5976
    %v5979 = vsel %vm995, %v5848, 0
    %v5982 = vsel %vm1095, %v5977, 0
    %5984 = vmatpush.bf16.msra.mxu0 0
    %5985 = vmatpush.bf16.msra.mxu0 0
    %5986 = vmatpush.bf16.msra.mxu0 0
    %5987 = vmatpush.bf16.msra.mxu0 0
    %5988 = vmatpush.bf16.msra.mxu0 0
    %5989 = vmatpush.bf16.msra.mxu0 0
    %5990 = vmatpush.bf16.msra.mxu0 0
    %5991 = vmatpush.bf16.msra.mxu0 %v5982
    %5992 = vmatmul.bf16.gmra.mxu0 %v5979
    %v5993 = vpop.f32.mrf.mxu0
    %v5994 = vadd.f32 0.0, %v5993
    %v5995 = vpop.f32.mrf.mxu0
    %5996 = vdwg.mxu0
    %5997 = vrot.lane.b32.xlu0 %v5532, 64
    %v5998 = vpop.permute.xlu0 %5997
    %v6000 = vsel %vm995, %v5849, 0
    %v6003 = vsel %vm1095, %v5998, 0
    %6005 = vmatpush.bf16.msra.mxu0 0
    %6006 = vmatpush.bf16.msra.mxu0 0
    %6007 = vmatpush.bf16.msra.mxu0 0
    %6008 = vmatpush.bf16.msra.mxu0 0
    %6009 = vmatpush.bf16.msra.mxu0 0
    %6010 = vmatpush.bf16.msra.mxu0 0
    %6011 = vmatpush.bf16.msra.mxu0 0
    %6012 = vmatpush.bf16.msra.mxu0 %v6003
    %6013 = vmatmul.bf16.gmra.mxu0 %v6000
    %v6014 = vpop.f32.mrf.mxu0
    %v6015 = vadd.f32 0.0, %v6014
    %v6016 = vpop.f32.mrf.mxu0
    %6017 = vdwg.mxu0
    %6018 = vrot.lane.b32.xlu0 %v5020, 32
    %v6019 = vpop.permute.xlu0 %6018
    %6020 = vrot.lane.b32.xlu0 %v5025, 32
    %v6021 = vpop.permute.xlu0 %6020
    %v6023 = vsel %vm802, %v6019, 0
    %v6026 = vsel %vm802, %v6021, 0
    %6028 = vmatpush.bf16.xpose.msra.mxu0 0
    %6029 = vmatpush.bf16.xpose.msra.mxu0 0
    %6030 = vmatpush.bf16.xpose.msra.mxu0 0
    %6031 = vmatpush.bf16.xpose.msra.mxu0 0
    %6032 = vmatpush.bf16.xpose.msra.mxu0 0
    %6033 = vmatpush.bf16.xpose.msra.mxu0 0
    %6034 = vmatpush.bf16.xpose.msra.mxu0 0
    %6035 = vmatpush.bf16.xpose.msra.mxu0 %v6026
    %6036 = vmatmul.bf16.gmra.mxu0 %v6023
    %v6037 = vpop.f32.mrf.mxu0
    %v6038 = vadd.f32 0.0, %v6037
    %v6039 = vpop.f32.mrf.mxu0
    %6040 = vdwg.mxu0
    %6041 = vrot.lane.b32.xlu0 %v5049, 32
    %v6042 = vpop.permute.xlu0 %6041
    %6043 = vrot.lane.b32.xlu0 %v5054, 32
    %v6044 = vpop.permute.xlu0 %6043
    %v6046 = vsel %vm802, %v6042, 0
    %v6049 = vsel %vm802, %v6044, 0
    %6051 = vmatpush.bf16.xpose.msra.mxu0 0
    %6052 = vmatpush.bf16.xpose.msra.mxu0 0
    %6053 = vmatpush.bf16.xpose.msra.mxu0 0
    %6054 = vmatpush.bf16.xpose.msra.mxu0 0
    %6055 = vmatpush.bf16.xpose.msra.mxu0 0
    %6056 = vmatpush.bf16.xpose.msra.mxu0 0
    %6057 = vmatpush.bf16.xpose.msra.mxu0 0
    %6058 = vmatpush.bf16.xpose.msra.mxu0 %v6049
    %6059 = vmatmul.bf16.gmra.mxu0 %v6046
    %v6060 = vpop.f32.mrf.mxu0
    %v6061 = vadd.f32 0.0, %v6060
    %v6062 = vpop.f32.mrf.mxu0
    %6063 = vdwg.mxu0
    %6064 = vrot.lane.b32.xlu0 %v5078, 32
    %v6065 = vpop.permute.xlu0 %6064
    %6066 = vrot.lane.b32.xlu0 %v5083, 32
    %v6067 = vpop.permute.xlu0 %6066
    %v6069 = vsel %vm802, %v6065, 0
    %v6072 = vsel %vm802, %v6067, 0
    %6074 = vmatpush.bf16.xpose.msra.mxu0 0
    %6075 = vmatpush.bf16.xpose.msra.mxu0 0
    %6076 = vmatpush.bf16.xpose.msra.mxu0 0
    %6077 = vmatpush.bf16.xpose.msra.mxu0 0
    %6078 = vmatpush.bf16.xpose.msra.mxu0 0
    %6079 = vmatpush.bf16.xpose.msra.mxu0 0
    %6080 = vmatpush.bf16.xpose.msra.mxu0 0
    %6081 = vmatpush.bf16.xpose.msra.mxu0 %v6072
    %6082 = vmatmul.bf16.gmra.mxu0 %v6069
    %v6083 = vpop.f32.mrf.mxu0
    %v6084 = vadd.f32 0.0, %v6083
    %v6085 = vpop.f32.mrf.mxu0
    %6086 = vdwg.mxu0
    %6087 = vrot.lane.b32.xlu0 %v5107, 32
    %v6088 = vpop.permute.xlu0 %6087
    %6089 = vrot.lane.b32.xlu0 %v5112, 32
    %v6090 = vpop.permute.xlu0 %6089
    %v6092 = vsel %vm802, %v6088, 0
    %v6095 = vsel %vm802, %v6090, 0
    %6097 = vmatpush.bf16.xpose.msra.mxu0 0
    %6098 = vmatpush.bf16.xpose.msra.mxu0 0
    %6099 = vmatpush.bf16.xpose.msra.mxu0 0
    %6100 = vmatpush.bf16.xpose.msra.mxu0 0
    %6101 = vmatpush.bf16.xpose.msra.mxu0 0
    %6102 = vmatpush.bf16.xpose.msra.mxu0 0
    %6103 = vmatpush.bf16.xpose.msra.mxu0 0
    %6104 = vmatpush.bf16.xpose.msra.mxu0 %v6095
    %6105 = vmatmul.bf16.gmra.mxu0 %v6092
    %v6106 = vpop.f32.mrf.mxu0
    %v6107 = vadd.f32 0.0, %v6106
    %v6108 = vpop.f32.mrf.mxu0
    %6109 = vdwg.mxu0
    %6110 = vrot.lane.b32.xlu0 %v5136, 32
    %v6111 = vpop.permute.xlu0 %6110
    %6112 = vrot.lane.b32.xlu0 %v5141, 32
    %v6113 = vpop.permute.xlu0 %6112
    %v6115 = vsel %vm802, %v6111, 0
    %v6118 = vsel %vm802, %v6113, 0
    %6120 = vmatpush.bf16.xpose.msra.mxu0 0
    %6121 = vmatpush.bf16.xpose.msra.mxu0 0
    %6122 = vmatpush.bf16.xpose.msra.mxu0 0
    %6123 = vmatpush.bf16.xpose.msra.mxu0 0
    %6124 = vmatpush.bf16.xpose.msra.mxu0 0
    %6125 = vmatpush.bf16.xpose.msra.mxu0 0
    %6126 = vmatpush.bf16.xpose.msra.mxu0 0
    %6127 = vmatpush.bf16.xpose.msra.mxu0 %v6118
    %6128 = vmatmul.bf16.gmra.mxu0 %v6115
    %v6129 = vpop.f32.mrf.mxu0
    %v6130 = vadd.f32 0.0, %v6129
    %v6131 = vpop.f32.mrf.mxu0
    %6132 = vdwg.mxu0
    %6133 = vrot.lane.b32.xlu0 %v5165, 32
    %v6134 = vpop.permute.xlu0 %6133
    %6135 = vrot.lane.b32.xlu0 %v5170, 32
    %v6136 = vpop.permute.xlu0 %6135
    %v6138 = vsel %vm802, %v6134, 0
    %v6141 = vsel %vm802, %v6136, 0
    %6143 = vmatpush.bf16.xpose.msra.mxu0 0
    %6144 = vmatpush.bf16.xpose.msra.mxu0 0
    %6145 = vmatpush.bf16.xpose.msra.mxu0 0
    %6146 = vmatpush.bf16.xpose.msra.mxu0 0
    %6147 = vmatpush.bf16.xpose.msra.mxu0 0
    %6148 = vmatpush.bf16.xpose.msra.mxu0 0
    %6149 = vmatpush.bf16.xpose.msra.mxu0 0
    %6150 = vmatpush.bf16.xpose.msra.mxu0 %v6141
    %6151 = vmatmul.bf16.gmra.mxu0 %v6138
    %v6152 = vpop.f32.mrf.mxu0
    %v6153 = vadd.f32 0.0, %v6152
    %v6154 = vpop.f32.mrf.mxu0
    %6155 = vdwg.mxu0
    %6156 = vrot.lane.b32.xlu0 %v5194, 32
    %v6157 = vpop.permute.xlu0 %6156
    %6158 = vrot.lane.b32.xlu0 %v5199, 32
    %v6159 = vpop.permute.xlu0 %6158
    %v6161 = vsel %vm802, %v6157, 0
    %v6164 = vsel %vm802, %v6159, 0
    %6166 = vmatpush.bf16.xpose.msra.mxu0 0
    %6167 = vmatpush.bf16.xpose.msra.mxu0 0
    %6168 = vmatpush.bf16.xpose.msra.mxu0 0
    %6169 = vmatpush.bf16.xpose.msra.mxu0 0
    %6170 = vmatpush.bf16.xpose.msra.mxu0 0
    %6171 = vmatpush.bf16.xpose.msra.mxu0 0
    %6172 = vmatpush.bf16.xpose.msra.mxu0 0
    %6173 = vmatpush.bf16.xpose.msra.mxu0 %v6164
    %6174 = vmatmul.bf16.gmra.mxu0 %v6161
    %v6175 = vpop.f32.mrf.mxu0
    %v6176 = vadd.f32 0.0, %v6175
    %v6177 = vpop.f32.mrf.mxu0
    %6178 = vdwg.mxu0
    %6179 = vrot.lane.b32.xlu0 %v5223, 32
    %v6180 = vpop.permute.xlu0 %6179
    %6181 = vrot.lane.b32.xlu0 %v5228, 32
    %v6182 = vpop.permute.xlu0 %6181
    %v6184 = vsel %vm802, %v6180, 0
    %v6187 = vsel %vm802, %v6182, 0
    %6189 = vmatpush.bf16.xpose.msra.mxu0 0
    %6190 = vmatpush.bf16.xpose.msra.mxu0 0
    %6191 = vmatpush.bf16.xpose.msra.mxu0 0
    %6192 = vmatpush.bf16.xpose.msra.mxu0 0
    %6193 = vmatpush.bf16.xpose.msra.mxu0 0
    %6194 = vmatpush.bf16.xpose.msra.mxu0 0
    %6195 = vmatpush.bf16.xpose.msra.mxu0 0
    %6196 = vmatpush.bf16.xpose.msra.mxu0 %v6187
    %6197 = vmatmul.bf16.gmra.mxu0 %v6184
    %v6198 = vpop.f32.mrf.mxu0
    %v6199 = vadd.f32 0.0, %v6198
    %v6200 = vpop.f32.mrf.mxu0
    %6201 = vdwg.mxu0
    %v6202 = vmul.f32 %v6038, 0.17677669
    %v6203 = vmul.f32 %v6061, 0.17677669
    %v6204 = vmul.f32 %v6084, 0.17677669
    %v6205 = vmul.f32 %v6107, 0.17677669
    %v6206 = vmul.f32 %v6130, 0.17677669
    %v6207 = vmul.f32 %v6153, 0.17677669
    %v6208 = vmul.f32 %v6176, 0.17677669
    %v6209 = vmul.f32 %v6199, 0.17677669
    %v6210 = vadd.f32 %v6202, %v971
    %v6211 = vadd.f32 %v6203, %v972
    %v6212 = vadd.f32 %v6204, %v973
    %v6213 = vadd.f32 %v6205, %v974
    %v6214 = vadd.f32 %v6206, %v975
    %v6215 = vadd.f32 %v6207, %v976
    %v6216 = vadd.f32 %v6208, %v977
    %v6217 = vadd.f32 %v6209, %v978
    %v6218 = vsel %vm995, %v6210, -inf
    %6219 = vmax.xlane.f32.xlu0 %v6218
    %v6220 = vpop.xlane.xlu0 %6219
    %v6221 = vsel %vm995, %v6211, -inf
    %6222 = vmax.xlane.f32.xlu0 %v6221
    %v6223 = vpop.xlane.xlu0 %6222
    %v6224 = vsel %vm995, %v6212, -inf
    %6225 = vmax.xlane.f32.xlu0 %v6224
    %v6226 = vpop.xlane.xlu0 %6225
    %v6227 = vsel %vm995, %v6213, -inf
    %6228 = vmax.xlane.f32.xlu0 %v6227
    %v6229 = vpop.xlane.xlu0 %6228
    %v6230 = vsel %vm995, %v6214, -inf
    %6231 = vmax.xlane.f32.xlu0 %v6230
    %v6232 = vpop.xlane.xlu0 %6231
    %v6233 = vsel %vm995, %v6215, -inf
    %6234 = vmax.xlane.f32.xlu0 %v6233
    %v6235 = vpop.xlane.xlu0 %6234
    %v6236 = vsel %vm995, %v6216, -inf
    %6237 = vmax.xlane.f32.xlu0 %v6236
    %v6238 = vpop.xlane.xlu0 %6237
    %v6239 = vsel %vm995, %v6217, -inf
    %6240 = vmax.xlane.f32.xlu0 %v6239
    %v6241 = vpop.xlane.xlu0 %6240
    %v6242 = vsub.f32 %v6210, %v6220
    %v6243 = vsub.f32 %v6211, %v6223
    %v6244 = vsub.f32 %v6212, %v6226
    %v6245 = vsub.f32 %v6213, %v6229
    %v6246 = vsub.f32 %v6214, %v6232
    %v6247 = vsub.f32 %v6215, %v6235
    %v6248 = vsub.f32 %v6216, %v6238
    %v6249 = vsub.f32 %v6217, %v6241
    %v6250 = vmul.f32 %v6242, 1.442695
    %v6251 = vpow.pop %v6250
    %v6252 = vmul.f32 %v6243, 1.442695
    %v6253 = vpow.pop %v6252
    %v6254 = vmul.f32 %v6244, 1.442695
    %v6255 = vpow.pop %v6254
    %v6256 = vmul.f32 %v6245, 1.442695
    %v6257 = vpow.pop %v6256
    %v6258 = vmul.f32 %v6246, 1.442695
    %v6259 = vpow.pop %v6258
    %v6260 = vmul.f32 %v6247, 1.442695
    %v6261 = vpow.pop %v6260
    %v6262 = vmul.f32 %v6248, 1.442695
    %v6263 = vpow.pop %v6262
    %v6264 = vmul.f32 %v6249, 1.442695
    %v6265 = vpow.pop %v6264
    %v6266 = vsel %vm995, %v6251, 0.0
    %6267 = vadd.xlane.f32.xlu0 %v6266
    %v6268 = vpop.xlane.xlu0 %6267
    %v6269 = vsel %vm995, %v6253, 0.0
    %6270 = vadd.xlane.f32.xlu0 %v6269
    %v6271 = vpop.xlane.xlu0 %6270
    %v6272 = vsel %vm995, %v6255, 0.0
    %6273 = vadd.xlane.f32.xlu0 %v6272
    %v6274 = vpop.xlane.xlu0 %6273
    %v6275 = vsel %vm995, %v6257, 0.0
    %6276 = vadd.xlane.f32.xlu0 %v6275
    %v6277 = vpop.xlane.xlu0 %6276
    %v6278 = vsel %vm995, %v6259, 0.0
    %6279 = vadd.xlane.f32.xlu0 %v6278
    %v6280 = vpop.xlane.xlu0 %6279
    %v6281 = vsel %vm995, %v6261, 0.0
    %6282 = vadd.xlane.f32.xlu0 %v6281
    %v6283 = vpop.xlane.xlu0 %6282
    %v6284 = vsel %vm995, %v6263, 0.0
    %6285 = vadd.xlane.f32.xlu0 %v6284
    %v6286 = vpop.xlane.xlu0 %6285
    %v6287 = vsel %vm995, %v6265, 0.0
    %6288 = vadd.xlane.f32.xlu0 %v6287
    %v6289 = vpop.xlane.xlu0 %6288
    %v6290 = vrcp.pop %v6268
    %v6291 = vrcp.pop %v6271
    %v6292 = vrcp.pop %v6274
    %v6293 = vrcp.pop %v6277
    %v6294 = vrcp.pop %v6280
    %v6295 = vrcp.pop %v6283
    %v6296 = vrcp.pop %v6286
    %v6297 = vrcp.pop %v6289
    %v6298 = vmul.f32 %v6251, %v6290
    %v6299 = vmul.f32 %v6253, %v6291
    %v6300 = vmul.f32 %v6255, %v6292
    %v6301 = vmul.f32 %v6257, %v6293
    %v6302 = vmul.f32 %v6259, %v6294
    %v6303 = vmul.f32 %v6261, %v6295
    %v6304 = vmul.f32 %v6263, %v6296
    %v6305 = vmul.f32 %v6265, %v6297
    %v6306 = vpack.c.bf16 %v6298, %v6298
    %v6307 = vpack.c.bf16 %v6299, %v6299
    %v6308 = vpack.c.bf16 %v6300, %v6300
    %v6309 = vpack.c.bf16 %v6301, %v6301
    %v6310 = vpack.c.bf16 %v6302, %v6302
    %v6311 = vpack.c.bf16 %v6303, %v6303
    %v6312 = vpack.c.bf16 %v6304, %v6304
    %v6313 = vpack.c.bf16 %v6305, %v6305
    %6314 = vrot.lane.b32.xlu0 %v5364, 32
    %v6315 = vpop.permute.xlu0 %6314
    %v6317 = vsel %vm995, %v6306, 0
    %v6320 = vsel %vm1095, %v6315, 0
    %6322 = vmatpush.bf16.msra.mxu0 0
    %6323 = vmatpush.bf16.msra.mxu0 0
    %6324 = vmatpush.bf16.msra.mxu0 0
    %6325 = vmatpush.bf16.msra.mxu0 0
    %6326 = vmatpush.bf16.msra.mxu0 0
    %6327 = vmatpush.bf16.msra.mxu0 0
    %6328 = vmatpush.bf16.msra.mxu0 0
    %6329 = vmatpush.bf16.msra.mxu0 %v6320
    %6330 = vmatmul.bf16.gmra.mxu0 %v6317
    %v6331 = vpop.f32.mrf.mxu0
    %v6332 = vadd.f32 0.0, %v6331
    %v6333 = vpop.f32.mrf.mxu0
    %6334 = vdwg.mxu0
    %6335 = vrot.lane.b32.xlu0 %v5388, 32
    %v6336 = vpop.permute.xlu0 %6335
    %v6338 = vsel %vm995, %v6307, 0
    %v6341 = vsel %vm1095, %v6336, 0
    %6343 = vmatpush.bf16.msra.mxu0 0
    %6344 = vmatpush.bf16.msra.mxu0 0
    %6345 = vmatpush.bf16.msra.mxu0 0
    %6346 = vmatpush.bf16.msra.mxu0 0
    %6347 = vmatpush.bf16.msra.mxu0 0
    %6348 = vmatpush.bf16.msra.mxu0 0
    %6349 = vmatpush.bf16.msra.mxu0 0
    %6350 = vmatpush.bf16.msra.mxu0 %v6341
    %6351 = vmatmul.bf16.gmra.mxu0 %v6338
    %v6352 = vpop.f32.mrf.mxu0
    %v6353 = vadd.f32 0.0, %v6352
    %v6354 = vpop.f32.mrf.mxu0
    %6355 = vdwg.mxu0
    %6356 = vrot.lane.b32.xlu0 %v5412, 32
    %v6357 = vpop.permute.xlu0 %6356
    %v6359 = vsel %vm995, %v6308, 0
    %v6362 = vsel %vm1095, %v6357, 0
    %6364 = vmatpush.bf16.msra.mxu0 0
    %6365 = vmatpush.bf16.msra.mxu0 0
    %6366 = vmatpush.bf16.msra.mxu0 0
    %6367 = vmatpush.bf16.msra.mxu0 0
    %6368 = vmatpush.bf16.msra.mxu0 0
    %6369 = vmatpush.bf16.msra.mxu0 0
    %6370 = vmatpush.bf16.msra.mxu0 0
    %6371 = vmatpush.bf16.msra.mxu0 %v6362
    %6372 = vmatmul.bf16.gmra.mxu0 %v6359
    %v6373 = vpop.f32.mrf.mxu0
    %v6374 = vadd.f32 0.0, %v6373
    %v6375 = vpop.f32.mrf.mxu0
    %6376 = vdwg.mxu0
    %6377 = vrot.lane.b32.xlu0 %v5436, 32
    %v6378 = vpop.permute.xlu0 %6377
    %v6380 = vsel %vm995, %v6309, 0
    %v6383 = vsel %vm1095, %v6378, 0
    %6385 = vmatpush.bf16.msra.mxu0 0
    %6386 = vmatpush.bf16.msra.mxu0 0
    %6387 = vmatpush.bf16.msra.mxu0 0
    %6388 = vmatpush.bf16.msra.mxu0 0
    %6389 = vmatpush.bf16.msra.mxu0 0
    %6390 = vmatpush.bf16.msra.mxu0 0
    %6391 = vmatpush.bf16.msra.mxu0 0
    %6392 = vmatpush.bf16.msra.mxu0 %v6383
    %6393 = vmatmul.bf16.gmra.mxu0 %v6380
    %v6394 = vpop.f32.mrf.mxu0
    %v6395 = vadd.f32 0.0, %v6394
    %v6396 = vpop.f32.mrf.mxu0
    %6397 = vdwg.mxu0
    %6398 = vrot.lane.b32.xlu0 %v5460, 32
    %v6399 = vpop.permute.xlu0 %6398
    %v6401 = vsel %vm995, %v6310, 0
    %v6404 = vsel %vm1095, %v6399, 0
    %6406 = vmatpush.bf16.msra.mxu0 0
    %6407 = vmatpush.bf16.msra.mxu0 0
    %6408 = vmatpush.bf16.msra.mxu0 0
    %6409 = vmatpush.bf16.msra.mxu0 0
    %6410 = vmatpush.bf16.msra.mxu0 0
    %6411 = vmatpush.bf16.msra.mxu0 0
    %6412 = vmatpush.bf16.msra.mxu0 0
    %6413 = vmatpush.bf16.msra.mxu0 %v6404
    %6414 = vmatmul.bf16.gmra.mxu0 %v6401
    %v6415 = vpop.f32.mrf.mxu0
    %v6416 = vadd.f32 0.0, %v6415
    %v6417 = vpop.f32.mrf.mxu0
    %6418 = vdwg.mxu0
    %6419 = vrot.lane.b32.xlu0 %v5484, 32
    %v6420 = vpop.permute.xlu0 %6419
    %v6422 = vsel %vm995, %v6311, 0
    %v6425 = vsel %vm1095, %v6420, 0
    %6427 = vmatpush.bf16.msra.mxu0 0
    %6428 = vmatpush.bf16.msra.mxu0 0
    %6429 = vmatpush.bf16.msra.mxu0 0
    %6430 = vmatpush.bf16.msra.mxu0 0
    %6431 = vmatpush.bf16.msra.mxu0 0
    %6432 = vmatpush.bf16.msra.mxu0 0
    %6433 = vmatpush.bf16.msra.mxu0 0
    %6434 = vmatpush.bf16.msra.mxu0 %v6425
    %6435 = vmatmul.bf16.gmra.mxu0 %v6422
    %v6436 = vpop.f32.mrf.mxu0
    %v6437 = vadd.f32 0.0, %v6436
    %v6438 = vpop.f32.mrf.mxu0
    %6439 = vdwg.mxu0
    %6440 = vrot.lane.b32.xlu0 %v5508, 32
    %v6441 = vpop.permute.xlu0 %6440
    %v6443 = vsel %vm995, %v6312, 0
    %v6446 = vsel %vm1095, %v6441, 0
    %6448 = vmatpush.bf16.msra.mxu0 0
    %6449 = vmatpush.bf16.msra.mxu0 0
    %6450 = vmatpush.bf16.msra.mxu0 0
    %6451 = vmatpush.bf16.msra.mxu0 0
    %6452 = vmatpush.bf16.msra.mxu0 0
    %6453 = vmatpush.bf16.msra.mxu0 0
    %6454 = vmatpush.bf16.msra.mxu0 0
    %6455 = vmatpush.bf16.msra.mxu0 %v6446
    %6456 = vmatmul.bf16.gmra.mxu0 %v6443
    %v6457 = vpop.f32.mrf.mxu0
    %v6458 = vadd.f32 0.0, %v6457
    %v6459 = vpop.f32.mrf.mxu0
    %6460 = vdwg.mxu0
    %6461 = vrot.lane.b32.xlu0 %v5532, 32
    %v6462 = vpop.permute.xlu0 %6461
    %v6464 = vsel %vm995, %v6313, 0
    %v6467 = vsel %vm1095, %v6462, 0
    %6469 = vmatpush.bf16.msra.mxu0 0
    %6470 = vmatpush.bf16.msra.mxu0 0
    %6471 = vmatpush.bf16.msra.mxu0 0
    %6472 = vmatpush.bf16.msra.mxu0 0
    %6473 = vmatpush.bf16.msra.mxu0 0
    %6474 = vmatpush.bf16.msra.mxu0 0
    %6475 = vmatpush.bf16.msra.mxu0 0
    %6476 = vmatpush.bf16.msra.mxu0 %v6467
    %6477 = vmatmul.bf16.gmra.mxu0 %v6464
    %v6478 = vpop.f32.mrf.mxu0
    %v6479 = vadd.f32 0.0, %v6478
    %v6480 = vpop.f32.mrf.mxu0
    %6481 = vdwg.mxu0
    %6490 = vrot.lane.b32.xlu0 %v5383, 32
    %v6491 = vpop.permute.xlu0 %6490
    %6492 = vrot.lane.b32.xlu0 %v5407, 32
    %v6493 = vpop.permute.xlu0 %6492
    %6494 = vrot.lane.b32.xlu0 %v5431, 32
    %v6495 = vpop.permute.xlu0 %6494
    %6496 = vrot.lane.b32.xlu0 %v5455, 32
    %v6497 = vpop.permute.xlu0 %6496
    %6498 = vrot.lane.b32.xlu0 %v5479, 32
    %v6499 = vpop.permute.xlu0 %6498
    %6500 = vrot.lane.b32.xlu0 %v5503, 32
    %v6501 = vpop.permute.xlu0 %6500
    %6502 = vrot.lane.b32.xlu0 %v5527, 32
    %v6503 = vpop.permute.xlu0 %6502
    %6504 = vrot.lane.b32.xlu0 %v5551, 32
    %v6505 = vpop.permute.xlu0 %6504
    %6522 = vrot.lane.b32.xlu0 %v5868, 64
    %v6523 = vpop.permute.xlu0 %6522
    %6524 = vrot.lane.b32.xlu0 %v5889, 64
    %v6525 = vpop.permute.xlu0 %6524
    %6526 = vrot.lane.b32.xlu0 %v5910, 64
    %v6527 = vpop.permute.xlu0 %6526
    %6528 = vrot.lane.b32.xlu0 %v5931, 64
    %v6529 = vpop.permute.xlu0 %6528
    %6530 = vrot.lane.b32.xlu0 %v5952, 64
    %v6531 = vpop.permute.xlu0 %6530
    %6532 = vrot.lane.b32.xlu0 %v5973, 64
    %v6533 = vpop.permute.xlu0 %6532
    %6534 = vrot.lane.b32.xlu0 %v5994, 64
    %v6535 = vpop.permute.xlu0 %6534
    %6536 = vrot.lane.b32.xlu0 %v6015, 64
    %v6537 = vpop.permute.xlu0 %6536
    %6554 = vrot.lane.b32.xlu0 %v6332, 96
    %v6555 = vpop.permute.xlu0 %6554
    %6556 = vrot.lane.b32.xlu0 %v6353, 96
    %v6557 = vpop.permute.xlu0 %6556
    %6558 = vrot.lane.b32.xlu0 %v6374, 96
    %v6559 = vpop.permute.xlu0 %6558
    %6560 = vrot.lane.b32.xlu0 %v6395, 96
    %v6561 = vpop.permute.xlu0 %6560
    %6562 = vrot.lane.b32.xlu0 %v6416, 96
    %v6563 = vpop.permute.xlu0 %6562
    %6564 = vrot.lane.b32.xlu0 %v6437, 96
    %v6565 = vpop.permute.xlu0 %6564
    %6566 = vrot.lane.b32.xlu0 %v6458, 96
    %v6567 = vpop.permute.xlu0 %6566
    %6568 = vrot.lane.b32.xlu0 %v6479, 96
    %v6569 = vpop.permute.xlu0 %6568
    %v6578 = vsel %vm802, %v4882, %v6491
    %v6579 = vsel %vm802, %v4901, %v6493
    %v6580 = vsel %vm802, %v4920, %v6495
    %v6581 = vsel %vm802, %v4939, %v6497
    %v6582 = vsel %vm802, %v4958, %v6499
    %v6583 = vsel %vm802, %v4977, %v6501
    %v6584 = vsel %vm802, %v4996, %v6503
    %v6585 = vsel %vm802, %v5015, %v6505
    %v6586 = vsel %vm278, %v6578, %v6523
    %v6587 = vsel %vm278, %v6579, %v6525
    %v6588 = vsel %vm278, %v6580, %v6527
    %v6589 = vsel %vm278, %v6581, %v6529
    %v6590 = vsel %vm278, %v6582, %v6531
    %v6591 = vsel %vm278, %v6583, %v6533
    %v6592 = vsel %vm278, %v6584, %v6535
    %v6593 = vsel %vm278, %v6585, %v6537
    %v6594 = vsel %vm2821, %v6586, %v6555
    %v6595 = vsel %vm2821, %v6587, %v6557
    %v6596 = vsel %vm2821, %v6588, %v6559
    %v6597 = vsel %vm2821, %v6589, %v6561
    %v6598 = vsel %vm2821, %v6590, %v6563
    %v6599 = vsel %vm2821, %v6591, %v6565
    %v6600 = vsel %vm2821, %v6592, %v6567
    %v6601 = vsel %vm2821, %v6593, %v6569
    %v6602 = vpack.c.bf16 %v6595, %v6594
    %v6603 = vpack.c.bf16 %v6597, %v6596
    %v6604 = vpack.c.bf16 %v6599, %v6598
    %v6605 = vpack.c.bf16 %v6601, %v6600
    %s6606 = scalar_lea.vmem [#allocation8], 64
    %v6607 = vld [vmem:[%s6606] sm:$0xf]
    %v6608 = vld [vmem:[%s6606 + $0x4] sm:$0xf]
    %v6609 = vld [vmem:[%s6606 + $0x8] sm:$0xf]
    %v6610 = vld [vmem:[%s6606 + $0xc] sm:$0xf]
    %v6611 = vld [vmem:[%s6606 + $0x10] sm:$0xf]
    %v6612 = vld [vmem:[%s6606 + $0x14] sm:$0xf]
    %v6613 = vld [vmem:[%s6606 + $0x18] sm:$0xf]
    %v6614 = vld [vmem:[%s6606 + $0x1c] sm:$0xf]
    %v6615 = vld [vmem:[%s6606 + $0x20] sm:$0xf]
    %v6616 = vld [vmem:[%s6606 + $0x24] sm:$0xf]
    %v6617 = vld [vmem:[%s6606 + $0x28] sm:$0xf]
    %v6618 = vld [vmem:[%s6606 + $0x2c] sm:$0xf]
    %v6619 = vld [vmem:[%s6606 + $0x30] sm:$0xf]
    %v6620 = vld [vmem:[%s6606 + $0x34] sm:$0xf]
    %v6621 = vld [vmem:[%s6606 + $0x38] sm:$0xf]
    %v6622 = vld [vmem:[%s6606 + $0x3c] sm:$0xf]
    %s6623 = scalar_lea.vmem %s10, 1
    %v6624 = vld [vmem:[%s6623] sm:$0x1]
    %v6626 = vperm.slane %v6624, 0
    %v6644 = vunpack.c.l.b16 %v6607
    %v6645 = vunpack.c.l.b16 %v6608
    %v6646 = vunpack.c.l.b16 %v6609
    %v6647 = vunpack.c.l.b16 %v6610
    %v6648 = vunpack.c.l.b16 %v6611
    %v6649 = vunpack.c.l.b16 %v6612
    %v6650 = vunpack.c.l.b16 %v6613
    %v6651 = vunpack.c.l.b16 %v6614
    %v6652 = vunpack.c.l.b16 %v6615
    %v6653 = vunpack.c.l.b16 %v6616
    %v6654 = vunpack.c.l.b16 %v6617
    %v6655 = vunpack.c.l.b16 %v6618
    %v6656 = vunpack.c.l.b16 %v6619
    %v6657 = vunpack.c.l.b16 %v6620
    %v6658 = vunpack.c.l.b16 %v6621
    %v6659 = vunpack.c.l.b16 %v6622
    %v6660 = vpack.c.b16 %v6645, %v6644
    %v6661 = vpack.c.b16 %v6647, %v6646
    %v6662 = vpack.c.b16 %v6649, %v6648
    %v6663 = vpack.c.b16 %v6651, %v6650
    %v6664 = vpack.c.b16 %v6653, %v6652
    %v6665 = vpack.c.b16 %v6655, %v6654
    %v6666 = vpack.c.b16 %v6657, %v6656
    %v6667 = vpack.c.b16 %v6659, %v6658
    %6676 = vmatpush.bf16.msra.mxu0 %v6667
    %6677 = vmatpush.bf16.msra.mxu0 %v6666
    %6678 = vmatpush.bf16.msra.mxu0 %v6665
    %6679 = vmatpush.bf16.msra.mxu0 %v6664
    %6680 = vmatpush.bf16.msra.mxu0 %v6663
    %6681 = vmatpush.bf16.msra.mxu0 %v6662
    %6682 = vmatpush.bf16.msra.mxu0 %v6661
    %6683 = vmatpush.bf16.msra.mxu0 %v6660
    %6684 = vmatmul.bf16.gmra.mxu0 %v6602
    %v6685 = vpop.f32.mrf.mxu0
    %v6686 = vadd.f32 %v6626, %v6685
    %v6687 = vpop.f32.mrf.mxu0
    %v6688 = vadd.f32 %v6626, %v6687
    %6689 = vmatmul.bf16.gmra.mxu0 %v6603
    %v6690 = vpop.f32.mrf.mxu0
    %v6691 = vadd.f32 %v6626, %v6690
    %v6692 = vpop.f32.mrf.mxu0
    %v6693 = vadd.f32 %v6626, %v6692
    %6694 = vmatmul.bf16.gmra.mxu0 %v6604
    %v6695 = vpop.f32.mrf.mxu0
    %v6696 = vadd.f32 %v6626, %v6695
    %v6697 = vpop.f32.mrf.mxu0
    %v6698 = vadd.f32 %v6626, %v6697
    %6699 = vmatmul.bf16.gmra.mxu0 %v6605
    %v6700 = vpop.f32.mrf.mxu0
    %v6701 = vadd.f32 %v6626, %v6700
    %v6702 = vpop.f32.mrf.mxu0
    %v6703 = vadd.f32 %v6626, %v6702
    %6704 = vdwg.mxu0
    %v6705 = vadd.f32 %v4309, %v6686
    %v6706 = vadd.f32 %v4310, %v6688
    %v6707 = vadd.f32 %v4311, %v6691
    %v6708 = vadd.f32 %v4312, %v6693
    %v6709 = vadd.f32 %v4313, %v6696
    %v6710 = vadd.f32 %v4314, %v6698
    %v6711 = vadd.f32 %v4315, %v6701
    %v6712 = vadd.f32 %v4316, %v6703
    %s6713 = scalar_lea.vmem %s11, 1
    %v6714 = vld [vmem:[%s6713] sm:$0x1]
    %s6715 = scalar_lea.vmem %s12, 1
    %v6716 = vld [vmem:[%s6715] sm:$0x1]
    %6717 = vadd.xlane.f32.xlu0 %v6705
    %v6718 = vpop.xlane.xlu0 %6717
    %6719 = vadd.xlane.f32.xlu0 %v6706
    %v6720 = vpop.xlane.xlu0 %6719
    %6721 = vadd.xlane.f32.xlu0 %v6707
    %v6722 = vpop.xlane.xlu0 %6721
    %6723 = vadd.xlane.f32.xlu0 %v6708
    %v6724 = vpop.xlane.xlu0 %6723
    %6725 = vadd.xlane.f32.xlu0 %v6709
    %v6726 = vpop.xlane.xlu0 %6725
    %6727 = vadd.xlane.f32.xlu0 %v6710
    %v6728 = vpop.xlane.xlu0 %6727
    %6729 = vadd.xlane.f32.xlu0 %v6711
    %v6730 = vpop.xlane.xlu0 %6729
    %6731 = vadd.xlane.f32.xlu0 %v6712
    %v6732 = vpop.xlane.xlu0 %6731
    %v6733 = vmul.f32 %v6718, %v344
    %v6734 = vmul.f32 %v6720, %v344
    %v6735 = vmul.f32 %v6722, %v344
    %v6736 = vmul.f32 %v6724, %v344
    %v6737 = vmul.f32 %v6726, %v344
    %v6738 = vmul.f32 %v6728, %v344
    %v6739 = vmul.f32 %v6730, %v344
    %v6740 = vmul.f32 %v6732, %v344
    %v6741 = vsub.f32 %v6705, %v6733
    %v6742 = vsub.f32 %v6706, %v6734
    %v6743 = vsub.f32 %v6707, %v6735
    %v6744 = vsub.f32 %v6708, %v6736
    %v6745 = vsub.f32 %v6709, %v6737
    %v6746 = vsub.f32 %v6710, %v6738
    %v6747 = vsub.f32 %v6711, %v6739
    %v6748 = vsub.f32 %v6712, %v6740
    %v6749 = vmul.f32 %v6741, %v6741
    %v6750 = vmul.f32 %v6742, %v6742
    %v6751 = vmul.f32 %v6743, %v6743
    %v6752 = vmul.f32 %v6744, %v6744
    %v6753 = vmul.f32 %v6745, %v6745
    %v6754 = vmul.f32 %v6746, %v6746
    %v6755 = vmul.f32 %v6747, %v6747
    %v6756 = vmul.f32 %v6748, %v6748
    %6757 = vadd.xlane.f32.xlu0 %v6749
    %v6758 = vpop.xlane.xlu0 %6757
    %6759 = vadd.xlane.f32.xlu0 %v6750
    %v6760 = vpop.xlane.xlu0 %6759
    %6761 = vadd.xlane.f32.xlu0 %v6751
    %v6762 = vpop.xlane.xlu0 %6761
    %6763 = vadd.xlane.f32.xlu0 %v6752
    %v6764 = vpop.xlane.xlu0 %6763
    %6765 = vadd.xlane.f32.xlu0 %v6753
    %v6766 = vpop.xlane.xlu0 %6765
    %6767 = vadd.xlane.f32.xlu0 %v6754
    %v6768 = vpop.xlane.xlu0 %6767
    %6769 = vadd.xlane.f32.xlu0 %v6755
    %v6770 = vpop.xlane.xlu0 %6769
    %6771 = vadd.xlane.f32.xlu0 %v6756
    %v6772 = vpop.xlane.xlu0 %6771
    %v6773 = vmul.f32 %v6758, %v344
    %v6774 = vmul.f32 %v6760, %v344
    %v6775 = vmul.f32 %v6762, %v344
    %v6776 = vmul.f32 %v6764, %v344
    %v6777 = vmul.f32 %v6766, %v344
    %v6778 = vmul.f32 %v6768, %v344
    %v6779 = vmul.f32 %v6770, %v344
    %v6780 = vmul.f32 %v6772, %v344
    %v6781 = vadd.f32 %v6773, 1e-12
    %v6782 = vadd.f32 %v6774, 1e-12
    %v6783 = vadd.f32 %v6775, 1e-12
    %v6784 = vadd.f32 %v6776, 1e-12
    %v6785 = vadd.f32 %v6777, 1e-12
    %v6786 = vadd.f32 %v6778, 1e-12
    %v6787 = vadd.f32 %v6779, 1e-12
    %v6788 = vadd.f32 %v6780, 1e-12
    %v6789 = vrsqrt.pop %v6781
    %v6790 = vmul.f32 %v6789, %v6781
    %v6791 = vmul.f32 %v6790, %v6789
    %v6792 = vmul.f32 0.5, %v6791
    %v6793 = vsub.f32 1.5, %v6792
    %v6794 = vmul.f32 %v6789, %v6793
    %vm6795 = vweird.f32 %v6781
    %vm6796 = vweird.f32 %v6789
    %vm6797 = vmor %vm6795, %vm6796
    %v6798 = vsel %vm6797, %v6789, %v6794
    %v6799 = vrsqrt.pop %v6782
    %v6800 = vmul.f32 %v6799, %v6782
    %v6801 = vmul.f32 %v6800, %v6799
    %v6802 = vmul.f32 0.5, %v6801
    %v6803 = vsub.f32 1.5, %v6802
    %v6804 = vmul.f32 %v6799, %v6803
    %vm6805 = vweird.f32 %v6782
    %vm6806 = vweird.f32 %v6799
    %vm6807 = vmor %vm6805, %vm6806
    %v6808 = vsel %vm6807, %v6799, %v6804
    %v6809 = vrsqrt.pop %v6783
    %v6810 = vmul.f32 %v6809, %v6783
    %v6811 = vmul.f32 %v6810, %v6809
    %v6812 = vmul.f32 0.5, %v6811
    %v6813 = vsub.f32 1.5, %v6812
    %v6814 = vmul.f32 %v6809, %v6813
    %vm6815 = vweird.f32 %v6783
    %vm6816 = vweird.f32 %v6809
    %vm6817 = vmor %vm6815, %vm6816
    %v6818 = vsel %vm6817, %v6809, %v6814
    %v6819 = vrsqrt.pop %v6784
    %v6820 = vmul.f32 %v6819, %v6784
    %v6821 = vmul.f32 %v6820, %v6819
    %v6822 = vmul.f32 0.5, %v6821
    %v6823 = vsub.f32 1.5, %v6822
    %v6824 = vmul.f32 %v6819, %v6823
    %vm6825 = vweird.f32 %v6784
    %vm6826 = vweird.f32 %v6819
    %vm6827 = vmor %vm6825, %vm6826
    %v6828 = vsel %vm6827, %v6819, %v6824
    %v6829 = vrsqrt.pop %v6785
    %v6830 = vmul.f32 %v6829, %v6785
    %v6831 = vmul.f32 %v6830, %v6829
    %v6832 = vmul.f32 0.5, %v6831
    %v6833 = vsub.f32 1.5, %v6832
    %v6834 = vmul.f32 %v6829, %v6833
    %vm6835 = vweird.f32 %v6785
    %vm6836 = vweird.f32 %v6829
    %vm6837 = vmor %vm6835, %vm6836
    %v6838 = vsel %vm6837, %v6829, %v6834
    %v6839 = vrsqrt.pop %v6786
    %v6840 = vmul.f32 %v6839, %v6786
    %v6841 = vmul.f32 %v6840, %v6839
    %v6842 = vmul.f32 0.5, %v6841
    %v6843 = vsub.f32 1.5, %v6842
    %v6844 = vmul.f32 %v6839, %v6843
    %vm6845 = vweird.f32 %v6786
    %vm6846 = vweird.f32 %v6839
    %vm6847 = vmor %vm6845, %vm6846
    %v6848 = vsel %vm6847, %v6839, %v6844
    %v6849 = vrsqrt.pop %v6787
    %v6850 = vmul.f32 %v6849, %v6787
    %v6851 = vmul.f32 %v6850, %v6849
    %v6852 = vmul.f32 0.5, %v6851
    %v6853 = vsub.f32 1.5, %v6852
    %v6854 = vmul.f32 %v6849, %v6853
    %vm6855 = vweird.f32 %v6787
    %vm6856 = vweird.f32 %v6849
    %vm6857 = vmor %vm6855, %vm6856
    %v6858 = vsel %vm6857, %v6849, %v6854
    %v6859 = vrsqrt.pop %v6788
    %v6860 = vmul.f32 %v6859, %v6788
    %v6861 = vmul.f32 %v6860, %v6859
    %v6862 = vmul.f32 0.5, %v6861
    %v6863 = vsub.f32 1.5, %v6862
    %v6864 = vmul.f32 %v6859, %v6863
    %vm6865 = vweird.f32 %v6788
    %vm6866 = vweird.f32 %v6859
    %vm6867 = vmor %vm6865, %vm6866
    %v6868 = vsel %vm6867, %v6859, %v6864
    %v6869 = vmul.f32 %v6741, %v6798
    %v6870 = vmul.f32 %v6742, %v6808
    %v6871 = vmul.f32 %v6743, %v6818
    %v6872 = vmul.f32 %v6744, %v6828
    %v6873 = vmul.f32 %v6745, %v6838
    %v6874 = vmul.f32 %v6746, %v6848
    %v6875 = vmul.f32 %v6747, %v6858
    %v6876 = vmul.f32 %v6748, %v6868
    %v6878 = vperm.slane %v6714, 0
    %v6880 = vmul.f32 %v6869, %v6878
    %v6881 = vmul.f32 %v6870, %v6878
    %v6882 = vmul.f32 %v6871, %v6878
    %v6883 = vmul.f32 %v6872, %v6878
    %v6884 = vmul.f32 %v6873, %v6878
    %v6885 = vmul.f32 %v6874, %v6878
    %v6886 = vmul.f32 %v6875, %v6878
    %v6887 = vmul.f32 %v6876, %v6878
    %v6889 = vperm.slane %v6716, 0
    %v6891 = vadd.f32 %v6880, %v6889
    %v6892 = vadd.f32 %v6881, %v6889
    %v6893 = vadd.f32 %v6882, %v6889
    %v6894 = vadd.f32 %v6883, %v6889
    %v6895 = vadd.f32 %v6884, %v6889
    %v6896 = vadd.f32 %v6885, %v6889
    %v6897 = vadd.f32 %v6886, %v6889
    %v6898 = vadd.f32 %v6887, %v6889
    %v6899 = vpack.c.bf16 %v6892, %v6891
    %v6900 = vpack.c.bf16 %v6894, %v6893
    %v6901 = vpack.c.bf16 %v6896, %v6895
    %v6902 = vpack.c.bf16 %v6898, %v6897
    %s6903 = scalar_lea.vmem [#allocation9], 256
    %v6904 = vld [vmem:[%s6903] sm:$0xff]
    %v6905 = vld [vmem:[%s6903 + $0x8] sm:$0xff]
    %v6906 = vld [vmem:[%s6903 + $0x10] sm:$0xff]
    %v6907 = vld [vmem:[%s6903 + $0x18] sm:$0xff]
    %v6908 = vld [vmem:[%s6903 + $0x20] sm:$0xff]
    %v6909 = vld [vmem:[%s6903 + $0x28] sm:$0xff]
    %v6910 = vld [vmem:[%s6903 + $0x30] sm:$0xff]
    %v6911 = vld [vmem:[%s6903 + $0x38] sm:$0xff]
    %v6912 = vld [vmem:[%s6903 + $0x40] sm:$0xff]
    %v6913 = vld [vmem:[%s6903 + $0x48] sm:$0xff]
    %v6914 = vld [vmem:[%s6903 + $0x50] sm:$0xff]
    %v6915 = vld [vmem:[%s6903 + $0x58] sm:$0xff]
    %v6916 = vld [vmem:[%s6903 + $0x60] sm:$0xff]
    %v6917 = vld [vmem:[%s6903 + $0x68] sm:$0xff]
    %v6918 = vld [vmem:[%s6903 + $0x70] sm:$0xff]
    %v6919 = vld [vmem:[%s6903 + $0x78] sm:$0xff]
    %v6920 = vld [vmem:[%s6903 + $0x80] sm:$0xff]
    %v6921 = vld [vmem:[%s6903 + $0x88] sm:$0xff]
    %v6922 = vld [vmem:[%s6903 + $0x90] sm:$0xff]
    %v6923 = vld [vmem:[%s6903 + $0x98] sm:$0xff]
    %v6924 = vld [vmem:[%s6903 + $0xa0] sm:$0xff]
    %v6925 = vld [vmem:[%s6903 + $0xa8] sm:$0xff]
    %v6926 = vld [vmem:[%s6903 + $0xb0] sm:$0xff]
    %v6927 = vld [vmem:[%s6903 + $0xb8] sm:$0xff]
    %v6928 = vld [vmem:[%s6903 + $0xc0] sm:$0xff]
    %v6929 = vld [vmem:[%s6903 + $0xc8] sm:$0xff]
    %v6930 = vld [vmem:[%s6903 + $0xd0] sm:$0xff]
    %v6931 = vld [vmem:[%s6903 + $0xd8] sm:$0xff]
    %v6932 = vld [vmem:[%s6903 + $0xe0] sm:$0xff]
    %v6933 = vld [vmem:[%s6903 + $0xe8] sm:$0xff]
    %v6934 = vld [vmem:[%s6903 + $0xf0] sm:$0xff]
    %v6935 = vld [vmem:[%s6903 + $0xf8] sm:$0xff]
    %s6936 = scalar_lea.vmem %s14, 4
    %v6937 = vld [vmem:[%s6936] sm:$0xf]
    %v6939 = vperm.slane %v6937, 0
    %v6940 = vperm.slane %v6937, 1
    %v6941 = vperm.slane %v6937, 2
    %v6942 = vperm.slane %v6937, 3
    %v6979 = vunpack.c.l.b16 %v6904
    %v6980 = vunpack.c.h.b16 %v6904
    %v6981 = vunpack.c.l.b16 %v6905
    %v6982 = vunpack.c.h.b16 %v6905
    %v6983 = vunpack.c.l.b16 %v6906
    %v6984 = vunpack.c.h.b16 %v6906
    %v6985 = vunpack.c.l.b16 %v6907
    %v6986 = vunpack.c.h.b16 %v6907
    %v6987 = vunpack.c.l.b16 %v6908
    %v6988 = vunpack.c.h.b16 %v6908
    %v6989 = vunpack.c.l.b16 %v6909
    %v6990 = vunpack.c.h.b16 %v6909
    %v6991 = vunpack.c.l.b16 %v6910
    %v6992 = vunpack.c.h.b16 %v6910
    %v6993 = vunpack.c.l.b16 %v6911
    %v6994 = vunpack.c.h.b16 %v6911
    %v6995 = vunpack.c.l.b16 %v6912
    %v6996 = vunpack.c.h.b16 %v6912
    %v6997 = vunpack.c.l.b16 %v6913
    %v6998 = vunpack.c.h.b16 %v6913
    %v6999 = vunpack.c.l.b16 %v6914
    %v7000 = vunpack.c.h.b16 %v6914
    %v7001 = vunpack.c.l.b16 %v6915
    %v7002 = vunpack.c.h.b16 %v6915
    %v7003 = vunpack.c.l.b16 %v6916
    %v7004 = vunpack.c.h.b16 %v6916
    %v7005 = vunpack.c.l.b16 %v6917
    %v7006 = vunpack.c.h.b16 %v6917
    %v7007 = vunpack.c.l.b16 %v6918
    %v7008 = vunpack.c.h.b16 %v6918
    %v7009 = vunpack.c.l.b16 %v6919
    %v7010 = vunpack.c.h.b16 %v6919
    %v7011 = vunpack.c.l.b16 %v6920
    %v7012 = vunpack.c.h.b16 %v6920
    %v7013 = vunpack.c.l.b16 %v6921
    %v7014 = vunpack.c.h.b16 %v6921
    %v7015 = vunpack.c.l.b16 %v6922
    %v7016 = vunpack.c.h.b16 %v6922
    %v7017 = vunpack.c.l.b16 %v6923
    %v7018 = vunpack.c.h.b16 %v6923
    %v7019 = vunpack.c.l.b16 %v6924
    %v7020 = vunpack.c.h.b16 %v6924
    %v7021 = vunpack.c.l.b16 %v6925
    %v7022 = vunpack.c.h.b16 %v6925
    %v7023 = vunpack.c.l.b16 %v6926
    %v7024 = vunpack.c.h.b16 %v6926
    %v7025 = vunpack.c.l.b16 %v6927
    %v7026 = vunpack.c.h.b16 %v6927
    %v7027 = vunpack.c.l.b16 %v6928
    %v7028 = vunpack.c.h.b16 %v6928
    %v7029 = vunpack.c.l.b16 %v6929
    %v7030 = vunpack.c.h.b16 %v6929
    %v7031 = vunpack.c.l.b16 %v6930
    %v7032 = vunpack.c.h.b16 %v6930
    %v7033 = vunpack.c.l.b16 %v6931
    %v7034 = vunpack.c.h.b16 %v6931
    %v7035 = vunpack.c.l.b16 %v6932
    %v7036 = vunpack.c.h.b16 %v6932
    %v7037 = vunpack.c.l.b16 %v6933
    %v7038 = vunpack.c.h.b16 %v6933
    %v7039 = vunpack.c.l.b16 %v6934
    %v7040 = vunpack.c.h.b16 %v6934
    %v7041 = vunpack.c.l.b16 %v6935
    %v7042 = vunpack.c.h.b16 %v6935
    %v7043 = vpack.c.b16 %v6983, %v6979
    %v7044 = vpack.c.b16 %v6984, %v6980
    %v7045 = vpack.c.b16 %v6985, %v6981
    %v7046 = vpack.c.b16 %v6986, %v6982
    %v7047 = vpack.c.b16 %v6991, %v6987
    %v7048 = vpack.c.b16 %v6992, %v6988
    %v7049 = vpack.c.b16 %v6993, %v6989
    %v7050 = vpack.c.b16 %v6994, %v6990
    %v7051 = vpack.c.b16 %v6999, %v6995
    %v7052 = vpack.c.b16 %v7000, %v6996
    %v7053 = vpack.c.b16 %v7001, %v6997
    %v7054 = vpack.c.b16 %v7002, %v6998
    %v7055 = vpack.c.b16 %v7007, %v7003
    %v7056 = vpack.c.b16 %v7008, %v7004
    %v7057 = vpack.c.b16 %v7009, %v7005
    %v7058 = vpack.c.b16 %v7010, %v7006
    %v7059 = vpack.c.b16 %v7015, %v7011
    %v7060 = vpack.c.b16 %v7016, %v7012
    %v7061 = vpack.c.b16 %v7017, %v7013
    %v7062 = vpack.c.b16 %v7018, %v7014
    %v7063 = vpack.c.b16 %v7023, %v7019
    %v7064 = vpack.c.b16 %v7024, %v7020
    %v7065 = vpack.c.b16 %v7025, %v7021
    %v7066 = vpack.c.b16 %v7026, %v7022
    %v7067 = vpack.c.b16 %v7031, %v7027
    %v7068 = vpack.c.b16 %v7032, %v7028
    %v7069 = vpack.c.b16 %v7033, %v7029
    %v7070 = vpack.c.b16 %v7034, %v7030
    %v7071 = vpack.c.b16 %v7039, %v7035
    %v7072 = vpack.c.b16 %v7040, %v7036
    %v7073 = vpack.c.b16 %v7041, %v7037
    %v7074 = vpack.c.b16 %v7042, %v7038
    %7107 = vmatpush.bf16.msra.mxu0 %v7071
    %7108 = vmatpush.bf16.msra.mxu0 %v7067
    %7109 = vmatpush.bf16.msra.mxu0 %v7063
    %7110 = vmatpush.bf16.msra.mxu0 %v7059
    %7111 = vmatpush.bf16.msra.mxu0 %v7055
    %7112 = vmatpush.bf16.msra.mxu0 %v7051
    %7113 = vmatpush.bf16.msra.mxu0 %v7047
    %7114 = vmatpush.bf16.msra.mxu0 %v7043
    %7115 = vmatmul.bf16.gmra.mxu0 %v6899
    %v7116 = vpop.f32.mrf.mxu0
    %v7117 = vadd.f32 %v6939, %v7116
    %v7118 = vpop.f32.mrf.mxu0
    %v7119 = vadd.f32 %v6939, %v7118
    %7120 = vmatmul.bf16.gmra.mxu0 %v6900
    %v7121 = vpop.f32.mrf.mxu0
    %v7122 = vadd.f32 %v6939, %v7121
    %v7123 = vpop.f32.mrf.mxu0
    %v7124 = vadd.f32 %v6939, %v7123
    %7125 = vmatmul.bf16.gmra.mxu0 %v6901
    %v7126 = vpop.f32.mrf.mxu0
    %v7127 = vadd.f32 %v6939, %v7126
    %v7128 = vpop.f32.mrf.mxu0
    %v7129 = vadd.f32 %v6939, %v7128
    %7130 = vmatmul.bf16.gmra.mxu0 %v6902
    %v7131 = vpop.f32.mrf.mxu0
    %v7132 = vadd.f32 %v6939, %v7131
    %v7133 = vpop.f32.mrf.mxu0
    %v7134 = vadd.f32 %v6939, %v7133
    %7135 = vdwg.mxu0
    %7136 = vmatpush.bf16.msra.mxu0 %v7072
    %7137 = vmatpush.bf16.msra.mxu0 %v7068
    %7138 = vmatpush.bf16.msra.mxu0 %v7064
    %7139 = vmatpush.bf16.msra.mxu0 %v7060
    %7140 = vmatpush.bf16.msra.mxu0 %v7056
    %7141 = vmatpush.bf16.msra.mxu0 %v7052
    %7142 = vmatpush.bf16.msra.mxu0 %v7048
    %7143 = vmatpush.bf16.msra.mxu0 %v7044
    %7144 = vmatmul.bf16.gmra.mxu0 %v6899
    %v7145 = vpop.f32.mrf.mxu0
    %v7146 = vadd.f32 %v6940, %v7145
    %v7147 = vpop.f32.mrf.mxu0
    %v7148 = vadd.f32 %v6940, %v7147
    %7149 = vmatmul.bf16.gmra.mxu0 %v6900
    %v7150 = vpop.f32.mrf.mxu0
    %v7151 = vadd.f32 %v6940, %v7150
    %v7152 = vpop.f32.mrf.mxu0
    %v7153 = vadd.f32 %v6940, %v7152
    %7154 = vmatmul.bf16.gmra.mxu0 %v6901
    %v7155 = vpop.f32.mrf.mxu0
    %v7156 = vadd.f32 %v6940, %v7155
    %v7157 = vpop.f32.mrf.mxu0
    %v7158 = vadd.f32 %v6940, %v7157
    %7159 = vmatmul.bf16.gmra.mxu0 %v6902
    %v7160 = vpop.f32.mrf.mxu0
    %v7161 = vadd.f32 %v6940, %v7160
    %v7162 = vpop.f32.mrf.mxu0
    %v7163 = vadd.f32 %v6940, %v7162
    %7164 = vdwg.mxu0
    %7165 = vmatpush.bf16.msra.mxu0 %v7073
    %7166 = vmatpush.bf16.msra.mxu0 %v7069
    %7167 = vmatpush.bf16.msra.mxu0 %v7065
    %7168 = vmatpush.bf16.msra.mxu0 %v7061
    %7169 = vmatpush.bf16.msra.mxu0 %v7057
    %7170 = vmatpush.bf16.msra.mxu0 %v7053
    %7171 = vmatpush.bf16.msra.mxu0 %v7049
    %7172 = vmatpush.bf16.msra.mxu0 %v7045
    %7173 = vmatmul.bf16.gmra.mxu0 %v6899
    %v7174 = vpop.f32.mrf.mxu0
    %v7175 = vadd.f32 %v6941, %v7174
    %v7176 = vpop.f32.mrf.mxu0
    %v7177 = vadd.f32 %v6941, %v7176
    %7178 = vmatmul.bf16.gmra.mxu0 %v6900
    %v7179 = vpop.f32.mrf.mxu0
    %v7180 = vadd.f32 %v6941, %v7179
    %v7181 = vpop.f32.mrf.mxu0
    %v7182 = vadd.f32 %v6941, %v7181
    %7183 = vmatmul.bf16.gmra.mxu0 %v6901
    %v7184 = vpop.f32.mrf.mxu0
    %v7185 = vadd.f32 %v6941, %v7184
    %v7186 = vpop.f32.mrf.mxu0
    %v7187 = vadd.f32 %v6941, %v7186
    %7188 = vmatmul.bf16.gmra.mxu0 %v6902
    %v7189 = vpop.f32.mrf.mxu0
    %v7190 = vadd.f32 %v6941, %v7189
    %v7191 = vpop.f32.mrf.mxu0
    %v7192 = vadd.f32 %v6941, %v7191
    %7193 = vdwg.mxu0
    %7194 = vmatpush.bf16.msra.mxu0 %v7074
    %7195 = vmatpush.bf16.msra.mxu0 %v7070
    %7196 = vmatpush.bf16.msra.mxu0 %v7066
    %7197 = vmatpush.bf16.msra.mxu0 %v7062
    %7198 = vmatpush.bf16.msra.mxu0 %v7058
    %7199 = vmatpush.bf16.msra.mxu0 %v7054
    %7200 = vmatpush.bf16.msra.mxu0 %v7050
    %7201 = vmatpush.bf16.msra.mxu0 %v7046
    %7202 = vmatmul.bf16.gmra.mxu0 %v6899
    %v7203 = vpop.f32.mrf.mxu0
    %v7204 = vadd.f32 %v6942, %v7203
    %v7205 = vpop.f32.mrf.mxu0
    %v7206 = vadd.f32 %v6942, %v7205
    %7207 = vmatmul.bf16.gmra.mxu0 %v6900
    %v7208 = vpop.f32.mrf.mxu0
    %v7209 = vadd.f32 %v6942, %v7208
    %v7210 = vpop.f32.mrf.mxu0
    %v7211 = vadd.f32 %v6942, %v7210
    %7212 = vmatmul.bf16.gmra.mxu0 %v6901
    %v7213 = vpop.f32.mrf.mxu0
    %v7214 = vadd.f32 %v6942, %v7213
    %v7215 = vpop.f32.mrf.mxu0
    %v7216 = vadd.f32 %v6942, %v7215
    %7217 = vmatmul.bf16.gmra.mxu0 %v6902
    %v7218 = vpop.f32.mrf.mxu0
    %v7219 = vadd.f32 %v6942, %v7218
    %v7220 = vpop.f32.mrf.mxu0
    %v7221 = vadd.f32 %v6942, %v7220
    %7222 = vdwg.mxu0
    %v7223 = vmul.f32 %v7117, %v7117
    %v7224 = vmul.f32 %v7146, %v7146
    %v7225 = vmul.f32 %v7175, %v7175
    %v7226 = vmul.f32 %v7204, %v7204
    %v7227 = vmul.f32 %v7119, %v7119
    %v7228 = vmul.f32 %v7148, %v7148
    %v7229 = vmul.f32 %v7177, %v7177
    %v7230 = vmul.f32 %v7206, %v7206
    %v7231 = vmul.f32 %v7122, %v7122
    %v7232 = vmul.f32 %v7151, %v7151
    %v7233 = vmul.f32 %v7180, %v7180
    %v7234 = vmul.f32 %v7209, %v7209
    %v7235 = vmul.f32 %v7124, %v7124
    %v7236 = vmul.f32 %v7153, %v7153
    %v7237 = vmul.f32 %v7182, %v7182
    %v7238 = vmul.f32 %v7211, %v7211
    %v7239 = vmul.f32 %v7127, %v7127
    %v7240 = vmul.f32 %v7156, %v7156
    %v7241 = vmul.f32 %v7185, %v7185
    %v7242 = vmul.f32 %v7214, %v7214
    %v7243 = vmul.f32 %v7129, %v7129
    %v7244 = vmul.f32 %v7158, %v7158
    %v7245 = vmul.f32 %v7187, %v7187
    %v7246 = vmul.f32 %v7216, %v7216
    %v7247 = vmul.f32 %v7132, %v7132
    %v7248 = vmul.f32 %v7161, %v7161
    %v7249 = vmul.f32 %v7190, %v7190
    %v7250 = vmul.f32 %v7219, %v7219
    %v7251 = vmul.f32 %v7134, %v7134
    %v7252 = vmul.f32 %v7163, %v7163
    %v7253 = vmul.f32 %v7192, %v7192
    %v7254 = vmul.f32 %v7221, %v7221
    %v7255 = vmul.f32 %v7117, %v7223
    %v7256 = vmul.f32 %v7146, %v7224
    %v7257 = vmul.f32 %v7175, %v7225
    %v7258 = vmul.f32 %v7204, %v7226
    %v7259 = vmul.f32 %v7119, %v7227
    %v7260 = vmul.f32 %v7148, %v7228
    %v7261 = vmul.f32 %v7177, %v7229
    %v7262 = vmul.f32 %v7206, %v7230
    %v7263 = vmul.f32 %v7122, %v7231
    %v7264 = vmul.f32 %v7151, %v7232
    %v7265 = vmul.f32 %v7180, %v7233
    %v7266 = vmul.f32 %v7209, %v7234
    %v7267 = vmul.f32 %v7124, %v7235
    %v7268 = vmul.f32 %v7153, %v7236
    %v7269 = vmul.f32 %v7182, %v7237
    %v7270 = vmul.f32 %v7211, %v7238
    %v7271 = vmul.f32 %v7127, %v7239
    %v7272 = vmul.f32 %v7156, %v7240
    %v7273 = vmul.f32 %v7185, %v7241
    %v7274 = vmul.f32 %v7214, %v7242
    %v7275 = vmul.f32 %v7129, %v7243
    %v7276 = vmul.f32 %v7158, %v7244
    %v7277 = vmul.f32 %v7187, %v7245
    %v7278 = vmul.f32 %v7216, %v7246
    %v7279 = vmul.f32 %v7132, %v7247
    %v7280 = vmul.f32 %v7161, %v7248
    %v7281 = vmul.f32 %v7190, %v7249
    %v7282 = vmul.f32 %v7219, %v7250
    %v7283 = vmul.f32 %v7134, %v7251
    %v7284 = vmul.f32 %v7163, %v7252
    %v7285 = vmul.f32 %v7192, %v7253
    %v7286 = vmul.f32 %v7221, %v7254
    %v7287 = vmul.f32 %v7255, 0.044715
    %v7288 = vmul.f32 %v7256, 0.044715
    %v7289 = vmul.f32 %v7257, 0.044715
    %v7290 = vmul.f32 %v7258, 0.044715
    %v7291 = vmul.f32 %v7259, 0.044715
    %v7292 = vmul.f32 %v7260, 0.044715
    %v7293 = vmul.f32 %v7261, 0.044715
    %v7294 = vmul.f32 %v7262, 0.044715
    %v7295 = vmul.f32 %v7263, 0.044715
    %v7296 = vmul.f32 %v7264, 0.044715
    %v7297 = vmul.f32 %v7265, 0.044715
    %v7298 = vmul.f32 %v7266, 0.044715
    %v7299 = vmul.f32 %v7267, 0.044715
    %v7300 = vmul.f32 %v7268, 0.044715
    %v7301 = vmul.f32 %v7269, 0.044715
    %v7302 = vmul.f32 %v7270, 0.044715
    %v7303 = vmul.f32 %v7271, 0.044715
    %v7304 = vmul.f32 %v7272, 0.044715
    %v7305 = vmul.f32 %v7273, 0.044715
    %v7306 = vmul.f32 %v7274, 0.044715
    %v7307 = vmul.f32 %v7275, 0.044715
    %v7308 = vmul.f32 %v7276, 0.044715
    %v7309 = vmul.f32 %v7277, 0.044715
    %v7310 = vmul.f32 %v7278, 0.044715
    %v7311 = vmul.f32 %v7279, 0.044715
    %v7312 = vmul.f32 %v7280, 0.044715
    %v7313 = vmul.f32 %v7281, 0.044715
    %v7314 = vmul.f32 %v7282, 0.044715
    %v7315 = vmul.f32 %v7283, 0.044715
    %v7316 = vmul.f32 %v7284, 0.044715
    %v7317 = vmul.f32 %v7285, 0.044715
    %v7318 = vmul.f32 %v7286, 0.044715
    %v7319 = vadd.f32 %v7117, %v7287
    %v7320 = vadd.f32 %v7146, %v7288
    %v7321 = vadd.f32 %v7175, %v7289
    %v7322 = vadd.f32 %v7204, %v7290
    %v7323 = vadd.f32 %v7119, %v7291
    %v7324 = vadd.f32 %v7148, %v7292
    %v7325 = vadd.f32 %v7177, %v7293
    %v7326 = vadd.f32 %v7206, %v7294
    %v7327 = vadd.f32 %v7122, %v7295
    %v7328 = vadd.f32 %v7151, %v7296
    %v7329 = vadd.f32 %v7180, %v7297
    %v7330 = vadd.f32 %v7209, %v7298
    %v7331 = vadd.f32 %v7124, %v7299
    %v7332 = vadd.f32 %v7153, %v7300
    %v7333 = vadd.f32 %v7182, %v7301
    %v7334 = vadd.f32 %v7211, %v7302
    %v7335 = vadd.f32 %v7127, %v7303
    %v7336 = vadd.f32 %v7156, %v7304
    %v7337 = vadd.f32 %v7185, %v7305
    %v7338 = vadd.f32 %v7214, %v7306
    %v7339 = vadd.f32 %v7129, %v7307
    %v7340 = vadd.f32 %v7158, %v7308
    %v7341 = vadd.f32 %v7187, %v7309
    %v7342 = vadd.f32 %v7216, %v7310
    %v7343 = vadd.f32 %v7132, %v7311
    %v7344 = vadd.f32 %v7161, %v7312
    %v7345 = vadd.f32 %v7190, %v7313
    %v7346 = vadd.f32 %v7219, %v7314
    %v7347 = vadd.f32 %v7134, %v7315
    %v7348 = vadd.f32 %v7163, %v7316
    %v7349 = vadd.f32 %v7192, %v7317
    %v7350 = vadd.f32 %v7221, %v7318
    %v7351 = vmul.f32 %v7319, 0.7978846
    %v7352 = vmul.f32 %v7320, 0.7978846
    %v7353 = vmul.f32 %v7321, 0.7978846
    %v7354 = vmul.f32 %v7322, 0.7978846
    %v7355 = vmul.f32 %v7323, 0.7978846
    %v7356 = vmul.f32 %v7324, 0.7978846
    %v7357 = vmul.f32 %v7325, 0.7978846
    %v7358 = vmul.f32 %v7326, 0.7978846
    %v7359 = vmul.f32 %v7327, 0.7978846
    %v7360 = vmul.f32 %v7328, 0.7978846
    %v7361 = vmul.f32 %v7329, 0.7978846
    %v7362 = vmul.f32 %v7330, 0.7978846
    %v7363 = vmul.f32 %v7331, 0.7978846
    %v7364 = vmul.f32 %v7332, 0.7978846
    %v7365 = vmul.f32 %v7333, 0.7978846
    %v7366 = vmul.f32 %v7334, 0.7978846
    %v7367 = vmul.f32 %v7335, 0.7978846
    %v7368 = vmul.f32 %v7336, 0.7978846
    %v7369 = vmul.f32 %v7337, 0.7978846
    %v7370 = vmul.f32 %v7338, 0.7978846
    %v7371 = vmul.f32 %v7339, 0.7978846
    %v7372 = vmul.f32 %v7340, 0.7978846
    %v7373 = vmul.f32 %v7341, 0.7978846
    %v7374 = vmul.f32 %v7342, 0.7978846
    %v7375 = vmul.f32 %v7343, 0.7978846
    %v7376 = vmul.f32 %v7344, 0.7978846
    %v7377 = vmul.f32 %v7345, 0.7978846
    %v7378 = vmul.f32 %v7346, 0.7978846
    %v7379 = vmul.f32 %v7347, 0.7978846
    %v7380 = vmul.f32 %v7348, 0.7978846
    %v7381 = vmul.f32 %v7349, 0.7978846
    %v7382 = vmul.f32 %v7350, 0.7978846
    %v7383 = vtanh.pop %v7351
    %v7384 = vtanh.pop %v7352
    %v7385 = vtanh.pop %v7353
    %v7386 = vtanh.pop %v7354
    %v7387 = vtanh.pop %v7355
    %v7388 = vtanh.pop %v7356
    %v7389 = vtanh.pop %v7357
    %v7390 = vtanh.pop %v7358
    %v7391 = vtanh.pop %v7359
    %v7392 = vtanh.pop %v7360
    %v7393 = vtanh.pop %v7361
    %v7394 = vtanh.pop %v7362
    %v7395 = vtanh.pop %v7363
    %v7396 = vtanh.pop %v7364
    %v7397 = vtanh.pop %v7365
    %v7398 = vtanh.pop %v7366
    %v7399 = vtanh.pop %v7367
    %v7400 = vtanh.pop %v7368
    %v7401 = vtanh.pop %v7369
    %v7402 = vtanh.pop %v7370
    %v7403 = vtanh.pop %v7371
    %v7404 = vtanh.pop %v7372
    %v7405 = vtanh.pop %v7373
    %v7406 = vtanh.pop %v7374
    %v7407 = vtanh.pop %v7375
    %v7408 = vtanh.pop %v7376
    %v7409 = vtanh.pop %v7377
    %v7410 = vtanh.pop %v7378
    %v7411 = vtanh.pop %v7379
    %v7412 = vtanh.pop %v7380
    %v7413 = vtanh.pop %v7381
    %v7414 = vtanh.pop %v7382
    %v7415 = vadd.f32 %v7383, 1.0
    %v7416 = vadd.f32 %v7384, 1.0
    %v7417 = vadd.f32 %v7385, 1.0
    %v7418 = vadd.f32 %v7386, 1.0
    %v7419 = vadd.f32 %v7387, 1.0
    %v7420 = vadd.f32 %v7388, 1.0
    %v7421 = vadd.f32 %v7389, 1.0
    %v7422 = vadd.f32 %v7390, 1.0
    %v7423 = vadd.f32 %v7391, 1.0
    %v7424 = vadd.f32 %v7392, 1.0
    %v7425 = vadd.f32 %v7393, 1.0
    %v7426 = vadd.f32 %v7394, 1.0
    %v7427 = vadd.f32 %v7395, 1.0
    %v7428 = vadd.f32 %v7396, 1.0
    %v7429 = vadd.f32 %v7397, 1.0
    %v7430 = vadd.f32 %v7398, 1.0
    %v7431 = vadd.f32 %v7399, 1.0
    %v7432 = vadd.f32 %v7400, 1.0
    %v7433 = vadd.f32 %v7401, 1.0
    %v7434 = vadd.f32 %v7402, 1.0
    %v7435 = vadd.f32 %v7403, 1.0
    %v7436 = vadd.f32 %v7404, 1.0
    %v7437 = vadd.f32 %v7405, 1.0
    %v7438 = vadd.f32 %v7406, 1.0
    %v7439 = vadd.f32 %v7407, 1.0
    %v7440 = vadd.f32 %v7408, 1.0
    %v7441 = vadd.f32 %v7409, 1.0
    %v7442 = vadd.f32 %v7410, 1.0
    %v7443 = vadd.f32 %v7411, 1.0
    %v7444 = vadd.f32 %v7412, 1.0
    %v7445 = vadd.f32 %v7413, 1.0
    %v7446 = vadd.f32 %v7414, 1.0
    %v7447 = vmul.f32 %v7415, 0.5
    %v7448 = vmul.f32 %v7416, 0.5
    %v7449 = vmul.f32 %v7417, 0.5
    %v7450 = vmul.f32 %v7418, 0.5
    %v7451 = vmul.f32 %v7419, 0.5
    %v7452 = vmul.f32 %v7420, 0.5
    %v7453 = vmul.f32 %v7421, 0.5
    %v7454 = vmul.f32 %v7422, 0.5
    %v7455 = vmul.f32 %v7423, 0.5
    %v7456 = vmul.f32 %v7424, 0.5
    %v7457 = vmul.f32 %v7425, 0.5
    %v7458 = vmul.f32 %v7426, 0.5
    %v7459 = vmul.f32 %v7427, 0.5
    %v7460 = vmul.f32 %v7428, 0.5
    %v7461 = vmul.f32 %v7429, 0.5
    %v7462 = vmul.f32 %v7430, 0.5
    %v7463 = vmul.f32 %v7431, 0.5
    %v7464 = vmul.f32 %v7432, 0.5
    %v7465 = vmul.f32 %v7433, 0.5
    %v7466 = vmul.f32 %v7434, 0.5
    %v7467 = vmul.f32 %v7435, 0.5
    %v7468 = vmul.f32 %v7436, 0.5
    %v7469 = vmul.f32 %v7437, 0.5
    %v7470 = vmul.f32 %v7438, 0.5
    %v7471 = vmul.f32 %v7439, 0.5
    %v7472 = vmul.f32 %v7440, 0.5
    %v7473 = vmul.f32 %v7441, 0.5
    %v7474 = vmul.f32 %v7442, 0.5
    %v7475 = vmul.f32 %v7443, 0.5
    %v7476 = vmul.f32 %v7444, 0.5
    %v7477 = vmul.f32 %v7445, 0.5
    %v7478 = vmul.f32 %v7446, 0.5
    %v7479 = vmul.f32 %v7117, %v7447
    %v7480 = vmul.f32 %v7146, %v7448
    %v7481 = vmul.f32 %v7175, %v7449
    %v7482 = vmul.f32 %v7204, %v7450
    %v7483 = vmul.f32 %v7119, %v7451
    %v7484 = vmul.f32 %v7148, %v7452
    %v7485 = vmul.f32 %v7177, %v7453
    %v7486 = vmul.f32 %v7206, %v7454
    %v7487 = vmul.f32 %v7122, %v7455
    %v7488 = vmul.f32 %v7151, %v7456
    %v7489 = vmul.f32 %v7180, %v7457
    %v7490 = vmul.f32 %v7209, %v7458
    %v7491 = vmul.f32 %v7124, %v7459
    %v7492 = vmul.f32 %v7153, %v7460
    %v7493 = vmul.f32 %v7182, %v7461
    %v7494 = vmul.f32 %v7211, %v7462
    %v7495 = vmul.f32 %v7127, %v7463
    %v7496 = vmul.f32 %v7156, %v7464
    %v7497 = vmul.f32 %v7185, %v7465
    %v7498 = vmul.f32 %v7214, %v7466
    %v7499 = vmul.f32 %v7129, %v7467
    %v7500 = vmul.f32 %v7158, %v7468
    %v7501 = vmul.f32 %v7187, %v7469
    %v7502 = vmul.f32 %v7216, %v7470
    %v7503 = vmul.f32 %v7132, %v7471
    %v7504 = vmul.f32 %v7161, %v7472
    %v7505 = vmul.f32 %v7190, %v7473
    %v7506 = vmul.f32 %v7219, %v7474
    %v7507 = vmul.f32 %v7134, %v7475
    %v7508 = vmul.f32 %v7163, %v7476
    %v7509 = vmul.f32 %v7192, %v7477
    %v7510 = vmul.f32 %v7221, %v7478
    %v7511 = vpack.c.bf16 %v7483, %v7479
    %v7512 = vpack.c.bf16 %v7484, %v7480
    %v7513 = vpack.c.bf16 %v7485, %v7481
    %v7514 = vpack.c.bf16 %v7486, %v7482
    %v7515 = vpack.c.bf16 %v7491, %v7487
    %v7516 = vpack.c.bf16 %v7492, %v7488
    %v7517 = vpack.c.bf16 %v7493, %v7489
    %v7518 = vpack.c.bf16 %v7494, %v7490
    %v7519 = vpack.c.bf16 %v7499, %v7495
    %v7520 = vpack.c.bf16 %v7500, %v7496
    %v7521 = vpack.c.bf16 %v7501, %v7497
    %v7522 = vpack.c.bf16 %v7502, %v7498
    %v7523 = vpack.c.bf16 %v7507, %v7503
    %v7524 = vpack.c.bf16 %v7508, %v7504
    %v7525 = vpack.c.bf16 %v7509, %v7505
    %v7526 = vpack.c.bf16 %v7510, %v7506
    %s7527 = scalar_lea.vmem [#allocation11], 256
    %v7528 = vld [vmem:[%s7527] sm:$0xf]
    %v7529 = vld [vmem:[%s7527 + $0x4] sm:$0xf]
    %v7530 = vld [vmem:[%s7527 + $0x8] sm:$0xf]
    %v7531 = vld [vmem:[%s7527 + $0xc] sm:$0xf]
    %v7532 = vld [vmem:[%s7527 + $0x10] sm:$0xf]
    %v7533 = vld [vmem:[%s7527 + $0x14] sm:$0xf]
    %v7534 = vld [vmem:[%s7527 + $0x18] sm:$0xf]
    %v7535 = vld [vmem:[%s7527 + $0x1c] sm:$0xf]
    %v7536 = vld [vmem:[%s7527 + $0x20] sm:$0xf]
    %v7537 = vld [vmem:[%s7527 + $0x24] sm:$0xf]
    %v7538 = vld [vmem:[%s7527 + $0x28] sm:$0xf]
    %v7539 = vld [vmem:[%s7527 + $0x2c] sm:$0xf]
    %v7540 = vld [vmem:[%s7527 + $0x30] sm:$0xf]
    %v7541 = vld [vmem:[%s7527 + $0x34] sm:$0xf]
    %v7542 = vld [vmem:[%s7527 + $0x38] sm:$0xf]
    %v7543 = vld [vmem:[%s7527 + $0x3c] sm:$0xf]
    %v7544 = vld [vmem:[%s7527 + $0x40] sm:$0xf]
    %v7545 = vld [vmem:[%s7527 + $0x44] sm:$0xf]
    %v7546 = vld [vmem:[%s7527 + $0x48] sm:$0xf]
    %v7547 = vld [vmem:[%s7527 + $0x4c] sm:$0xf]
    %v7548 = vld [vmem:[%s7527 + $0x50] sm:$0xf]
    %v7549 = vld [vmem:[%s7527 + $0x54] sm:$0xf]
    %v7550 = vld [vmem:[%s7527 + $0x58] sm:$0xf]
    %v7551 = vld [vmem:[%s7527 + $0x5c] sm:$0xf]
    %v7552 = vld [vmem:[%s7527 + $0x60] sm:$0xf]
    %v7553 = vld [vmem:[%s7527 + $0x64] sm:$0xf]
    %v7554 = vld [vmem:[%s7527 + $0x68] sm:$0xf]
    %v7555 = vld [vmem:[%s7527 + $0x6c] sm:$0xf]
    %v7556 = vld [vmem:[%s7527 + $0x70] sm:$0xf]
    %v7557 = vld [vmem:[%s7527 + $0x74] sm:$0xf]
    %v7558 = vld [vmem:[%s7527 + $0x78] sm:$0xf]
    %v7559 = vld [vmem:[%s7527 + $0x7c] sm:$0xf]
    %v7560 = vld [vmem:[%s7527 + $0x80] sm:$0xf]
    %v7561 = vld [vmem:[%s7527 + $0x84] sm:$0xf]
    %v7562 = vld [vmem:[%s7527 + $0x88] sm:$0xf]
    %v7563 = vld [vmem:[%s7527 + $0x8c] sm:$0xf]
    %v7564 = vld [vmem:[%s7527 + $0x90] sm:$0xf]
    %v7565 = vld [vmem:[%s7527 + $0x94] sm:$0xf]
    %v7566 = vld [vmem:[%s7527 + $0x98] sm:$0xf]
    %v7567 = vld [vmem:[%s7527 + $0x9c] sm:$0xf]
    %v7568 = vld [vmem:[%s7527 + $0xa0] sm:$0xf]
    %v7569 = vld [vmem:[%s7527 + $0xa4] sm:$0xf]
    %v7570 = vld [vmem:[%s7527 + $0xa8] sm:$0xf]
    %v7571 = vld [vmem:[%s7527 + $0xac] sm:$0xf]
    %v7572 = vld [vmem:[%s7527 + $0xb0] sm:$0xf]
    %v7573 = vld [vmem:[%s7527 + $0xb4] sm:$0xf]
    %v7574 = vld [vmem:[%s7527 + $0xb8] sm:$0xf]
    %v7575 = vld [vmem:[%s7527 + $0xbc] sm:$0xf]
    %v7576 = vld [vmem:[%s7527 + $0xc0] sm:$0xf]
    %v7577 = vld [vmem:[%s7527 + $0xc4] sm:$0xf]
    %v7578 = vld [vmem:[%s7527 + $0xc8] sm:$0xf]
    %v7579 = vld [vmem:[%s7527 + $0xcc] sm:$0xf]
    %v7580 = vld [vmem:[%s7527 + $0xd0] sm:$0xf]
    %v7581 = vld [vmem:[%s7527 + $0xd4] sm:$0xf]
    %v7582 = vld [vmem:[%s7527 + $0xd8] sm:$0xf]
    %v7583 = vld [vmem:[%s7527 + $0xdc] sm:$0xf]
    %v7584 = vld [vmem:[%s7527 + $0xe0] sm:$0xf]
    %v7585 = vld [vmem:[%s7527 + $0xe4] sm:$0xf]
    %v7586 = vld [vmem:[%s7527 + $0xe8] sm:$0xf]
    %v7587 = vld [vmem:[%s7527 + $0xec] sm:$0xf]
    %v7588 = vld [vmem:[%s7527 + $0xf0] sm:$0xf]
    %v7589 = vld [vmem:[%s7527 + $0xf4] sm:$0xf]
    %v7590 = vld [vmem:[%s7527 + $0xf8] sm:$0xf]
    %v7591 = vld [vmem:[%s7527 + $0xfc] sm:$0xf]
    %s7592 = scalar_lea.vmem %s16, 1
    %v7593 = vld [vmem:[%s7592] sm:$0x1]
    %v7595 = vperm.slane %v7593, 0
    %v7661 = vunpack.c.l.b16 %v7528
    %v7662 = vunpack.c.l.b16 %v7529
    %v7663 = vunpack.c.l.b16 %v7530
    %v7664 = vunpack.c.l.b16 %v7531
    %v7665 = vunpack.c.l.b16 %v7532
    %v7666 = vunpack.c.l.b16 %v7533
    %v7667 = vunpack.c.l.b16 %v7534
    %v7668 = vunpack.c.l.b16 %v7535
    %v7669 = vunpack.c.l.b16 %v7536
    %v7670 = vunpack.c.l.b16 %v7537
    %v7671 = vunpack.c.l.b16 %v7538
    %v7672 = vunpack.c.l.b16 %v7539
    %v7673 = vunpack.c.l.b16 %v7540
    %v7674 = vunpack.c.l.b16 %v7541
    %v7675 = vunpack.c.l.b16 %v7542
    %v7676 = vunpack.c.l.b16 %v7543
    %v7677 = vunpack.c.l.b16 %v7544
    %v7678 = vunpack.c.l.b16 %v7545
    %v7679 = vunpack.c.l.b16 %v7546
    %v7680 = vunpack.c.l.b16 %v7547
    %v7681 = vunpack.c.l.b16 %v7548
    %v7682 = vunpack.c.l.b16 %v7549
    %v7683 = vunpack.c.l.b16 %v7550
    %v7684 = vunpack.c.l.b16 %v7551
    %v7685 = vunpack.c.l.b16 %v7552
    %v7686 = vunpack.c.l.b16 %v7553
    %v7687 = vunpack.c.l.b16 %v7554
    %v7688 = vunpack.c.l.b16 %v7555
    %v7689 = vunpack.c.l.b16 %v7556
    %v7690 = vunpack.c.l.b16 %v7557
    %v7691 = vunpack.c.l.b16 %v7558
    %v7692 = vunpack.c.l.b16 %v7559
    %v7693 = vunpack.c.l.b16 %v7560
    %v7694 = vunpack.c.l.b16 %v7561
    %v7695 = vunpack.c.l.b16 %v7562
    %v7696 = vunpack.c.l.b16 %v7563
    %v7697 = vunpack.c.l.b16 %v7564
    %v7698 = vunpack.c.l.b16 %v7565
    %v7699 = vunpack.c.l.b16 %v7566
    %v7700 = vunpack.c.l.b16 %v7567
    %v7701 = vunpack.c.l.b16 %v7568
    %v7702 = vunpack.c.l.b16 %v7569
    %v7703 = vunpack.c.l.b16 %v7570
    %v7704 = vunpack.c.l.b16 %v7571
    %v7705 = vunpack.c.l.b16 %v7572
    %v7706 = vunpack.c.l.b16 %v7573
    %v7707 = vunpack.c.l.b16 %v7574
    %v7708 = vunpack.c.l.b16 %v7575
    %v7709 = vunpack.c.l.b16 %v7576
    %v7710 = vunpack.c.l.b16 %v7577
    %v7711 = vunpack.c.l.b16 %v7578
    %v7712 = vunpack.c.l.b16 %v7579
    %v7713 = vunpack.c.l.b16 %v7580
    %v7714 = vunpack.c.l.b16 %v7581
    %v7715 = vunpack.c.l.b16 %v7582
    %v7716 = vunpack.c.l.b16 %v7583
    %v7717 = vunpack.c.l.b16 %v7584
    %v7718 = vunpack.c.l.b16 %v7585
    %v7719 = vunpack.c.l.b16 %v7586
    %v7720 = vunpack.c.l.b16 %v7587
    %v7721 = vunpack.c.l.b16 %v7588
    %v7722 = vunpack.c.l.b16 %v7589
    %v7723 = vunpack.c.l.b16 %v7590
    %v7724 = vunpack.c.l.b16 %v7591
    %v7725 = vpack.c.b16 %v7662, %v7661
    %v7726 = vpack.c.b16 %v7664, %v7663
    %v7727 = vpack.c.b16 %v7666, %v7665
    %v7728 = vpack.c.b16 %v7668, %v7667
    %v7729 = vpack.c.b16 %v7670, %v7669
    %v7730 = vpack.c.b16 %v7672, %v7671
    %v7731 = vpack.c.b16 %v7674, %v7673
    %v7732 = vpack.c.b16 %v7676, %v7675
    %v7733 = vpack.c.b16 %v7678, %v7677
    %v7734 = vpack.c.b16 %v7680, %v7679
    %v7735 = vpack.c.b16 %v7682, %v7681
    %v7736 = vpack.c.b16 %v7684, %v7683
    %v7737 = vpack.c.b16 %v7686, %v7685
    %v7738 = vpack.c.b16 %v7688, %v7687
    %v7739 = vpack.c.b16 %v7690, %v7689
    %v7740 = vpack.c.b16 %v7692, %v7691
    %v7741 = vpack.c.b16 %v7694, %v7693
    %v7742 = vpack.c.b16 %v7696, %v7695
    %v7743 = vpack.c.b16 %v7698, %v7697
    %v7744 = vpack.c.b16 %v7700, %v7699
    %v7745 = vpack.c.b16 %v7702, %v7701
    %v7746 = vpack.c.b16 %v7704, %v7703
    %v7747 = vpack.c.b16 %v7706, %v7705
    %v7748 = vpack.c.b16 %v7708, %v7707
    %v7749 = vpack.c.b16 %v7710, %v7709
    %v7750 = vpack.c.b16 %v7712, %v7711
    %v7751 = vpack.c.b16 %v7714, %v7713
    %v7752 = vpack.c.b16 %v7716, %v7715
    %v7753 = vpack.c.b16 %v7718, %v7717
    %v7754 = vpack.c.b16 %v7720, %v7719
    %v7755 = vpack.c.b16 %v7722, %v7721
    %v7756 = vpack.c.b16 %v7724, %v7723
    %7789 = vmatpush.bf16.msra.mxu0 %v7732
    %7790 = vmatpush.bf16.msra.mxu0 %v7731
    %7791 = vmatpush.bf16.msra.mxu0 %v7730
    %7792 = vmatpush.bf16.msra.mxu0 %v7729
    %7793 = vmatpush.bf16.msra.mxu0 %v7728
    %7794 = vmatpush.bf16.msra.mxu0 %v7727
    %7795 = vmatpush.bf16.msra.mxu0 %v7726
    %7796 = vmatpush.bf16.msra.mxu0 %v7725
    %7797 = vmatmul.bf16.gmra.mxu0 %v7511
    %v7798 = vpop.f32.mrf.mxu0
    %v7799 = vadd.f32 %v7595, %v7798
    %v7800 = vpop.f32.mrf.mxu0
    %v7801 = vadd.f32 %v7595, %v7800
    %7802 = vmatmul.bf16.gmra.mxu0 %v7515
    %v7803 = vpop.f32.mrf.mxu0
    %v7804 = vadd.f32 %v7595, %v7803
    %v7805 = vpop.f32.mrf.mxu0
    %v7806 = vadd.f32 %v7595, %v7805
    %7807 = vmatmul.bf16.gmra.mxu0 %v7519
    %v7808 = vpop.f32.mrf.mxu0
    %v7809 = vadd.f32 %v7595, %v7808
    %v7810 = vpop.f32.mrf.mxu0
    %v7811 = vadd.f32 %v7595, %v7810
    %7812 = vmatmul.bf16.gmra.mxu0 %v7523
    %v7813 = vpop.f32.mrf.mxu0
    %v7814 = vadd.f32 %v7595, %v7813
    %v7815 = vpop.f32.mrf.mxu0
    %v7816 = vadd.f32 %v7595, %v7815
    %7817 = vdwg.mxu0
    %7818 = vmatpush.bf16.msra.mxu0 %v7740
    %7819 = vmatpush.bf16.msra.mxu0 %v7739
    %7820 = vmatpush.bf16.msra.mxu0 %v7738
    %7821 = vmatpush.bf16.msra.mxu0 %v7737
    %7822 = vmatpush.bf16.msra.mxu0 %v7736
    %7823 = vmatpush.bf16.msra.mxu0 %v7735
    %7824 = vmatpush.bf16.msra.mxu0 %v7734
    %7825 = vmatpush.bf16.msra.mxu0 %v7733
    %7826 = vmatmul.bf16.gmra.mxu0 %v7512
    %v7827 = vpop.f32.mrf.mxu0
    %v7828 = vadd.f32 %v7799, %v7827
    %v7829 = vpop.f32.mrf.mxu0
    %v7830 = vadd.f32 %v7801, %v7829
    %7831 = vmatmul.bf16.gmra.mxu0 %v7516
    %v7832 = vpop.f32.mrf.mxu0
    %v7833 = vadd.f32 %v7804, %v7832
    %v7834 = vpop.f32.mrf.mxu0
    %v7835 = vadd.f32 %v7806, %v7834
    %7836 = vmatmul.bf16.gmra.mxu0 %v7520
    %v7837 = vpop.f32.mrf.mxu0
    %v7838 = vadd.f32 %v7809, %v7837
    %v7839 = vpop.f32.mrf.mxu0
    %v7840 = vadd.f32 %v7811, %v7839
    %7841 = vmatmul.bf16.gmra.mxu0 %v7524
    %v7842 = vpop.f32.mrf.mxu0
    %v7843 = vadd.f32 %v7814, %v7842
    %v7844 = vpop.f32.mrf.mxu0
    %v7845 = vadd.f32 %v7816, %v7844
    %7846 = vdwg.mxu0
    %7847 = vmatpush.bf16.msra.mxu0 %v7748
    %7848 = vmatpush.bf16.msra.mxu0 %v7747
    %7849 = vmatpush.bf16.msra.mxu0 %v7746
    %7850 = vmatpush.bf16.msra.mxu0 %v7745
    %7851 = vmatpush.bf16.msra.mxu0 %v7744
    %7852 = vmatpush.bf16.msra.mxu0 %v7743
    %7853 = vmatpush.bf16.msra.mxu0 %v7742
    %7854 = vmatpush.bf16.msra.mxu0 %v7741
    %7855 = vmatmul.bf16.gmra.mxu0 %v7513
    %v7856 = vpop.f32.mrf.mxu0
    %v7857 = vadd.f32 %v7828, %v7856
    %v7858 = vpop.f32.mrf.mxu0
    %v7859 = vadd.f32 %v7830, %v7858
    %7860 = vmatmul.bf16.gmra.mxu0 %v7517
    %v7861 = vpop.f32.mrf.mxu0
    %v7862 = vadd.f32 %v7833, %v7861
    %v7863 = vpop.f32.mrf.mxu0
    %v7864 = vadd.f32 %v7835, %v7863
    %7865 = vmatmul.bf16.gmra.mxu0 %v7521
    %v7866 = vpop.f32.mrf.mxu0
    %v7867 = vadd.f32 %v7838, %v7866
    %v7868 = vpop.f32.mrf.mxu0
    %v7869 = vadd.f32 %v7840, %v7868
    %7870 = vmatmul.bf16.gmra.mxu0 %v7525
    %v7871 = vpop.f32.mrf.mxu0
    %v7872 = vadd.f32 %v7843, %v7871
    %v7873 = vpop.f32.mrf.mxu0
    %v7874 = vadd.f32 %v7845, %v7873
    %7875 = vdwg.mxu0
    %7876 = vmatpush.bf16.msra.mxu0 %v7756
    %7877 = vmatpush.bf16.msra.mxu0 %v7755
    %7878 = vmatpush.bf16.msra.mxu0 %v7754
    %7879 = vmatpush.bf16.msra.mxu0 %v7753
    %7880 = vmatpush.bf16.msra.mxu0 %v7752
    %7881 = vmatpush.bf16.msra.mxu0 %v7751
    %7882 = vmatpush.bf16.msra.mxu0 %v7750
    %7883 = vmatpush.bf16.msra.mxu0 %v7749
    %7884 = vmatmul.bf16.gmra.mxu0 %v7514
    %v7885 = vpop.f32.mrf.mxu0
    %v7886 = vadd.f32 %v7857, %v7885
    %v7887 = vpop.f32.mrf.mxu0
    %v7888 = vadd.f32 %v7859, %v7887
    %7889 = vmatmul.bf16.gmra.mxu0 %v7518
    %v7890 = vpop.f32.mrf.mxu0
    %v7891 = vadd.f32 %v7862, %v7890
    %v7892 = vpop.f32.mrf.mxu0
    %v7893 = vadd.f32 %v7864, %v7892
    %7894 = vmatmul.bf16.gmra.mxu0 %v7522
    %v7895 = vpop.f32.mrf.mxu0
    %v7896 = vadd.f32 %v7867, %v7895
    %v7897 = vpop.f32.mrf.mxu0
    %v7898 = vadd.f32 %v7869, %v7897
    %7899 = vmatmul.bf16.gmra.mxu0 %v7526
    %v7900 = vpop.f32.mrf.mxu0
    %v7901 = vadd.f32 %v7872, %v7900
    %v7902 = vpop.f32.mrf.mxu0
    %v7903 = vadd.f32 %v7874, %v7902
    %7904 = vdwg.mxu0
    %v7905 = vadd.f32 %v6891, %v7886
    %v7906 = vadd.f32 %v6892, %v7888
    %v7907 = vadd.f32 %v6893, %v7891
    %v7908 = vadd.f32 %v6894, %v7893
    %v7909 = vadd.f32 %v6895, %v7896
    %v7910 = vadd.f32 %v6896, %v7898
    %v7911 = vadd.f32 %v6897, %v7901
    %v7912 = vadd.f32 %v6898, %v7903
    %s7913 = scalar_lea.vmem %s17, 1
    %v7914 = vld [vmem:[%s7913] sm:$0x1]
    %s7915 = scalar_lea.vmem %s18, 1
    %v7916 = vld [vmem:[%s7915] sm:$0x1]
    %7917 = vadd.xlane.f32.xlu0 %v7905
    %v7918 = vpop.xlane.xlu0 %7917
    %7919 = vadd.xlane.f32.xlu0 %v7906
    %v7920 = vpop.xlane.xlu0 %7919
    %7921 = vadd.xlane.f32.xlu0 %v7907
    %v7922 = vpop.xlane.xlu0 %7921
    %7923 = vadd.xlane.f32.xlu0 %v7908
    %v7924 = vpop.xlane.xlu0 %7923
    %7925 = vadd.xlane.f32.xlu0 %v7909
    %v7926 = vpop.xlane.xlu0 %7925
    %7927 = vadd.xlane.f32.xlu0 %v7910
    %v7928 = vpop.xlane.xlu0 %7927
    %7929 = vadd.xlane.f32.xlu0 %v7911
    %v7930 = vpop.xlane.xlu0 %7929
    %7931 = vadd.xlane.f32.xlu0 %v7912
    %v7932 = vpop.xlane.xlu0 %7931
    %v7933 = vmul.f32 %v7918, %v344
    %v7934 = vmul.f32 %v7920, %v344
    %v7935 = vmul.f32 %v7922, %v344
    %v7936 = vmul.f32 %v7924, %v344
    %v7937 = vmul.f32 %v7926, %v344
    %v7938 = vmul.f32 %v7928, %v344
    %v7939 = vmul.f32 %v7930, %v344
    %v7940 = vmul.f32 %v7932, %v344
    %v7941 = vsub.f32 %v7905, %v7933
    %v7942 = vsub.f32 %v7906, %v7934
    %v7943 = vsub.f32 %v7907, %v7935
    %v7944 = vsub.f32 %v7908, %v7936
    %v7945 = vsub.f32 %v7909, %v7937
    %v7946 = vsub.f32 %v7910, %v7938
    %v7947 = vsub.f32 %v7911, %v7939
    %v7948 = vsub.f32 %v7912, %v7940
    %v7949 = vmul.f32 %v7941, %v7941
    %v7950 = vmul.f32 %v7942, %v7942
    %v7951 = vmul.f32 %v7943, %v7943
    %v7952 = vmul.f32 %v7944, %v7944
    %v7953 = vmul.f32 %v7945, %v7945
    %v7954 = vmul.f32 %v7946, %v7946
    %v7955 = vmul.f32 %v7947, %v7947
    %v7956 = vmul.f32 %v7948, %v7948
    %7957 = vadd.xlane.f32.xlu0 %v7949
    %v7958 = vpop.xlane.xlu0 %7957
    %7959 = vadd.xlane.f32.xlu0 %v7950
    %v7960 = vpop.xlane.xlu0 %7959
    %7961 = vadd.xlane.f32.xlu0 %v7951
    %v7962 = vpop.xlane.xlu0 %7961
    %7963 = vadd.xlane.f32.xlu0 %v7952
    %v7964 = vpop.xlane.xlu0 %7963
    %7965 = vadd.xlane.f32.xlu0 %v7953
    %v7966 = vpop.xlane.xlu0 %7965
    %7967 = vadd.xlane.f32.xlu0 %v7954
    %v7968 = vpop.xlane.xlu0 %7967
    %7969 = vadd.xlane.f32.xlu0 %v7955
    %v7970 = vpop.xlane.xlu0 %7969
    %7971 = vadd.xlane.f32.xlu0 %v7956
    %v7972 = vpop.xlane.xlu0 %7971
    %v7973 = vmul.f32 %v7958, %v344
    %v7974 = vmul.f32 %v7960, %v344
    %v7975 = vmul.f32 %v7962, %v344
    %v7976 = vmul.f32 %v7964, %v344
    %v7977 = vmul.f32 %v7966, %v344
    %v7978 = vmul.f32 %v7968, %v344
    %v7979 = vmul.f32 %v7970, %v344
    %v7980 = vmul.f32 %v7972, %v344
    %v7981 = vadd.f32 %v7973, 1e-12
    %v7982 = vadd.f32 %v7974, 1e-12
    %v7983 = vadd.f32 %v7975, 1e-12
    %v7984 = vadd.f32 %v7976, 1e-12
    %v7985 = vadd.f32 %v7977, 1e-12
    %v7986 = vadd.f32 %v7978, 1e-12
    %v7987 = vadd.f32 %v7979, 1e-12
    %v7988 = vadd.f32 %v7980, 1e-12
    %v7989 = vrsqrt.pop %v7981
    %v7990 = vmul.f32 %v7989, %v7981
    %v7991 = vmul.f32 %v7990, %v7989
    %v7992 = vmul.f32 0.5, %v7991
    %v7993 = vsub.f32 1.5, %v7992
    %v7994 = vmul.f32 %v7989, %v7993
    %vm7995 = vweird.f32 %v7981
    %vm7996 = vweird.f32 %v7989
    %vm7997 = vmor %vm7995, %vm7996
    %v7998 = vsel %vm7997, %v7989, %v7994
    %v7999 = vrsqrt.pop %v7982
    %v8000 = vmul.f32 %v7999, %v7982
    %v8001 = vmul.f32 %v8000, %v7999
    %v8002 = vmul.f32 0.5, %v8001
    %v8003 = vsub.f32 1.5, %v8002
    %v8004 = vmul.f32 %v7999, %v8003
    %vm8005 = vweird.f32 %v7982
    %vm8006 = vweird.f32 %v7999
    %vm8007 = vmor %vm8005, %vm8006
    %v8008 = vsel %vm8007, %v7999, %v8004
    %v8009 = vrsqrt.pop %v7983
    %v8010 = vmul.f32 %v8009, %v7983
    %v8011 = vmul.f32 %v8010, %v8009
    %v8012 = vmul.f32 0.5, %v8011
    %v8013 = vsub.f32 1.5, %v8012
    %v8014 = vmul.f32 %v8009, %v8013
    %vm8015 = vweird.f32 %v7983
    %vm8016 = vweird.f32 %v8009
    %vm8017 = vmor %vm8015, %vm8016
    %v8018 = vsel %vm8017, %v8009, %v8014
    %v8019 = vrsqrt.pop %v7984
    %v8020 = vmul.f32 %v8019, %v7984
    %v8021 = vmul.f32 %v8020, %v8019
    %v8022 = vmul.f32 0.5, %v8021
    %v8023 = vsub.f32 1.5, %v8022
    %v8024 = vmul.f32 %v8019, %v8023
    %vm8025 = vweird.f32 %v7984
    %vm8026 = vweird.f32 %v8019
    %vm8027 = vmor %vm8025, %vm8026
    %v8028 = vsel %vm8027, %v8019, %v8024
    %v8029 = vrsqrt.pop %v7985
    %v8030 = vmul.f32 %v8029, %v7985
    %v8031 = vmul.f32 %v8030, %v8029
    %v8032 = vmul.f32 0.5, %v8031
    %v8033 = vsub.f32 1.5, %v8032
    %v8034 = vmul.f32 %v8029, %v8033
    %vm8035 = vweird.f32 %v7985
    %vm8036 = vweird.f32 %v8029
    %vm8037 = vmor %vm8035, %vm8036
    %v8038 = vsel %vm8037, %v8029, %v8034
    %v8039 = vrsqrt.pop %v7986
    %v8040 = vmul.f32 %v8039, %v7986
    %v8041 = vmul.f32 %v8040, %v8039
    %v8042 = vmul.f32 0.5, %v8041
    %v8043 = vsub.f32 1.5, %v8042
    %v8044 = vmul.f32 %v8039, %v8043
    %vm8045 = vweird.f32 %v7986
    %vm8046 = vweird.f32 %v8039
    %vm8047 = vmor %vm8045, %vm8046
    %v8048 = vsel %vm8047, %v8039, %v8044
    %v8049 = vrsqrt.pop %v7987
    %v8050 = vmul.f32 %v8049, %v7987
    %v8051 = vmul.f32 %v8050, %v8049
    %v8052 = vmul.f32 0.5, %v8051
    %v8053 = vsub.f32 1.5, %v8052
    %v8054 = vmul.f32 %v8049, %v8053
    %vm8055 = vweird.f32 %v7987
    %vm8056 = vweird.f32 %v8049
    %vm8057 = vmor %vm8055, %vm8056
    %v8058 = vsel %vm8057, %v8049, %v8054
    %v8059 = vrsqrt.pop %v7988
    %v8060 = vmul.f32 %v8059, %v7988
    %v8061 = vmul.f32 %v8060, %v8059
    %v8062 = vmul.f32 0.5, %v8061
    %v8063 = vsub.f32 1.5, %v8062
    %v8064 = vmul.f32 %v8059, %v8063
    %vm8065 = vweird.f32 %v7988
    %vm8066 = vweird.f32 %v8059
    %vm8067 = vmor %vm8065, %vm8066
    %v8068 = vsel %vm8067, %v8059, %v8064
    %v8069 = vmul.f32 %v7941, %v7998
    %v8070 = vmul.f32 %v7942, %v8008
    %v8071 = vmul.f32 %v7943, %v8018
    %v8072 = vmul.f32 %v7944, %v8028
    %v8073 = vmul.f32 %v7945, %v8038
    %v8074 = vmul.f32 %v7946, %v8048
    %v8075 = vmul.f32 %v7947, %v8058
    %v8076 = vmul.f32 %v7948, %v8068
    %v8078 = vperm.slane %v7914, 0
    %v8080 = vmul.f32 %v8069, %v8078
    %v8081 = vmul.f32 %v8070, %v8078
    %v8082 = vmul.f32 %v8071, %v8078
    %v8083 = vmul.f32 %v8072, %v8078
    %v8084 = vmul.f32 %v8073, %v8078
    %v8085 = vmul.f32 %v8074, %v8078
    %v8086 = vmul.f32 %v8075, %v8078
    %v8087 = vmul.f32 %v8076, %v8078
    %v8089 = vperm.slane %v7916, 0
    %v8091 = vadd.f32 %v8080, %v8089
    %v8092 = vadd.f32 %v8081, %v8089
    %v8093 = vadd.f32 %v8082, %v8089
    %v8094 = vadd.f32 %v8083, %v8089
    %v8095 = vadd.f32 %v8084, %v8089
    %v8096 = vadd.f32 %v8085, %v8089
    %v8097 = vadd.f32 %v8086, %v8089
    %v8098 = vadd.f32 %v8087, %v8089
    %v8099 = vpack.c.bf16 %v8091, %v8091
    %v8100 = vpack.c.bf16 %v8092, %v8092
    %v8101 = vpack.c.bf16 %v8093, %v8093
    %v8102 = vpack.c.bf16 %v8094, %v8094
    %v8103 = vpack.c.bf16 %v8095, %v8095
    %v8104 = vpack.c.bf16 %v8096, %v8096
    %v8105 = vpack.c.bf16 %v8097, %v8097
    %v8106 = vpack.c.bf16 %v8098, %v8098
    %v8107 = vld [vmem:[#allocation12] sm:$0xf]
    %v8108 = vld [vmem:[#allocation12 + $0x4] sm:$0xf]
    %v8109 = vld [vmem:[#allocation12 + $0x8] sm:$0xf]
    %v8110 = vld [vmem:[#allocation12 + $0xc] sm:$0xf]
    %v8111 = vld [vmem:[#allocation12 + $0x10] sm:$0xf]
    %v8112 = vld [vmem:[#allocation12 + $0x14] sm:$0xf]
    %v8113 = vld [vmem:[#allocation12 + $0x18] sm:$0xf]
    %v8114 = vld [vmem:[#allocation12 + $0x1c] sm:$0xf]
    %v8115 = vld [vmem:[#allocation12 + $0x20] sm:$0xf]
    %v8116 = vld [vmem:[#allocation12 + $0x24] sm:$0xf]
    %v8117 = vld [vmem:[#allocation12 + $0x28] sm:$0xf]
    %v8118 = vld [vmem:[#allocation12 + $0x2c] sm:$0xf]
    %v8119 = vld [vmem:[#allocation12 + $0x30] sm:$0xf]
    %v8120 = vld [vmem:[#allocation12 + $0x34] sm:$0xf]
    %v8121 = vld [vmem:[#allocation12 + $0x38] sm:$0xf]
    %v8122 = vld [vmem:[#allocation12 + $0x3c] sm:$0xf]
    %v8123 = vld [vmem:[%s20] sm:$0x1]
    %v8125 = vperm.slane %v8123, 0
    %v8135 = vunpack.c.l.b16 %v8099
    %v8136 = vunpack.c.l.b16 %v8100
    %v8137 = vunpack.c.l.b16 %v8101
    %v8138 = vunpack.c.l.b16 %v8102
    %v8139 = vunpack.c.l.b16 %v8103
    %v8140 = vunpack.c.l.b16 %v8104
    %v8141 = vunpack.c.l.b16 %v8105
    %v8142 = vunpack.c.l.b16 %v8106
    %v8143 = vrot.slane %v8136, 7
    %vm8144 = vcmask 1041409
    %v8145 = vsel %vm8144, %v8143, %v8135
    %v8146 = vrot.slane %v8137, 6
    %vm8147 = vcmask 1042434
    %v8148 = vsel %vm8147, %v8146, %v8145
    %v8149 = vrot.slane %v8138, 5
    %vm8150 = vcmask 1043459
    %v8151 = vsel %vm8150, %v8149, %v8148
    %v8152 = vrot.slane %v8139, 4
    %vm8153 = vcmask 1044484
    %v8154 = vsel %vm8153, %v8152, %v8151
    %v8155 = vrot.slane %v8140, 3
    %vm8156 = vcmask 1045509
    %v8157 = vsel %vm8156, %v8155, %v8154
    %v8158 = vrot.slane %v8141, 2
    %vm8159 = vcmask 1046534
    %v8160 = vsel %vm8159, %v8158, %v8157
    %v8161 = vrot.slane %v8142, 1
    %vm8162 = vcmask 1047559
    %v8163 = vsel %vm8162, %v8161, %v8160
    %v8164 = vpack.c.b16 %v8163, %v8163
    %v8182 = vunpack.c.l.b16 %v8107
    %v8183 = vunpack.c.l.b16 %v8108
    %v8184 = vunpack.c.l.b16 %v8109
    %v8185 = vunpack.c.l.b16 %v8110
    %v8186 = vunpack.c.l.b16 %v8111
    %v8187 = vunpack.c.l.b16 %v8112
    %v8188 = vunpack.c.l.b16 %v8113
    %v8189 = vunpack.c.l.b16 %v8114
    %v8190 = vunpack.c.l.b16 %v8115
    %v8191 = vunpack.c.l.b16 %v8116
    %v8192 = vunpack.c.l.b16 %v8117
    %v8193 = vunpack.c.l.b16 %v8118
    %v8194 = vunpack.c.l.b16 %v8119
    %v8195 = vunpack.c.l.b16 %v8120
    %v8196 = vunpack.c.l.b16 %v8121
    %v8197 = vunpack.c.l.b16 %v8122
    %v8198 = vpack.c.b16 %v8183, %v8182
    %v8199 = vpack.c.b16 %v8185, %v8184
    %v8200 = vpack.c.b16 %v8187, %v8186
    %v8201 = vpack.c.b16 %v8189, %v8188
    %v8202 = vpack.c.b16 %v8191, %v8190
    %v8203 = vpack.c.b16 %v8193, %v8192
    %v8204 = vpack.c.b16 %v8195, %v8194
    %v8205 = vpack.c.b16 %v8197, %v8196
    %8214 = vmatpush.bf16.msra.mxu0 %v8205
    %8215 = vmatpush.bf16.msra.mxu0 %v8204
    %8216 = vmatpush.bf16.msra.mxu0 %v8203
    %8217 = vmatpush.bf16.msra.mxu0 %v8202
    %8218 = vmatpush.bf16.msra.mxu0 %v8201
    %8219 = vmatpush.bf16.msra.mxu0 %v8200
    %8220 = vmatpush.bf16.msra.mxu0 %v8199
    %8221 = vmatpush.bf16.msra.mxu0 %v8198
    %8222 = vmatmul.bf16.gmra.mxu0 %v8164
    %v8223 = vpop.f32.mrf.mxu0
    %v8224 = vadd.f32 %v8125, %v8223
    %v8225 = vpop.f32.mrf.mxu0
    %8226 = vdwg.mxu0
    %v8227 = vtanh.pop %v8224
    %v8228 = vld [vmem:[%s21] sm:$0x1]
    %v8230 = vperm.slane %v8228, 0
    %v8232 = vmul.f32 %v8227, %v8230
    %8233 = vadd.xlane.f32.xlu0 %v8232
    %v8234 = vpop.xlane.xlu0 %8233
    %v8235 = vld [vmem:[%s2] sm:$0xff]
    %v8236 = vld [vmem:[#allocation2] sm:$0x1]
    %v8238 = vperm.slane %v8236, 0
    %v8240 = vmul.f32 %v8235, %v8238
    %v8241 = vadd.f32 %v8234, %v8240
    %v8242 = vld [vmem:[#allocation3] sm:$0x1]
    %v8244 = vperm.slane %v8242, 0
    %v8246 = vadd.f32 %v8241, %v8244
    %vm8247 = vcmask 7168
    %8248 = vst.msk [vmem:[%s24] sm:$0xff] %vm8247, %v8246
    // Predicated region
    $region122: #{ranker_forward.1} parent=1 // pred_check
      _
    $region123: #{ranker_forward.1} parent=1 // pred_check_branch
      %8250 = sbr.rel (0) target = $region125
    $region124: #{ranker_forward.1} parent=1 // pred_region
      _
    $region125: #{ranker_forward.1} parent=1 // pred_fallthru
      _
    // Predicated region
    $region126: #{ranker_forward.1} parent=1 // pred_check
      _
    $region127: #{ranker_forward.1} parent=1 // pred_check_branch
      %8252 = sbr.rel (0) target = $region129
    $region128: #{ranker_forward.1} parent=1 // pred_region
      _
    $region129: #{ranker_forward.1} parent=1 // pred_fallthru
      _
    %8253 = vsyncpa [#allocation5], 1
    %8254 = vsyncpa [#allocation7], 1
    %8255 = vsyncpa [#allocation10], 1
    %8256 = vsyncpa [#allocation13], 1

</llo_original>
